<compile_context>
chip_gen: v7x
topology: tpu7x:2x2x1
jax: 0.10.0
libtpu: 0.0.40
codegen_flags: <defaults>
</compile_context>

<pallas_src>
import jax
import jax.numpy as jnp
from jax.experimental import pallas as pl
from jax.experimental.pallas import tpu as pltpu


_VMEM_LIMIT = 48 * 1024 * 1024      # < 64 MiB physical VMEM per TC on v7x
_BN_EPS = 1e-5                      # nn.BatchNorm2d default
_LRELU_SLOPE = 0.01                 # nn.LeakyReLU default


# --------------------------------------------------------------------------
# small tiling helper (only the plain matmul path tiles M)
# --------------------------------------------------------------------------

def _tile_m(m, cap=1024):
    """Largest divisor of m that is a multiple of 8 and <= min(cap, m//2),
    so the parallel M axis gets >=2 grid steps (v7x megacore) when m is big."""
    if m <= 16 or m % 8 != 0:
        return m
    t = (min(cap, max(8, m // 2)) // 8) * 8
    while t >= 8:
        if m % t == 0:
            return t
        t -= 8
    return m


# --------------------------------------------------------------------------
# fused ConvTranspose(sub-pixel matmul) + BatchNorm(train) + LeakyReLU kernel
# --------------------------------------------------------------------------

def _make_convt_bn_lrelu_kernel(cout, inv_count):
    """Single-block kernel: r = a @ w (f32 acc); per-channel batch stats
    (columns are phase-major [ph0|ph1|ph2|ph3] x cout, folded across phases
    with XLU rolls); centered variance; y = gamma*(r-mean)*rsqrt(var+eps)+beta;
    LeakyReLU; bf16 store."""
    def kernel(a_ref, w_ref, g_ref, b_ref, o_ref):
        r = jnp.dot(a_ref[...], w_ref[...], preferred_element_type=jnp.float32)

        colsum = jnp.sum(r, axis=0, keepdims=True)              # (1, 4*cout)
        tot = colsum
        for k in (1, 2, 3):                                     # fold the 4 phases
            tot = tot + pltpu.roll(colsum, shift=k * cout, axis=1)
        mean = tot * inv_count                                  # per-channel, phase-broadcast

        d = r - mean
        colsq = jnp.sum(d * d, axis=0, keepdims=True)
        totsq = colsq
        for k in (1, 2, 3):
            totsq = totsq + pltpu.roll(colsq, shift=k * cout, axis=1)
        inv = jax.lax.rsqrt(totsq * inv_count + _BN_EPS)

        y = d * (g_ref[...] * inv) + b_ref[...]
        o_ref[...] = jnp.where(y >= 0.0, y, _LRELU_SLOPE * y).astype(o_ref.dtype)
    return kernel


def convt_matmul_bn_lrelu(patches, wsub, gamma4, beta4, cout):
    """(M, 4*Cin) @ (4*Cin, 4*Cout) with fused train-mode BN + LeakyReLU.
    Whole layer is one grid step (full batch needed for the BN statistics);
    working sets here are <~4 MiB so this fits VMEM on v5e/v6e/v7x."""
    M, K = patches.shape
    N = wsub.shape[1]
    inv_count = 1.0 / float(4 * M)           # BN count = N*H_out*W_out = 4*M
    return pl.pallas_call(
        _make_convt_bn_lrelu_kernel(cout, inv_count),
        out_shape=jax.ShapeDtypeStruct((M, N), jnp.bfloat16),
        grid=(1,),
        in_specs=[
            pl.BlockSpec((M, K), lambda i: (0, 0)),
            pl.BlockSpec((K, N), lambda i: (0, 0)),
            pl.BlockSpec((1, N), lambda i: (0, 0)),
            pl.BlockSpec((1, N), lambda i: (0, 0)),
        ],
        out_specs=pl.BlockSpec((M, N), lambda i: (0, 0)),
        compiler_params=pltpu.CompilerParams(
            dimension_semantics=("arbitrary",),
            vmem_limit_bytes=_VMEM_LIMIT,
        ),
    )(patches, wsub, gamma4, beta4)


# --------------------------------------------------------------------------
# plain matmul + bias kernel (decoder_input Linear, final Conv2d)
# --------------------------------------------------------------------------

def _matmul_bias_kernel(a_ref, b_ref, bias_ref, o_ref):
    r = jnp.dot(a_ref[...], b_ref[...], preferred_element_type=jnp.float32)
    o_ref[...] = (r + bias_ref[...]).astype(o_ref.dtype)


def matmul_bias(a, b, bias, out_dtype):
    """(M,K) @ (K,N) + bias.  Single K step; M tiled with a parallel grid so
    large-M layers (final conv) keep both v7x TensorCores busy."""
    M, K = a.shape
    N = b.shape[1]
    TM = _tile_m(M)
    gm = M // TM
    return pl.pallas_call(
        _matmul_bias_kernel,
        out_shape=jax.ShapeDtypeStruct((M, N), out_dtype),
        grid=(gm,),
        in_specs=[
            pl.BlockSpec((TM, K), lambda i: (i, 0)),
            pl.BlockSpec((K, N), lambda i: (0, 0)),
            pl.BlockSpec((1, N), lambda i: (0, 0)),
        ],
        out_specs=pl.BlockSpec((TM, N), lambda i: (i, 0)),
        compiler_params=pltpu.CompilerParams(
            dimension_semantics=("parallel",),
            vmem_limit_bytes=_VMEM_LIMIT,
        ),
    )(a, b, bias.reshape(1, N).astype(jnp.float32))


# --------------------------------------------------------------------------
# ConvTranspose2d(3, s=2, p=1, op=1) sub-pixel decomposition (XLA glue)
# --------------------------------------------------------------------------

def _subpixel_weight(wt):
    """Fold ConvTranspose2d weights (Cin, Cout, 3, 3) into a (4*Cin, 4*Cout)
    matrix: rows = 2x2 input taps [t00,t01,t10,t11], cols = 4 output phases
    [(even,even),(even,odd),(odd,even),(odd,odd)]."""
    cin, cout = wt.shape[0], wt.shape[1]
    wc = wt[:, :, ::-1, ::-1]                       # correlation form Wc[ci,co,kh,kw]
    z = jnp.zeros((cin, cout), wt.dtype)
    r_t00 = jnp.concatenate([wc[:, :, 1, 1], wc[:, :, 1, 0], wc[:, :, 0, 1], wc[:, :, 0, 0]], axis=1)
    r_t01 = jnp.concatenate([z,              wc[:, :, 1, 2], z,              wc[:, :, 0, 2]], axis=1)
    r_t10 = jnp.concatenate([z,              z,              wc[:, :, 2, 1], wc[:, :, 2, 0]], axis=1)
    r_t11 = jnp.concatenate([z,              z,              z,              wc[:, :, 2, 2]], axis=1)
    return jnp.concatenate([r_t00, r_t01, r_t10, r_t11], axis=0)


def _subpixel_patches(x):
    """2x2 taps of x (NHWC) with one zero row/col of padding at bottom/right."""
    n, h, w, c = x.shape
    xp = jnp.pad(x, ((0, 0), (0, 1), (0, 1), (0, 0)))
    taps = [xp[:, :h, :w, :], xp[:, :h, 1:, :], xp[:, 1:, :w, :], xp[:, 1:, 1:, :]]
    return jnp.concatenate(taps, axis=-1).reshape(n * h * w, 4 * c)


def conv_transpose_bn_lrelu(x, wt, gamma, beta):
    """ConvTranspose2d(k=3,s=2,p=1,op=1) + train-mode BatchNorm2d + LeakyReLU,
    all inside one Pallas call.  The ConvT bias is omitted: a per-channel
    constant before train-mode BN is exactly absorbed by the batch mean."""
    n, h, w, cin = x.shape
    cout = wt.shape[1]
    patches = _subpixel_patches(x)                                   # (M, 4*Cin) bf16
    wsub = _subpixel_weight(wt).astype(jnp.bfloat16)                 # (4*Cin, 4*Cout)
    gamma4 = jnp.tile(gamma, 4).reshape(1, 4 * cout).astype(jnp.float32)
    beta4 = jnp.tile(beta, 4).reshape(1, 4 * cout).astype(jnp.float32)

    y = convt_matmul_bn_lrelu(patches, wsub, gamma4, beta4, cout)    # (M, 4*Cout) bf16

    # pixel shuffle: interleave the 4 phases into the 2H x 2W output (NHWC)
    a = y.reshape(n, h, w, 2, 2, cout).transpose(0, 1, 3, 2, 4, 5)
    return a.reshape(n, 2 * h, 2 * w, cout)


# --------------------------------------------------------------------------
# final Conv2d(k=3, s=1, p=1) via im2col + lane-dense matmul
# --------------------------------------------------------------------------

def conv2d_3x3_p1(x, w, bias, out_dtype=jnp.float32):
    n, H, W, cin = x.shape
    cout = w.shape[0]
    xp = jnp.pad(x, ((0, 0), (1, 1), (1, 1), (0, 0)))
    cols = [xp[:, kh:kh + H, kw:kw + W, :] for kh in range(3) for kw in range(3)]
    patches = jnp.concatenate(cols, axis=-1).reshape(n * H * W, 9 * cin)  # bf16
    wmat = w.transpose(2, 3, 1, 0).reshape(9 * cin, cout).astype(jnp.bfloat16)

    # lane-dense output: pad the 3 output channels to 128 columns, slice after.
    npad = 128
    wmat_p = jnp.pad(wmat, ((0, 0), (0, npad - cout)))
    bias_p = jnp.pad(bias.astype(jnp.float32), (0, npad - cout))
    y = matmul_bias(patches, wmat_p, bias_p, out_dtype=out_dtype)    # (M, 128)
    return y[:, :cout].reshape(n, H, W, cout)


# --------------------------------------------------------------------------
# Decoder
# --------------------------------------------------------------------------

def init_params(key, latent_dim, hidden_dims):
    rev = list(hidden_dims)[::-1]
    assert rev[0] == 512, "decode() hard-codes view(-1, 512, 2, 2)"
    params = {}
    key, k1, k2 = jax.random.split(key, 3)
    params["lin_w"] = 0.05 * jax.random.normal(k1, (latent_dim, rev[0] * 4), jnp.float32)
    params["lin_b"] = 0.05 * jax.random.normal(k2, (rev[0] * 4,), jnp.float32)

    blocks = []
    for i in range(len(rev) - 1):
        cin, cout = rev[i], rev[i + 1]
        key, kw, kb = jax.random.split(key, 3)
        wt = 0.05 * jax.random.normal(kw, (cin, cout, 3, 3), jnp.float32)
        b = 0.05 * jax.random.normal(kb, (cout,), jnp.float32)   # unused: absorbed by train-mode BN
        g = jnp.ones((cout,), jnp.float32)
        bb = jnp.zeros((cout,), jnp.float32)
        blocks.append((wt, b, g, bb))
    params["blocks"] = tuple(blocks)

    c = rev[-1]
    key, kw, kb = jax.random.split(key, 3)
    params["final_ct"] = (
        0.05 * jax.random.normal(kw, (c, c, 3, 3), jnp.float32),
        0.05 * jax.random.normal(kb, (c,), jnp.float32),         # unused: absorbed by BN
        jnp.ones((c,), jnp.float32),
        jnp.zeros((c,), jnp.float32),
    )
    key, kw, kb = jax.random.split(key, 3)
    params["final_conv"] = (
        0.05 * jax.random.normal(kw, (3, c, 3, 3), jnp.float32),
        0.05 * jax.random.normal(kb, (3,), jnp.float32),
    )
    return params


def decoder_forward(params, z):
    b = z.shape[0]
    h = matmul_bias(z.astype(jnp.bfloat16),
                    params["lin_w"].astype(jnp.bfloat16),
                    params["lin_b"], out_dtype=jnp.bfloat16)         # (B, 512*4)
    # view(-1, 512, 2, 2) [NCHW] -> NHWC
    h = h.reshape(b, 512, 2, 2).transpose(0, 2, 3, 1)

    for (wt, _b_unused, g, bb) in params["blocks"]:
        h = conv_transpose_bn_lrelu(h, wt, g, bb)

    wt, _b_unused, g, bb = params["final_ct"]
    h = conv_transpose_bn_lrelu(h, wt, g, bb)

    w, bias = params["final_conv"]
    h = conv2d_3x3_p1(h, w, bias, out_dtype=jnp.float32)
    return h.transpose(0, 3, 1, 2)                                   # NCHW [B, 3, H, W]


# --------------------------------------------------------------------------
# pure-XLA reference of one ConvT+BN+LeakyReLU block (validates the sub-pixel
# tap/phase mapping and the "ConvT bias absorbed by train-mode BN" claim)
# --------------------------------------------------------------------------

def _ref_convt_bn_lrelu(x, wt, bias, gamma, beta):
    # transposed conv = conv over the 2x-dilated input with the flipped kernel,
    # padding (k-1-p, k-1-p+op) = (1, 2) per spatial side.
    wconv = jnp.transpose(wt, (2, 3, 0, 1))[::-1, ::-1, :, :]        # HWIO, flipped
    y = jax.lax.conv_general_dilated(
        x, wconv, window_strides=(1, 1), padding=((1, 2), (1, 2)),
        lhs_dilation=(2, 2), dimension_numbers=("NHWC", "HWIO", "NHWC"),
        precision=jax.lax.Precision.HIGHEST) + bias
    mean = jnp.mean(y, axis=(0, 1, 2), keepdims=True)
    var = jnp.mean((y - mean) ** 2, axis=(0, 1, 2), keepdims=True)
    yn = (y - mean) * jax.lax.rsqrt(var + _BN_EPS) * gamma + beta
    return jnp.where(yn >= 0.0, yn, _LRELU_SLOPE * yn)


if __name__ == "__main__":
    latent_dim = 32
    # hidden_dims[-1] must be 512 because decode() hard-codes view(-1, 512, 2, 2);
    # the rest is kept small so the example stays lightweight.
    hidden_dims = [32, 64, 128, 512]
    B = 2

    key = jax.random.PRNGKey(0)
    kp, kz, kv = jax.random.split(key, 3)
    params = init_params(kp, latent_dim, hidden_dims)
    z = jax.random.normal(kz, (B, latent_dim), jnp.float32)

    out = jax.jit(decoder_forward)(params, z)
    out = jax.block_until_ready(out)

    expected_hw = 2 * (2 ** len(hidden_dims))   # one 2x upsample per (block + final ConvT)
    assert out.shape == (B, 3, expected_hw, expected_hw), out.shape
    assert out.dtype == jnp.float32
    assert bool(jnp.all(jnp.isfinite(out)))

    # single-layer numerical validation of the fused ConvT+BN+LeakyReLU kernel
    cin_t, cout_t = 64, 32
    kx, kw_, kb_ = jax.random.split(kv, 3)
    x_t = jax.random.normal(kx, (2, 8, 8, cin_t), jnp.float32).astype(jnp.bfloat16)
    wt_t = (0.05 * jax.random.normal(kw_, (cin_t, cout_t, 3, 3), jnp.float32)
            ).astype(jnp.bfloat16).astype(jnp.float32)
    bias_t = 0.05 * jax.random.normal(kb_, (cout_t,), jnp.float32)
    g_t = jnp.ones((cout_t,), jnp.float32)
    b_t = jnp.zeros((cout_t,), jnp.float32)

    got = conv_transpose_bn_lrelu(x_t, wt_t, g_t, b_t).astype(jnp.float32)
    want = _ref_convt_bn_lrelu(x_t.astype(jnp.float32), wt_t, bias_t, g_t, b_t)
    err = float(jnp.max(jnp.abs(jax.block_until_ready(got) - want)))
    assert err < 0.1, f"fused ConvT+BN+LeakyReLU mismatch vs lax reference: {err}"

    print("KERNEL_OK")
</pallas_src>

<mosaic_0001>
module attributes {stable_mosaic.version = 11 : i64} {
  func.func @_matmul_bias_kernel(%arg0: i32, %arg1: memref<2x32xbf16, #tpu.memory_space<vmem>>, %arg2: memref<32x2048xbf16, #tpu.memory_space<vmem>>, %arg3: memref<1x2048xf32, #tpu.memory_space<vmem>>, %arg4: memref<2x2048xbf16, #tpu.memory_space<vmem>>) attributes {dimension_semantics = [#tpu.dimension_semantics<parallel>], iteration_bounds = array<i64: 1>, scalar_prefetch = 0 : i64, scratch_operands = 0 : i64, tpu.core_type = #tpu.core_type<tc>, window_params = [{transform_indices = @transform_0, window_bounds = array<i64: 2, 32>}, {pipeline_mode = #tpu.pipeline_mode<synchronous>, transform_indices = @transform_1, window_bounds = array<i64: 32, 2048>}, {pipeline_mode = #tpu.pipeline_mode<synchronous>, transform_indices = @transform_2, window_bounds = array<i64: 1, 2048>}, {transform_indices = @transform_3, window_bounds = array<i64: 2, 2048>}]} {
    %c0 = arith.constant 0 : index
    %c0_0 = arith.constant 0 : index
    %0 = vector.load %arg1[%c0, %c0_0] : memref<2x32xbf16, #tpu.memory_space<vmem>>, vector<2x32xbf16>
    %c0_1 = arith.constant 0 : index
    %c0_2 = arith.constant 0 : index
    %1 = vector.load %arg2[%c0_1, %c0_2] : memref<32x2048xbf16, #tpu.memory_space<vmem>>, vector<32x2048xbf16>
    %cst = arith.constant dense<0.000000e+00> : vector<2x2048xf32>
    %2 = tpu.matmul %0, %1, %cst {dimension_numbers = #tpu.dot_dimension_numbers<[1], [0], [0], [1], [0, 0, 1, 1], [], []>} : vector<2x32xbf16>, vector<32x2048xbf16>, vector<2x2048xf32> -> vector<2x2048xf32>
    %c0_3 = arith.constant 0 : index
    %c0_4 = arith.constant 0 : index
    %3 = vector.load %arg3[%c0_3, %c0_4] : memref<1x2048xf32, #tpu.memory_space<vmem>>, vector<1x2048xf32>
    %4 = vector.broadcast %3 : vector<1x2048xf32> to vector<2x2048xf32>
    %5 = arith.addf %2, %4 : vector<2x2048xf32>
    %6 = arith.truncf %5 : vector<2x2048xf32> to vector<2x2048xbf16>
    %c0_5 = arith.constant 0 : index
    %c0_6 = arith.constant 0 : index
    %7 = vector.load %arg4[%c0_5, %c0_6] : memref<2x2048xbf16, #tpu.memory_space<vmem>>, vector<2x2048xbf16>
    tpu.vector_store %arg4[%c0_5, %c0_6], %6 {strides = array<i32>} : memref<2x2048xbf16, #tpu.memory_space<vmem>>, vector<2x2048xbf16>,
    return
  }
  func.func @transform_0(%arg0: i32) -> (i32, i32) {
    %c0_i32 = arith.constant 0 : i32
    %c0_i32_0 = arith.constant 0 : i32
    return %arg0, %c0_i32 : i32, i32
  }
  func.func @transform_1(%arg0: i32) -> (i32, i32) {
    %c0_i32 = arith.constant 0 : i32
    %c0_i32_0 = arith.constant 0 : i32
    %c0_i32_1 = arith.constant 0 : i32
    return %c0_i32, %c0_i32_0 : i32, i32
  }
  func.func @transform_2(%arg0: i32) -> (i32, i32) {
    %c0_i32 = arith.constant 0 : i32
    %c0_i32_0 = arith.constant 0 : i32
    %c0_i32_1 = arith.constant 0 : i32
    return %c0_i32, %c0_i32_0 : i32, i32
  }
  func.func @transform_3(%arg0: i32) -> (i32, i32) {
    %c0_i32 = arith.constant 0 : i32
    %c0_i32_0 = arith.constant 0 : i32
    return %arg0, %c0_i32 : i32, i32
  }
}

module attributes {stable_mosaic.version = 11 : i64} {
  func.func @kernel(%arg0: i32, %arg1: memref<8x2048xbf16, #tpu.memory_space<vmem>>, %arg2: memref<2048x512xbf16, #tpu.memory_space<vmem>>, %arg3: memref<1x512xf32, #tpu.memory_space<vmem>>, %arg4: memref<1x512xf32, #tpu.memory_space<vmem>>, %arg5: memref<8x512xbf16, #tpu.memory_space<vmem>>) attributes {dimension_semantics = [#tpu.dimension_semantics<arbitrary>], iteration_bounds = array<i64: 1>, scalar_prefetch = 0 : i64, scratch_operands = 0 : i64, tpu.core_type = #tpu.core_type<tc>, window_params = [{pipeline_mode = #tpu.pipeline_mode<synchronous>, transform_indices = @transform_0, window_bounds = array<i64: 8, 2048>}, {pipeline_mode = #tpu.pipeline_mode<synchronous>, transform_indices = @transform_1, window_bounds = array<i64: 2048, 512>}, {pipeline_mode = #tpu.pipeline_mode<synchronous>, transform_indices = @transform_2, window_bounds = array<i64: 1, 512>}, {pipeline_mode = #tpu.pipeline_mode<synchronous>, transform_indices = @transform_3, window_bounds = array<i64: 1, 512>}, {pipeline_mode = #tpu.pipeline_mode<synchronous>, transform_indices = @transform_4, window_bounds = array<i64: 8, 512>}]} {
    %c0 = arith.constant 0 : index
    %c0_0 = arith.constant 0 : index
    %0 = vector.load %arg1[%c0, %c0_0] : memref<8x2048xbf16, #tpu.memory_space<vmem>>, vector<8x2048xbf16>
    %c0_1 = arith.constant 0 : index
    %c0_2 = arith.constant 0 : index
    %1 = vector.load %arg2[%c0_1, %c0_2] : memref<2048x512xbf16, #tpu.memory_space<vmem>>, vector<2048x512xbf16>
    %cst = arith.constant dense<0.000000e+00> : vector<8x512xf32>
    %2 = tpu.matmul %0, %1, %cst {dimension_numbers = #tpu.dot_dimension_numbers<[1], [0], [0], [1], [0, 0, 1, 1], [], []>} : vector<8x2048xbf16>, vector<2048x512xbf16>, vector<8x512xf32> -> vector<8x512xf32>
    %cst_3 = arith.constant dense<0.000000e+00> : vector<512xf32>
    %3 = vector.multi_reduction <add>, %2, %cst_3 [0] : vector<8x512xf32> to vector<512xf32>
    %4 = vector.shape_cast %3 : vector<512xf32> to vector<1x512xf32>
    %c128_i32 = arith.constant 128 : i32
    %5 = tpu.dynamic_rotate %4 by %c128_i32 dim 1 : vector<1x512xf32>, i32 -> vector<1x512xf32>
    %6 = arith.addf %4, %5 : vector<1x512xf32>
    %c256_i32 = arith.constant 256 : i32
    %7 = tpu.dynamic_rotate %4 by %c256_i32 dim 1 : vector<1x512xf32>, i32 -> vector<1x512xf32>
    %8 = arith.addf %6, %7 : vector<1x512xf32>
    %c384_i32 = arith.constant 384 : i32
    %9 = tpu.dynamic_rotate %4 by %c384_i32 dim 1 : vector<1x512xf32>, i32 -> vector<1x512xf32>
    %10 = arith.addf %8, %9 : vector<1x512xf32>
    %cst_4 = arith.constant 3.125000e-02 : f32
    %11 = vector.broadcast %cst_4 : f32 to vector<1x512xf32>
    %12 = arith.mulf %10, %11 : vector<1x512xf32>
    %13 = vector.broadcast %12 : vector<1x512xf32> to vector<8x512xf32>
    %14 = arith.subf %2, %13 : vector<8x512xf32>
    %15 = arith.mulf %14, %14 : vector<8x512xf32>
    %cst_5 = arith.constant dense<0.000000e+00> : vector<512xf32>
    %16 = vector.multi_reduction <add>, %15, %cst_5 [0] : vector<8x512xf32> to vector<512xf32>
    %17 = vector.shape_cast %16 : vector<512xf32> to vector<1x512xf32>
    %c128_i32_6 = arith.constant 128 : i32
    %18 = tpu.dynamic_rotate %17 by %c128_i32_6 dim 1 : vector<1x512xf32>, i32 -> vector<1x512xf32>
    %19 = arith.addf %17, %18 : vector<1x512xf32>
    %c256_i32_7 = arith.constant 256 : i32
    %20 = tpu.dynamic_rotate %17 by %c256_i32_7 dim 1 : vector<1x512xf32>, i32 -> vector<1x512xf32>
    %21 = arith.addf %19, %20 : vector<1x512xf32>
    %c384_i32_8 = arith.constant 384 : i32
    %22 = tpu.dynamic_rotate %17 by %c384_i32_8 dim 1 : vector<1x512xf32>, i32 -> vector<1x512xf32>
    %23 = arith.addf %21, %22 : vector<1x512xf32>
    %cst_9 = arith.constant 3.125000e-02 : f32
    %24 = vector.broadcast %cst_9 : f32 to vector<1x512xf32>
    %25 = arith.mulf %23, %24 : vector<1x512xf32>
    %cst_10 = arith.constant 9.99999974E-6 : f32
    %26 = vector.broadcast %cst_10 : f32 to vector<1x512xf32>
    %27 = arith.addf %25, %26 : vector<1x512xf32>
    %28 = math.rsqrt %27 : vector<1x512xf32>
    %c0_11 = arith.constant 0 : index
    %c0_12 = arith.constant 0 : index
    %29 = vector.load %arg3[%c0_11, %c0_12] : memref<1x512xf32, #tpu.memory_space<vmem>>, vector<1x512xf32>
    %30 = arith.mulf %29, %28 : vector<1x512xf32>
    %31 = vector.broadcast %30 : vector<1x512xf32> to vector<8x512xf32>
    %32 = arith.mulf %14, %31 : vector<8x512xf32>
    %c0_13 = arith.constant 0 : index
    %c0_14 = arith.constant 0 : index
    %33 = vector.load %arg4[%c0_13, %c0_14] : memref<1x512xf32, #tpu.memory_space<vmem>>, vector<1x512xf32>
    %34 = vector.broadcast %33 : vector<1x512xf32> to vector<8x512xf32>
    %35 = arith.addf %32, %34 : vector<8x512xf32>
    %cst_15 = arith.constant 0.000000e+00 : f32
    %36 = vector.broadcast %cst_15 : f32 to vector<8x512xf32>
    %37 = arith.cmpf oge, %35, %36 : vector<8x512xf32>
    %cst_16 = arith.constant 0.00999999977 : f32
    %38 = vector.broadcast %cst_16 : f32 to vector<8x512xf32>
    %39 = arith.mulf %38, %35 : vector<8x512xf32>
    %40 = arith.select %37, %35, %39 : vector<8x512xi1>, vector<8x512xf32>
    %41 = arith.truncf %40 : vector<8x512xf32> to vector<8x512xbf16>
    %c0_17 = arith.constant 0 : index
    %c0_18 = arith.constant 0 : index
    %42 = vector.load %arg5[%c0_17, %c0_18] : memref<8x512xbf16, #tpu.memory_space<vmem>>, vector<8x512xbf16>
    tpu.vector_store %arg5[%c0_17, %c0_18], %41 {strides = array<i32>} : memref<8x512xbf16, #tpu.memory_space<vmem>>, vector<8x512xbf16>,
    return
  }
  func.func @transform_0(%arg0: i32) -> (i32, i32) {
    %c0_i32 = arith.constant 0 : i32
    %c0_i32_0 = arith.constant 0 : i32
    %c0_i32_1 = arith.constant 0 : i32
    return %c0_i32, %c0_i32_0 : i32, i32
  }
  func.func @transform_1(%arg0: i32) -> (i32, i32) {
    %c0_i32 = arith.constant 0 : i32
    %c0_i32_0 = arith.constant 0 : i32
    %c0_i32_1 = arith.constant 0 : i32
    return %c0_i32, %c0_i32_0 : i32, i32
  }
  func.func @transform_2(%arg0: i32) -> (i32, i32) {
    %c0_i32 = arith.constant 0 : i32
    %c0_i32_0 = arith.constant 0 : i32
    %c0_i32_1 = arith.constant 0 : i32
    return %c0_i32, %c0_i32_0 : i32, i32
  }
  func.func @transform_3(%arg0: i32) -> (i32, i32) {
    %c0_i32 = arith.constant 0 : i32
    %c0_i32_0 = arith.constant 0 : i32
    %c0_i32_1 = arith.constant 0 : i32
    return %c0_i32, %c0_i32_0 : i32, i32
  }
  func.func @transform_4(%arg0: i32) -> (i32, i32) {
    %c0_i32 = arith.constant 0 : i32
    %c0_i32_0 = arith.constant 0 : i32
    %c0_i32_1 = arith.constant 0 : i32
    return %c0_i32, %c0_i32_0 : i32, i32
  }
}

module attributes {stable_mosaic.version = 11 : i64} {
  func.func @kernel(%arg0: i32, %arg1: memref<32x512xbf16, #tpu.memory_space<vmem>>, %arg2: memref<512x256xbf16, #tpu.memory_space<vmem>>, %arg3: memref<1x256xf32, #tpu.memory_space<vmem>>, %arg4: memref<1x256xf32, #tpu.memory_space<vmem>>, %arg5: memref<32x256xbf16, #tpu.memory_space<vmem>>) attributes {dimension_semantics = [#tpu.dimension_semantics<arbitrary>], iteration_bounds = array<i64: 1>, scalar_prefetch = 0 : i64, scratch_operands = 0 : i64, tpu.core_type = #tpu.core_type<tc>, window_params = [{pipeline_mode = #tpu.pipeline_mode<synchronous>, transform_indices = @transform_0, window_bounds = array<i64: 32, 512>}, {pipeline_mode = #tpu.pipeline_mode<synchronous>, transform_indices = @transform_1, window_bounds = array<i64: 512, 256>}, {pipeline_mode = #tpu.pipeline_mode<synchronous>, transform_indices = @transform_2, window_bounds = array<i64: 1, 256>}, {pipeline_mode = #tpu.pipeline_mode<synchronous>, transform_indices = @transform_3, window_bounds = array<i64: 1, 256>}, {pipeline_mode = #tpu.pipeline_mode<synchronous>, transform_indices = @transform_4, window_bounds = array<i64: 32, 256>}]} {
    %c0 = arith.constant 0 : index
    %c0_0 = arith.constant 0 : index
    %0 = vector.load %arg1[%c0, %c0_0] : memref<32x512xbf16, #tpu.memory_space<vmem>>, vector<32x512xbf16>
    %c0_1 = arith.constant 0 : index
    %c0_2 = arith.constant 0 : index
    %1 = vector.load %arg2[%c0_1, %c0_2] : memref<512x256xbf16, #tpu.memory_space<vmem>>, vector<512x256xbf16>
    %cst = arith.constant dense<0.000000e+00> : vector<32x256xf32>
    %2 = tpu.matmul %0, %1, %cst {dimension_numbers = #tpu.dot_dimension_numbers<[1], [0], [0], [1], [0, 0, 1, 1], [], []>} : vector<32x512xbf16>, vector<512x256xbf16>, vector<32x256xf32> -> vector<32x256xf32>
    %cst_3 = arith.constant dense<0.000000e+00> : vector<256xf32>
    %3 = vector.multi_reduction <add>, %2, %cst_3 [0] : vector<32x256xf32> to vector<256xf32>
    %4 = vector.shape_cast %3 : vector<256xf32> to vector<1x256xf32>
    %c64_i32 = arith.constant 64 : i32
    %5 = tpu.dynamic_rotate %4 by %c64_i32 dim 1 : vector<1x256xf32>, i32 -> vector<1x256xf32>
    %6 = arith.addf %4, %5 : vector<1x256xf32>
    %c128_i32 = arith.constant 128 : i32
    %7 = tpu.dynamic_rotate %4 by %c128_i32 dim 1 : vector<1x256xf32>, i32 -> vector<1x256xf32>
    %8 = arith.addf %6, %7 : vector<1x256xf32>
    %c192_i32 = arith.constant 192 : i32
    %9 = tpu.dynamic_rotate %4 by %c192_i32 dim 1 : vector<1x256xf32>, i32 -> vector<1x256xf32>
    %10 = arith.addf %8, %9 : vector<1x256xf32>
    %cst_4 = arith.constant 7.812500e-03 : f32
    %11 = vector.broadcast %cst_4 : f32 to vector<1x256xf32>
    %12 = arith.mulf %10, %11 : vector<1x256xf32>
    %13 = vector.broadcast %12 : vector<1x256xf32> to vector<32x256xf32>
    %14 = arith.subf %2, %13 : vector<32x256xf32>
    %15 = arith.mulf %14, %14 : vector<32x256xf32>
    %cst_5 = arith.constant dense<0.000000e+00> : vector<256xf32>
    %16 = vector.multi_reduction <add>, %15, %cst_5 [0] : vector<32x256xf32> to vector<256xf32>
    %17 = vector.shape_cast %16 : vector<256xf32> to vector<1x256xf32>
    %c64_i32_6 = arith.constant 64 : i32
    %18 = tpu.dynamic_rotate %17 by %c64_i32_6 dim 1 : vector<1x256xf32>, i32 -> vector<1x256xf32>
    %19 = arith.addf %17, %18 : vector<1x256xf32>
    %c128_i32_7 = arith.constant 128 : i32
    %20 = tpu.dynamic_rotate %17 by %c128_i32_7 dim 1 : vector<1x256xf32>, i32 -> vector<1x256xf32>
    %21 = arith.addf %19, %20 : vector<1x256xf32>
    %c192_i32_8 = arith.constant 192 : i32
    %22 = tpu.dynamic_rotate %17 by %c192_i32_8 dim 1 : vector<1x256xf32>, i32 -> vector<1x256xf32>
    %23 = arith.addf %21, %22 : vector<1x256xf32>
    %cst_9 = arith.constant 7.812500e-03 : f32
    %24 = vector.broadcast %cst_9 : f32 to vector<1x256xf32>
    %25 = arith.mulf %23, %24 : vector<1x256xf32>
    %cst_10 = arith.constant 9.99999974E-6 : f32
    %26 = vector.broadcast %cst_10 : f32 to vector<1x256xf32>
    %27 = arith.addf %25, %26 : vector<1x256xf32>
    %28 = math.rsqrt %27 : vector<1x256xf32>
    %c0_11 = arith.constant 0 : index
    %c0_12 = arith.constant 0 : index
    %29 = vector.load %arg3[%c0_11, %c0_12] : memref<1x256xf32, #tpu.memory_space<vmem>>, vector<1x256xf32>
    %30 = arith.mulf %29, %28 : vector<1x256xf32>
    %31 = vector.broadcast %30 : vector<1x256xf32> to vector<32x256xf32>
    %32 = arith.mulf %14, %31 : vector<32x256xf32>
    %c0_13 = arith.constant 0 : index
    %c0_14 = arith.constant 0 : index
    %33 = vector.load %arg4[%c0_13, %c0_14] : memref<1x256xf32, #tpu.memory_space<vmem>>, vector<1x256xf32>
    %34 = vector.broadcast %33 : vector<1x256xf32> to vector<32x256xf32>
    %35 = arith.addf %32, %34 : vector<32x256xf32>
    %cst_15 = arith.constant 0.000000e+00 : f32
    %36 = vector.broadcast %cst_15 : f32 to vector<32x256xf32>
    %37 = arith.cmpf oge, %35, %36 : vector<32x256xf32>
    %cst_16 = arith.constant 0.00999999977 : f32
    %38 = vector.broadcast %cst_16 : f32 to vector<32x256xf32>
    %39 = arith.mulf %38, %35 : vector<32x256xf32>
    %40 = arith.select %37, %35, %39 : vector<32x256xi1>, vector<32x256xf32>
    %41 = arith.truncf %40 : vector<32x256xf32> to vector<32x256xbf16>
    %c0_17 = arith.constant 0 : index
    %c0_18 = arith.constant 0 : index
    %42 = vector.load %arg5[%c0_17, %c0_18] : memref<32x256xbf16, #tpu.memory_space<vmem>>, vector<32x256xbf16>
    tpu.vector_store %arg5[%c0_17, %c0_18], %41 {strides = array<i32>} : memref<32x256xbf16, #tpu.memory_space<vmem>>, vector<32x256xbf16>,
    return
  }
  func.func @transform_0(%arg0: i32) -> (i32, i32) {
    %c0_i32 = arith.constant 0 : i32
    %c0_i32_0 = arith.constant 0 : i32
    %c0_i32_1 = arith.constant 0 : i32
    return %c0_i32, %c0_i32_0 : i32, i32
  }
  func.func @transform_1(%arg0: i32) -> (i32, i32) {
    %c0_i32 = arith.constant 0 : i32
    %c0_i32_0 = arith.constant 0 : i32
    %c0_i32_1 = arith.constant 0 : i32
    return %c0_i32, %c0_i32_0 : i32, i32
  }
  func.func @transform_2(%arg0: i32) -> (i32, i32) {
    %c0_i32 = arith.constant 0 : i32
    %c0_i32_0 = arith.constant 0 : i32
    %c0_i32_1 = arith.constant 0 : i32
    return %c0_i32, %c0_i32_0 : i32, i32
  }
  func.func @transform_3(%arg0: i32) -> (i32, i32) {
    %c0_i32 = arith.constant 0 : i32
    %c0_i32_0 = arith.constant 0 : i32
    %c0_i32_1 = arith.constant 0 : i32
    return %c0_i32, %c0_i32_0 : i32, i32
  }
  func.func @transform_4(%arg0: i32) -> (i32, i32) {
    %c0_i32 = arith.constant 0 : i32
    %c0_i32_0 = arith.constant 0 : i32
    %c0_i32_1 = arith.constant 0 : i32
    return %c0_i32, %c0_i32_0 : i32, i32
  }
}

module attributes {stable_mosaic.version = 11 : i64} {
  func.func @kernel(%arg0: i32, %arg1: memref<128x256xbf16, #tpu.memory_space<vmem>>, %arg2: memref<256x128xbf16, #tpu.memory_space<vmem>>, %arg3: memref<1x128xf32, #tpu.memory_space<vmem>>, %arg4: memref<1x128xf32, #tpu.memory_space<vmem>>, %arg5: memref<128x128xbf16, #tpu.memory_space<vmem>>) attributes {dimension_semantics = [#tpu.dimension_semantics<arbitrary>], iteration_bounds = array<i64: 1>, scalar_prefetch = 0 : i64, scratch_operands = 0 : i64, tpu.core_type = #tpu.core_type<tc>, window_params = [{pipeline_mode = #tpu.pipeline_mode<synchronous>, transform_indices = @transform_0, window_bounds = array<i64: 128, 256>}, {pipeline_mode = #tpu.pipeline_mode<synchronous>, transform_indices = @transform_1, window_bounds = array<i64: 256, 128>}, {pipeline_mode = #tpu.pipeline_mode<synchronous>, transform_indices = @transform_2, window_bounds = array<i64: 1, 128>}, {pipeline_mode = #tpu.pipeline_mode<synchronous>, transform_indices = @transform_3, window_bounds = array<i64: 1, 128>}, {pipeline_mode = #tpu.pipeline_mode<synchronous>, transform_indices = @transform_4, window_bounds = array<i64: 128, 128>}]} {
    %c0 = arith.constant 0 : index
    %c0_0 = arith.constant 0 : index
    %0 = vector.load %arg1[%c0, %c0_0] : memref<128x256xbf16, #tpu.memory_space<vmem>>, vector<128x256xbf16>
    %c0_1 = arith.constant 0 : index
    %c0_2 = arith.constant 0 : index
    %1 = vector.load %arg2[%c0_1, %c0_2] : memref<256x128xbf16, #tpu.memory_space<vmem>>, vector<256x128xbf16>
    %cst = arith.constant dense<0.000000e+00> : vector<128x128xf32>
    %2 = tpu.matmul %0, %1, %cst {dimension_numbers = #tpu.dot_dimension_numbers<[1], [0], [0], [1], [0, 0, 1, 1], [], []>} : vector<128x256xbf16>, vector<256x128xbf16>, vector<128x128xf32> -> vector<128x128xf32>
    %cst_3 = arith.constant dense<0.000000e+00> : vector<128xf32>
    %3 = vector.multi_reduction <add>, %2, %cst_3 [0] : vector<128x128xf32> to vector<128xf32>
    %4 = vector.shape_cast %3 : vector<128xf32> to vector<1x128xf32>
    %c32_i32 = arith.constant 32 : i32
    %5 = tpu.dynamic_rotate %4 by %c32_i32 dim 1 : vector<1x128xf32>, i32 -> vector<1x128xf32>
    %6 = arith.addf %4, %5 : vector<1x128xf32>
    %c64_i32 = arith.constant 64 : i32
    %7 = tpu.dynamic_rotate %4 by %c64_i32 dim 1 : vector<1x128xf32>, i32 -> vector<1x128xf32>
    %8 = arith.addf %6, %7 : vector<1x128xf32>
    %c96_i32 = arith.constant 96 : i32
    %9 = tpu.dynamic_rotate %4 by %c96_i32 dim 1 : vector<1x128xf32>, i32 -> vector<1x128xf32>
    %10 = arith.addf %8, %9 : vector<1x128xf32>
    %cst_4 = arith.constant 0.001953125 : f32
    %11 = vector.broadcast %cst_4 : f32 to vector<1x128xf32>
    %12 = arith.mulf %10, %11 : vector<1x128xf32>
    %13 = vector.broadcast %12 : vector<1x128xf32> to vector<128x128xf32>
    %14 = arith.subf %2, %13 : vector<128x128xf32>
    %15 = arith.mulf %14, %14 : vector<128x128xf32>
    %cst_5 = arith.constant dense<0.000000e+00> : vector<128xf32>
    %16 = vector.multi_reduction <add>, %15, %cst_5 [0] : vector<128x128xf32> to vector<128xf32>
    %17 = vector.shape_cast %16 : vector<128xf32> to vector<1x128xf32>
    %c32_i32_6 = arith.constant 32 : i32
    %18 = tpu.dynamic_rotate %17 by %c32_i32_6 dim 1 : vector<1x128xf32>, i32 -> vector<1x128xf32>
    %19 = arith.addf %17, %18 : vector<1x128xf32>
    %c64_i32_7 = arith.constant 64 : i32
    %20 = tpu.dynamic_rotate %17 by %c64_i32_7 dim 1 : vector<1x128xf32>, i32 -> vector<1x128xf32>
    %21 = arith.addf %19, %20 : vector<1x128xf32>
    %c96_i32_8 = arith.constant 96 : i32
    %22 = tpu.dynamic_rotate %17 by %c96_i32_8 dim 1 : vector<1x128xf32>, i32 -> vector<1x128xf32>
    %23 = arith.addf %21, %22 : vector<1x128xf32>
    %cst_9 = arith.constant 0.001953125 : f32
    %24 = vector.broadcast %cst_9 : f32 to vector<1x128xf32>
    %25 = arith.mulf %23, %24 : vector<1x128xf32>
    %cst_10 = arith.constant 9.99999974E-6 : f32
    %26 = vector.broadcast %cst_10 : f32 to vector<1x128xf32>
    %27 = arith.addf %25, %26 : vector<1x128xf32>
    %28 = math.rsqrt %27 : vector<1x128xf32>
    %c0_11 = arith.constant 0 : index
    %c0_12 = arith.constant 0 : index
    %29 = vector.load %arg3[%c0_11, %c0_12] : memref<1x128xf32, #tpu.memory_space<vmem>>, vector<1x128xf32>
    %30 = arith.mulf %29, %28 : vector<1x128xf32>
    %31 = vector.broadcast %30 : vector<1x128xf32> to vector<128x128xf32>
    %32 = arith.mulf %14, %31 : vector<128x128xf32>
    %c0_13 = arith.constant 0 : index
    %c0_14 = arith.constant 0 : index
    %33 = vector.load %arg4[%c0_13, %c0_14] : memref<1x128xf32, #tpu.memory_space<vmem>>, vector<1x128xf32>
    %34 = vector.broadcast %33 : vector<1x128xf32> to vector<128x128xf32>
    %35 = arith.addf %32, %34 : vector<128x128xf32>
    %cst_15 = arith.constant 0.000000e+00 : f32
    %36 = vector.broadcast %cst_15 : f32 to vector<128x128xf32>
    %37 = arith.cmpf oge, %35, %36 : vector<128x128xf32>
    %cst_16 = arith.constant 0.00999999977 : f32
    %38 = vector.broadcast %cst_16 : f32 to vector<128x128xf32>
    %39 = arith.mulf %38, %35 : vector<128x128xf32>
    %40 = arith.select %37, %35, %39 : vector<128x128xi1>, vector<128x128xf32>
    %41 = arith.truncf %40 : vector<128x128xf32> to vector<128x128xbf16>
    %c0_17 = arith.constant 0 : index
    %c0_18 = arith.constant 0 : index
    %42 = vector.load %arg5[%c0_17, %c0_18] : memref<128x128xbf16, #tpu.memory_space<vmem>>, vector<128x128xbf16>
    tpu.vector_store %arg5[%c0_17, %c0_18], %41 {strides = array<i32>} : memref<128x128xbf16, #tpu.memory_space<vmem>>, vector<128x128xbf16>,
    return
  }
  func.func @transform_0(%arg0: i32) -> (i32, i32) {
    %c0_i32 = arith.constant 0 : i32
    %c0_i32_0 = arith.constant 0 : i32
    %c0_i32_1 = arith.constant 0 : i32
    return %c0_i32, %c0_i32_0 : i32, i32
  }
  func.func @transform_1(%arg0: i32) -> (i32, i32) {
    %c0_i32 = arith.constant 0 : i32
    %c0_i32_0 = arith.constant 0 : i32
    %c0_i32_1 = arith.constant 0 : i32
    return %c0_i32, %c0_i32_0 : i32, i32
  }
  func.func @transform_2(%arg0: i32) -> (i32, i32) {
    %c0_i32 = arith.constant 0 : i32
    %c0_i32_0 = arith.constant 0 : i32
    %c0_i32_1 = arith.constant 0 : i32
    return %c0_i32, %c0_i32_0 : i32, i32
  }
  func.func @transform_3(%arg0: i32) -> (i32, i32) {
    %c0_i32 = arith.constant 0 : i32
    %c0_i32_0 = arith.constant 0 : i32
    %c0_i32_1 = arith.constant 0 : i32
    return %c0_i32, %c0_i32_0 : i32, i32
  }
  func.func @transform_4(%arg0: i32) -> (i32, i32) {
    %c0_i32 = arith.constant 0 : i32
    %c0_i32_0 = arith.constant 0 : i32
    %c0_i32_1 = arith.constant 0 : i32
    return %c0_i32, %c0_i32_0 : i32, i32
  }
}

module attributes {stable_mosaic.version = 11 : i64} {
  func.func @kernel(%arg0: i32, %arg1: memref<512x128xbf16, #tpu.memory_space<vmem>>, %arg2: memref<128x128xbf16, #tpu.memory_space<vmem>>, %arg3: memref<1x128xf32, #tpu.memory_space<vmem>>, %arg4: memref<1x128xf32, #tpu.memory_space<vmem>>, %arg5: memref<512x128xbf16, #tpu.memory_space<vmem>>) attributes {dimension_semantics = [#tpu.dimension_semantics<arbitrary>], iteration_bounds = array<i64: 1>, scalar_prefetch = 0 : i64, scratch_operands = 0 : i64, tpu.core_type = #tpu.core_type<tc>, window_params = [{pipeline_mode = #tpu.pipeline_mode<synchronous>, transform_indices = @transform_0, window_bounds = array<i64: 512, 128>}, {pipeline_mode = #tpu.pipeline_mode<synchronous>, transform_indices = @transform_1, window_bounds = array<i64: 128, 128>}, {pipeline_mode = #tpu.pipeline_mode<synchronous>, transform_indices = @transform_2, window_bounds = array<i64: 1, 128>}, {pipeline_mode = #tpu.pipeline_mode<synchronous>, transform_indices = @transform_3, window_bounds = array<i64: 1, 128>}, {pipeline_mode = #tpu.pipeline_mode<synchronous>, transform_indices = @transform_4, window_bounds = array<i64: 512, 128>}]} {
    %c0 = arith.constant 0 : index
    %c0_0 = arith.constant 0 : index
    %0 = vector.load %arg1[%c0, %c0_0] : memref<512x128xbf16, #tpu.memory_space<vmem>>, vector<512x128xbf16>
    %c0_1 = arith.constant 0 : index
    %c0_2 = arith.constant 0 : index
    %1 = vector.load %arg2[%c0_1, %c0_2] : memref<128x128xbf16, #tpu.memory_space<vmem>>, vector<128x128xbf16>
    %cst = arith.constant dense<0.000000e+00> : vector<512x128xf32>
    %2 = tpu.matmul %0, %1, %cst {dimension_numbers = #tpu.dot_dimension_numbers<[1], [0], [0], [1], [0, 0, 1, 1], [], []>} : vector<512x128xbf16>, vector<128x128xbf16>, vector<512x128xf32> -> vector<512x128xf32>
    %cst_3 = arith.constant dense<0.000000e+00> : vector<128xf32>
    %3 = vector.multi_reduction <add>, %2, %cst_3 [0] : vector<512x128xf32> to vector<128xf32>
    %4 = vector.shape_cast %3 : vector<128xf32> to vector<1x128xf32>
    %c32_i32 = arith.constant 32 : i32
    %5 = tpu.dynamic_rotate %4 by %c32_i32 dim 1 : vector<1x128xf32>, i32 -> vector<1x128xf32>
    %6 = arith.addf %4, %5 : vector<1x128xf32>
    %c64_i32 = arith.constant 64 : i32
    %7 = tpu.dynamic_rotate %4 by %c64_i32 dim 1 : vector<1x128xf32>, i32 -> vector<1x128xf32>
    %8 = arith.addf %6, %7 : vector<1x128xf32>
    %c96_i32 = arith.constant 96 : i32
    %9 = tpu.dynamic_rotate %4 by %c96_i32 dim 1 : vector<1x128xf32>, i32 -> vector<1x128xf32>
    %10 = arith.addf %8, %9 : vector<1x128xf32>
    %cst_4 = arith.constant 4.8828125E-4 : f32
    %11 = vector.broadcast %cst_4 : f32 to vector<1x128xf32>
    %12 = arith.mulf %10, %11 : vector<1x128xf32>
    %13 = vector.broadcast %12 : vector<1x128xf32> to vector<512x128xf32>
    %14 = arith.subf %2, %13 : vector<512x128xf32>
    %15 = arith.mulf %14, %14 : vector<512x128xf32>
    %cst_5 = arith.constant dense<0.000000e+00> : vector<128xf32>
    %16 = vector.multi_reduction <add>, %15, %cst_5 [0] : vector<512x128xf32> to vector<128xf32>
    %17 = vector.shape_cast %16 : vector<128xf32> to vector<1x128xf32>
    %c32_i32_6 = arith.constant 32 : i32
    %18 = tpu.dynamic_rotate %17 by %c32_i32_6 dim 1 : vector<1x128xf32>, i32 -> vector<1x128xf32>
    %19 = arith.addf %17, %18 : vector<1x128xf32>
    %c64_i32_7 = arith.constant 64 : i32
    %20 = tpu.dynamic_rotate %17 by %c64_i32_7 dim 1 : vector<1x128xf32>, i32 -> vector<1x128xf32>
    %21 = arith.addf %19, %20 : vector<1x128xf32>
    %c96_i32_8 = arith.constant 96 : i32
    %22 = tpu.dynamic_rotate %17 by %c96_i32_8 dim 1 : vector<1x128xf32>, i32 -> vector<1x128xf32>
    %23 = arith.addf %21, %22 : vector<1x128xf32>
    %cst_9 = arith.constant 4.8828125E-4 : f32
    %24 = vector.broadcast %cst_9 : f32 to vector<1x128xf32>
    %25 = arith.mulf %23, %24 : vector<1x128xf32>
    %cst_10 = arith.constant 9.99999974E-6 : f32
    %26 = vector.broadcast %cst_10 : f32 to vector<1x128xf32>
    %27 = arith.addf %25, %26 : vector<1x128xf32>
    %28 = math.rsqrt %27 : vector<1x128xf32>
    %c0_11 = arith.constant 0 : index
    %c0_12 = arith.constant 0 : index
    %29 = vector.load %arg3[%c0_11, %c0_12] : memref<1x128xf32, #tpu.memory_space<vmem>>, vector<1x128xf32>
    %30 = arith.mulf %29, %28 : vector<1x128xf32>
    %31 = vector.broadcast %30 : vector<1x128xf32> to vector<512x128xf32>
    %32 = arith.mulf %14, %31 : vector<512x128xf32>
    %c0_13 = arith.constant 0 : index
    %c0_14 = arith.constant 0 : index
    %33 = vector.load %arg4[%c0_13, %c0_14] : memref<1x128xf32, #tpu.memory_space<vmem>>, vector<1x128xf32>
    %34 = vector.broadcast %33 : vector<1x128xf32> to vector<512x128xf32>
    %35 = arith.addf %32, %34 : vector<512x128xf32>
    %cst_15 = arith.constant 0.000000e+00 : f32
    %36 = vector.broadcast %cst_15 : f32 to vector<512x128xf32>
    %37 = arith.cmpf oge, %35, %36 : vector<512x128xf32>
    %cst_16 = arith.constant 0.00999999977 : f32
    %38 = vector.broadcast %cst_16 : f32 to vector<512x128xf32>
    %39 = arith.mulf %38, %35 : vector<512x128xf32>
    %40 = arith.select %37, %35, %39 : vector<512x128xi1>, vector<512x128xf32>
    %41 = arith.truncf %40 : vector<512x128xf32> to vector<512x128xbf16>
    %c0_17 = arith.constant 0 : index
    %c0_18 = arith.constant 0 : index
    %42 = vector.load %arg5[%c0_17, %c0_18] : memref<512x128xbf16, #tpu.memory_space<vmem>>, vector<512x128xbf16>
    tpu.vector_store %arg5[%c0_17, %c0_18], %41 {strides = array<i32>} : memref<512x128xbf16, #tpu.memory_space<vmem>>, vector<512x128xbf16>,
    return
  }
  func.func @transform_0(%arg0: i32) -> (i32, i32) {
    %c0_i32 = arith.constant 0 : i32
    %c0_i32_0 = arith.constant 0 : i32
    %c0_i32_1 = arith.constant 0 : i32
    return %c0_i32, %c0_i32_0 : i32, i32
  }
  func.func @transform_1(%arg0: i32) -> (i32, i32) {
    %c0_i32 = arith.constant 0 : i32
    %c0_i32_0 = arith.constant 0 : i32
    %c0_i32_1 = arith.constant 0 : i32
    return %c0_i32, %c0_i32_0 : i32, i32
  }
  func.func @transform_2(%arg0: i32) -> (i32, i32) {
    %c0_i32 = arith.constant 0 : i32
    %c0_i32_0 = arith.constant 0 : i32
    %c0_i32_1 = arith.constant 0 : i32
    return %c0_i32, %c0_i32_0 : i32, i32
  }
  func.func @transform_3(%arg0: i32) -> (i32, i32) {
    %c0_i32 = arith.constant 0 : i32
    %c0_i32_0 = arith.constant 0 : i32
    %c0_i32_1 = arith.constant 0 : i32
    return %c0_i32, %c0_i32_0 : i32, i32
  }
  func.func @transform_4(%arg0: i32) -> (i32, i32) {
    %c0_i32 = arith.constant 0 : i32
    %c0_i32_0 = arith.constant 0 : i32
    %c0_i32_1 = arith.constant 0 : i32
    return %c0_i32, %c0_i32_0 : i32, i32
  }
}

module attributes {stable_mosaic.version = 11 : i64} {
  func.func @_matmul_bias_kernel(%arg0: i32, %arg1: memref<1024x288xbf16, #tpu.memory_space<vmem>>, %arg2: memref<288x128xbf16, #tpu.memory_space<vmem>>, %arg3: memref<1x128xf32, #tpu.memory_space<vmem>>, %arg4: memref<1024x128xf32, #tpu.memory_space<vmem>>) attributes {dimension_semantics = [#tpu.dimension_semantics<parallel>], iteration_bounds = array<i64: 2>, scalar_prefetch = 0 : i64, scratch_operands = 0 : i64, tpu.core_type = #tpu.core_type<tc>, window_params = [{transform_indices = @transform_0, window_bounds = array<i64: 1024, 288>}, {pipeline_mode = #tpu.pipeline_mode<synchronous>, transform_indices = @transform_1, window_bounds = array<i64: 288, 128>}, {pipeline_mode = #tpu.pipeline_mode<synchronous>, transform_indices = @transform_2, window_bounds = array<i64: 1, 128>}, {transform_indices = @transform_3, window_bounds = array<i64: 1024, 128>}]} {
    %c0 = arith.constant 0 : index
    %c0_0 = arith.constant 0 : index
    %0 = vector.load %arg1[%c0, %c0_0] : memref<1024x288xbf16, #tpu.memory_space<vmem>>, vector<1024x288xbf16>
    %c0_1 = arith.constant 0 : index
    %c0_2 = arith.constant 0 : index
    %1 = vector.load %arg2[%c0_1, %c0_2] : memref<288x128xbf16, #tpu.memory_space<vmem>>, vector<288x128xbf16>
    %cst = arith.constant dense<0.000000e+00> : vector<1024x128xf32>
    %2 = tpu.matmul %0, %1, %cst {dimension_numbers = #tpu.dot_dimension_numbers<[1], [0], [0], [1], [0, 0, 1, 1], [], []>} : vector<1024x288xbf16>, vector<288x128xbf16>, vector<1024x128xf32> -> vector<1024x128xf32>
    %c0_3 = arith.constant 0 : index
    %c0_4 = arith.constant 0 : index
    %3 = vector.load %arg3[%c0_3, %c0_4] : memref<1x128xf32, #tpu.memory_space<vmem>>, vector<1x128xf32>
    %4 = vector.broadcast %3 : vector<1x128xf32> to vector<1024x128xf32>
    %5 = arith.addf %2, %4 : vector<1024x128xf32>
    %c0_5 = arith.constant 0 : index
    %c0_6 = arith.constant 0 : index
    %6 = vector.load %arg4[%c0_5, %c0_6] : memref<1024x128xf32, #tpu.memory_space<vmem>>, vector<1024x128xf32>
    tpu.vector_store %arg4[%c0_5, %c0_6], %5 {strides = array<i32>} : memref<1024x128xf32, #tpu.memory_space<vmem>>, vector<1024x128xf32>,
    return
  }
  func.func @transform_0(%arg0: i32) -> (i32, i32) {
    %c0_i32 = arith.constant 0 : i32
    %c0_i32_0 = arith.constant 0 : i32
    return %arg0, %c0_i32 : i32, i32
  }
  func.func @transform_1(%arg0: i32) -> (i32, i32) {
    %c0_i32 = arith.constant 0 : i32
    %c0_i32_0 = arith.constant 0 : i32
    %c0_i32_1 = arith.constant 0 : i32
    return %c0_i32, %c0_i32_0 : i32, i32
  }
  func.func @transform_2(%arg0: i32) -> (i32, i32) {
    %c0_i32 = arith.constant 0 : i32
    %c0_i32_0 = arith.constant 0 : i32
    %c0_i32_1 = arith.constant 0 : i32
    return %c0_i32, %c0_i32_0 : i32, i32
  }
  func.func @transform_3(%arg0: i32) -> (i32, i32) {
    %c0_i32 = arith.constant 0 : i32
    %c0_i32_0 = arith.constant 0 : i32
    return %arg0, %c0_i32 : i32, i32
  }
}

</mosaic_0001>

<llo_original>
// kernel: decoder_forward.6
$region0: #{decoder_forward.6}
  #allocation0 [shape = 'u32[]', space=smem, size = 0x4, offset = 0x4, fixed_abs, tag = 'smem constant byte address 0x4 - core index']
  #allocation1 [shape = 'u32[144,128]{1,0:T(1,128)}', space=vmem, size = 0x12000, scoped, tag = 'internal scratch']
  %s0 = inlined_call_operand.vmem [shape: bf16[2,32], index: 0, kind: input, shape index: {}]
  %s1 = inlined_call_operand.vmem [shape: bf16[32,2048], index: 1, kind: input, shape index: {}]
  %s2 = inlined_call_operand.vmem [shape: f32[1,2048], index: 2, kind: input, shape index: {}]
  %s3 = inlined_call_operand.vmem [shape: bf16[2,2048], index: 3, kind: output, shape index: {}]
  %s4 = sld [smem:[#allocation0]]
  $region22: #{decoder_forward.6} parent=0
    _
  %s6 = ssub.s32 1, %s4
  %s7 = scalar_select 0, %s6, %s4
  // Predicated region
  $region2: #{decoder_forward.6} parent=0 // pred_check
    _
  $region3: #{decoder_forward.6} parent=0 // pred_check_branch
    %9 = sbr.rel (0) target = $region5
  $region4: #{decoder_forward.6} parent=0 // pred_region
    _
  $region5: #{decoder_forward.6} parent=0 // pred_fallthru
    _
  // Predicated region
  $region6: #{decoder_forward.6} parent=0 // pred_check
    _
  $region7: #{decoder_forward.6} parent=0 // pred_check_branch
    %11 = sbr.rel (0) target = $region9
  $region8: #{decoder_forward.6} parent=0 // pred_region
    _
  $region9: #{decoder_forward.6} parent=0 // pred_fallthru
    _
  // Predicated region
  $region10: #{decoder_forward.6} parent=0 // pred_check
    _
  $region11: #{decoder_forward.6} parent=0 // pred_check_branch
    %13 = sbr.rel (0) target = $region13
  $region12: #{decoder_forward.6} parent=0 // pred_region
    _
  $region13: #{decoder_forward.6} parent=0 // pred_fallthru
    _
  %v15 = vld [vmem:[%s0] sm:$0x1]
  %v16 = vld [vmem:[%s1] sm:$0xff]
  %v17 = vld [vmem:[%s1 + $0x8] sm:$0xff]
  %v18 = vld [vmem:[%s1 + $0x10] sm:$0xff]
  %v19 = vld [vmem:[%s1 + $0x18] sm:$0xff]
  %v20 = vld [vmem:[%s1 + $0x20] sm:$0xff]
  %v21 = vld [vmem:[%s1 + $0x28] sm:$0xff]
  %v22 = vld [vmem:[%s1 + $0x30] sm:$0xff]
  %v23 = vld [vmem:[%s1 + $0x38] sm:$0xff]
  %v24 = vld [vmem:[%s1 + $0x40] sm:$0xff]
  %v25 = vld [vmem:[%s1 + $0x48] sm:$0xff]
  %v26 = vld [vmem:[%s1 + $0x50] sm:$0xff]
  %v27 = vld [vmem:[%s1 + $0x58] sm:$0xff]
  %v28 = vld [vmem:[%s1 + $0x60] sm:$0xff]
  %v29 = vld [vmem:[%s1 + $0x68] sm:$0xff]
  %v30 = vld [vmem:[%s1 + $0x70] sm:$0xff]
  %v31 = vld [vmem:[%s1 + $0x78] sm:$0xff]
  %v32 = vld [vmem:[%s1 + $0x80] sm:$0xff]
  %v33 = vld [vmem:[%s1 + $0x88] sm:$0xff]
  %v34 = vld [vmem:[%s1 + $0x90] sm:$0xff]
  %v35 = vld [vmem:[%s1 + $0x98] sm:$0xff]
  %v36 = vld [vmem:[%s1 + $0xa0] sm:$0xff]
  %v37 = vld [vmem:[%s1 + $0xa8] sm:$0xff]
  %v38 = vld [vmem:[%s1 + $0xb0] sm:$0xff]
  %v39 = vld [vmem:[%s1 + $0xb8] sm:$0xff]
  %v40 = vld [vmem:[%s1 + $0xc0] sm:$0xff]
  %v41 = vld [vmem:[%s1 + $0xc8] sm:$0xff]
  %v42 = vld [vmem:[%s1 + $0xd0] sm:$0xff]
  %v43 = vld [vmem:[%s1 + $0xd8] sm:$0xff]
  %v44 = vld [vmem:[%s1 + $0xe0] sm:$0xff]
  %v45 = vld [vmem:[%s1 + $0xe8] sm:$0xff]
  %v46 = vld [vmem:[%s1 + $0xf0] sm:$0xff]
  %v47 = vld [vmem:[%s1 + $0xf8] sm:$0xff]
  %v48 = vld [vmem:[%s2] sm:$0xff]
  %v49 = vld [vmem:[%s2 + $0x8] sm:$0xff]
  %v52 = vlaneseq
  %v53 = vshrl.u32 %v52, 7
  %v54 = vsub.s32 0, %v53
  %v55 = vrot.slane %v48, %v54
  %v56 = vlaneseq
  %v57 = vshrl.u32 %v56, 7
  %v58 = vsub.s32 1, %v57
  %v59 = vrot.slane %v48, %v58
  %v60 = vlaneseq
  %v61 = vshrl.u32 %v60, 7
  %v62 = vsub.s32 2, %v61
  %v63 = vrot.slane %v48, %v62
  %v64 = vlaneseq
  %v65 = vshrl.u32 %v64, 7
  %v66 = vsub.s32 3, %v65
  %v67 = vrot.slane %v48, %v66
  %v68 = vlaneseq
  %v69 = vshrl.u32 %v68, 7
  %v70 = vsub.s32 4, %v69
  %v71 = vrot.slane %v48, %v70
  %v72 = vlaneseq
  %v73 = vshrl.u32 %v72, 7
  %v74 = vsub.s32 5, %v73
  %v75 = vrot.slane %v48, %v74
  %v76 = vlaneseq
  %v77 = vshrl.u32 %v76, 7
  %v78 = vsub.s32 6, %v77
  %v79 = vrot.slane %v48, %v78
  %v80 = vlaneseq
  %v81 = vshrl.u32 %v80, 7
  %v82 = vsub.s32 7, %v81
  %v83 = vrot.slane %v48, %v82
  %v84 = vlaneseq
  %v85 = vshrl.u32 %v84, 7
  %v86 = vsub.s32 0, %v85
  %v87 = vrot.slane %v49, %v86
  %v88 = vlaneseq
  %v89 = vshrl.u32 %v88, 7
  %v90 = vsub.s32 1, %v89
  %v91 = vrot.slane %v49, %v90
  %v92 = vlaneseq
  %v93 = vshrl.u32 %v92, 7
  %v94 = vsub.s32 2, %v93
  %v95 = vrot.slane %v49, %v94
  %v96 = vlaneseq
  %v97 = vshrl.u32 %v96, 7
  %v98 = vsub.s32 3, %v97
  %v99 = vrot.slane %v49, %v98
  %v100 = vlaneseq
  %v101 = vshrl.u32 %v100, 7
  %v102 = vsub.s32 4, %v101
  %v103 = vrot.slane %v49, %v102
  %v104 = vlaneseq
  %v105 = vshrl.u32 %v104, 7
  %v106 = vsub.s32 5, %v105
  %v107 = vrot.slane %v49, %v106
  %v108 = vlaneseq
  %v109 = vshrl.u32 %v108, 7
  %v110 = vsub.s32 6, %v109
  %v111 = vrot.slane %v49, %v110
  %v112 = vlaneseq
  %v113 = vshrl.u32 %v112, 7
  %v114 = vsub.s32 7, %v113
  %v115 = vrot.slane %v49, %v114
  %v164 = vunpack.c.l.b16 %v16
  %v165 = vunpack.c.h.b16 %v16
  %v166 = vunpack.c.l.b16 %v17
  %v167 = vunpack.c.h.b16 %v17
  %v168 = vunpack.c.l.b16 %v18
  %v169 = vunpack.c.h.b16 %v18
  %v170 = vunpack.c.l.b16 %v19
  %v171 = vunpack.c.h.b16 %v19
  %v172 = vunpack.c.l.b16 %v20
  %v173 = vunpack.c.h.b16 %v20
  %v174 = vunpack.c.l.b16 %v21
  %v175 = vunpack.c.h.b16 %v21
  %v176 = vunpack.c.l.b16 %v22
  %v177 = vunpack.c.h.b16 %v22
  %v178 = vunpack.c.l.b16 %v23
  %v179 = vunpack.c.h.b16 %v23
  %v180 = vunpack.c.l.b16 %v24
  %v181 = vunpack.c.h.b16 %v24
  %v182 = vunpack.c.l.b16 %v25
  %v183 = vunpack.c.h.b16 %v25
  %v184 = vunpack.c.l.b16 %v26
  %v185 = vunpack.c.h.b16 %v26
  %v186 = vunpack.c.l.b16 %v27
  %v187 = vunpack.c.h.b16 %v27
  %v188 = vunpack.c.l.b16 %v28
  %v189 = vunpack.c.h.b16 %v28
  %v190 = vunpack.c.l.b16 %v29
  %v191 = vunpack.c.h.b16 %v29
  %v192 = vunpack.c.l.b16 %v30
  %v193 = vunpack.c.h.b16 %v30
  %v194 = vunpack.c.l.b16 %v31
  %v195 = vunpack.c.h.b16 %v31
  %v196 = vunpack.c.l.b16 %v32
  %v197 = vunpack.c.h.b16 %v32
  %v198 = vunpack.c.l.b16 %v33
  %v199 = vunpack.c.h.b16 %v33
  %v200 = vunpack.c.l.b16 %v34
  %v201 = vunpack.c.h.b16 %v34
  %v202 = vunpack.c.l.b16 %v35
  %v203 = vunpack.c.h.b16 %v35
  %v204 = vunpack.c.l.b16 %v36
  %v205 = vunpack.c.h.b16 %v36
  %v206 = vunpack.c.l.b16 %v37
  %v207 = vunpack.c.h.b16 %v37
  %v208 = vunpack.c.l.b16 %v38
  %v209 = vunpack.c.h.b16 %v38
  %v210 = vunpack.c.l.b16 %v39
  %v211 = vunpack.c.h.b16 %v39
  %v212 = vunpack.c.l.b16 %v40
  %v213 = vunpack.c.h.b16 %v40
  %v214 = vunpack.c.l.b16 %v41
  %v215 = vunpack.c.h.b16 %v41
  %v216 = vunpack.c.l.b16 %v42
  %v217 = vunpack.c.h.b16 %v42
  %v218 = vunpack.c.l.b16 %v43
  %v219 = vunpack.c.h.b16 %v43
  %v220 = vunpack.c.l.b16 %v44
  %v221 = vunpack.c.h.b16 %v44
  %v222 = vunpack.c.l.b16 %v45
  %v223 = vunpack.c.h.b16 %v45
  %v224 = vunpack.c.l.b16 %v46
  %v225 = vunpack.c.h.b16 %v46
  %v226 = vunpack.c.l.b16 %v47
  %v227 = vunpack.c.h.b16 %v47
  %v228 = vpack.c.b16 %v180, %v164
  %v229 = vpack.c.b16 %v181, %v165
  %v230 = vpack.c.b16 %v182, %v166
  %v231 = vpack.c.b16 %v183, %v167
  %v232 = vpack.c.b16 %v184, %v168
  %v233 = vpack.c.b16 %v185, %v169
  %v234 = vpack.c.b16 %v186, %v170
  %v235 = vpack.c.b16 %v187, %v171
  %v236 = vpack.c.b16 %v188, %v172
  %v237 = vpack.c.b16 %v189, %v173
  %v238 = vpack.c.b16 %v190, %v174
  %v239 = vpack.c.b16 %v191, %v175
  %v240 = vpack.c.b16 %v192, %v176
  %v241 = vpack.c.b16 %v193, %v177
  %v242 = vpack.c.b16 %v194, %v178
  %v243 = vpack.c.b16 %v195, %v179
  %v244 = vpack.c.b16 %v212, %v196
  %v245 = vpack.c.b16 %v213, %v197
  %v246 = vpack.c.b16 %v214, %v198
  %v247 = vpack.c.b16 %v215, %v199
  %v248 = vpack.c.b16 %v216, %v200
  %v249 = vpack.c.b16 %v217, %v201
  %v250 = vpack.c.b16 %v218, %v202
  %v251 = vpack.c.b16 %v219, %v203
  %v252 = vpack.c.b16 %v220, %v204
  %v253 = vpack.c.b16 %v221, %v205
  %v254 = vpack.c.b16 %v222, %v206
  %v255 = vpack.c.b16 %v223, %v207
  %v256 = vpack.c.b16 %v224, %v208
  %v257 = vpack.c.b16 %v225, %v209
  %v258 = vpack.c.b16 %v226, %v210
  %v259 = vpack.c.b16 %v227, %v211
  %vm292 = vcmask 261120
  %v294 = vsel %vm292, %v15, 0
  %296 = vmatprep.subr.bf16.mxu0 %v229
  %297 = vmatpush1.bf16.msra.mxu0 %v228
  %298 = vmatprep.subr.bf16.mxu0 %v245
  %299 = vmatpush1.bf16.msra.mxu0 %v244
  %300 = vmatprep.subr.bf16.mxu0 0
  %301 = vmatpush1.bf16.msra.mxu0 0
  %302 = vmatprep.subr.bf16.mxu0 0
  %303 = vmatpush1.bf16.msra.mxu0 0
  %304 = vmatprep.subr.bf16.mxu0 0
  %305 = vmatpush1.bf16.msra.mxu0 0
  %306 = vmatprep.subr.bf16.mxu0 0
  %307 = vmatpush1.bf16.msra.mxu0 0
  %308 = vmatprep.subr.bf16.mxu0 0
  %309 = vmatpush1.bf16.msra.mxu0 0
  %310 = vmatprep.subr.bf16.mxu0 0
  %311 = vmatpush1.bf16.msra.mxu0 0
  %312 = vmatprep.subr.bf16.mxu0 0
  %313 = vmatpush1.bf16.msra.mxu0 0
  %314 = vmatprep.subr.bf16.mxu0 0
  %315 = vmatpush1.bf16.msra.mxu0 0
  %316 = vmatprep.subr.bf16.mxu0 0
  %317 = vmatpush1.bf16.msra.mxu0 0
  %318 = vmatprep.subr.bf16.mxu0 0
  %319 = vmatpush1.bf16.msra.mxu0 0
  %320 = vmatprep.subr.bf16.mxu0 0
  %321 = vmatpush1.bf16.msra.mxu0 0
  %322 = vmatprep.subr.bf16.mxu0 0
  %323 = vmatpush1.bf16.msra.mxu0 0
  %324 = vmatprep.subr.bf16.mxu0 0
  %325 = vmatpush1.bf16.msra.mxu0 0
  %326 = vmatprep.subr.bf16.mxu0 0
  %327 = vmatpush1.bf16.msra.mxu0 0
  %328 = vmatprep.mubr.bf16.mxu0 0
  %329 = vmatmul.mubr.bf16.gmra.mrb[0].mxu0 %v294
  %v330 = vpop.f32.mrb[0].mxu0
  %v331 = vadd.f32 %v55, %v330
  %v332 = vpop.f32.mrb[0].mxu0
  %v333 = vadd.f32 %v59, %v332
  %v334 = vpop.f32.mrb[0].mxu0
  %v335 = vpop.f32.mrb[0].mxu0
  %336 = vdwg.mxu0
  %337 = vmatprep.subr.bf16.mxu0 %v231
  %338 = vmatpush1.bf16.msra.mxu0 %v230
  %339 = vmatprep.subr.bf16.mxu0 %v247
  %340 = vmatpush1.bf16.msra.mxu0 %v246
  %341 = vmatprep.subr.bf16.mxu0 0
  %342 = vmatpush1.bf16.msra.mxu0 0
  %343 = vmatprep.subr.bf16.mxu0 0
  %344 = vmatpush1.bf16.msra.mxu0 0
  %345 = vmatprep.subr.bf16.mxu0 0
  %346 = vmatpush1.bf16.msra.mxu0 0
  %347 = vmatprep.subr.bf16.mxu0 0
  %348 = vmatpush1.bf16.msra.mxu0 0
  %349 = vmatprep.subr.bf16.mxu0 0
  %350 = vmatpush1.bf16.msra.mxu0 0
  %351 = vmatprep.subr.bf16.mxu0 0
  %352 = vmatpush1.bf16.msra.mxu0 0
  %353 = vmatprep.subr.bf16.mxu0 0
  %354 = vmatpush1.bf16.msra.mxu0 0
  %355 = vmatprep.subr.bf16.mxu0 0
  %356 = vmatpush1.bf16.msra.mxu0 0
  %357 = vmatprep.subr.bf16.mxu0 0
  %358 = vmatpush1.bf16.msra.mxu0 0
  %359 = vmatprep.subr.bf16.mxu0 0
  %360 = vmatpush1.bf16.msra.mxu0 0
  %361 = vmatprep.subr.bf16.mxu0 0
  %362 = vmatpush1.bf16.msra.mxu0 0
  %363 = vmatprep.subr.bf16.mxu0 0
  %364 = vmatpush1.bf16.msra.mxu0 0
  %365 = vmatprep.subr.bf16.mxu0 0
  %366 = vmatpush1.bf16.msra.mxu0 0
  %367 = vmatprep.subr.bf16.mxu0 0
  %368 = vmatpush1.bf16.msra.mxu0 0
  %369 = vmatprep.mubr.bf16.mxu0 0
  %370 = vmatmul.mubr.bf16.gmra.mrb[0].mxu0 %v294
  %v371 = vpop.f32.mrb[0].mxu0
  %v372 = vadd.f32 %v63, %v371
  %v373 = vpop.f32.mrb[0].mxu0
  %v374 = vadd.f32 %v67, %v373
  %v375 = vpop.f32.mrb[0].mxu0
  %v376 = vpop.f32.mrb[0].mxu0
  %377 = vdwg.mxu0
  %378 = vmatprep.subr.bf16.mxu0 %v233
  %379 = vmatpush1.bf16.msra.mxu0 %v232
  %380 = vmatprep.subr.bf16.mxu0 %v249
  %381 = vmatpush1.bf16.msra.mxu0 %v248
  %382 = vmatprep.subr.bf16.mxu0 0
  %383 = vmatpush1.bf16.msra.mxu0 0
  %384 = vmatprep.subr.bf16.mxu0 0
  %385 = vmatpush1.bf16.msra.mxu0 0
  %386 = vmatprep.subr.bf16.mxu0 0
  %387 = vmatpush1.bf16.msra.mxu0 0
  %388 = vmatprep.subr.bf16.mxu0 0
  %389 = vmatpush1.bf16.msra.mxu0 0
  %390 = vmatprep.subr.bf16.mxu0 0
  %391 = vmatpush1.bf16.msra.mxu0 0
  %392 = vmatprep.subr.bf16.mxu0 0
  %393 = vmatpush1.bf16.msra.mxu0 0
  %394 = vmatprep.subr.bf16.mxu0 0
  %395 = vmatpush1.bf16.msra.mxu0 0
  %396 = vmatprep.subr.bf16.mxu0 0
  %397 = vmatpush1.bf16.msra.mxu0 0
  %398 = vmatprep.subr.bf16.mxu0 0
  %399 = vmatpush1.bf16.msra.mxu0 0
  %400 = vmatprep.subr.bf16.mxu0 0
  %401 = vmatpush1.bf16.msra.mxu0 0
  %402 = vmatprep.subr.bf16.mxu0 0
  %403 = vmatpush1.bf16.msra.mxu0 0
  %404 = vmatprep.subr.bf16.mxu0 0
  %405 = vmatpush1.bf16.msra.mxu0 0
  %406 = vmatprep.subr.bf16.mxu0 0
  %407 = vmatpush1.bf16.msra.mxu0 0
  %408 = vmatprep.subr.bf16.mxu0 0
  %409 = vmatpush1.bf16.msra.mxu0 0
  %410 = vmatprep.mubr.bf16.mxu0 0
  %411 = vmatmul.mubr.bf16.gmra.mrb[0].mxu0 %v294
  %v412 = vpop.f32.mrb[0].mxu0
  %v413 = vadd.f32 %v71, %v412
  %v414 = vpop.f32.mrb[0].mxu0
  %v415 = vadd.f32 %v75, %v414
  %v416 = vpop.f32.mrb[0].mxu0
  %v417 = vpop.f32.mrb[0].mxu0
  %418 = vdwg.mxu0
  %419 = vmatprep.subr.bf16.mxu0 %v235
  %420 = vmatpush1.bf16.msra.mxu0 %v234
  %421 = vmatprep.subr.bf16.mxu0 %v251
  %422 = vmatpush1.bf16.msra.mxu0 %v250
  %423 = vmatprep.subr.bf16.mxu0 0
  %424 = vmatpush1.bf16.msra.mxu0 0
  %425 = vmatprep.subr.bf16.mxu0 0
  %426 = vmatpush1.bf16.msra.mxu0 0
  %427 = vmatprep.subr.bf16.mxu0 0
  %428 = vmatpush1.bf16.msra.mxu0 0
  %429 = vmatprep.subr.bf16.mxu0 0
  %430 = vmatpush1.bf16.msra.mxu0 0
  %431 = vmatprep.subr.bf16.mxu0 0
  %432 = vmatpush1.bf16.msra.mxu0 0
  %433 = vmatprep.subr.bf16.mxu0 0
  %434 = vmatpush1.bf16.msra.mxu0 0
  %435 = vmatprep.subr.bf16.mxu0 0
  %436 = vmatpush1.bf16.msra.mxu0 0
  %437 = vmatprep.subr.bf16.mxu0 0
  %438 = vmatpush1.bf16.msra.mxu0 0
  %439 = vmatprep.subr.bf16.mxu0 0
  %440 = vmatpush1.bf16.msra.mxu0 0
  %441 = vmatprep.subr.bf16.mxu0 0
  %442 = vmatpush1.bf16.msra.mxu0 0
  %443 = vmatprep.subr.bf16.mxu0 0
  %444 = vmatpush1.bf16.msra.mxu0 0
  %445 = vmatprep.subr.bf16.mxu0 0
  %446 = vmatpush1.bf16.msra.mxu0 0
  %447 = vmatprep.subr.bf16.mxu0 0
  %448 = vmatpush1.bf16.msra.mxu0 0
  %449 = vmatprep.subr.bf16.mxu0 0
  %450 = vmatpush1.bf16.msra.mxu0 0
  %451 = vmatprep.mubr.bf16.mxu0 0
  %452 = vmatmul.mubr.bf16.gmra.mrb[0].mxu0 %v294
  %v453 = vpop.f32.mrb[0].mxu0
  %v454 = vadd.f32 %v79, %v453
  %v455 = vpop.f32.mrb[0].mxu0
  %v456 = vadd.f32 %v83, %v455
  %v457 = vpop.f32.mrb[0].mxu0
  %v458 = vpop.f32.mrb[0].mxu0
  %459 = vdwg.mxu0
  %460 = vmatprep.subr.bf16.mxu0 %v237
  %461 = vmatpush1.bf16.msra.mxu0 %v236
  %462 = vmatprep.subr.bf16.mxu0 %v253
  %463 = vmatpush1.bf16.msra.mxu0 %v252
  %464 = vmatprep.subr.bf16.mxu0 0
  %465 = vmatpush1.bf16.msra.mxu0 0
  %466 = vmatprep.subr.bf16.mxu0 0
  %467 = vmatpush1.bf16.msra.mxu0 0
  %468 = vmatprep.subr.bf16.mxu0 0
  %469 = vmatpush1.bf16.msra.mxu0 0
  %470 = vmatprep.subr.bf16.mxu0 0
  %471 = vmatpush1.bf16.msra.mxu0 0
  %472 = vmatprep.subr.bf16.mxu0 0
  %473 = vmatpush1.bf16.msra.mxu0 0
  %474 = vmatprep.subr.bf16.mxu0 0
  %475 = vmatpush1.bf16.msra.mxu0 0
  %476 = vmatprep.subr.bf16.mxu0 0
  %477 = vmatpush1.bf16.msra.mxu0 0
  %478 = vmatprep.subr.bf16.mxu0 0
  %479 = vmatpush1.bf16.msra.mxu0 0
  %480 = vmatprep.subr.bf16.mxu0 0
  %481 = vmatpush1.bf16.msra.mxu0 0
  %482 = vmatprep.subr.bf16.mxu0 0
  %483 = vmatpush1.bf16.msra.mxu0 0
  %484 = vmatprep.subr.bf16.mxu0 0
  %485 = vmatpush1.bf16.msra.mxu0 0
  %486 = vmatprep.subr.bf16.mxu0 0
  %487 = vmatpush1.bf16.msra.mxu0 0
  %488 = vmatprep.subr.bf16.mxu0 0
  %489 = vmatpush1.bf16.msra.mxu0 0
  %490 = vmatprep.subr.bf16.mxu0 0
  %491 = vmatpush1.bf16.msra.mxu0 0
  %492 = vmatprep.mubr.bf16.mxu0 0
  %493 = vmatmul.mubr.bf16.gmra.mrb[0].mxu0 %v294
  %v494 = vpop.f32.mrb[0].mxu0
  %v495 = vadd.f32 %v87, %v494
  %v496 = vpop.f32.mrb[0].mxu0
  %v497 = vadd.f32 %v91, %v496
  %v498 = vpop.f32.mrb[0].mxu0
  %v499 = vpop.f32.mrb[0].mxu0
  %500 = vdwg.mxu0
  %501 = vmatprep.subr.bf16.mxu0 %v239
  %502 = vmatpush1.bf16.msra.mxu0 %v238
  %503 = vmatprep.subr.bf16.mxu0 %v255
  %504 = vmatpush1.bf16.msra.mxu0 %v254
  %505 = vmatprep.subr.bf16.mxu0 0
  %506 = vmatpush1.bf16.msra.mxu0 0
  %507 = vmatprep.subr.bf16.mxu0 0
  %508 = vmatpush1.bf16.msra.mxu0 0
  %509 = vmatprep.subr.bf16.mxu0 0
  %510 = vmatpush1.bf16.msra.mxu0 0
  %511 = vmatprep.subr.bf16.mxu0 0
  %512 = vmatpush1.bf16.msra.mxu0 0
  %513 = vmatprep.subr.bf16.mxu0 0
  %514 = vmatpush1.bf16.msra.mxu0 0
  %515 = vmatprep.subr.bf16.mxu0 0
  %516 = vmatpush1.bf16.msra.mxu0 0
  %517 = vmatprep.subr.bf16.mxu0 0
  %518 = vmatpush1.bf16.msra.mxu0 0
  %519 = vmatprep.subr.bf16.mxu0 0
  %520 = vmatpush1.bf16.msra.mxu0 0
  %521 = vmatprep.subr.bf16.mxu0 0
  %522 = vmatpush1.bf16.msra.mxu0 0
  %523 = vmatprep.subr.bf16.mxu0 0
  %524 = vmatpush1.bf16.msra.mxu0 0
  %525 = vmatprep.subr.bf16.mxu0 0
  %526 = vmatpush1.bf16.msra.mxu0 0
  %527 = vmatprep.subr.bf16.mxu0 0
  %528 = vmatpush1.bf16.msra.mxu0 0
  %529 = vmatprep.subr.bf16.mxu0 0
  %530 = vmatpush1.bf16.msra.mxu0 0
  %531 = vmatprep.subr.bf16.mxu0 0
  %532 = vmatpush1.bf16.msra.mxu0 0
  %533 = vmatprep.mubr.bf16.mxu0 0
  %534 = vmatmul.mubr.bf16.gmra.mrb[0].mxu0 %v294
  %v535 = vpop.f32.mrb[0].mxu0
  %v536 = vadd.f32 %v95, %v535
  %v537 = vpop.f32.mrb[0].mxu0
  %v538 = vadd.f32 %v99, %v537
  %v539 = vpop.f32.mrb[0].mxu0
  %v540 = vpop.f32.mrb[0].mxu0
  %541 = vdwg.mxu0
  %542 = vmatprep.subr.bf16.mxu0 %v241
  %543 = vmatpush1.bf16.msra.mxu0 %v240
  %544 = vmatprep.subr.bf16.mxu0 %v257
  %545 = vmatpush1.bf16.msra.mxu0 %v256
  %546 = vmatprep.subr.bf16.mxu0 0
  %547 = vmatpush1.bf16.msra.mxu0 0
  %548 = vmatprep.subr.bf16.mxu0 0
  %549 = vmatpush1.bf16.msra.mxu0 0
  %550 = vmatprep.subr.bf16.mxu0 0
  %551 = vmatpush1.bf16.msra.mxu0 0
  %552 = vmatprep.subr.bf16.mxu0 0
  %553 = vmatpush1.bf16.msra.mxu0 0
  %554 = vmatprep.subr.bf16.mxu0 0
  %555 = vmatpush1.bf16.msra.mxu0 0
  %556 = vmatprep.subr.bf16.mxu0 0
  %557 = vmatpush1.bf16.msra.mxu0 0
  %558 = vmatprep.subr.bf16.mxu0 0
  %559 = vmatpush1.bf16.msra.mxu0 0
  %560 = vmatprep.subr.bf16.mxu0 0
  %561 = vmatpush1.bf16.msra.mxu0 0
  %562 = vmatprep.subr.bf16.mxu0 0
  %563 = vmatpush1.bf16.msra.mxu0 0
  %564 = vmatprep.subr.bf16.mxu0 0
  %565 = vmatpush1.bf16.msra.mxu0 0
  %566 = vmatprep.subr.bf16.mxu0 0
  %567 = vmatpush1.bf16.msra.mxu0 0
  %568 = vmatprep.subr.bf16.mxu0 0
  %569 = vmatpush1.bf16.msra.mxu0 0
  %570 = vmatprep.subr.bf16.mxu0 0
  %571 = vmatpush1.bf16.msra.mxu0 0
  %572 = vmatprep.subr.bf16.mxu0 0
  %573 = vmatpush1.bf16.msra.mxu0 0
  %574 = vmatprep.mubr.bf16.mxu0 0
  %575 = vmatmul.mubr.bf16.gmra.mrb[0].mxu0 %v294
  %v576 = vpop.f32.mrb[0].mxu0
  %v577 = vadd.f32 %v103, %v576
  %v578 = vpop.f32.mrb[0].mxu0
  %v579 = vadd.f32 %v107, %v578
  %v580 = vpop.f32.mrb[0].mxu0
  %v581 = vpop.f32.mrb[0].mxu0
  %582 = vdwg.mxu0
  %583 = vmatprep.subr.bf16.mxu0 %v243
  %584 = vmatpush1.bf16.msra.mxu0 %v242
  %585 = vmatprep.subr.bf16.mxu0 %v259
  %586 = vmatpush1.bf16.msra.mxu0 %v258
  %587 = vmatprep.subr.bf16.mxu0 0
  %588 = vmatpush1.bf16.msra.mxu0 0
  %589 = vmatprep.subr.bf16.mxu0 0
  %590 = vmatpush1.bf16.msra.mxu0 0
  %591 = vmatprep.subr.bf16.mxu0 0
  %592 = vmatpush1.bf16.msra.mxu0 0
  %593 = vmatprep.subr.bf16.mxu0 0
  %594 = vmatpush1.bf16.msra.mxu0 0
  %595 = vmatprep.subr.bf16.mxu0 0
  %596 = vmatpush1.bf16.msra.mxu0 0
  %597 = vmatprep.subr.bf16.mxu0 0
  %598 = vmatpush1.bf16.msra.mxu0 0
  %599 = vmatprep.subr.bf16.mxu0 0
  %600 = vmatpush1.bf16.msra.mxu0 0
  %601 = vmatprep.subr.bf16.mxu0 0
  %602 = vmatpush1.bf16.msra.mxu0 0
  %603 = vmatprep.subr.bf16.mxu0 0
  %604 = vmatpush1.bf16.msra.mxu0 0
  %605 = vmatprep.subr.bf16.mxu0 0
  %606 = vmatpush1.bf16.msra.mxu0 0
  %607 = vmatprep.subr.bf16.mxu0 0
  %608 = vmatpush1.bf16.msra.mxu0 0
  %609 = vmatprep.subr.bf16.mxu0 0
  %610 = vmatpush1.bf16.msra.mxu0 0
  %611 = vmatprep.subr.bf16.mxu0 0
  %612 = vmatpush1.bf16.msra.mxu0 0
  %613 = vmatprep.subr.bf16.mxu0 0
  %614 = vmatpush1.bf16.msra.mxu0 0
  %615 = vmatprep.mubr.bf16.mxu0 0
  %616 = vmatmul.mubr.bf16.gmra.mrb[0].mxu0 %v294
  %v617 = vpop.f32.mrb[0].mxu0
  %v618 = vadd.f32 %v111, %v617
  %v619 = vpop.f32.mrb[0].mxu0
  %v620 = vadd.f32 %v115, %v619
  %v621 = vpop.f32.mrb[0].mxu0
  %v622 = vpop.f32.mrb[0].mxu0
  %623 = vdwg.mxu0
  %v624 = vpack.c.bf16 %v331, %v331
  %v625 = vpack.c.bf16 %v333, %v333
  %v626 = vpack.c.bf16 %v372, %v372
  %v627 = vpack.c.bf16 %v374, %v374
  %v628 = vpack.c.bf16 %v413, %v413
  %v629 = vpack.c.bf16 %v415, %v415
  %v630 = vpack.c.bf16 %v454, %v454
  %v631 = vpack.c.bf16 %v456, %v456
  %v632 = vpack.c.bf16 %v495, %v495
  %v633 = vpack.c.bf16 %v497, %v497
  %v634 = vpack.c.bf16 %v536, %v536
  %v635 = vpack.c.bf16 %v538, %v538
  %v636 = vpack.c.bf16 %v577, %v577
  %v637 = vpack.c.bf16 %v579, %v579
  %v638 = vpack.c.bf16 %v618, %v618
  %v639 = vpack.c.bf16 %v620, %v620
  %v656 = vcombine.low %v624, %v625
  %v657 = vcombine.low %v626, %v627
  %v658 = vcombine.low %v628, %v629
  %v659 = vcombine.low %v630, %v631
  %v661 = vunpack.c.l.s4 1966171168
  %v662 = vunpack.c.0.s8 %v661
  %v663 = vlaneseq
  %v664 = vshrl.u32 %v663, 7
  %v665 = vsub.s32 %v662, %v664
  %v666 = vrot.slane %v656, %v665
  %v668 = vunpack.c.l.s4 1966171168
  %v669 = vunpack.c.0.s8 %v668
  %v670 = vlaneseq
  %v671 = vshrl.u32 %v670, 7
  %v672 = vsub.s32 %v669, %v671
  %v673 = vrot.slane %v657, %v672
  %v675 = vunpack.c.l.s4 1966171168
  %v676 = vunpack.c.0.s8 %v675
  %v677 = vlaneseq
  %v678 = vshrl.u32 %v677, 7
  %v679 = vsub.s32 %v676, %v678
  %v680 = vrot.slane %v658, %v679
  %v682 = vunpack.c.l.s4 1966171168
  %v683 = vunpack.c.0.s8 %v682
  %v684 = vlaneseq
  %v685 = vshrl.u32 %v684, 7
  %v686 = vsub.s32 %v683, %v685
  %v687 = vrot.slane %v659, %v686
  %v688 = vcombine.low %v666, %v673
  %v689 = vcombine.low %v680, %v687
  %v691 = vunpack.c.l.s4 1966171168
  %v692 = vunpack.c.0.s8 %v691
  %v693 = vlaneseq
  %v694 = vshrl.u32 %v693, 7
  %v695 = vsub.s32 %v692, %v694
  %v696 = vrot.slane %v688, %v695
  %v698 = vunpack.c.l.s4 1966171168
  %v699 = vunpack.c.0.s8 %v698
  %v700 = vlaneseq
  %v701 = vshrl.u32 %v700, 7
  %v702 = vsub.s32 %v699, %v701
  %v703 = vrot.slane %v689, %v702
  %v704 = vcombine.low %v696, %v703
  %v705 = vcombine.low %v632, %v633
  %v706 = vcombine.low %v634, %v635
  %v707 = vcombine.low %v636, %v637
  %v708 = vcombine.low %v638, %v639
  %v710 = vunpack.c.l.s4 1966171168
  %v711 = vunpack.c.0.s8 %v710
  %v712 = vlaneseq
  %v713 = vshrl.u32 %v712, 7
  %v714 = vsub.s32 %v711, %v713
  %v715 = vrot.slane %v705, %v714
  %v717 = vunpack.c.l.s4 1966171168
  %v718 = vunpack.c.0.s8 %v717
  %v719 = vlaneseq
  %v720 = vshrl.u32 %v719, 7
  %v721 = vsub.s32 %v718, %v720
  %v722 = vrot.slane %v706, %v721
  %v724 = vunpack.c.l.s4 1966171168
  %v725 = vunpack.c.0.s8 %v724
  %v726 = vlaneseq
  %v727 = vshrl.u32 %v726, 7
  %v728 = vsub.s32 %v725, %v727
  %v729 = vrot.slane %v707, %v728
  %v731 = vunpack.c.l.s4 1966171168
  %v732 = vunpack.c.0.s8 %v731
  %v733 = vlaneseq
  %v734 = vshrl.u32 %v733, 7
  %v735 = vsub.s32 %v732, %v734
  %v736 = vrot.slane %v708, %v735
  %v737 = vcombine.low %v715, %v722
  %v738 = vcombine.low %v729, %v736
  %v740 = vunpack.c.l.s4 1966171168
  %v741 = vunpack.c.0.s8 %v740
  %v742 = vlaneseq
  %v743 = vshrl.u32 %v742, 7
  %v744 = vsub.s32 %v741, %v743
  %v745 = vrot.slane %v737, %v744
  %v747 = vunpack.c.l.s4 1966171168
  %v748 = vunpack.c.0.s8 %v747
  %v749 = vlaneseq
  %v750 = vshrl.u32 %v749, 7
  %v751 = vsub.s32 %v748, %v750
  %v752 = vrot.slane %v738, %v751
  %v753 = vcombine.low %v745, %v752
  %756 = vst [vmem:[%s3] sm:$0xff] %v704
  %757 = vst [vmem:[%s3 + $0x8] sm:$0xff] %v753
  // Predicated region
  $region14: #{decoder_forward.6} parent=0 // pred_check
    _
  $region15: #{decoder_forward.6} parent=0 // pred_check_branch
    %759 = sbr.rel (0) target = $region17
  $region16: #{decoder_forward.6} parent=0 // pred_region
    _
  $region17: #{decoder_forward.6} parent=0 // pred_fallthru
    _
  // Predicated region
  $region18: #{decoder_forward.6} parent=0 // pred_check
    _
  $region19: #{decoder_forward.6} parent=0 // pred_check_branch
    %761 = sbr.rel (0) target = $region21
  $region20: #{decoder_forward.6} parent=0 // pred_region
    _
  $region21: #{decoder_forward.6} parent=0 // pred_fallthru
    _

// kernel: tile.43
$region0: #{tile.43}
  #allocation0 [shape = 's32[1]{0}', space=sflag, size = 0x4, scoped, tag = 'scoped memory for tile.43']
  %s0 = inlined_call_operand.vmem [shape: f32[128], index: 0, kind: input, shape index: {}]
  %s1 = inlined_call_operand.vmem [shape: f32[4,128], index: 1, kind: output, shape index: {}]
  // Predicated region
  $region2: #{tile.43} parent=0 // pred_check
    _
  $region3: #{tile.43} parent=0 // pred_check_branch
    %3 = sbr.rel (0) target = $region5
  $region4: #{tile.43} parent=0 // pred_region
    _
  $region5: #{tile.43} parent=0 // pred_fallthru
    _
  %v4 = vld [vmem:[%s0] ss:$0 sm:$0xff]
  %5 = vst [vmem:[%s1] sm:$0xf] %v4

// kernel: decoder_forward.7
$region0: #{decoder_forward.7}
  #allocation0 [shape = 'u32[]', space=smem, size = 0x4, offset = 0x4, fixed_abs, tag = 'smem constant byte address 0x4 - core index']
  #allocation1 [shape = 'u32[144,128]{1,0:T(1,128)}', space=vmem, size = 0x12000, scoped, tag = 'internal scratch']
  %s0 = inlined_call_operand.vmem [shape: bf16[8,2048], index: 0, kind: input, shape index: {}]
  %s1 = inlined_call_operand.vmem [shape: bf16[2048,512], index: 1, kind: input, shape index: {}]
  %s2 = inlined_call_operand.vmem [shape: f32[1,512], index: 2, kind: input, shape index: {}]
  %s3 = inlined_call_operand.vmem [shape: f32[1,512], index: 3, kind: input, shape index: {}]
  %s4 = inlined_call_operand.vmem [shape: bf16[8,512], index: 4, kind: output, shape index: {}]
  %s5 = sld [smem:[#allocation0]]
  $region26: #{decoder_forward.7} parent=0
    _
  %s7 = ssub.s32 1, %s5
  %s8 = scalar_select 0, %s7, %s5
  // Predicated region
  $region2: #{decoder_forward.7} parent=0 // pred_check
    _
  $region3: #{decoder_forward.7} parent=0 // pred_check_branch
    %10 = sbr.rel (0) target = $region5
  $region4: #{decoder_forward.7} parent=0 // pred_region
    _
  $region5: #{decoder_forward.7} parent=0 // pred_fallthru
    _
  // Predicated region
  $region6: #{decoder_forward.7} parent=0 // pred_check
    _
  $region7: #{decoder_forward.7} parent=0 // pred_check_branch
    %12 = sbr.rel (0) target = $region9
  $region8: #{decoder_forward.7} parent=0 // pred_region
    _
  $region9: #{decoder_forward.7} parent=0 // pred_fallthru
    _
  // Predicated region
  $region10: #{decoder_forward.7} parent=0 // pred_check
    _
  $region11: #{decoder_forward.7} parent=0 // pred_check_branch
    %14 = sbr.rel (0) target = $region13
  $region12: #{decoder_forward.7} parent=0 // pred_region
    _
  $region13: #{decoder_forward.7} parent=0 // pred_fallthru
    _
  // Predicated region
  $region14: #{decoder_forward.7} parent=0 // pred_check
    _
  $region15: #{decoder_forward.7} parent=0 // pred_check_branch
    %16 = sbr.rel (0) target = $region17
  $region16: #{decoder_forward.7} parent=0 // pred_region
    _
  $region17: #{decoder_forward.7} parent=0 // pred_fallthru
    _
  %v17 = vld [vmem:[%s0] sm:$0xff]
  %v18 = vld [vmem:[%s0 + $0x8] sm:$0xff]
  %v19 = vld [vmem:[%s0 + $0x10] sm:$0xff]
  %v20 = vld [vmem:[%s0 + $0x18] sm:$0xff]
  %v21 = vld [vmem:[%s0 + $0x20] sm:$0xff]
  %v22 = vld [vmem:[%s0 + $0x28] sm:$0xff]
  %v23 = vld [vmem:[%s0 + $0x30] sm:$0xff]
  %v24 = vld [vmem:[%s0 + $0x38] sm:$0xff]
  %v25 = vld [vmem:[%s1] sm:$0xff]
  %v26 = vld [vmem:[%s1 + $0x8] sm:$0xff]
  %v27 = vld [vmem:[%s1 + $0x10] sm:$0xff]
  %v28 = vld [vmem:[%s1 + $0x18] sm:$0xff]
  %v29 = vld [vmem:[%s1 + $0x20] sm:$0xff]
  %v30 = vld [vmem:[%s1 + $0x28] sm:$0xff]
  %v31 = vld [vmem:[%s1 + $0x30] sm:$0xff]
  %v32 = vld [vmem:[%s1 + $0x38] sm:$0xff]
  %v33 = vld [vmem:[%s1 + $0x40] sm:$0xff]
  %v34 = vld [vmem:[%s1 + $0x48] sm:$0xff]
  %v35 = vld [vmem:[%s1 + $0x50] sm:$0xff]
  %v36 = vld [vmem:[%s1 + $0x58] sm:$0xff]
  %v37 = vld [vmem:[%s1 + $0x60] sm:$0xff]
  %v38 = vld [vmem:[%s1 + $0x68] sm:$0xff]
  %v39 = vld [vmem:[%s1 + $0x70] sm:$0xff]
  %v40 = vld [vmem:[%s1 + $0x78] sm:$0xff]
  %v41 = vld [vmem:[%s1 + $0x80] sm:$0xff]
  %v42 = vld [vmem:[%s1 + $0x88] sm:$0xff]
  %v43 = vld [vmem:[%s1 + $0x90] sm:$0xff]
  %v44 = vld [vmem:[%s1 + $0x98] sm:$0xff]
  %v45 = vld [vmem:[%s1 + $0xa0] sm:$0xff]
  %v46 = vld [vmem:[%s1 + $0xa8] sm:$0xff]
  %v47 = vld [vmem:[%s1 + $0xb0] sm:$0xff]
  %v48 = vld [vmem:[%s1 + $0xb8] sm:$0xff]
  %v49 = vld [vmem:[%s1 + $0xc0] sm:$0xff]
  %v50 = vld [vmem:[%s1 + $0xc8] sm:$0xff]
  %v51 = vld [vmem:[%s1 + $0xd0] sm:$0xff]
  %v52 = vld [vmem:[%s1 + $0xd8] sm:$0xff]
  %v53 = vld [vmem:[%s1 + $0xe0] sm:$0xff]
  %v54 = vld [vmem:[%s1 + $0xe8] sm:$0xff]
  %v55 = vld [vmem:[%s1 + $0xf0] sm:$0xff]
  %v56 = vld [vmem:[%s1 + $0xf8] sm:$0xff]
  %v57 = vld [vmem:[%s1 + $0x100] sm:$0xff]
  %v58 = vld [vmem:[%s1 + $0x108] sm:$0xff]
  %v59 = vld [vmem:[%s1 + $0x110] sm:$0xff]
  %v60 = vld [vmem:[%s1 + $0x118] sm:$0xff]
  %v61 = vld [vmem:[%s1 + $0x120] sm:$0xff]
  %v62 = vld [vmem:[%s1 + $0x128] sm:$0xff]
  %v63 = vld [vmem:[%s1 + $0x130] sm:$0xff]
  %v64 = vld [vmem:[%s1 + $0x138] sm:$0xff]
  %v65 = vld [vmem:[%s1 + $0x140] sm:$0xff]
  %v66 = vld [vmem:[%s1 + $0x148] sm:$0xff]
  %v67 = vld [vmem:[%s1 + $0x150] sm:$0xff]
  %v68 = vld [vmem:[%s1 + $0x158] sm:$0xff]
  %v69 = vld [vmem:[%s1 + $0x160] sm:$0xff]
  %v70 = vld [vmem:[%s1 + $0x168] sm:$0xff]
  %v71 = vld [vmem:[%s1 + $0x170] sm:$0xff]
  %v72 = vld [vmem:[%s1 + $0x178] sm:$0xff]
  %v73 = vld [vmem:[%s1 + $0x180] sm:$0xff]
  %v74 = vld [vmem:[%s1 + $0x188] sm:$0xff]
  %v75 = vld [vmem:[%s1 + $0x190] sm:$0xff]
  %v76 = vld [vmem:[%s1 + $0x198] sm:$0xff]
  %v77 = vld [vmem:[%s1 + $0x1a0] sm:$0xff]
  %v78 = vld [vmem:[%s1 + $0x1a8] sm:$0xff]
  %v79 = vld [vmem:[%s1 + $0x1b0] sm:$0xff]
  %v80 = vld [vmem:[%s1 + $0x1b8] sm:$0xff]
  %v81 = vld [vmem:[%s1 + $0x1c0] sm:$0xff]
  %v82 = vld [vmem:[%s1 + $0x1c8] sm:$0xff]
  %v83 = vld [vmem:[%s1 + $0x1d0] sm:$0xff]
  %v84 = vld [vmem:[%s1 + $0x1d8] sm:$0xff]
  %v85 = vld [vmem:[%s1 + $0x1e0] sm:$0xff]
  %v86 = vld [vmem:[%s1 + $0x1e8] sm:$0xff]
  %v87 = vld [vmem:[%s1 + $0x1f0] sm:$0xff]
  %v88 = vld [vmem:[%s1 + $0x1f8] sm:$0xff]
  %v89 = vld [vmem:[%s1 + $0x200] sm:$0xff]
  %v90 = vld [vmem:[%s1 + $0x208] sm:$0xff]
  %v91 = vld [vmem:[%s1 + $0x210] sm:$0xff]
  %v92 = vld [vmem:[%s1 + $0x218] sm:$0xff]
  %v93 = vld [vmem:[%s1 + $0x220] sm:$0xff]
  %v94 = vld [vmem:[%s1 + $0x228] sm:$0xff]
  %v95 = vld [vmem:[%s1 + $0x230] sm:$0xff]
  %v96 = vld [vmem:[%s1 + $0x238] sm:$0xff]
  %v97 = vld [vmem:[%s1 + $0x240] sm:$0xff]
  %v98 = vld [vmem:[%s1 + $0x248] sm:$0xff]
  %v99 = vld [vmem:[%s1 + $0x250] sm:$0xff]
  %v100 = vld [vmem:[%s1 + $0x258] sm:$0xff]
  %v101 = vld [vmem:[%s1 + $0x260] sm:$0xff]
  %v102 = vld [vmem:[%s1 + $0x268] sm:$0xff]
  %v103 = vld [vmem:[%s1 + $0x270] sm:$0xff]
  %v104 = vld [vmem:[%s1 + $0x278] sm:$0xff]
  %v105 = vld [vmem:[%s1 + $0x280] sm:$0xff]
  %v106 = vld [vmem:[%s1 + $0x288] sm:$0xff]
  %v107 = vld [vmem:[%s1 + $0x290] sm:$0xff]
  %v108 = vld [vmem:[%s1 + $0x298] sm:$0xff]
  %v109 = vld [vmem:[%s1 + $0x2a0] sm:$0xff]
  %v110 = vld [vmem:[%s1 + $0x2a8] sm:$0xff]
  %v111 = vld [vmem:[%s1 + $0x2b0] sm:$0xff]
  %v112 = vld [vmem:[%s1 + $0x2b8] sm:$0xff]
  %v113 = vld [vmem:[%s1 + $0x2c0] sm:$0xff]
  %v114 = vld [vmem:[%s1 + $0x2c8] sm:$0xff]
  %v115 = vld [vmem:[%s1 + $0x2d0] sm:$0xff]
  %v116 = vld [vmem:[%s1 + $0x2d8] sm:$0xff]
  %v117 = vld [vmem:[%s1 + $0x2e0] sm:$0xff]
  %v118 = vld [vmem:[%s1 + $0x2e8] sm:$0xff]
  %v119 = vld [vmem:[%s1 + $0x2f0] sm:$0xff]
  %v120 = vld [vmem:[%s1 + $0x2f8] sm:$0xff]
  %v121 = vld [vmem:[%s1 + $0x300] sm:$0xff]
  %v122 = vld [vmem:[%s1 + $0x308] sm:$0xff]
  %v123 = vld [vmem:[%s1 + $0x310] sm:$0xff]
  %v124 = vld [vmem:[%s1 + $0x318] sm:$0xff]
  %v125 = vld [vmem:[%s1 + $0x320] sm:$0xff]
  %v126 = vld [vmem:[%s1 + $0x328] sm:$0xff]
  %v127 = vld [vmem:[%s1 + $0x330] sm:$0xff]
  %v128 = vld [vmem:[%s1 + $0x338] sm:$0xff]
  %v129 = vld [vmem:[%s1 + $0x340] sm:$0xff]
  %v130 = vld [vmem:[%s1 + $0x348] sm:$0xff]
  %v131 = vld [vmem:[%s1 + $0x350] sm:$0xff]
  %v132 = vld [vmem:[%s1 + $0x358] sm:$0xff]
  %v133 = vld [vmem:[%s1 + $0x360] sm:$0xff]
  %v134 = vld [vmem:[%s1 + $0x368] sm:$0xff]
  %v135 = vld [vmem:[%s1 + $0x370] sm:$0xff]
  %v136 = vld [vmem:[%s1 + $0x378] sm:$0xff]
  %v137 = vld [vmem:[%s1 + $0x380] sm:$0xff]
  %v138 = vld [vmem:[%s1 + $0x388] sm:$0xff]
  %v139 = vld [vmem:[%s1 + $0x390] sm:$0xff]
  %v140 = vld [vmem:[%s1 + $0x398] sm:$0xff]
  %v141 = vld [vmem:[%s1 + $0x3a0] sm:$0xff]
  %v142 = vld [vmem:[%s1 + $0x3a8] sm:$0xff]
  %v143 = vld [vmem:[%s1 + $0x3b0] sm:$0xff]
  %v144 = vld [vmem:[%s1 + $0x3b8] sm:$0xff]
  %v145 = vld [vmem:[%s1 + $0x3c0] sm:$0xff]
  %v146 = vld [vmem:[%s1 + $0x3c8] sm:$0xff]
  %v147 = vld [vmem:[%s1 + $0x3d0] sm:$0xff]
  %v148 = vld [vmem:[%s1 + $0x3d8] sm:$0xff]
  %v149 = vld [vmem:[%s1 + $0x3e0] sm:$0xff]
  %v150 = vld [vmem:[%s1 + $0x3e8] sm:$0xff]
  %v151 = vld [vmem:[%s1 + $0x3f0] sm:$0xff]
  %v152 = vld [vmem:[%s1 + $0x3f8] sm:$0xff]
  %v153 = vld [vmem:[%s1 + $0x400] sm:$0xff]
  %v154 = vld [vmem:[%s1 + $0x408] sm:$0xff]
  %v155 = vld [vmem:[%s1 + $0x410] sm:$0xff]
  %v156 = vld [vmem:[%s1 + $0x418] sm:$0xff]
  %v157 = vld [vmem:[%s1 + $0x420] sm:$0xff]
  %v158 = vld [vmem:[%s1 + $0x428] sm:$0xff]
  %v159 = vld [vmem:[%s1 + $0x430] sm:$0xff]
  %v160 = vld [vmem:[%s1 + $0x438] sm:$0xff]
  %v161 = vld [vmem:[%s1 + $0x440] sm:$0xff]
  %v162 = vld [vmem:[%s1 + $0x448] sm:$0xff]
  %v163 = vld [vmem:[%s1 + $0x450] sm:$0xff]
  %v164 = vld [vmem:[%s1 + $0x458] sm:$0xff]
  %v165 = vld [vmem:[%s1 + $0x460] sm:$0xff]
  %v166 = vld [vmem:[%s1 + $0x468] sm:$0xff]
  %v167 = vld [vmem:[%s1 + $0x470] sm:$0xff]
  %v168 = vld [vmem:[%s1 + $0x478] sm:$0xff]
  %v169 = vld [vmem:[%s1 + $0x480] sm:$0xff]
  %v170 = vld [vmem:[%s1 + $0x488] sm:$0xff]
  %v171 = vld [vmem:[%s1 + $0x490] sm:$0xff]
  %v172 = vld [vmem:[%s1 + $0x498] sm:$0xff]
  %v173 = vld [vmem:[%s1 + $0x4a0] sm:$0xff]
  %v174 = vld [vmem:[%s1 + $0x4a8] sm:$0xff]
  %v175 = vld [vmem:[%s1 + $0x4b0] sm:$0xff]
  %v176 = vld [vmem:[%s1 + $0x4b8] sm:$0xff]
  %v177 = vld [vmem:[%s1 + $0x4c0] sm:$0xff]
  %v178 = vld [vmem:[%s1 + $0x4c8] sm:$0xff]
  %v179 = vld [vmem:[%s1 + $0x4d0] sm:$0xff]
  %v180 = vld [vmem:[%s1 + $0x4d8] sm:$0xff]
  %v181 = vld [vmem:[%s1 + $0x4e0] sm:$0xff]
  %v182 = vld [vmem:[%s1 + $0x4e8] sm:$0xff]
  %v183 = vld [vmem:[%s1 + $0x4f0] sm:$0xff]
  %v184 = vld [vmem:[%s1 + $0x4f8] sm:$0xff]
  %v185 = vld [vmem:[%s1 + $0x500] sm:$0xff]
  %v186 = vld [vmem:[%s1 + $0x508] sm:$0xff]
  %v187 = vld [vmem:[%s1 + $0x510] sm:$0xff]
  %v188 = vld [vmem:[%s1 + $0x518] sm:$0xff]
  %v189 = vld [vmem:[%s1 + $0x520] sm:$0xff]
  %v190 = vld [vmem:[%s1 + $0x528] sm:$0xff]
  %v191 = vld [vmem:[%s1 + $0x530] sm:$0xff]
  %v192 = vld [vmem:[%s1 + $0x538] sm:$0xff]
  %v193 = vld [vmem:[%s1 + $0x540] sm:$0xff]
  %v194 = vld [vmem:[%s1 + $0x548] sm:$0xff]
  %v195 = vld [vmem:[%s1 + $0x550] sm:$0xff]
  %v196 = vld [vmem:[%s1 + $0x558] sm:$0xff]
  %v197 = vld [vmem:[%s1 + $0x560] sm:$0xff]
  %v198 = vld [vmem:[%s1 + $0x568] sm:$0xff]
  %v199 = vld [vmem:[%s1 + $0x570] sm:$0xff]
  %v200 = vld [vmem:[%s1 + $0x578] sm:$0xff]
  %v201 = vld [vmem:[%s1 + $0x580] sm:$0xff]
  %v202 = vld [vmem:[%s1 + $0x588] sm:$0xff]
  %v203 = vld [vmem:[%s1 + $0x590] sm:$0xff]
  %v204 = vld [vmem:[%s1 + $0x598] sm:$0xff]
  %v205 = vld [vmem:[%s1 + $0x5a0] sm:$0xff]
  %v206 = vld [vmem:[%s1 + $0x5a8] sm:$0xff]
  %v207 = vld [vmem:[%s1 + $0x5b0] sm:$0xff]
  %v208 = vld [vmem:[%s1 + $0x5b8] sm:$0xff]
  %v209 = vld [vmem:[%s1 + $0x5c0] sm:$0xff]
  %v210 = vld [vmem:[%s1 + $0x5c8] sm:$0xff]
  %v211 = vld [vmem:[%s1 + $0x5d0] sm:$0xff]
  %v212 = vld [vmem:[%s1 + $0x5d8] sm:$0xff]
  %v213 = vld [vmem:[%s1 + $0x5e0] sm:$0xff]
  %v214 = vld [vmem:[%s1 + $0x5e8] sm:$0xff]
  %v215 = vld [vmem:[%s1 + $0x5f0] sm:$0xff]
  %v216 = vld [vmem:[%s1 + $0x5f8] sm:$0xff]
  %v217 = vld [vmem:[%s1 + $0x600] sm:$0xff]
  %v218 = vld [vmem:[%s1 + $0x608] sm:$0xff]
  %v219 = vld [vmem:[%s1 + $0x610] sm:$0xff]
  %v220 = vld [vmem:[%s1 + $0x618] sm:$0xff]
  %v221 = vld [vmem:[%s1 + $0x620] sm:$0xff]
  %v222 = vld [vmem:[%s1 + $0x628] sm:$0xff]
  %v223 = vld [vmem:[%s1 + $0x630] sm:$0xff]
  %v224 = vld [vmem:[%s1 + $0x638] sm:$0xff]
  %v225 = vld [vmem:[%s1 + $0x640] sm:$0xff]
  %v226 = vld [vmem:[%s1 + $0x648] sm:$0xff]
  %v227 = vld [vmem:[%s1 + $0x650] sm:$0xff]
  %v228 = vld [vmem:[%s1 + $0x658] sm:$0xff]
  %v229 = vld [vmem:[%s1 + $0x660] sm:$0xff]
  %v230 = vld [vmem:[%s1 + $0x668] sm:$0xff]
  %v231 = vld [vmem:[%s1 + $0x670] sm:$0xff]
  %v232 = vld [vmem:[%s1 + $0x678] sm:$0xff]
  %v233 = vld [vmem:[%s1 + $0x680] sm:$0xff]
  %v234 = vld [vmem:[%s1 + $0x688] sm:$0xff]
  %v235 = vld [vmem:[%s1 + $0x690] sm:$0xff]
  %v236 = vld [vmem:[%s1 + $0x698] sm:$0xff]
  %v237 = vld [vmem:[%s1 + $0x6a0] sm:$0xff]
  %v238 = vld [vmem:[%s1 + $0x6a8] sm:$0xff]
  %v239 = vld [vmem:[%s1 + $0x6b0] sm:$0xff]
  %v240 = vld [vmem:[%s1 + $0x6b8] sm:$0xff]
  %v241 = vld [vmem:[%s1 + $0x6c0] sm:$0xff]
  %v242 = vld [vmem:[%s1 + $0x6c8] sm:$0xff]
  %v243 = vld [vmem:[%s1 + $0x6d0] sm:$0xff]
  %v244 = vld [vmem:[%s1 + $0x6d8] sm:$0xff]
  %v245 = vld [vmem:[%s1 + $0x6e0] sm:$0xff]
  %v246 = vld [vmem:[%s1 + $0x6e8] sm:$0xff]
  %v247 = vld [vmem:[%s1 + $0x6f0] sm:$0xff]
  %v248 = vld [vmem:[%s1 + $0x6f8] sm:$0xff]
  %v249 = vld [vmem:[%s1 + $0x700] sm:$0xff]
  %v250 = vld [vmem:[%s1 + $0x708] sm:$0xff]
  %v251 = vld [vmem:[%s1 + $0x710] sm:$0xff]
  %v252 = vld [vmem:[%s1 + $0x718] sm:$0xff]
  %v253 = vld [vmem:[%s1 + $0x720] sm:$0xff]
  %v254 = vld [vmem:[%s1 + $0x728] sm:$0xff]
  %v255 = vld [vmem:[%s1 + $0x730] sm:$0xff]
  %v256 = vld [vmem:[%s1 + $0x738] sm:$0xff]
  %v257 = vld [vmem:[%s1 + $0x740] sm:$0xff]
  %v258 = vld [vmem:[%s1 + $0x748] sm:$0xff]
  %v259 = vld [vmem:[%s1 + $0x750] sm:$0xff]
  %v260 = vld [vmem:[%s1 + $0x758] sm:$0xff]
  %v261 = vld [vmem:[%s1 + $0x760] sm:$0xff]
  %v262 = vld [vmem:[%s1 + $0x768] sm:$0xff]
  %v263 = vld [vmem:[%s1 + $0x770] sm:$0xff]
  %v264 = vld [vmem:[%s1 + $0x778] sm:$0xff]
  %v265 = vld [vmem:[%s1 + $0x780] sm:$0xff]
  %v266 = vld [vmem:[%s1 + $0x788] sm:$0xff]
  %v267 = vld [vmem:[%s1 + $0x790] sm:$0xff]
  %v268 = vld [vmem:[%s1 + $0x798] sm:$0xff]
  %v269 = vld [vmem:[%s1 + $0x7a0] sm:$0xff]
  %v270 = vld [vmem:[%s1 + $0x7a8] sm:$0xff]
  %v271 = vld [vmem:[%s1 + $0x7b0] sm:$0xff]
  %v272 = vld [vmem:[%s1 + $0x7b8] sm:$0xff]
  %v273 = vld [vmem:[%s1 + $0x7c0] sm:$0xff]
  %v274 = vld [vmem:[%s1 + $0x7c8] sm:$0xff]
  %v275 = vld [vmem:[%s1 + $0x7d0] sm:$0xff]
  %v276 = vld [vmem:[%s1 + $0x7d8] sm:$0xff]
  %v277 = vld [vmem:[%s1 + $0x7e0] sm:$0xff]
  %v278 = vld [vmem:[%s1 + $0x7e8] sm:$0xff]
  %v279 = vld [vmem:[%s1 + $0x7f0] sm:$0xff]
  %v280 = vld [vmem:[%s1 + $0x7f8] sm:$0xff]
  %v281 = vld [vmem:[%s1 + $0x800] sm:$0xff]
  %v282 = vld [vmem:[%s1 + $0x808] sm:$0xff]
  %v283 = vld [vmem:[%s1 + $0x810] sm:$0xff]
  %v284 = vld [vmem:[%s1 + $0x818] sm:$0xff]
  %v285 = vld [vmem:[%s1 + $0x820] sm:$0xff]
  %v286 = vld [vmem:[%s1 + $0x828] sm:$0xff]
  %v287 = vld [vmem:[%s1 + $0x830] sm:$0xff]
  %v288 = vld [vmem:[%s1 + $0x838] sm:$0xff]
  %v289 = vld [vmem:[%s1 + $0x840] sm:$0xff]
  %v290 = vld [vmem:[%s1 + $0x848] sm:$0xff]
  %v291 = vld [vmem:[%s1 + $0x850] sm:$0xff]
  %v292 = vld [vmem:[%s1 + $0x858] sm:$0xff]
  %v293 = vld [vmem:[%s1 + $0x860] sm:$0xff]
  %v294 = vld [vmem:[%s1 + $0x868] sm:$0xff]
  %v295 = vld [vmem:[%s1 + $0x870] sm:$0xff]
  %v296 = vld [vmem:[%s1 + $0x878] sm:$0xff]
  %v297 = vld [vmem:[%s1 + $0x880] sm:$0xff]
  %v298 = vld [vmem:[%s1 + $0x888] sm:$0xff]
  %v299 = vld [vmem:[%s1 + $0x890] sm:$0xff]
  %v300 = vld [vmem:[%s1 + $0x898] sm:$0xff]
  %v301 = vld [vmem:[%s1 + $0x8a0] sm:$0xff]
  %v302 = vld [vmem:[%s1 + $0x8a8] sm:$0xff]
  %v303 = vld [vmem:[%s1 + $0x8b0] sm:$0xff]
  %v304 = vld [vmem:[%s1 + $0x8b8] sm:$0xff]
  %v305 = vld [vmem:[%s1 + $0x8c0] sm:$0xff]
  %v306 = vld [vmem:[%s1 + $0x8c8] sm:$0xff]
  %v307 = vld [vmem:[%s1 + $0x8d0] sm:$0xff]
  %v308 = vld [vmem:[%s1 + $0x8d8] sm:$0xff]
  %v309 = vld [vmem:[%s1 + $0x8e0] sm:$0xff]
  %v310 = vld [vmem:[%s1 + $0x8e8] sm:$0xff]
  %v311 = vld [vmem:[%s1 + $0x8f0] sm:$0xff]
  %v312 = vld [vmem:[%s1 + $0x8f8] sm:$0xff]
  %v313 = vld [vmem:[%s1 + $0x900] sm:$0xff]
  %v314 = vld [vmem:[%s1 + $0x908] sm:$0xff]
  %v315 = vld [vmem:[%s1 + $0x910] sm:$0xff]
  %v316 = vld [vmem:[%s1 + $0x918] sm:$0xff]
  %v317 = vld [vmem:[%s1 + $0x920] sm:$0xff]
  %v318 = vld [vmem:[%s1 + $0x928] sm:$0xff]
  %v319 = vld [vmem:[%s1 + $0x930] sm:$0xff]
  %v320 = vld [vmem:[%s1 + $0x938] sm:$0xff]
  %v321 = vld [vmem:[%s1 + $0x940] sm:$0xff]
  %v322 = vld [vmem:[%s1 + $0x948] sm:$0xff]
  %v323 = vld [vmem:[%s1 + $0x950] sm:$0xff]
  %v324 = vld [vmem:[%s1 + $0x958] sm:$0xff]
  %v325 = vld [vmem:[%s1 + $0x960] sm:$0xff]
  %v326 = vld [vmem:[%s1 + $0x968] sm:$0xff]
  %v327 = vld [vmem:[%s1 + $0x970] sm:$0xff]
  %v328 = vld [vmem:[%s1 + $0x978] sm:$0xff]
  %v329 = vld [vmem:[%s1 + $0x980] sm:$0xff]
  %v330 = vld [vmem:[%s1 + $0x988] sm:$0xff]
  %v331 = vld [vmem:[%s1 + $0x990] sm:$0xff]
  %v332 = vld [vmem:[%s1 + $0x998] sm:$0xff]
  %v333 = vld [vmem:[%s1 + $0x9a0] sm:$0xff]
  %v334 = vld [vmem:[%s1 + $0x9a8] sm:$0xff]
  %v335 = vld [vmem:[%s1 + $0x9b0] sm:$0xff]
  %v336 = vld [vmem:[%s1 + $0x9b8] sm:$0xff]
  %v337 = vld [vmem:[%s1 + $0x9c0] sm:$0xff]
  %v338 = vld [vmem:[%s1 + $0x9c8] sm:$0xff]
  %v339 = vld [vmem:[%s1 + $0x9d0] sm:$0xff]
  %v340 = vld [vmem:[%s1 + $0x9d8] sm:$0xff]
  %v341 = vld [vmem:[%s1 + $0x9e0] sm:$0xff]
  %v342 = vld [vmem:[%s1 + $0x9e8] sm:$0xff]
  %v343 = vld [vmem:[%s1 + $0x9f0] sm:$0xff]
  %v344 = vld [vmem:[%s1 + $0x9f8] sm:$0xff]
  %v345 = vld [vmem:[%s1 + $0xa00] sm:$0xff]
  %v346 = vld [vmem:[%s1 + $0xa08] sm:$0xff]
  %v347 = vld [vmem:[%s1 + $0xa10] sm:$0xff]
  %v348 = vld [vmem:[%s1 + $0xa18] sm:$0xff]
  %v349 = vld [vmem:[%s1 + $0xa20] sm:$0xff]
  %v350 = vld [vmem:[%s1 + $0xa28] sm:$0xff]
  %v351 = vld [vmem:[%s1 + $0xa30] sm:$0xff]
  %v352 = vld [vmem:[%s1 + $0xa38] sm:$0xff]
  %v353 = vld [vmem:[%s1 + $0xa40] sm:$0xff]
  %v354 = vld [vmem:[%s1 + $0xa48] sm:$0xff]
  %v355 = vld [vmem:[%s1 + $0xa50] sm:$0xff]
  %v356 = vld [vmem:[%s1 + $0xa58] sm:$0xff]
  %v357 = vld [vmem:[%s1 + $0xa60] sm:$0xff]
  %v358 = vld [vmem:[%s1 + $0xa68] sm:$0xff]
  %v359 = vld [vmem:[%s1 + $0xa70] sm:$0xff]
  %v360 = vld [vmem:[%s1 + $0xa78] sm:$0xff]
  %v361 = vld [vmem:[%s1 + $0xa80] sm:$0xff]
  %v362 = vld [vmem:[%s1 + $0xa88] sm:$0xff]
  %v363 = vld [vmem:[%s1 + $0xa90] sm:$0xff]
  %v364 = vld [vmem:[%s1 + $0xa98] sm:$0xff]
  %v365 = vld [vmem:[%s1 + $0xaa0] sm:$0xff]
  %v366 = vld [vmem:[%s1 + $0xaa8] sm:$0xff]
  %v367 = vld [vmem:[%s1 + $0xab0] sm:$0xff]
  %v368 = vld [vmem:[%s1 + $0xab8] sm:$0xff]
  %v369 = vld [vmem:[%s1 + $0xac0] sm:$0xff]
  %v370 = vld [vmem:[%s1 + $0xac8] sm:$0xff]
  %v371 = vld [vmem:[%s1 + $0xad0] sm:$0xff]
  %v372 = vld [vmem:[%s1 + $0xad8] sm:$0xff]
  %v373 = vld [vmem:[%s1 + $0xae0] sm:$0xff]
  %v374 = vld [vmem:[%s1 + $0xae8] sm:$0xff]
  %v375 = vld [vmem:[%s1 + $0xaf0] sm:$0xff]
  %v376 = vld [vmem:[%s1 + $0xaf8] sm:$0xff]
  %v377 = vld [vmem:[%s1 + $0xb00] sm:$0xff]
  %v378 = vld [vmem:[%s1 + $0xb08] sm:$0xff]
  %v379 = vld [vmem:[%s1 + $0xb10] sm:$0xff]
  %v380 = vld [vmem:[%s1 + $0xb18] sm:$0xff]
  %v381 = vld [vmem:[%s1 + $0xb20] sm:$0xff]
  %v382 = vld [vmem:[%s1 + $0xb28] sm:$0xff]
  %v383 = vld [vmem:[%s1 + $0xb30] sm:$0xff]
  %v384 = vld [vmem:[%s1 + $0xb38] sm:$0xff]
  %v385 = vld [vmem:[%s1 + $0xb40] sm:$0xff]
  %v386 = vld [vmem:[%s1 + $0xb48] sm:$0xff]
  %v387 = vld [vmem:[%s1 + $0xb50] sm:$0xff]
  %v388 = vld [vmem:[%s1 + $0xb58] sm:$0xff]
  %v389 = vld [vmem:[%s1 + $0xb60] sm:$0xff]
  %v390 = vld [vmem:[%s1 + $0xb68] sm:$0xff]
  %v391 = vld [vmem:[%s1 + $0xb70] sm:$0xff]
  %v392 = vld [vmem:[%s1 + $0xb78] sm:$0xff]
  %v393 = vld [vmem:[%s1 + $0xb80] sm:$0xff]
  %v394 = vld [vmem:[%s1 + $0xb88] sm:$0xff]
  %v395 = vld [vmem:[%s1 + $0xb90] sm:$0xff]
  %v396 = vld [vmem:[%s1 + $0xb98] sm:$0xff]
  %v397 = vld [vmem:[%s1 + $0xba0] sm:$0xff]
  %v398 = vld [vmem:[%s1 + $0xba8] sm:$0xff]
  %v399 = vld [vmem:[%s1 + $0xbb0] sm:$0xff]
  %v400 = vld [vmem:[%s1 + $0xbb8] sm:$0xff]
  %v401 = vld [vmem:[%s1 + $0xbc0] sm:$0xff]
  %v402 = vld [vmem:[%s1 + $0xbc8] sm:$0xff]
  %v403 = vld [vmem:[%s1 + $0xbd0] sm:$0xff]
  %v404 = vld [vmem:[%s1 + $0xbd8] sm:$0xff]
  %v405 = vld [vmem:[%s1 + $0xbe0] sm:$0xff]
  %v406 = vld [vmem:[%s1 + $0xbe8] sm:$0xff]
  %v407 = vld [vmem:[%s1 + $0xbf0] sm:$0xff]
  %v408 = vld [vmem:[%s1 + $0xbf8] sm:$0xff]
  %v409 = vld [vmem:[%s1 + $0xc00] sm:$0xff]
  %v410 = vld [vmem:[%s1 + $0xc08] sm:$0xff]
  %v411 = vld [vmem:[%s1 + $0xc10] sm:$0xff]
  %v412 = vld [vmem:[%s1 + $0xc18] sm:$0xff]
  %v413 = vld [vmem:[%s1 + $0xc20] sm:$0xff]
  %v414 = vld [vmem:[%s1 + $0xc28] sm:$0xff]
  %v415 = vld [vmem:[%s1 + $0xc30] sm:$0xff]
  %v416 = vld [vmem:[%s1 + $0xc38] sm:$0xff]
  %v417 = vld [vmem:[%s1 + $0xc40] sm:$0xff]
  %v418 = vld [vmem:[%s1 + $0xc48] sm:$0xff]
  %v419 = vld [vmem:[%s1 + $0xc50] sm:$0xff]
  %v420 = vld [vmem:[%s1 + $0xc58] sm:$0xff]
  %v421 = vld [vmem:[%s1 + $0xc60] sm:$0xff]
  %v422 = vld [vmem:[%s1 + $0xc68] sm:$0xff]
  %v423 = vld [vmem:[%s1 + $0xc70] sm:$0xff]
  %v424 = vld [vmem:[%s1 + $0xc78] sm:$0xff]
  %v425 = vld [vmem:[%s1 + $0xc80] sm:$0xff]
  %v426 = vld [vmem:[%s1 + $0xc88] sm:$0xff]
  %v427 = vld [vmem:[%s1 + $0xc90] sm:$0xff]
  %v428 = vld [vmem:[%s1 + $0xc98] sm:$0xff]
  %v429 = vld [vmem:[%s1 + $0xca0] sm:$0xff]
  %v430 = vld [vmem:[%s1 + $0xca8] sm:$0xff]
  %v431 = vld [vmem:[%s1 + $0xcb0] sm:$0xff]
  %v432 = vld [vmem:[%s1 + $0xcb8] sm:$0xff]
  %v433 = vld [vmem:[%s1 + $0xcc0] sm:$0xff]
  %v434 = vld [vmem:[%s1 + $0xcc8] sm:$0xff]
  %v435 = vld [vmem:[%s1 + $0xcd0] sm:$0xff]
  %v436 = vld [vmem:[%s1 + $0xcd8] sm:$0xff]
  %v437 = vld [vmem:[%s1 + $0xce0] sm:$0xff]
  %v438 = vld [vmem:[%s1 + $0xce8] sm:$0xff]
  %v439 = vld [vmem:[%s1 + $0xcf0] sm:$0xff]
  %v440 = vld [vmem:[%s1 + $0xcf8] sm:$0xff]
  %v441 = vld [vmem:[%s1 + $0xd00] sm:$0xff]
  %v442 = vld [vmem:[%s1 + $0xd08] sm:$0xff]
  %v443 = vld [vmem:[%s1 + $0xd10] sm:$0xff]
  %v444 = vld [vmem:[%s1 + $0xd18] sm:$0xff]
  %v445 = vld [vmem:[%s1 + $0xd20] sm:$0xff]
  %v446 = vld [vmem:[%s1 + $0xd28] sm:$0xff]
  %v447 = vld [vmem:[%s1 + $0xd30] sm:$0xff]
  %v448 = vld [vmem:[%s1 + $0xd38] sm:$0xff]
  %v449 = vld [vmem:[%s1 + $0xd40] sm:$0xff]
  %v450 = vld [vmem:[%s1 + $0xd48] sm:$0xff]
  %v451 = vld [vmem:[%s1 + $0xd50] sm:$0xff]
  %v452 = vld [vmem:[%s1 + $0xd58] sm:$0xff]
  %v453 = vld [vmem:[%s1 + $0xd60] sm:$0xff]
  %v454 = vld [vmem:[%s1 + $0xd68] sm:$0xff]
  %v455 = vld [vmem:[%s1 + $0xd70] sm:$0xff]
  %v456 = vld [vmem:[%s1 + $0xd78] sm:$0xff]
  %v457 = vld [vmem:[%s1 + $0xd80] sm:$0xff]
  %v458 = vld [vmem:[%s1 + $0xd88] sm:$0xff]
  %v459 = vld [vmem:[%s1 + $0xd90] sm:$0xff]
  %v460 = vld [vmem:[%s1 + $0xd98] sm:$0xff]
  %v461 = vld [vmem:[%s1 + $0xda0] sm:$0xff]
  %v462 = vld [vmem:[%s1 + $0xda8] sm:$0xff]
  %v463 = vld [vmem:[%s1 + $0xdb0] sm:$0xff]
  %v464 = vld [vmem:[%s1 + $0xdb8] sm:$0xff]
  %v465 = vld [vmem:[%s1 + $0xdc0] sm:$0xff]
  %v466 = vld [vmem:[%s1 + $0xdc8] sm:$0xff]
  %v467 = vld [vmem:[%s1 + $0xdd0] sm:$0xff]
  %v468 = vld [vmem:[%s1 + $0xdd8] sm:$0xff]
  %v469 = vld [vmem:[%s1 + $0xde0] sm:$0xff]
  %v470 = vld [vmem:[%s1 + $0xde8] sm:$0xff]
  %v471 = vld [vmem:[%s1 + $0xdf0] sm:$0xff]
  %v472 = vld [vmem:[%s1 + $0xdf8] sm:$0xff]
  %v473 = vld [vmem:[%s1 + $0xe00] sm:$0xff]
  %v474 = vld [vmem:[%s1 + $0xe08] sm:$0xff]
  %v475 = vld [vmem:[%s1 + $0xe10] sm:$0xff]
  %v476 = vld [vmem:[%s1 + $0xe18] sm:$0xff]
  %v477 = vld [vmem:[%s1 + $0xe20] sm:$0xff]
  %v478 = vld [vmem:[%s1 + $0xe28] sm:$0xff]
  %v479 = vld [vmem:[%s1 + $0xe30] sm:$0xff]
  %v480 = vld [vmem:[%s1 + $0xe38] sm:$0xff]
  %v481 = vld [vmem:[%s1 + $0xe40] sm:$0xff]
  %v482 = vld [vmem:[%s1 + $0xe48] sm:$0xff]
  %v483 = vld [vmem:[%s1 + $0xe50] sm:$0xff]
  %v484 = vld [vmem:[%s1 + $0xe58] sm:$0xff]
  %v485 = vld [vmem:[%s1 + $0xe60] sm:$0xff]
  %v486 = vld [vmem:[%s1 + $0xe68] sm:$0xff]
  %v487 = vld [vmem:[%s1 + $0xe70] sm:$0xff]
  %v488 = vld [vmem:[%s1 + $0xe78] sm:$0xff]
  %v489 = vld [vmem:[%s1 + $0xe80] sm:$0xff]
  %v490 = vld [vmem:[%s1 + $0xe88] sm:$0xff]
  %v491 = vld [vmem:[%s1 + $0xe90] sm:$0xff]
  %v492 = vld [vmem:[%s1 + $0xe98] sm:$0xff]
  %v493 = vld [vmem:[%s1 + $0xea0] sm:$0xff]
  %v494 = vld [vmem:[%s1 + $0xea8] sm:$0xff]
  %v495 = vld [vmem:[%s1 + $0xeb0] sm:$0xff]
  %v496 = vld [vmem:[%s1 + $0xeb8] sm:$0xff]
  %v497 = vld [vmem:[%s1 + $0xec0] sm:$0xff]
  %v498 = vld [vmem:[%s1 + $0xec8] sm:$0xff]
  %v499 = vld [vmem:[%s1 + $0xed0] sm:$0xff]
  %v500 = vld [vmem:[%s1 + $0xed8] sm:$0xff]
  %v501 = vld [vmem:[%s1 + $0xee0] sm:$0xff]
  %v502 = vld [vmem:[%s1 + $0xee8] sm:$0xff]
  %v503 = vld [vmem:[%s1 + $0xef0] sm:$0xff]
  %v504 = vld [vmem:[%s1 + $0xef8] sm:$0xff]
  %v505 = vld [vmem:[%s1 + $0xf00] sm:$0xff]
  %v506 = vld [vmem:[%s1 + $0xf08] sm:$0xff]
  %v507 = vld [vmem:[%s1 + $0xf10] sm:$0xff]
  %v508 = vld [vmem:[%s1 + $0xf18] sm:$0xff]
  %v509 = vld [vmem:[%s1 + $0xf20] sm:$0xff]
  %v510 = vld [vmem:[%s1 + $0xf28] sm:$0xff]
  %v511 = vld [vmem:[%s1 + $0xf30] sm:$0xff]
  %v512 = vld [vmem:[%s1 + $0xf38] sm:$0xff]
  %v513 = vld [vmem:[%s1 + $0xf40] sm:$0xff]
  %v514 = vld [vmem:[%s1 + $0xf48] sm:$0xff]
  %v515 = vld [vmem:[%s1 + $0xf50] sm:$0xff]
  %v516 = vld [vmem:[%s1 + $0xf58] sm:$0xff]
  %v517 = vld [vmem:[%s1 + $0xf60] sm:$0xff]
  %v518 = vld [vmem:[%s1 + $0xf68] sm:$0xff]
  %v519 = vld [vmem:[%s1 + $0xf70] sm:$0xff]
  %v520 = vld [vmem:[%s1 + $0xf78] sm:$0xff]
  %v521 = vld [vmem:[%s1 + $0xf80] sm:$0xff]
  %v522 = vld [vmem:[%s1 + $0xf88] sm:$0xff]
  %v523 = vld [vmem:[%s1 + $0xf90] sm:$0xff]
  %v524 = vld [vmem:[%s1 + $0xf98] sm:$0xff]
  %v525 = vld [vmem:[%s1 + $0xfa0] sm:$0xff]
  %v526 = vld [vmem:[%s1 + $0xfa8] sm:$0xff]
  %v527 = vld [vmem:[%s1 + $0xfb0] sm:$0xff]
  %v528 = vld [vmem:[%s1 + $0xfb8] sm:$0xff]
  %v529 = vld [vmem:[%s1 + $0xfc0] sm:$0xff]
  %v530 = vld [vmem:[%s1 + $0xfc8] sm:$0xff]
  %v531 = vld [vmem:[%s1 + $0xfd0] sm:$0xff]
  %v532 = vld [vmem:[%s1 + $0xfd8] sm:$0xff]
  %v533 = vld [vmem:[%s1 + $0xfe0] sm:$0xff]
  %v534 = vld [vmem:[%s1 + $0xfe8] sm:$0xff]
  %v535 = vld [vmem:[%s1 + $0xff0] sm:$0xff]
  %v536 = vld [vmem:[%s1 + $0xff8] sm:$0xff]
  %v545 = vunpack.c.l.b16 %v17
  %v546 = vunpack.c.h.b16 %v17
  %v547 = vunpack.c.l.b16 %v18
  %v548 = vunpack.c.h.b16 %v18
  %v549 = vunpack.c.l.b16 %v19
  %v550 = vunpack.c.h.b16 %v19
  %v551 = vunpack.c.l.b16 %v20
  %v552 = vunpack.c.h.b16 %v20
  %v553 = vunpack.c.l.b16 %v21
  %v554 = vunpack.c.h.b16 %v21
  %v555 = vunpack.c.l.b16 %v22
  %v556 = vunpack.c.h.b16 %v22
  %v557 = vunpack.c.l.b16 %v23
  %v558 = vunpack.c.h.b16 %v23
  %v559 = vunpack.c.l.b16 %v24
  %v560 = vunpack.c.h.b16 %v24
  %v561 = vpack.c.b16 %v545, %v545
  %v562 = vpack.c.b16 %v546, %v546
  %v563 = vpack.c.b16 %v547, %v547
  %v564 = vpack.c.b16 %v548, %v548
  %v565 = vpack.c.b16 %v549, %v549
  %v566 = vpack.c.b16 %v550, %v550
  %v567 = vpack.c.b16 %v551, %v551
  %v568 = vpack.c.b16 %v552, %v552
  %v569 = vpack.c.b16 %v553, %v553
  %v570 = vpack.c.b16 %v554, %v554
  %v571 = vpack.c.b16 %v555, %v555
  %v572 = vpack.c.b16 %v556, %v556
  %v573 = vpack.c.b16 %v557, %v557
  %v574 = vpack.c.b16 %v558, %v558
  %v575 = vpack.c.b16 %v559, %v559
  %v576 = vpack.c.b16 %v560, %v560
  %v1105 = vunpack.c.l.b16 %v25
  %v1106 = vunpack.c.h.b16 %v25
  %v1107 = vunpack.c.l.b16 %v26
  %v1108 = vunpack.c.h.b16 %v26
  %v1109 = vunpack.c.l.b16 %v27
  %v1110 = vunpack.c.h.b16 %v27
  %v1111 = vunpack.c.l.b16 %v28
  %v1112 = vunpack.c.h.b16 %v28
  %v1113 = vunpack.c.l.b16 %v29
  %v1114 = vunpack.c.h.b16 %v29
  %v1115 = vunpack.c.l.b16 %v30
  %v1116 = vunpack.c.h.b16 %v30
  %v1117 = vunpack.c.l.b16 %v31
  %v1118 = vunpack.c.h.b16 %v31
  %v1119 = vunpack.c.l.b16 %v32
  %v1120 = vunpack.c.h.b16 %v32
  %v1121 = vunpack.c.l.b16 %v33
  %v1122 = vunpack.c.h.b16 %v33
  %v1123 = vunpack.c.l.b16 %v34
  %v1124 = vunpack.c.h.b16 %v34
  %v1125 = vunpack.c.l.b16 %v35
  %v1126 = vunpack.c.h.b16 %v35
  %v1127 = vunpack.c.l.b16 %v36
  %v1128 = vunpack.c.h.b16 %v36
  %v1129 = vunpack.c.l.b16 %v37
  %v1130 = vunpack.c.h.b16 %v37
  %v1131 = vunpack.c.l.b16 %v38
  %v1132 = vunpack.c.h.b16 %v38
  %v1133 = vunpack.c.l.b16 %v39
  %v1134 = vunpack.c.h.b16 %v39
  %v1135 = vunpack.c.l.b16 %v40
  %v1136 = vunpack.c.h.b16 %v40
  %v1137 = vunpack.c.l.b16 %v41
  %v1138 = vunpack.c.h.b16 %v41
  %v1139 = vunpack.c.l.b16 %v42
  %v1140 = vunpack.c.h.b16 %v42
  %v1141 = vunpack.c.l.b16 %v43
  %v1142 = vunpack.c.h.b16 %v43
  %v1143 = vunpack.c.l.b16 %v44
  %v1144 = vunpack.c.h.b16 %v44
  %v1145 = vunpack.c.l.b16 %v45
  %v1146 = vunpack.c.h.b16 %v45
  %v1147 = vunpack.c.l.b16 %v46
  %v1148 = vunpack.c.h.b16 %v46
  %v1149 = vunpack.c.l.b16 %v47
  %v1150 = vunpack.c.h.b16 %v47
  %v1151 = vunpack.c.l.b16 %v48
  %v1152 = vunpack.c.h.b16 %v48
  %v1153 = vunpack.c.l.b16 %v49
  %v1154 = vunpack.c.h.b16 %v49
  %v1155 = vunpack.c.l.b16 %v50
  %v1156 = vunpack.c.h.b16 %v50
  %v1157 = vunpack.c.l.b16 %v51
  %v1158 = vunpack.c.h.b16 %v51
  %v1159 = vunpack.c.l.b16 %v52
  %v1160 = vunpack.c.h.b16 %v52
  %v1161 = vunpack.c.l.b16 %v53
  %v1162 = vunpack.c.h.b16 %v53
  %v1163 = vunpack.c.l.b16 %v54
  %v1164 = vunpack.c.h.b16 %v54
  %v1165 = vunpack.c.l.b16 %v55
  %v1166 = vunpack.c.h.b16 %v55
  %v1167 = vunpack.c.l.b16 %v56
  %v1168 = vunpack.c.h.b16 %v56
  %v1169 = vunpack.c.l.b16 %v57
  %v1170 = vunpack.c.h.b16 %v57
  %v1171 = vunpack.c.l.b16 %v58
  %v1172 = vunpack.c.h.b16 %v58
  %v1173 = vunpack.c.l.b16 %v59
  %v1174 = vunpack.c.h.b16 %v59
  %v1175 = vunpack.c.l.b16 %v60
  %v1176 = vunpack.c.h.b16 %v60
  %v1177 = vunpack.c.l.b16 %v61
  %v1178 = vunpack.c.h.b16 %v61
  %v1179 = vunpack.c.l.b16 %v62
  %v1180 = vunpack.c.h.b16 %v62
  %v1181 = vunpack.c.l.b16 %v63
  %v1182 = vunpack.c.h.b16 %v63
  %v1183 = vunpack.c.l.b16 %v64
  %v1184 = vunpack.c.h.b16 %v64
  %v1185 = vunpack.c.l.b16 %v65
  %v1186 = vunpack.c.h.b16 %v65
  %v1187 = vunpack.c.l.b16 %v66
  %v1188 = vunpack.c.h.b16 %v66
  %v1189 = vunpack.c.l.b16 %v67
  %v1190 = vunpack.c.h.b16 %v67
  %v1191 = vunpack.c.l.b16 %v68
  %v1192 = vunpack.c.h.b16 %v68
  %v1193 = vunpack.c.l.b16 %v69
  %v1194 = vunpack.c.h.b16 %v69
  %v1195 = vunpack.c.l.b16 %v70
  %v1196 = vunpack.c.h.b16 %v70
  %v1197 = vunpack.c.l.b16 %v71
  %v1198 = vunpack.c.h.b16 %v71
  %v1199 = vunpack.c.l.b16 %v72
  %v1200 = vunpack.c.h.b16 %v72
  %v1201 = vunpack.c.l.b16 %v73
  %v1202 = vunpack.c.h.b16 %v73
  %v1203 = vunpack.c.l.b16 %v74
  %v1204 = vunpack.c.h.b16 %v74
  %v1205 = vunpack.c.l.b16 %v75
  %v1206 = vunpack.c.h.b16 %v75
  %v1207 = vunpack.c.l.b16 %v76
  %v1208 = vunpack.c.h.b16 %v76
  %v1209 = vunpack.c.l.b16 %v77
  %v1210 = vunpack.c.h.b16 %v77
  %v1211 = vunpack.c.l.b16 %v78
  %v1212 = vunpack.c.h.b16 %v78
  %v1213 = vunpack.c.l.b16 %v79
  %v1214 = vunpack.c.h.b16 %v79
  %v1215 = vunpack.c.l.b16 %v80
  %v1216 = vunpack.c.h.b16 %v80
  %v1217 = vunpack.c.l.b16 %v81
  %v1218 = vunpack.c.h.b16 %v81
  %v1219 = vunpack.c.l.b16 %v82
  %v1220 = vunpack.c.h.b16 %v82
  %v1221 = vunpack.c.l.b16 %v83
  %v1222 = vunpack.c.h.b16 %v83
  %v1223 = vunpack.c.l.b16 %v84
  %v1224 = vunpack.c.h.b16 %v84
  %v1225 = vunpack.c.l.b16 %v85
  %v1226 = vunpack.c.h.b16 %v85
  %v1227 = vunpack.c.l.b16 %v86
  %v1228 = vunpack.c.h.b16 %v86
  %v1229 = vunpack.c.l.b16 %v87
  %v1230 = vunpack.c.h.b16 %v87
  %v1231 = vunpack.c.l.b16 %v88
  %v1232 = vunpack.c.h.b16 %v88
  %v1233 = vunpack.c.l.b16 %v89
  %v1234 = vunpack.c.h.b16 %v89
  %v1235 = vunpack.c.l.b16 %v90
  %v1236 = vunpack.c.h.b16 %v90
  %v1237 = vunpack.c.l.b16 %v91
  %v1238 = vunpack.c.h.b16 %v91
  %v1239 = vunpack.c.l.b16 %v92
  %v1240 = vunpack.c.h.b16 %v92
  %v1241 = vunpack.c.l.b16 %v93
  %v1242 = vunpack.c.h.b16 %v93
  %v1243 = vunpack.c.l.b16 %v94
  %v1244 = vunpack.c.h.b16 %v94
  %v1245 = vunpack.c.l.b16 %v95
  %v1246 = vunpack.c.h.b16 %v95
  %v1247 = vunpack.c.l.b16 %v96
  %v1248 = vunpack.c.h.b16 %v96
  %v1249 = vunpack.c.l.b16 %v97
  %v1250 = vunpack.c.h.b16 %v97
  %v1251 = vunpack.c.l.b16 %v98
  %v1252 = vunpack.c.h.b16 %v98
  %v1253 = vunpack.c.l.b16 %v99
  %v1254 = vunpack.c.h.b16 %v99
  %v1255 = vunpack.c.l.b16 %v100
  %v1256 = vunpack.c.h.b16 %v100
  %v1257 = vunpack.c.l.b16 %v101
  %v1258 = vunpack.c.h.b16 %v101
  %v1259 = vunpack.c.l.b16 %v102
  %v1260 = vunpack.c.h.b16 %v102
  %v1261 = vunpack.c.l.b16 %v103
  %v1262 = vunpack.c.h.b16 %v103
  %v1263 = vunpack.c.l.b16 %v104
  %v1264 = vunpack.c.h.b16 %v104
  %v1265 = vunpack.c.l.b16 %v105
  %v1266 = vunpack.c.h.b16 %v105
  %v1267 = vunpack.c.l.b16 %v106
  %v1268 = vunpack.c.h.b16 %v106
  %v1269 = vunpack.c.l.b16 %v107
  %v1270 = vunpack.c.h.b16 %v107
  %v1271 = vunpack.c.l.b16 %v108
  %v1272 = vunpack.c.h.b16 %v108
  %v1273 = vunpack.c.l.b16 %v109
  %v1274 = vunpack.c.h.b16 %v109
  %v1275 = vunpack.c.l.b16 %v110
  %v1276 = vunpack.c.h.b16 %v110
  %v1277 = vunpack.c.l.b16 %v111
  %v1278 = vunpack.c.h.b16 %v111
  %v1279 = vunpack.c.l.b16 %v112
  %v1280 = vunpack.c.h.b16 %v112
  %v1281 = vunpack.c.l.b16 %v113
  %v1282 = vunpack.c.h.b16 %v113
  %v1283 = vunpack.c.l.b16 %v114
  %v1284 = vunpack.c.h.b16 %v114
  %v1285 = vunpack.c.l.b16 %v115
  %v1286 = vunpack.c.h.b16 %v115
  %v1287 = vunpack.c.l.b16 %v116
  %v1288 = vunpack.c.h.b16 %v116
  %v1289 = vunpack.c.l.b16 %v117
  %v1290 = vunpack.c.h.b16 %v117
  %v1291 = vunpack.c.l.b16 %v118
  %v1292 = vunpack.c.h.b16 %v118
  %v1293 = vunpack.c.l.b16 %v119
  %v1294 = vunpack.c.h.b16 %v119
  %v1295 = vunpack.c.l.b16 %v120
  %v1296 = vunpack.c.h.b16 %v120
  %v1297 = vunpack.c.l.b16 %v121
  %v1298 = vunpack.c.h.b16 %v121
  %v1299 = vunpack.c.l.b16 %v122
  %v1300 = vunpack.c.h.b16 %v122
  %v1301 = vunpack.c.l.b16 %v123
  %v1302 = vunpack.c.h.b16 %v123
  %v1303 = vunpack.c.l.b16 %v124
  %v1304 = vunpack.c.h.b16 %v124
  %v1305 = vunpack.c.l.b16 %v125
  %v1306 = vunpack.c.h.b16 %v125
  %v1307 = vunpack.c.l.b16 %v126
  %v1308 = vunpack.c.h.b16 %v126
  %v1309 = vunpack.c.l.b16 %v127
  %v1310 = vunpack.c.h.b16 %v127
  %v1311 = vunpack.c.l.b16 %v128
  %v1312 = vunpack.c.h.b16 %v128
  %v1313 = vunpack.c.l.b16 %v129
  %v1314 = vunpack.c.h.b16 %v129
  %v1315 = vunpack.c.l.b16 %v130
  %v1316 = vunpack.c.h.b16 %v130
  %v1317 = vunpack.c.l.b16 %v131
  %v1318 = vunpack.c.h.b16 %v131
  %v1319 = vunpack.c.l.b16 %v132
  %v1320 = vunpack.c.h.b16 %v132
  %v1321 = vunpack.c.l.b16 %v133
  %v1322 = vunpack.c.h.b16 %v133
  %v1323 = vunpack.c.l.b16 %v134
  %v1324 = vunpack.c.h.b16 %v134
  %v1325 = vunpack.c.l.b16 %v135
  %v1326 = vunpack.c.h.b16 %v135
  %v1327 = vunpack.c.l.b16 %v136
  %v1328 = vunpack.c.h.b16 %v136
  %v1329 = vunpack.c.l.b16 %v137
  %v1330 = vunpack.c.h.b16 %v137
  %v1331 = vunpack.c.l.b16 %v138
  %v1332 = vunpack.c.h.b16 %v138
  %v1333 = vunpack.c.l.b16 %v139
  %v1334 = vunpack.c.h.b16 %v139
  %v1335 = vunpack.c.l.b16 %v140
  %v1336 = vunpack.c.h.b16 %v140
  %v1337 = vunpack.c.l.b16 %v141
  %v1338 = vunpack.c.h.b16 %v141
  %v1339 = vunpack.c.l.b16 %v142
  %v1340 = vunpack.c.h.b16 %v142
  %v1341 = vunpack.c.l.b16 %v143
  %v1342 = vunpack.c.h.b16 %v143
  %v1343 = vunpack.c.l.b16 %v144
  %v1344 = vunpack.c.h.b16 %v144
  %v1345 = vunpack.c.l.b16 %v145
  %v1346 = vunpack.c.h.b16 %v145
  %v1347 = vunpack.c.l.b16 %v146
  %v1348 = vunpack.c.h.b16 %v146
  %v1349 = vunpack.c.l.b16 %v147
  %v1350 = vunpack.c.h.b16 %v147
  %v1351 = vunpack.c.l.b16 %v148
  %v1352 = vunpack.c.h.b16 %v148
  %v1353 = vunpack.c.l.b16 %v149
  %v1354 = vunpack.c.h.b16 %v149
  %v1355 = vunpack.c.l.b16 %v150
  %v1356 = vunpack.c.h.b16 %v150
  %v1357 = vunpack.c.l.b16 %v151
  %v1358 = vunpack.c.h.b16 %v151
  %v1359 = vunpack.c.l.b16 %v152
  %v1360 = vunpack.c.h.b16 %v152
  %v1361 = vunpack.c.l.b16 %v153
  %v1362 = vunpack.c.h.b16 %v153
  %v1363 = vunpack.c.l.b16 %v154
  %v1364 = vunpack.c.h.b16 %v154
  %v1365 = vunpack.c.l.b16 %v155
  %v1366 = vunpack.c.h.b16 %v155
  %v1367 = vunpack.c.l.b16 %v156
  %v1368 = vunpack.c.h.b16 %v156
  %v1369 = vunpack.c.l.b16 %v157
  %v1370 = vunpack.c.h.b16 %v157
  %v1371 = vunpack.c.l.b16 %v158
  %v1372 = vunpack.c.h.b16 %v158
  %v1373 = vunpack.c.l.b16 %v159
  %v1374 = vunpack.c.h.b16 %v159
  %v1375 = vunpack.c.l.b16 %v160
  %v1376 = vunpack.c.h.b16 %v160
  %v1377 = vunpack.c.l.b16 %v161
  %v1378 = vunpack.c.h.b16 %v161
  %v1379 = vunpack.c.l.b16 %v162
  %v1380 = vunpack.c.h.b16 %v162
  %v1381 = vunpack.c.l.b16 %v163
  %v1382 = vunpack.c.h.b16 %v163
  %v1383 = vunpack.c.l.b16 %v164
  %v1384 = vunpack.c.h.b16 %v164
  %v1385 = vunpack.c.l.b16 %v165
  %v1386 = vunpack.c.h.b16 %v165
  %v1387 = vunpack.c.l.b16 %v166
  %v1388 = vunpack.c.h.b16 %v166
  %v1389 = vunpack.c.l.b16 %v167
  %v1390 = vunpack.c.h.b16 %v167
  %v1391 = vunpack.c.l.b16 %v168
  %v1392 = vunpack.c.h.b16 %v168
  %v1393 = vunpack.c.l.b16 %v169
  %v1394 = vunpack.c.h.b16 %v169
  %v1395 = vunpack.c.l.b16 %v170
  %v1396 = vunpack.c.h.b16 %v170
  %v1397 = vunpack.c.l.b16 %v171
  %v1398 = vunpack.c.h.b16 %v171
  %v1399 = vunpack.c.l.b16 %v172
  %v1400 = vunpack.c.h.b16 %v172
  %v1401 = vunpack.c.l.b16 %v173
  %v1402 = vunpack.c.h.b16 %v173
  %v1403 = vunpack.c.l.b16 %v174
  %v1404 = vunpack.c.h.b16 %v174
  %v1405 = vunpack.c.l.b16 %v175
  %v1406 = vunpack.c.h.b16 %v175
  %v1407 = vunpack.c.l.b16 %v176
  %v1408 = vunpack.c.h.b16 %v176
  %v1409 = vunpack.c.l.b16 %v177
  %v1410 = vunpack.c.h.b16 %v177
  %v1411 = vunpack.c.l.b16 %v178
  %v1412 = vunpack.c.h.b16 %v178
  %v1413 = vunpack.c.l.b16 %v179
  %v1414 = vunpack.c.h.b16 %v179
  %v1415 = vunpack.c.l.b16 %v180
  %v1416 = vunpack.c.h.b16 %v180
  %v1417 = vunpack.c.l.b16 %v181
  %v1418 = vunpack.c.h.b16 %v181
  %v1419 = vunpack.c.l.b16 %v182
  %v1420 = vunpack.c.h.b16 %v182
  %v1421 = vunpack.c.l.b16 %v183
  %v1422 = vunpack.c.h.b16 %v183
  %v1423 = vunpack.c.l.b16 %v184
  %v1424 = vunpack.c.h.b16 %v184
  %v1425 = vunpack.c.l.b16 %v185
  %v1426 = vunpack.c.h.b16 %v185
  %v1427 = vunpack.c.l.b16 %v186
  %v1428 = vunpack.c.h.b16 %v186
  %v1429 = vunpack.c.l.b16 %v187
  %v1430 = vunpack.c.h.b16 %v187
  %v1431 = vunpack.c.l.b16 %v188
  %v1432 = vunpack.c.h.b16 %v188
  %v1433 = vunpack.c.l.b16 %v189
  %v1434 = vunpack.c.h.b16 %v189
  %v1435 = vunpack.c.l.b16 %v190
  %v1436 = vunpack.c.h.b16 %v190
  %v1437 = vunpack.c.l.b16 %v191
  %v1438 = vunpack.c.h.b16 %v191
  %v1439 = vunpack.c.l.b16 %v192
  %v1440 = vunpack.c.h.b16 %v192
  %v1441 = vunpack.c.l.b16 %v193
  %v1442 = vunpack.c.h.b16 %v193
  %v1443 = vunpack.c.l.b16 %v194
  %v1444 = vunpack.c.h.b16 %v194
  %v1445 = vunpack.c.l.b16 %v195
  %v1446 = vunpack.c.h.b16 %v195
  %v1447 = vunpack.c.l.b16 %v196
  %v1448 = vunpack.c.h.b16 %v196
  %v1449 = vunpack.c.l.b16 %v197
  %v1450 = vunpack.c.h.b16 %v197
  %v1451 = vunpack.c.l.b16 %v198
  %v1452 = vunpack.c.h.b16 %v198
  %v1453 = vunpack.c.l.b16 %v199
  %v1454 = vunpack.c.h.b16 %v199
  %v1455 = vunpack.c.l.b16 %v200
  %v1456 = vunpack.c.h.b16 %v200
  %v1457 = vunpack.c.l.b16 %v201
  %v1458 = vunpack.c.h.b16 %v201
  %v1459 = vunpack.c.l.b16 %v202
  %v1460 = vunpack.c.h.b16 %v202
  %v1461 = vunpack.c.l.b16 %v203
  %v1462 = vunpack.c.h.b16 %v203
  %v1463 = vunpack.c.l.b16 %v204
  %v1464 = vunpack.c.h.b16 %v204
  %v1465 = vunpack.c.l.b16 %v205
  %v1466 = vunpack.c.h.b16 %v205
  %v1467 = vunpack.c.l.b16 %v206
  %v1468 = vunpack.c.h.b16 %v206
  %v1469 = vunpack.c.l.b16 %v207
  %v1470 = vunpack.c.h.b16 %v207
  %v1471 = vunpack.c.l.b16 %v208
  %v1472 = vunpack.c.h.b16 %v208
  %v1473 = vunpack.c.l.b16 %v209
  %v1474 = vunpack.c.h.b16 %v209
  %v1475 = vunpack.c.l.b16 %v210
  %v1476 = vunpack.c.h.b16 %v210
  %v1477 = vunpack.c.l.b16 %v211
  %v1478 = vunpack.c.h.b16 %v211
  %v1479 = vunpack.c.l.b16 %v212
  %v1480 = vunpack.c.h.b16 %v212
  %v1481 = vunpack.c.l.b16 %v213
  %v1482 = vunpack.c.h.b16 %v213
  %v1483 = vunpack.c.l.b16 %v214
  %v1484 = vunpack.c.h.b16 %v214
  %v1485 = vunpack.c.l.b16 %v215
  %v1486 = vunpack.c.h.b16 %v215
  %v1487 = vunpack.c.l.b16 %v216
  %v1488 = vunpack.c.h.b16 %v216
  %v1489 = vunpack.c.l.b16 %v217
  %v1490 = vunpack.c.h.b16 %v217
  %v1491 = vunpack.c.l.b16 %v218
  %v1492 = vunpack.c.h.b16 %v218
  %v1493 = vunpack.c.l.b16 %v219
  %v1494 = vunpack.c.h.b16 %v219
  %v1495 = vunpack.c.l.b16 %v220
  %v1496 = vunpack.c.h.b16 %v220
  %v1497 = vunpack.c.l.b16 %v221
  %v1498 = vunpack.c.h.b16 %v221
  %v1499 = vunpack.c.l.b16 %v222
  %v1500 = vunpack.c.h.b16 %v222
  %v1501 = vunpack.c.l.b16 %v223
  %v1502 = vunpack.c.h.b16 %v223
  %v1503 = vunpack.c.l.b16 %v224
  %v1504 = vunpack.c.h.b16 %v224
  %v1505 = vunpack.c.l.b16 %v225
  %v1506 = vunpack.c.h.b16 %v225
  %v1507 = vunpack.c.l.b16 %v226
  %v1508 = vunpack.c.h.b16 %v226
  %v1509 = vunpack.c.l.b16 %v227
  %v1510 = vunpack.c.h.b16 %v227
  %v1511 = vunpack.c.l.b16 %v228
  %v1512 = vunpack.c.h.b16 %v228
  %v1513 = vunpack.c.l.b16 %v229
  %v1514 = vunpack.c.h.b16 %v229
  %v1515 = vunpack.c.l.b16 %v230
  %v1516 = vunpack.c.h.b16 %v230
  %v1517 = vunpack.c.l.b16 %v231
  %v1518 = vunpack.c.h.b16 %v231
  %v1519 = vunpack.c.l.b16 %v232
  %v1520 = vunpack.c.h.b16 %v232
  %v1521 = vunpack.c.l.b16 %v233
  %v1522 = vunpack.c.h.b16 %v233
  %v1523 = vunpack.c.l.b16 %v234
  %v1524 = vunpack.c.h.b16 %v234
  %v1525 = vunpack.c.l.b16 %v235
  %v1526 = vunpack.c.h.b16 %v235
  %v1527 = vunpack.c.l.b16 %v236
  %v1528 = vunpack.c.h.b16 %v236
  %v1529 = vunpack.c.l.b16 %v237
  %v1530 = vunpack.c.h.b16 %v237
  %v1531 = vunpack.c.l.b16 %v238
  %v1532 = vunpack.c.h.b16 %v238
  %v1533 = vunpack.c.l.b16 %v239
  %v1534 = vunpack.c.h.b16 %v239
  %v1535 = vunpack.c.l.b16 %v240
  %v1536 = vunpack.c.h.b16 %v240
  %v1537 = vunpack.c.l.b16 %v241
  %v1538 = vunpack.c.h.b16 %v241
  %v1539 = vunpack.c.l.b16 %v242
  %v1540 = vunpack.c.h.b16 %v242
  %v1541 = vunpack.c.l.b16 %v243
  %v1542 = vunpack.c.h.b16 %v243
  %v1543 = vunpack.c.l.b16 %v244
  %v1544 = vunpack.c.h.b16 %v244
  %v1545 = vunpack.c.l.b16 %v245
  %v1546 = vunpack.c.h.b16 %v245
  %v1547 = vunpack.c.l.b16 %v246
  %v1548 = vunpack.c.h.b16 %v246
  %v1549 = vunpack.c.l.b16 %v247
  %v1550 = vunpack.c.h.b16 %v247
  %v1551 = vunpack.c.l.b16 %v248
  %v1552 = vunpack.c.h.b16 %v248
  %v1553 = vunpack.c.l.b16 %v249
  %v1554 = vunpack.c.h.b16 %v249
  %v1555 = vunpack.c.l.b16 %v250
  %v1556 = vunpack.c.h.b16 %v250
  %v1557 = vunpack.c.l.b16 %v251
  %v1558 = vunpack.c.h.b16 %v251
  %v1559 = vunpack.c.l.b16 %v252
  %v1560 = vunpack.c.h.b16 %v252
  %v1561 = vunpack.c.l.b16 %v253
  %v1562 = vunpack.c.h.b16 %v253
  %v1563 = vunpack.c.l.b16 %v254
  %v1564 = vunpack.c.h.b16 %v254
  %v1565 = vunpack.c.l.b16 %v255
  %v1566 = vunpack.c.h.b16 %v255
  %v1567 = vunpack.c.l.b16 %v256
  %v1568 = vunpack.c.h.b16 %v256
  %v1569 = vunpack.c.l.b16 %v257
  %v1570 = vunpack.c.h.b16 %v257
  %v1571 = vunpack.c.l.b16 %v258
  %v1572 = vunpack.c.h.b16 %v258
  %v1573 = vunpack.c.l.b16 %v259
  %v1574 = vunpack.c.h.b16 %v259
  %v1575 = vunpack.c.l.b16 %v260
  %v1576 = vunpack.c.h.b16 %v260
  %v1577 = vunpack.c.l.b16 %v261
  %v1578 = vunpack.c.h.b16 %v261
  %v1579 = vunpack.c.l.b16 %v262
  %v1580 = vunpack.c.h.b16 %v262
  %v1581 = vunpack.c.l.b16 %v263
  %v1582 = vunpack.c.h.b16 %v263
  %v1583 = vunpack.c.l.b16 %v264
  %v1584 = vunpack.c.h.b16 %v264
  %v1585 = vunpack.c.l.b16 %v265
  %v1586 = vunpack.c.h.b16 %v265
  %v1587 = vunpack.c.l.b16 %v266
  %v1588 = vunpack.c.h.b16 %v266
  %v1589 = vunpack.c.l.b16 %v267
  %v1590 = vunpack.c.h.b16 %v267
  %v1591 = vunpack.c.l.b16 %v268
  %v1592 = vunpack.c.h.b16 %v268
  %v1593 = vunpack.c.l.b16 %v269
  %v1594 = vunpack.c.h.b16 %v269
  %v1595 = vunpack.c.l.b16 %v270
  %v1596 = vunpack.c.h.b16 %v270
  %v1597 = vunpack.c.l.b16 %v271
  %v1598 = vunpack.c.h.b16 %v271
  %v1599 = vunpack.c.l.b16 %v272
  %v1600 = vunpack.c.h.b16 %v272
  %v1601 = vunpack.c.l.b16 %v273
  %v1602 = vunpack.c.h.b16 %v273
  %v1603 = vunpack.c.l.b16 %v274
  %v1604 = vunpack.c.h.b16 %v274
  %v1605 = vunpack.c.l.b16 %v275
  %v1606 = vunpack.c.h.b16 %v275
  %v1607 = vunpack.c.l.b16 %v276
  %v1608 = vunpack.c.h.b16 %v276
  %v1609 = vunpack.c.l.b16 %v277
  %v1610 = vunpack.c.h.b16 %v277
  %v1611 = vunpack.c.l.b16 %v278
  %v1612 = vunpack.c.h.b16 %v278
  %v1613 = vunpack.c.l.b16 %v279
  %v1614 = vunpack.c.h.b16 %v279
  %v1615 = vunpack.c.l.b16 %v280
  %v1616 = vunpack.c.h.b16 %v280
  %v1617 = vunpack.c.l.b16 %v281
  %v1618 = vunpack.c.h.b16 %v281
  %v1619 = vunpack.c.l.b16 %v282
  %v1620 = vunpack.c.h.b16 %v282
  %v1621 = vunpack.c.l.b16 %v283
  %v1622 = vunpack.c.h.b16 %v283
  %v1623 = vunpack.c.l.b16 %v284
  %v1624 = vunpack.c.h.b16 %v284
  %v1625 = vunpack.c.l.b16 %v285
  %v1626 = vunpack.c.h.b16 %v285
  %v1627 = vunpack.c.l.b16 %v286
  %v1628 = vunpack.c.h.b16 %v286
  %v1629 = vunpack.c.l.b16 %v287
  %v1630 = vunpack.c.h.b16 %v287
  %v1631 = vunpack.c.l.b16 %v288
  %v1632 = vunpack.c.h.b16 %v288
  %v1633 = vunpack.c.l.b16 %v289
  %v1634 = vunpack.c.h.b16 %v289
  %v1635 = vunpack.c.l.b16 %v290
  %v1636 = vunpack.c.h.b16 %v290
  %v1637 = vunpack.c.l.b16 %v291
  %v1638 = vunpack.c.h.b16 %v291
  %v1639 = vunpack.c.l.b16 %v292
  %v1640 = vunpack.c.h.b16 %v292
  %v1641 = vunpack.c.l.b16 %v293
  %v1642 = vunpack.c.h.b16 %v293
  %v1643 = vunpack.c.l.b16 %v294
  %v1644 = vunpack.c.h.b16 %v294
  %v1645 = vunpack.c.l.b16 %v295
  %v1646 = vunpack.c.h.b16 %v295
  %v1647 = vunpack.c.l.b16 %v296
  %v1648 = vunpack.c.h.b16 %v296
  %v1649 = vunpack.c.l.b16 %v297
  %v1650 = vunpack.c.h.b16 %v297
  %v1651 = vunpack.c.l.b16 %v298
  %v1652 = vunpack.c.h.b16 %v298
  %v1653 = vunpack.c.l.b16 %v299
  %v1654 = vunpack.c.h.b16 %v299
  %v1655 = vunpack.c.l.b16 %v300
  %v1656 = vunpack.c.h.b16 %v300
  %v1657 = vunpack.c.l.b16 %v301
  %v1658 = vunpack.c.h.b16 %v301
  %v1659 = vunpack.c.l.b16 %v302
  %v1660 = vunpack.c.h.b16 %v302
  %v1661 = vunpack.c.l.b16 %v303
  %v1662 = vunpack.c.h.b16 %v303
  %v1663 = vunpack.c.l.b16 %v304
  %v1664 = vunpack.c.h.b16 %v304
  %v1665 = vunpack.c.l.b16 %v305
  %v1666 = vunpack.c.h.b16 %v305
  %v1667 = vunpack.c.l.b16 %v306
  %v1668 = vunpack.c.h.b16 %v306
  %v1669 = vunpack.c.l.b16 %v307
  %v1670 = vunpack.c.h.b16 %v307
  %v1671 = vunpack.c.l.b16 %v308
  %v1672 = vunpack.c.h.b16 %v308
  %v1673 = vunpack.c.l.b16 %v309
  %v1674 = vunpack.c.h.b16 %v309
  %v1675 = vunpack.c.l.b16 %v310
  %v1676 = vunpack.c.h.b16 %v310
  %v1677 = vunpack.c.l.b16 %v311
  %v1678 = vunpack.c.h.b16 %v311
  %v1679 = vunpack.c.l.b16 %v312
  %v1680 = vunpack.c.h.b16 %v312
  %v1681 = vunpack.c.l.b16 %v313
  %v1682 = vunpack.c.h.b16 %v313
  %v1683 = vunpack.c.l.b16 %v314
  %v1684 = vunpack.c.h.b16 %v314
  %v1685 = vunpack.c.l.b16 %v315
  %v1686 = vunpack.c.h.b16 %v315
  %v1687 = vunpack.c.l.b16 %v316
  %v1688 = vunpack.c.h.b16 %v316
  %v1689 = vunpack.c.l.b16 %v317
  %v1690 = vunpack.c.h.b16 %v317
  %v1691 = vunpack.c.l.b16 %v318
  %v1692 = vunpack.c.h.b16 %v318
  %v1693 = vunpack.c.l.b16 %v319
  %v1694 = vunpack.c.h.b16 %v319
  %v1695 = vunpack.c.l.b16 %v320
  %v1696 = vunpack.c.h.b16 %v320
  %v1697 = vunpack.c.l.b16 %v321
  %v1698 = vunpack.c.h.b16 %v321
  %v1699 = vunpack.c.l.b16 %v322
  %v1700 = vunpack.c.h.b16 %v322
  %v1701 = vunpack.c.l.b16 %v323
  %v1702 = vunpack.c.h.b16 %v323
  %v1703 = vunpack.c.l.b16 %v324
  %v1704 = vunpack.c.h.b16 %v324
  %v1705 = vunpack.c.l.b16 %v325
  %v1706 = vunpack.c.h.b16 %v325
  %v1707 = vunpack.c.l.b16 %v326
  %v1708 = vunpack.c.h.b16 %v326
  %v1709 = vunpack.c.l.b16 %v327
  %v1710 = vunpack.c.h.b16 %v327
  %v1711 = vunpack.c.l.b16 %v328
  %v1712 = vunpack.c.h.b16 %v328
  %v1713 = vunpack.c.l.b16 %v329
  %v1714 = vunpack.c.h.b16 %v329
  %v1715 = vunpack.c.l.b16 %v330
  %v1716 = vunpack.c.h.b16 %v330
  %v1717 = vunpack.c.l.b16 %v331
  %v1718 = vunpack.c.h.b16 %v331
  %v1719 = vunpack.c.l.b16 %v332
  %v1720 = vunpack.c.h.b16 %v332
  %v1721 = vunpack.c.l.b16 %v333
  %v1722 = vunpack.c.h.b16 %v333
  %v1723 = vunpack.c.l.b16 %v334
  %v1724 = vunpack.c.h.b16 %v334
  %v1725 = vunpack.c.l.b16 %v335
  %v1726 = vunpack.c.h.b16 %v335
  %v1727 = vunpack.c.l.b16 %v336
  %v1728 = vunpack.c.h.b16 %v336
  %v1729 = vunpack.c.l.b16 %v337
  %v1730 = vunpack.c.h.b16 %v337
  %v1731 = vunpack.c.l.b16 %v338
  %v1732 = vunpack.c.h.b16 %v338
  %v1733 = vunpack.c.l.b16 %v339
  %v1734 = vunpack.c.h.b16 %v339
  %v1735 = vunpack.c.l.b16 %v340
  %v1736 = vunpack.c.h.b16 %v340
  %v1737 = vunpack.c.l.b16 %v341
  %v1738 = vunpack.c.h.b16 %v341
  %v1739 = vunpack.c.l.b16 %v342
  %v1740 = vunpack.c.h.b16 %v342
  %v1741 = vunpack.c.l.b16 %v343
  %v1742 = vunpack.c.h.b16 %v343
  %v1743 = vunpack.c.l.b16 %v344
  %v1744 = vunpack.c.h.b16 %v344
  %v1745 = vunpack.c.l.b16 %v345
  %v1746 = vunpack.c.h.b16 %v345
  %v1747 = vunpack.c.l.b16 %v346
  %v1748 = vunpack.c.h.b16 %v346
  %v1749 = vunpack.c.l.b16 %v347
  %v1750 = vunpack.c.h.b16 %v347
  %v1751 = vunpack.c.l.b16 %v348
  %v1752 = vunpack.c.h.b16 %v348
  %v1753 = vunpack.c.l.b16 %v349
  %v1754 = vunpack.c.h.b16 %v349
  %v1755 = vunpack.c.l.b16 %v350
  %v1756 = vunpack.c.h.b16 %v350
  %v1757 = vunpack.c.l.b16 %v351
  %v1758 = vunpack.c.h.b16 %v351
  %v1759 = vunpack.c.l.b16 %v352
  %v1760 = vunpack.c.h.b16 %v352
  %v1761 = vunpack.c.l.b16 %v353
  %v1762 = vunpack.c.h.b16 %v353
  %v1763 = vunpack.c.l.b16 %v354
  %v1764 = vunpack.c.h.b16 %v354
  %v1765 = vunpack.c.l.b16 %v355
  %v1766 = vunpack.c.h.b16 %v355
  %v1767 = vunpack.c.l.b16 %v356
  %v1768 = vunpack.c.h.b16 %v356
  %v1769 = vunpack.c.l.b16 %v357
  %v1770 = vunpack.c.h.b16 %v357
  %v1771 = vunpack.c.l.b16 %v358
  %v1772 = vunpack.c.h.b16 %v358
  %v1773 = vunpack.c.l.b16 %v359
  %v1774 = vunpack.c.h.b16 %v359
  %v1775 = vunpack.c.l.b16 %v360
  %v1776 = vunpack.c.h.b16 %v360
  %v1777 = vunpack.c.l.b16 %v361
  %v1778 = vunpack.c.h.b16 %v361
  %v1779 = vunpack.c.l.b16 %v362
  %v1780 = vunpack.c.h.b16 %v362
  %v1781 = vunpack.c.l.b16 %v363
  %v1782 = vunpack.c.h.b16 %v363
  %v1783 = vunpack.c.l.b16 %v364
  %v1784 = vunpack.c.h.b16 %v364
  %v1785 = vunpack.c.l.b16 %v365
  %v1786 = vunpack.c.h.b16 %v365
  %v1787 = vunpack.c.l.b16 %v366
  %v1788 = vunpack.c.h.b16 %v366
  %v1789 = vunpack.c.l.b16 %v367
  %v1790 = vunpack.c.h.b16 %v367
  %v1791 = vunpack.c.l.b16 %v368
  %v1792 = vunpack.c.h.b16 %v368
  %v1793 = vunpack.c.l.b16 %v369
  %v1794 = vunpack.c.h.b16 %v369
  %v1795 = vunpack.c.l.b16 %v370
  %v1796 = vunpack.c.h.b16 %v370
  %v1797 = vunpack.c.l.b16 %v371
  %v1798 = vunpack.c.h.b16 %v371
  %v1799 = vunpack.c.l.b16 %v372
  %v1800 = vunpack.c.h.b16 %v372
  %v1801 = vunpack.c.l.b16 %v373
  %v1802 = vunpack.c.h.b16 %v373
  %v1803 = vunpack.c.l.b16 %v374
  %v1804 = vunpack.c.h.b16 %v374
  %v1805 = vunpack.c.l.b16 %v375
  %v1806 = vunpack.c.h.b16 %v375
  %v1807 = vunpack.c.l.b16 %v376
  %v1808 = vunpack.c.h.b16 %v376
  %v1809 = vunpack.c.l.b16 %v377
  %v1810 = vunpack.c.h.b16 %v377
  %v1811 = vunpack.c.l.b16 %v378
  %v1812 = vunpack.c.h.b16 %v378
  %v1813 = vunpack.c.l.b16 %v379
  %v1814 = vunpack.c.h.b16 %v379
  %v1815 = vunpack.c.l.b16 %v380
  %v1816 = vunpack.c.h.b16 %v380
  %v1817 = vunpack.c.l.b16 %v381
  %v1818 = vunpack.c.h.b16 %v381
  %v1819 = vunpack.c.l.b16 %v382
  %v1820 = vunpack.c.h.b16 %v382
  %v1821 = vunpack.c.l.b16 %v383
  %v1822 = vunpack.c.h.b16 %v383
  %v1823 = vunpack.c.l.b16 %v384
  %v1824 = vunpack.c.h.b16 %v384
  %v1825 = vunpack.c.l.b16 %v385
  %v1826 = vunpack.c.h.b16 %v385
  %v1827 = vunpack.c.l.b16 %v386
  %v1828 = vunpack.c.h.b16 %v386
  %v1829 = vunpack.c.l.b16 %v387
  %v1830 = vunpack.c.h.b16 %v387
  %v1831 = vunpack.c.l.b16 %v388
  %v1832 = vunpack.c.h.b16 %v388
  %v1833 = vunpack.c.l.b16 %v389
  %v1834 = vunpack.c.h.b16 %v389
  %v1835 = vunpack.c.l.b16 %v390
  %v1836 = vunpack.c.h.b16 %v390
  %v1837 = vunpack.c.l.b16 %v391
  %v1838 = vunpack.c.h.b16 %v391
  %v1839 = vunpack.c.l.b16 %v392
  %v1840 = vunpack.c.h.b16 %v392
  %v1841 = vunpack.c.l.b16 %v393
  %v1842 = vunpack.c.h.b16 %v393
  %v1843 = vunpack.c.l.b16 %v394
  %v1844 = vunpack.c.h.b16 %v394
  %v1845 = vunpack.c.l.b16 %v395
  %v1846 = vunpack.c.h.b16 %v395
  %v1847 = vunpack.c.l.b16 %v396
  %v1848 = vunpack.c.h.b16 %v396
  %v1849 = vunpack.c.l.b16 %v397
  %v1850 = vunpack.c.h.b16 %v397
  %v1851 = vunpack.c.l.b16 %v398
  %v1852 = vunpack.c.h.b16 %v398
  %v1853 = vunpack.c.l.b16 %v399
  %v1854 = vunpack.c.h.b16 %v399
  %v1855 = vunpack.c.l.b16 %v400
  %v1856 = vunpack.c.h.b16 %v400
  %v1857 = vunpack.c.l.b16 %v401
  %v1858 = vunpack.c.h.b16 %v401
  %v1859 = vunpack.c.l.b16 %v402
  %v1860 = vunpack.c.h.b16 %v402
  %v1861 = vunpack.c.l.b16 %v403
  %v1862 = vunpack.c.h.b16 %v403
  %v1863 = vunpack.c.l.b16 %v404
  %v1864 = vunpack.c.h.b16 %v404
  %v1865 = vunpack.c.l.b16 %v405
  %v1866 = vunpack.c.h.b16 %v405
  %v1867 = vunpack.c.l.b16 %v406
  %v1868 = vunpack.c.h.b16 %v406
  %v1869 = vunpack.c.l.b16 %v407
  %v1870 = vunpack.c.h.b16 %v407
  %v1871 = vunpack.c.l.b16 %v408
  %v1872 = vunpack.c.h.b16 %v408
  %v1873 = vunpack.c.l.b16 %v409
  %v1874 = vunpack.c.h.b16 %v409
  %v1875 = vunpack.c.l.b16 %v410
  %v1876 = vunpack.c.h.b16 %v410
  %v1877 = vunpack.c.l.b16 %v411
  %v1878 = vunpack.c.h.b16 %v411
  %v1879 = vunpack.c.l.b16 %v412
  %v1880 = vunpack.c.h.b16 %v412
  %v1881 = vunpack.c.l.b16 %v413
  %v1882 = vunpack.c.h.b16 %v413
  %v1883 = vunpack.c.l.b16 %v414
  %v1884 = vunpack.c.h.b16 %v414
  %v1885 = vunpack.c.l.b16 %v415
  %v1886 = vunpack.c.h.b16 %v415
  %v1887 = vunpack.c.l.b16 %v416
  %v1888 = vunpack.c.h.b16 %v416
  %v1889 = vunpack.c.l.b16 %v417
  %v1890 = vunpack.c.h.b16 %v417
  %v1891 = vunpack.c.l.b16 %v418
  %v1892 = vunpack.c.h.b16 %v418
  %v1893 = vunpack.c.l.b16 %v419
  %v1894 = vunpack.c.h.b16 %v419
  %v1895 = vunpack.c.l.b16 %v420
  %v1896 = vunpack.c.h.b16 %v420
  %v1897 = vunpack.c.l.b16 %v421
  %v1898 = vunpack.c.h.b16 %v421
  %v1899 = vunpack.c.l.b16 %v422
  %v1900 = vunpack.c.h.b16 %v422
  %v1901 = vunpack.c.l.b16 %v423
  %v1902 = vunpack.c.h.b16 %v423
  %v1903 = vunpack.c.l.b16 %v424
  %v1904 = vunpack.c.h.b16 %v424
  %v1905 = vunpack.c.l.b16 %v425
  %v1906 = vunpack.c.h.b16 %v425
  %v1907 = vunpack.c.l.b16 %v426
  %v1908 = vunpack.c.h.b16 %v426
  %v1909 = vunpack.c.l.b16 %v427
  %v1910 = vunpack.c.h.b16 %v427
  %v1911 = vunpack.c.l.b16 %v428
  %v1912 = vunpack.c.h.b16 %v428
  %v1913 = vunpack.c.l.b16 %v429
  %v1914 = vunpack.c.h.b16 %v429
  %v1915 = vunpack.c.l.b16 %v430
  %v1916 = vunpack.c.h.b16 %v430
  %v1917 = vunpack.c.l.b16 %v431
  %v1918 = vunpack.c.h.b16 %v431
  %v1919 = vunpack.c.l.b16 %v432
  %v1920 = vunpack.c.h.b16 %v432
  %v1921 = vunpack.c.l.b16 %v433
  %v1922 = vunpack.c.h.b16 %v433
  %v1923 = vunpack.c.l.b16 %v434
  %v1924 = vunpack.c.h.b16 %v434
  %v1925 = vunpack.c.l.b16 %v435
  %v1926 = vunpack.c.h.b16 %v435
  %v1927 = vunpack.c.l.b16 %v436
  %v1928 = vunpack.c.h.b16 %v436
  %v1929 = vunpack.c.l.b16 %v437
  %v1930 = vunpack.c.h.b16 %v437
  %v1931 = vunpack.c.l.b16 %v438
  %v1932 = vunpack.c.h.b16 %v438
  %v1933 = vunpack.c.l.b16 %v439
  %v1934 = vunpack.c.h.b16 %v439
  %v1935 = vunpack.c.l.b16 %v440
  %v1936 = vunpack.c.h.b16 %v440
  %v1937 = vunpack.c.l.b16 %v441
  %v1938 = vunpack.c.h.b16 %v441
  %v1939 = vunpack.c.l.b16 %v442
  %v1940 = vunpack.c.h.b16 %v442
  %v1941 = vunpack.c.l.b16 %v443
  %v1942 = vunpack.c.h.b16 %v443
  %v1943 = vunpack.c.l.b16 %v444
  %v1944 = vunpack.c.h.b16 %v444
  %v1945 = vunpack.c.l.b16 %v445
  %v1946 = vunpack.c.h.b16 %v445
  %v1947 = vunpack.c.l.b16 %v446
  %v1948 = vunpack.c.h.b16 %v446
  %v1949 = vunpack.c.l.b16 %v447
  %v1950 = vunpack.c.h.b16 %v447
  %v1951 = vunpack.c.l.b16 %v448
  %v1952 = vunpack.c.h.b16 %v448
  %v1953 = vunpack.c.l.b16 %v449
  %v1954 = vunpack.c.h.b16 %v449
  %v1955 = vunpack.c.l.b16 %v450
  %v1956 = vunpack.c.h.b16 %v450
  %v1957 = vunpack.c.l.b16 %v451
  %v1958 = vunpack.c.h.b16 %v451
  %v1959 = vunpack.c.l.b16 %v452
  %v1960 = vunpack.c.h.b16 %v452
  %v1961 = vunpack.c.l.b16 %v453
  %v1962 = vunpack.c.h.b16 %v453
  %v1963 = vunpack.c.l.b16 %v454
  %v1964 = vunpack.c.h.b16 %v454
  %v1965 = vunpack.c.l.b16 %v455
  %v1966 = vunpack.c.h.b16 %v455
  %v1967 = vunpack.c.l.b16 %v456
  %v1968 = vunpack.c.h.b16 %v456
  %v1969 = vunpack.c.l.b16 %v457
  %v1970 = vunpack.c.h.b16 %v457
  %v1971 = vunpack.c.l.b16 %v458
  %v1972 = vunpack.c.h.b16 %v458
  %v1973 = vunpack.c.l.b16 %v459
  %v1974 = vunpack.c.h.b16 %v459
  %v1975 = vunpack.c.l.b16 %v460
  %v1976 = vunpack.c.h.b16 %v460
  %v1977 = vunpack.c.l.b16 %v461
  %v1978 = vunpack.c.h.b16 %v461
  %v1979 = vunpack.c.l.b16 %v462
  %v1980 = vunpack.c.h.b16 %v462
  %v1981 = vunpack.c.l.b16 %v463
  %v1982 = vunpack.c.h.b16 %v463
  %v1983 = vunpack.c.l.b16 %v464
  %v1984 = vunpack.c.h.b16 %v464
  %v1985 = vunpack.c.l.b16 %v465
  %v1986 = vunpack.c.h.b16 %v465
  %v1987 = vunpack.c.l.b16 %v466
  %v1988 = vunpack.c.h.b16 %v466
  %v1989 = vunpack.c.l.b16 %v467
  %v1990 = vunpack.c.h.b16 %v467
  %v1991 = vunpack.c.l.b16 %v468
  %v1992 = vunpack.c.h.b16 %v468
  %v1993 = vunpack.c.l.b16 %v469
  %v1994 = vunpack.c.h.b16 %v469
  %v1995 = vunpack.c.l.b16 %v470
  %v1996 = vunpack.c.h.b16 %v470
  %v1997 = vunpack.c.l.b16 %v471
  %v1998 = vunpack.c.h.b16 %v471
  %v1999 = vunpack.c.l.b16 %v472
  %v2000 = vunpack.c.h.b16 %v472
  %v2001 = vunpack.c.l.b16 %v473
  %v2002 = vunpack.c.h.b16 %v473
  %v2003 = vunpack.c.l.b16 %v474
  %v2004 = vunpack.c.h.b16 %v474
  %v2005 = vunpack.c.l.b16 %v475
  %v2006 = vunpack.c.h.b16 %v475
  %v2007 = vunpack.c.l.b16 %v476
  %v2008 = vunpack.c.h.b16 %v476
  %v2009 = vunpack.c.l.b16 %v477
  %v2010 = vunpack.c.h.b16 %v477
  %v2011 = vunpack.c.l.b16 %v478
  %v2012 = vunpack.c.h.b16 %v478
  %v2013 = vunpack.c.l.b16 %v479
  %v2014 = vunpack.c.h.b16 %v479
  %v2015 = vunpack.c.l.b16 %v480
  %v2016 = vunpack.c.h.b16 %v480
  %v2017 = vunpack.c.l.b16 %v481
  %v2018 = vunpack.c.h.b16 %v481
  %v2019 = vunpack.c.l.b16 %v482
  %v2020 = vunpack.c.h.b16 %v482
  %v2021 = vunpack.c.l.b16 %v483
  %v2022 = vunpack.c.h.b16 %v483
  %v2023 = vunpack.c.l.b16 %v484
  %v2024 = vunpack.c.h.b16 %v484
  %v2025 = vunpack.c.l.b16 %v485
  %v2026 = vunpack.c.h.b16 %v485
  %v2027 = vunpack.c.l.b16 %v486
  %v2028 = vunpack.c.h.b16 %v486
  %v2029 = vunpack.c.l.b16 %v487
  %v2030 = vunpack.c.h.b16 %v487
  %v2031 = vunpack.c.l.b16 %v488
  %v2032 = vunpack.c.h.b16 %v488
  %v2033 = vunpack.c.l.b16 %v489
  %v2034 = vunpack.c.h.b16 %v489
  %v2035 = vunpack.c.l.b16 %v490
  %v2036 = vunpack.c.h.b16 %v490
  %v2037 = vunpack.c.l.b16 %v491
  %v2038 = vunpack.c.h.b16 %v491
  %v2039 = vunpack.c.l.b16 %v492
  %v2040 = vunpack.c.h.b16 %v492
  %v2041 = vunpack.c.l.b16 %v493
  %v2042 = vunpack.c.h.b16 %v493
  %v2043 = vunpack.c.l.b16 %v494
  %v2044 = vunpack.c.h.b16 %v494
  %v2045 = vunpack.c.l.b16 %v495
  %v2046 = vunpack.c.h.b16 %v495
  %v2047 = vunpack.c.l.b16 %v496
  %v2048 = vunpack.c.h.b16 %v496
  %v2049 = vunpack.c.l.b16 %v497
  %v2050 = vunpack.c.h.b16 %v497
  %v2051 = vunpack.c.l.b16 %v498
  %v2052 = vunpack.c.h.b16 %v498
  %v2053 = vunpack.c.l.b16 %v499
  %v2054 = vunpack.c.h.b16 %v499
  %v2055 = vunpack.c.l.b16 %v500
  %v2056 = vunpack.c.h.b16 %v500
  %v2057 = vunpack.c.l.b16 %v501
  %v2058 = vunpack.c.h.b16 %v501
  %v2059 = vunpack.c.l.b16 %v502
  %v2060 = vunpack.c.h.b16 %v502
  %v2061 = vunpack.c.l.b16 %v503
  %v2062 = vunpack.c.h.b16 %v503
  %v2063 = vunpack.c.l.b16 %v504
  %v2064 = vunpack.c.h.b16 %v504
  %v2065 = vunpack.c.l.b16 %v505
  %v2066 = vunpack.c.h.b16 %v505
  %v2067 = vunpack.c.l.b16 %v506
  %v2068 = vunpack.c.h.b16 %v506
  %v2069 = vunpack.c.l.b16 %v507
  %v2070 = vunpack.c.h.b16 %v507
  %v2071 = vunpack.c.l.b16 %v508
  %v2072 = vunpack.c.h.b16 %v508
  %v2073 = vunpack.c.l.b16 %v509
  %v2074 = vunpack.c.h.b16 %v509
  %v2075 = vunpack.c.l.b16 %v510
  %v2076 = vunpack.c.h.b16 %v510
  %v2077 = vunpack.c.l.b16 %v511
  %v2078 = vunpack.c.h.b16 %v511
  %v2079 = vunpack.c.l.b16 %v512
  %v2080 = vunpack.c.h.b16 %v512
  %v2081 = vunpack.c.l.b16 %v513
  %v2082 = vunpack.c.h.b16 %v513
  %v2083 = vunpack.c.l.b16 %v514
  %v2084 = vunpack.c.h.b16 %v514
  %v2085 = vunpack.c.l.b16 %v515
  %v2086 = vunpack.c.h.b16 %v515
  %v2087 = vunpack.c.l.b16 %v516
  %v2088 = vunpack.c.h.b16 %v516
  %v2089 = vunpack.c.l.b16 %v517
  %v2090 = vunpack.c.h.b16 %v517
  %v2091 = vunpack.c.l.b16 %v518
  %v2092 = vunpack.c.h.b16 %v518
  %v2093 = vunpack.c.l.b16 %v519
  %v2094 = vunpack.c.h.b16 %v519
  %v2095 = vunpack.c.l.b16 %v520
  %v2096 = vunpack.c.h.b16 %v520
  %v2097 = vunpack.c.l.b16 %v521
  %v2098 = vunpack.c.h.b16 %v521
  %v2099 = vunpack.c.l.b16 %v522
  %v2100 = vunpack.c.h.b16 %v522
  %v2101 = vunpack.c.l.b16 %v523
  %v2102 = vunpack.c.h.b16 %v523
  %v2103 = vunpack.c.l.b16 %v524
  %v2104 = vunpack.c.h.b16 %v524
  %v2105 = vunpack.c.l.b16 %v525
  %v2106 = vunpack.c.h.b16 %v525
  %v2107 = vunpack.c.l.b16 %v526
  %v2108 = vunpack.c.h.b16 %v526
  %v2109 = vunpack.c.l.b16 %v527
  %v2110 = vunpack.c.h.b16 %v527
  %v2111 = vunpack.c.l.b16 %v528
  %v2112 = vunpack.c.h.b16 %v528
  %v2113 = vunpack.c.l.b16 %v529
  %v2114 = vunpack.c.h.b16 %v529
  %v2115 = vunpack.c.l.b16 %v530
  %v2116 = vunpack.c.h.b16 %v530
  %v2117 = vunpack.c.l.b16 %v531
  %v2118 = vunpack.c.h.b16 %v531
  %v2119 = vunpack.c.l.b16 %v532
  %v2120 = vunpack.c.h.b16 %v532
  %v2121 = vunpack.c.l.b16 %v533
  %v2122 = vunpack.c.h.b16 %v533
  %v2123 = vunpack.c.l.b16 %v534
  %v2124 = vunpack.c.h.b16 %v534
  %v2125 = vunpack.c.l.b16 %v535
  %v2126 = vunpack.c.h.b16 %v535
  %v2127 = vunpack.c.l.b16 %v536
  %v2128 = vunpack.c.h.b16 %v536
  %v2129 = vpack.c.b16 %v1109, %v1105
  %v2130 = vpack.c.b16 %v1110, %v1106
  %v2131 = vpack.c.b16 %v1111, %v1107
  %v2132 = vpack.c.b16 %v1112, %v1108
  %v2133 = vpack.c.b16 %v1117, %v1113
  %v2134 = vpack.c.b16 %v1118, %v1114
  %v2135 = vpack.c.b16 %v1119, %v1115
  %v2136 = vpack.c.b16 %v1120, %v1116
  %v2137 = vpack.c.b16 %v1125, %v1121
  %v2138 = vpack.c.b16 %v1126, %v1122
  %v2139 = vpack.c.b16 %v1127, %v1123
  %v2140 = vpack.c.b16 %v1128, %v1124
  %v2141 = vpack.c.b16 %v1133, %v1129
  %v2142 = vpack.c.b16 %v1134, %v1130
  %v2143 = vpack.c.b16 %v1135, %v1131
  %v2144 = vpack.c.b16 %v1136, %v1132
  %v2145 = vpack.c.b16 %v1141, %v1137
  %v2146 = vpack.c.b16 %v1142, %v1138
  %v2147 = vpack.c.b16 %v1143, %v1139
  %v2148 = vpack.c.b16 %v1144, %v1140
  %v2149 = vpack.c.b16 %v1149, %v1145
  %v2150 = vpack.c.b16 %v1150, %v1146
  %v2151 = vpack.c.b16 %v1151, %v1147
  %v2152 = vpack.c.b16 %v1152, %v1148
  %v2153 = vpack.c.b16 %v1157, %v1153
  %v2154 = vpack.c.b16 %v1158, %v1154
  %v2155 = vpack.c.b16 %v1159, %v1155
  %v2156 = vpack.c.b16 %v1160, %v1156
  %v2157 = vpack.c.b16 %v1165, %v1161
  %v2158 = vpack.c.b16 %v1166, %v1162
  %v2159 = vpack.c.b16 %v1167, %v1163
  %v2160 = vpack.c.b16 %v1168, %v1164
  %v2161 = vpack.c.b16 %v1173, %v1169
  %v2162 = vpack.c.b16 %v1174, %v1170
  %v2163 = vpack.c.b16 %v1175, %v1171
  %v2164 = vpack.c.b16 %v1176, %v1172
  %v2165 = vpack.c.b16 %v1181, %v1177
  %v2166 = vpack.c.b16 %v1182, %v1178
  %v2167 = vpack.c.b16 %v1183, %v1179
  %v2168 = vpack.c.b16 %v1184, %v1180
  %v2169 = vpack.c.b16 %v1189, %v1185
  %v2170 = vpack.c.b16 %v1190, %v1186
  %v2171 = vpack.c.b16 %v1191, %v1187
  %v2172 = vpack.c.b16 %v1192, %v1188
  %v2173 = vpack.c.b16 %v1197, %v1193
  %v2174 = vpack.c.b16 %v1198, %v1194
  %v2175 = vpack.c.b16 %v1199, %v1195
  %v2176 = vpack.c.b16 %v1200, %v1196
  %v2177 = vpack.c.b16 %v1205, %v1201
  %v2178 = vpack.c.b16 %v1206, %v1202
  %v2179 = vpack.c.b16 %v1207, %v1203
  %v2180 = vpack.c.b16 %v1208, %v1204
  %v2181 = vpack.c.b16 %v1213, %v1209
  %v2182 = vpack.c.b16 %v1214, %v1210
  %v2183 = vpack.c.b16 %v1215, %v1211
  %v2184 = vpack.c.b16 %v1216, %v1212
  %v2185 = vpack.c.b16 %v1221, %v1217
  %v2186 = vpack.c.b16 %v1222, %v1218
  %v2187 = vpack.c.b16 %v1223, %v1219
  %v2188 = vpack.c.b16 %v1224, %v1220
  %v2189 = vpack.c.b16 %v1229, %v1225
  %v2190 = vpack.c.b16 %v1230, %v1226
  %v2191 = vpack.c.b16 %v1231, %v1227
  %v2192 = vpack.c.b16 %v1232, %v1228
  %v2193 = vpack.c.b16 %v1237, %v1233
  %v2194 = vpack.c.b16 %v1238, %v1234
  %v2195 = vpack.c.b16 %v1239, %v1235
  %v2196 = vpack.c.b16 %v1240, %v1236
  %v2197 = vpack.c.b16 %v1245, %v1241
  %v2198 = vpack.c.b16 %v1246, %v1242
  %v2199 = vpack.c.b16 %v1247, %v1243
  %v2200 = vpack.c.b16 %v1248, %v1244
  %v2201 = vpack.c.b16 %v1253, %v1249
  %v2202 = vpack.c.b16 %v1254, %v1250
  %v2203 = vpack.c.b16 %v1255, %v1251
  %v2204 = vpack.c.b16 %v1256, %v1252
  %v2205 = vpack.c.b16 %v1261, %v1257
  %v2206 = vpack.c.b16 %v1262, %v1258
  %v2207 = vpack.c.b16 %v1263, %v1259
  %v2208 = vpack.c.b16 %v1264, %v1260
  %v2209 = vpack.c.b16 %v1269, %v1265
  %v2210 = vpack.c.b16 %v1270, %v1266
  %v2211 = vpack.c.b16 %v1271, %v1267
  %v2212 = vpack.c.b16 %v1272, %v1268
  %v2213 = vpack.c.b16 %v1277, %v1273
  %v2214 = vpack.c.b16 %v1278, %v1274
  %v2215 = vpack.c.b16 %v1279, %v1275
  %v2216 = vpack.c.b16 %v1280, %v1276
  %v2217 = vpack.c.b16 %v1285, %v1281
  %v2218 = vpack.c.b16 %v1286, %v1282
  %v2219 = vpack.c.b16 %v1287, %v1283
  %v2220 = vpack.c.b16 %v1288, %v1284
  %v2221 = vpack.c.b16 %v1293, %v1289
  %v2222 = vpack.c.b16 %v1294, %v1290
  %v2223 = vpack.c.b16 %v1295, %v1291
  %v2224 = vpack.c.b16 %v1296, %v1292
  %v2225 = vpack.c.b16 %v1301, %v1297
  %v2226 = vpack.c.b16 %v1302, %v1298
  %v2227 = vpack.c.b16 %v1303, %v1299
  %v2228 = vpack.c.b16 %v1304, %v1300
  %v2229 = vpack.c.b16 %v1309, %v1305
  %v2230 = vpack.c.b16 %v1310, %v1306
  %v2231 = vpack.c.b16 %v1311, %v1307
  %v2232 = vpack.c.b16 %v1312, %v1308
  %v2233 = vpack.c.b16 %v1317, %v1313
  %v2234 = vpack.c.b16 %v1318, %v1314
  %v2235 = vpack.c.b16 %v1319, %v1315
  %v2236 = vpack.c.b16 %v1320, %v1316
  %v2237 = vpack.c.b16 %v1325, %v1321
  %v2238 = vpack.c.b16 %v1326, %v1322
  %v2239 = vpack.c.b16 %v1327, %v1323
  %v2240 = vpack.c.b16 %v1328, %v1324
  %v2241 = vpack.c.b16 %v1333, %v1329
  %v2242 = vpack.c.b16 %v1334, %v1330
  %v2243 = vpack.c.b16 %v1335, %v1331
  %v2244 = vpack.c.b16 %v1336, %v1332
  %v2245 = vpack.c.b16 %v1341, %v1337
  %v2246 = vpack.c.b16 %v1342, %v1338
  %v2247 = vpack.c.b16 %v1343, %v1339
  %v2248 = vpack.c.b16 %v1344, %v1340
  %v2249 = vpack.c.b16 %v1349, %v1345
  %v2250 = vpack.c.b16 %v1350, %v1346
  %v2251 = vpack.c.b16 %v1351, %v1347
  %v2252 = vpack.c.b16 %v1352, %v1348
  %v2253 = vpack.c.b16 %v1357, %v1353
  %v2254 = vpack.c.b16 %v1358, %v1354
  %v2255 = vpack.c.b16 %v1359, %v1355
  %v2256 = vpack.c.b16 %v1360, %v1356
  %v2257 = vpack.c.b16 %v1365, %v1361
  %v2258 = vpack.c.b16 %v1366, %v1362
  %v2259 = vpack.c.b16 %v1367, %v1363
  %v2260 = vpack.c.b16 %v1368, %v1364
  %v2261 = vpack.c.b16 %v1373, %v1369
  %v2262 = vpack.c.b16 %v1374, %v1370
  %v2263 = vpack.c.b16 %v1375, %v1371
  %v2264 = vpack.c.b16 %v1376, %v1372
  %v2265 = vpack.c.b16 %v1381, %v1377
  %v2266 = vpack.c.b16 %v1382, %v1378
  %v2267 = vpack.c.b16 %v1383, %v1379
  %v2268 = vpack.c.b16 %v1384, %v1380
  %v2269 = vpack.c.b16 %v1389, %v1385
  %v2270 = vpack.c.b16 %v1390, %v1386
  %v2271 = vpack.c.b16 %v1391, %v1387
  %v2272 = vpack.c.b16 %v1392, %v1388
  %v2273 = vpack.c.b16 %v1397, %v1393
  %v2274 = vpack.c.b16 %v1398, %v1394
  %v2275 = vpack.c.b16 %v1399, %v1395
  %v2276 = vpack.c.b16 %v1400, %v1396
  %v2277 = vpack.c.b16 %v1405, %v1401
  %v2278 = vpack.c.b16 %v1406, %v1402
  %v2279 = vpack.c.b16 %v1407, %v1403
  %v2280 = vpack.c.b16 %v1408, %v1404
  %v2281 = vpack.c.b16 %v1413, %v1409
  %v2282 = vpack.c.b16 %v1414, %v1410
  %v2283 = vpack.c.b16 %v1415, %v1411
  %v2284 = vpack.c.b16 %v1416, %v1412
  %v2285 = vpack.c.b16 %v1421, %v1417
  %v2286 = vpack.c.b16 %v1422, %v1418
  %v2287 = vpack.c.b16 %v1423, %v1419
  %v2288 = vpack.c.b16 %v1424, %v1420
  %v2289 = vpack.c.b16 %v1429, %v1425
  %v2290 = vpack.c.b16 %v1430, %v1426
  %v2291 = vpack.c.b16 %v1431, %v1427
  %v2292 = vpack.c.b16 %v1432, %v1428
  %v2293 = vpack.c.b16 %v1437, %v1433
  %v2294 = vpack.c.b16 %v1438, %v1434
  %v2295 = vpack.c.b16 %v1439, %v1435
  %v2296 = vpack.c.b16 %v1440, %v1436
  %v2297 = vpack.c.b16 %v1445, %v1441
  %v2298 = vpack.c.b16 %v1446, %v1442
  %v2299 = vpack.c.b16 %v1447, %v1443
  %v2300 = vpack.c.b16 %v1448, %v1444
  %v2301 = vpack.c.b16 %v1453, %v1449
  %v2302 = vpack.c.b16 %v1454, %v1450
  %v2303 = vpack.c.b16 %v1455, %v1451
  %v2304 = vpack.c.b16 %v1456, %v1452
  %v2305 = vpack.c.b16 %v1461, %v1457
  %v2306 = vpack.c.b16 %v1462, %v1458
  %v2307 = vpack.c.b16 %v1463, %v1459
  %v2308 = vpack.c.b16 %v1464, %v1460
  %v2309 = vpack.c.b16 %v1469, %v1465
  %v2310 = vpack.c.b16 %v1470, %v1466
  %v2311 = vpack.c.b16 %v1471, %v1467
  %v2312 = vpack.c.b16 %v1472, %v1468
  %v2313 = vpack.c.b16 %v1477, %v1473
  %v2314 = vpack.c.b16 %v1478, %v1474
  %v2315 = vpack.c.b16 %v1479, %v1475
  %v2316 = vpack.c.b16 %v1480, %v1476
  %v2317 = vpack.c.b16 %v1485, %v1481
  %v2318 = vpack.c.b16 %v1486, %v1482
  %v2319 = vpack.c.b16 %v1487, %v1483
  %v2320 = vpack.c.b16 %v1488, %v1484
  %v2321 = vpack.c.b16 %v1493, %v1489
  %v2322 = vpack.c.b16 %v1494, %v1490
  %v2323 = vpack.c.b16 %v1495, %v1491
  %v2324 = vpack.c.b16 %v1496, %v1492
  %v2325 = vpack.c.b16 %v1501, %v1497
  %v2326 = vpack.c.b16 %v1502, %v1498
  %v2327 = vpack.c.b16 %v1503, %v1499
  %v2328 = vpack.c.b16 %v1504, %v1500
  %v2329 = vpack.c.b16 %v1509, %v1505
  %v2330 = vpack.c.b16 %v1510, %v1506
  %v2331 = vpack.c.b16 %v1511, %v1507
  %v2332 = vpack.c.b16 %v1512, %v1508
  %v2333 = vpack.c.b16 %v1517, %v1513
  %v2334 = vpack.c.b16 %v1518, %v1514
  %v2335 = vpack.c.b16 %v1519, %v1515
  %v2336 = vpack.c.b16 %v1520, %v1516
  %v2337 = vpack.c.b16 %v1525, %v1521
  %v2338 = vpack.c.b16 %v1526, %v1522
  %v2339 = vpack.c.b16 %v1527, %v1523
  %v2340 = vpack.c.b16 %v1528, %v1524
  %v2341 = vpack.c.b16 %v1533, %v1529
  %v2342 = vpack.c.b16 %v1534, %v1530
  %v2343 = vpack.c.b16 %v1535, %v1531
  %v2344 = vpack.c.b16 %v1536, %v1532
  %v2345 = vpack.c.b16 %v1541, %v1537
  %v2346 = vpack.c.b16 %v1542, %v1538
  %v2347 = vpack.c.b16 %v1543, %v1539
  %v2348 = vpack.c.b16 %v1544, %v1540
  %v2349 = vpack.c.b16 %v1549, %v1545
  %v2350 = vpack.c.b16 %v1550, %v1546
  %v2351 = vpack.c.b16 %v1551, %v1547
  %v2352 = vpack.c.b16 %v1552, %v1548
  %v2353 = vpack.c.b16 %v1557, %v1553
  %v2354 = vpack.c.b16 %v1558, %v1554
  %v2355 = vpack.c.b16 %v1559, %v1555
  %v2356 = vpack.c.b16 %v1560, %v1556
  %v2357 = vpack.c.b16 %v1565, %v1561
  %v2358 = vpack.c.b16 %v1566, %v1562
  %v2359 = vpack.c.b16 %v1567, %v1563
  %v2360 = vpack.c.b16 %v1568, %v1564
  %v2361 = vpack.c.b16 %v1573, %v1569
  %v2362 = vpack.c.b16 %v1574, %v1570
  %v2363 = vpack.c.b16 %v1575, %v1571
  %v2364 = vpack.c.b16 %v1576, %v1572
  %v2365 = vpack.c.b16 %v1581, %v1577
  %v2366 = vpack.c.b16 %v1582, %v1578
  %v2367 = vpack.c.b16 %v1583, %v1579
  %v2368 = vpack.c.b16 %v1584, %v1580
  %v2369 = vpack.c.b16 %v1589, %v1585
  %v2370 = vpack.c.b16 %v1590, %v1586
  %v2371 = vpack.c.b16 %v1591, %v1587
  %v2372 = vpack.c.b16 %v1592, %v1588
  %v2373 = vpack.c.b16 %v1597, %v1593
  %v2374 = vpack.c.b16 %v1598, %v1594
  %v2375 = vpack.c.b16 %v1599, %v1595
  %v2376 = vpack.c.b16 %v1600, %v1596
  %v2377 = vpack.c.b16 %v1605, %v1601
  %v2378 = vpack.c.b16 %v1606, %v1602
  %v2379 = vpack.c.b16 %v1607, %v1603
  %v2380 = vpack.c.b16 %v1608, %v1604
  %v2381 = vpack.c.b16 %v1613, %v1609
  %v2382 = vpack.c.b16 %v1614, %v1610
  %v2383 = vpack.c.b16 %v1615, %v1611
  %v2384 = vpack.c.b16 %v1616, %v1612
  %v2385 = vpack.c.b16 %v1621, %v1617
  %v2386 = vpack.c.b16 %v1622, %v1618
  %v2387 = vpack.c.b16 %v1623, %v1619
  %v2388 = vpack.c.b16 %v1624, %v1620
  %v2389 = vpack.c.b16 %v1629, %v1625
  %v2390 = vpack.c.b16 %v1630, %v1626
  %v2391 = vpack.c.b16 %v1631, %v1627
  %v2392 = vpack.c.b16 %v1632, %v1628
  %v2393 = vpack.c.b16 %v1637, %v1633
  %v2394 = vpack.c.b16 %v1638, %v1634
  %v2395 = vpack.c.b16 %v1639, %v1635
  %v2396 = vpack.c.b16 %v1640, %v1636
  %v2397 = vpack.c.b16 %v1645, %v1641
  %v2398 = vpack.c.b16 %v1646, %v1642
  %v2399 = vpack.c.b16 %v1647, %v1643
  %v2400 = vpack.c.b16 %v1648, %v1644
  %v2401 = vpack.c.b16 %v1653, %v1649
  %v2402 = vpack.c.b16 %v1654, %v1650
  %v2403 = vpack.c.b16 %v1655, %v1651
  %v2404 = vpack.c.b16 %v1656, %v1652
  %v2405 = vpack.c.b16 %v1661, %v1657
  %v2406 = vpack.c.b16 %v1662, %v1658
  %v2407 = vpack.c.b16 %v1663, %v1659
  %v2408 = vpack.c.b16 %v1664, %v1660
  %v2409 = vpack.c.b16 %v1669, %v1665
  %v2410 = vpack.c.b16 %v1670, %v1666
  %v2411 = vpack.c.b16 %v1671, %v1667
  %v2412 = vpack.c.b16 %v1672, %v1668
  %v2413 = vpack.c.b16 %v1677, %v1673
  %v2414 = vpack.c.b16 %v1678, %v1674
  %v2415 = vpack.c.b16 %v1679, %v1675
  %v2416 = vpack.c.b16 %v1680, %v1676
  %v2417 = vpack.c.b16 %v1685, %v1681
  %v2418 = vpack.c.b16 %v1686, %v1682
  %v2419 = vpack.c.b16 %v1687, %v1683
  %v2420 = vpack.c.b16 %v1688, %v1684
  %v2421 = vpack.c.b16 %v1693, %v1689
  %v2422 = vpack.c.b16 %v1694, %v1690
  %v2423 = vpack.c.b16 %v1695, %v1691
  %v2424 = vpack.c.b16 %v1696, %v1692
  %v2425 = vpack.c.b16 %v1701, %v1697
  %v2426 = vpack.c.b16 %v1702, %v1698
  %v2427 = vpack.c.b16 %v1703, %v1699
  %v2428 = vpack.c.b16 %v1704, %v1700
  %v2429 = vpack.c.b16 %v1709, %v1705
  %v2430 = vpack.c.b16 %v1710, %v1706
  %v2431 = vpack.c.b16 %v1711, %v1707
  %v2432 = vpack.c.b16 %v1712, %v1708
  %v2433 = vpack.c.b16 %v1717, %v1713
  %v2434 = vpack.c.b16 %v1718, %v1714
  %v2435 = vpack.c.b16 %v1719, %v1715
  %v2436 = vpack.c.b16 %v1720, %v1716
  %v2437 = vpack.c.b16 %v1725, %v1721
  %v2438 = vpack.c.b16 %v1726, %v1722
  %v2439 = vpack.c.b16 %v1727, %v1723
  %v2440 = vpack.c.b16 %v1728, %v1724
  %v2441 = vpack.c.b16 %v1733, %v1729
  %v2442 = vpack.c.b16 %v1734, %v1730
  %v2443 = vpack.c.b16 %v1735, %v1731
  %v2444 = vpack.c.b16 %v1736, %v1732
  %v2445 = vpack.c.b16 %v1741, %v1737
  %v2446 = vpack.c.b16 %v1742, %v1738
  %v2447 = vpack.c.b16 %v1743, %v1739
  %v2448 = vpack.c.b16 %v1744, %v1740
  %v2449 = vpack.c.b16 %v1749, %v1745
  %v2450 = vpack.c.b16 %v1750, %v1746
  %v2451 = vpack.c.b16 %v1751, %v1747
  %v2452 = vpack.c.b16 %v1752, %v1748
  %v2453 = vpack.c.b16 %v1757, %v1753
  %v2454 = vpack.c.b16 %v1758, %v1754
  %v2455 = vpack.c.b16 %v1759, %v1755
  %v2456 = vpack.c.b16 %v1760, %v1756
  %v2457 = vpack.c.b16 %v1765, %v1761
  %v2458 = vpack.c.b16 %v1766, %v1762
  %v2459 = vpack.c.b16 %v1767, %v1763
  %v2460 = vpack.c.b16 %v1768, %v1764
  %v2461 = vpack.c.b16 %v1773, %v1769
  %v2462 = vpack.c.b16 %v1774, %v1770
  %v2463 = vpack.c.b16 %v1775, %v1771
  %v2464 = vpack.c.b16 %v1776, %v1772
  %v2465 = vpack.c.b16 %v1781, %v1777
  %v2466 = vpack.c.b16 %v1782, %v1778
  %v2467 = vpack.c.b16 %v1783, %v1779
  %v2468 = vpack.c.b16 %v1784, %v1780
  %v2469 = vpack.c.b16 %v1789, %v1785
  %v2470 = vpack.c.b16 %v1790, %v1786
  %v2471 = vpack.c.b16 %v1791, %v1787
  %v2472 = vpack.c.b16 %v1792, %v1788
  %v2473 = vpack.c.b16 %v1797, %v1793
  %v2474 = vpack.c.b16 %v1798, %v1794
  %v2475 = vpack.c.b16 %v1799, %v1795
  %v2476 = vpack.c.b16 %v1800, %v1796
  %v2477 = vpack.c.b16 %v1805, %v1801
  %v2478 = vpack.c.b16 %v1806, %v1802
  %v2479 = vpack.c.b16 %v1807, %v1803
  %v2480 = vpack.c.b16 %v1808, %v1804
  %v2481 = vpack.c.b16 %v1813, %v1809
  %v2482 = vpack.c.b16 %v1814, %v1810
  %v2483 = vpack.c.b16 %v1815, %v1811
  %v2484 = vpack.c.b16 %v1816, %v1812
  %v2485 = vpack.c.b16 %v1821, %v1817
  %v2486 = vpack.c.b16 %v1822, %v1818
  %v2487 = vpack.c.b16 %v1823, %v1819
  %v2488 = vpack.c.b16 %v1824, %v1820
  %v2489 = vpack.c.b16 %v1829, %v1825
  %v2490 = vpack.c.b16 %v1830, %v1826
  %v2491 = vpack.c.b16 %v1831, %v1827
  %v2492 = vpack.c.b16 %v1832, %v1828
  %v2493 = vpack.c.b16 %v1837, %v1833
  %v2494 = vpack.c.b16 %v1838, %v1834
  %v2495 = vpack.c.b16 %v1839, %v1835
  %v2496 = vpack.c.b16 %v1840, %v1836
  %v2497 = vpack.c.b16 %v1845, %v1841
  %v2498 = vpack.c.b16 %v1846, %v1842
  %v2499 = vpack.c.b16 %v1847, %v1843
  %v2500 = vpack.c.b16 %v1848, %v1844
  %v2501 = vpack.c.b16 %v1853, %v1849
  %v2502 = vpack.c.b16 %v1854, %v1850
  %v2503 = vpack.c.b16 %v1855, %v1851
  %v2504 = vpack.c.b16 %v1856, %v1852
  %v2505 = vpack.c.b16 %v1861, %v1857
  %v2506 = vpack.c.b16 %v1862, %v1858
  %v2507 = vpack.c.b16 %v1863, %v1859
  %v2508 = vpack.c.b16 %v1864, %v1860
  %v2509 = vpack.c.b16 %v1869, %v1865
  %v2510 = vpack.c.b16 %v1870, %v1866
  %v2511 = vpack.c.b16 %v1871, %v1867
  %v2512 = vpack.c.b16 %v1872, %v1868
  %v2513 = vpack.c.b16 %v1877, %v1873
  %v2514 = vpack.c.b16 %v1878, %v1874
  %v2515 = vpack.c.b16 %v1879, %v1875
  %v2516 = vpack.c.b16 %v1880, %v1876
  %v2517 = vpack.c.b16 %v1885, %v1881
  %v2518 = vpack.c.b16 %v1886, %v1882
  %v2519 = vpack.c.b16 %v1887, %v1883
  %v2520 = vpack.c.b16 %v1888, %v1884
  %v2521 = vpack.c.b16 %v1893, %v1889
  %v2522 = vpack.c.b16 %v1894, %v1890
  %v2523 = vpack.c.b16 %v1895, %v1891
  %v2524 = vpack.c.b16 %v1896, %v1892
  %v2525 = vpack.c.b16 %v1901, %v1897
  %v2526 = vpack.c.b16 %v1902, %v1898
  %v2527 = vpack.c.b16 %v1903, %v1899
  %v2528 = vpack.c.b16 %v1904, %v1900
  %v2529 = vpack.c.b16 %v1909, %v1905
  %v2530 = vpack.c.b16 %v1910, %v1906
  %v2531 = vpack.c.b16 %v1911, %v1907
  %v2532 = vpack.c.b16 %v1912, %v1908
  %v2533 = vpack.c.b16 %v1917, %v1913
  %v2534 = vpack.c.b16 %v1918, %v1914
  %v2535 = vpack.c.b16 %v1919, %v1915
  %v2536 = vpack.c.b16 %v1920, %v1916
  %v2537 = vpack.c.b16 %v1925, %v1921
  %v2538 = vpack.c.b16 %v1926, %v1922
  %v2539 = vpack.c.b16 %v1927, %v1923
  %v2540 = vpack.c.b16 %v1928, %v1924
  %v2541 = vpack.c.b16 %v1933, %v1929
  %v2542 = vpack.c.b16 %v1934, %v1930
  %v2543 = vpack.c.b16 %v1935, %v1931
  %v2544 = vpack.c.b16 %v1936, %v1932
  %v2545 = vpack.c.b16 %v1941, %v1937
  %v2546 = vpack.c.b16 %v1942, %v1938
  %v2547 = vpack.c.b16 %v1943, %v1939
  %v2548 = vpack.c.b16 %v1944, %v1940
  %v2549 = vpack.c.b16 %v1949, %v1945
  %v2550 = vpack.c.b16 %v1950, %v1946
  %v2551 = vpack.c.b16 %v1951, %v1947
  %v2552 = vpack.c.b16 %v1952, %v1948
  %v2553 = vpack.c.b16 %v1957, %v1953
  %v2554 = vpack.c.b16 %v1958, %v1954
  %v2555 = vpack.c.b16 %v1959, %v1955
  %v2556 = vpack.c.b16 %v1960, %v1956
  %v2557 = vpack.c.b16 %v1965, %v1961
  %v2558 = vpack.c.b16 %v1966, %v1962
  %v2559 = vpack.c.b16 %v1967, %v1963
  %v2560 = vpack.c.b16 %v1968, %v1964
  %v2561 = vpack.c.b16 %v1973, %v1969
  %v2562 = vpack.c.b16 %v1974, %v1970
  %v2563 = vpack.c.b16 %v1975, %v1971
  %v2564 = vpack.c.b16 %v1976, %v1972
  %v2565 = vpack.c.b16 %v1981, %v1977
  %v2566 = vpack.c.b16 %v1982, %v1978
  %v2567 = vpack.c.b16 %v1983, %v1979
  %v2568 = vpack.c.b16 %v1984, %v1980
  %v2569 = vpack.c.b16 %v1989, %v1985
  %v2570 = vpack.c.b16 %v1990, %v1986
  %v2571 = vpack.c.b16 %v1991, %v1987
  %v2572 = vpack.c.b16 %v1992, %v1988
  %v2573 = vpack.c.b16 %v1997, %v1993
  %v2574 = vpack.c.b16 %v1998, %v1994
  %v2575 = vpack.c.b16 %v1999, %v1995
  %v2576 = vpack.c.b16 %v2000, %v1996
  %v2577 = vpack.c.b16 %v2005, %v2001
  %v2578 = vpack.c.b16 %v2006, %v2002
  %v2579 = vpack.c.b16 %v2007, %v2003
  %v2580 = vpack.c.b16 %v2008, %v2004
  %v2581 = vpack.c.b16 %v2013, %v2009
  %v2582 = vpack.c.b16 %v2014, %v2010
  %v2583 = vpack.c.b16 %v2015, %v2011
  %v2584 = vpack.c.b16 %v2016, %v2012
  %v2585 = vpack.c.b16 %v2021, %v2017
  %v2586 = vpack.c.b16 %v2022, %v2018
  %v2587 = vpack.c.b16 %v2023, %v2019
  %v2588 = vpack.c.b16 %v2024, %v2020
  %v2589 = vpack.c.b16 %v2029, %v2025
  %v2590 = vpack.c.b16 %v2030, %v2026
  %v2591 = vpack.c.b16 %v2031, %v2027
  %v2592 = vpack.c.b16 %v2032, %v2028
  %v2593 = vpack.c.b16 %v2037, %v2033
  %v2594 = vpack.c.b16 %v2038, %v2034
  %v2595 = vpack.c.b16 %v2039, %v2035
  %v2596 = vpack.c.b16 %v2040, %v2036
  %v2597 = vpack.c.b16 %v2045, %v2041
  %v2598 = vpack.c.b16 %v2046, %v2042
  %v2599 = vpack.c.b16 %v2047, %v2043
  %v2600 = vpack.c.b16 %v2048, %v2044
  %v2601 = vpack.c.b16 %v2053, %v2049
  %v2602 = vpack.c.b16 %v2054, %v2050
  %v2603 = vpack.c.b16 %v2055, %v2051
  %v2604 = vpack.c.b16 %v2056, %v2052
  %v2605 = vpack.c.b16 %v2061, %v2057
  %v2606 = vpack.c.b16 %v2062, %v2058
  %v2607 = vpack.c.b16 %v2063, %v2059
  %v2608 = vpack.c.b16 %v2064, %v2060
  %v2609 = vpack.c.b16 %v2069, %v2065
  %v2610 = vpack.c.b16 %v2070, %v2066
  %v2611 = vpack.c.b16 %v2071, %v2067
  %v2612 = vpack.c.b16 %v2072, %v2068
  %v2613 = vpack.c.b16 %v2077, %v2073
  %v2614 = vpack.c.b16 %v2078, %v2074
  %v2615 = vpack.c.b16 %v2079, %v2075
  %v2616 = vpack.c.b16 %v2080, %v2076
  %v2617 = vpack.c.b16 %v2085, %v2081
  %v2618 = vpack.c.b16 %v2086, %v2082
  %v2619 = vpack.c.b16 %v2087, %v2083
  %v2620 = vpack.c.b16 %v2088, %v2084
  %v2621 = vpack.c.b16 %v2093, %v2089
  %v2622 = vpack.c.b16 %v2094, %v2090
  %v2623 = vpack.c.b16 %v2095, %v2091
  %v2624 = vpack.c.b16 %v2096, %v2092
  %v2625 = vpack.c.b16 %v2101, %v2097
  %v2626 = vpack.c.b16 %v2102, %v2098
  %v2627 = vpack.c.b16 %v2103, %v2099
  %v2628 = vpack.c.b16 %v2104, %v2100
  %v2629 = vpack.c.b16 %v2109, %v2105
  %v2630 = vpack.c.b16 %v2110, %v2106
  %v2631 = vpack.c.b16 %v2111, %v2107
  %v2632 = vpack.c.b16 %v2112, %v2108
  %v2633 = vpack.c.b16 %v2117, %v2113
  %v2634 = vpack.c.b16 %v2118, %v2114
  %v2635 = vpack.c.b16 %v2119, %v2115
  %v2636 = vpack.c.b16 %v2120, %v2116
  %v2637 = vpack.c.b16 %v2125, %v2121
  %v2638 = vpack.c.b16 %v2126, %v2122
  %v2639 = vpack.c.b16 %v2127, %v2123
  %v2640 = vpack.c.b16 %v2128, %v2124
  %3153 = vmatprep.subr.bf16.mxu0 %v2130
  %3154 = vmatpush1.bf16.msra.mxu0 %v2129
  %3155 = vmatprep.subr.bf16.mxu0 %v2134
  %3156 = vmatpush1.bf16.msra.mxu0 %v2133
  %3157 = vmatprep.subr.bf16.mxu0 %v2138
  %3158 = vmatpush1.bf16.msra.mxu0 %v2137
  %3159 = vmatprep.subr.bf16.mxu0 %v2142
  %3160 = vmatpush1.bf16.msra.mxu0 %v2141
  %3161 = vmatprep.subr.bf16.mxu0 %v2146
  %3162 = vmatpush1.bf16.msra.mxu0 %v2145
  %3163 = vmatprep.subr.bf16.mxu0 %v2150
  %3164 = vmatpush1.bf16.msra.mxu0 %v2149
  %3165 = vmatprep.subr.bf16.mxu0 %v2154
  %3166 = vmatpush1.bf16.msra.mxu0 %v2153
  %3167 = vmatprep.subr.bf16.mxu0 %v2158
  %3168 = vmatpush1.bf16.msra.mxu0 %v2157
  %3169 = vmatprep.subr.bf16.mxu0 %v2162
  %3170 = vmatpush1.bf16.msra.mxu0 %v2161
  %3171 = vmatprep.subr.bf16.mxu0 %v2166
  %3172 = vmatpush1.bf16.msra.mxu0 %v2165
  %3173 = vmatprep.subr.bf16.mxu0 %v2170
  %3174 = vmatpush1.bf16.msra.mxu0 %v2169
  %3175 = vmatprep.subr.bf16.mxu0 %v2174
  %3176 = vmatpush1.bf16.msra.mxu0 %v2173
  %3177 = vmatprep.subr.bf16.mxu0 %v2178
  %3178 = vmatpush1.bf16.msra.mxu0 %v2177
  %3179 = vmatprep.subr.bf16.mxu0 %v2182
  %3180 = vmatpush1.bf16.msra.mxu0 %v2181
  %3181 = vmatprep.subr.bf16.mxu0 %v2186
  %3182 = vmatpush1.bf16.msra.mxu0 %v2185
  %3183 = vmatprep.subr.bf16.mxu0 %v2190
  %3184 = vmatpush1.bf16.msra.mxu0 %v2189
  %3185 = vmatprep.mubr.bf16.mxu0 %v562
  %3186 = vmatmul.mubr.bf16.gmra.mrb[0].mxu0 %v561
  %v3187 = vpop.f32.mrb[0].mxu0
  %v3188 = vadd.f32 0.0, %v3187
  %v3189 = vpop.f32.mrb[0].mxu0
  %v3190 = vadd.f32 0.0, %v3189
  %v3191 = vpop.f32.mrb[0].mxu0
  %v3192 = vpop.f32.mrb[0].mxu0
  %3193 = vdwg.mxu0
  %3194 = vmatprep.subr.bf16.mxu0 %v2194
  %3195 = vmatpush1.bf16.msra.mxu0 %v2193
  %3196 = vmatprep.subr.bf16.mxu0 %v2198
  %3197 = vmatpush1.bf16.msra.mxu0 %v2197
  %3198 = vmatprep.subr.bf16.mxu0 %v2202
  %3199 = vmatpush1.bf16.msra.mxu0 %v2201
  %3200 = vmatprep.subr.bf16.mxu0 %v2206
  %3201 = vmatpush1.bf16.msra.mxu0 %v2205
  %3202 = vmatprep.subr.bf16.mxu0 %v2210
  %3203 = vmatpush1.bf16.msra.mxu0 %v2209
  %3204 = vmatprep.subr.bf16.mxu0 %v2214
  %3205 = vmatpush1.bf16.msra.mxu0 %v2213
  %3206 = vmatprep.subr.bf16.mxu0 %v2218
  %3207 = vmatpush1.bf16.msra.mxu0 %v2217
  %3208 = vmatprep.subr.bf16.mxu0 %v2222
  %3209 = vmatpush1.bf16.msra.mxu0 %v2221
  %3210 = vmatprep.subr.bf16.mxu0 %v2226
  %3211 = vmatpush1.bf16.msra.mxu0 %v2225
  %3212 = vmatprep.subr.bf16.mxu0 %v2230
  %3213 = vmatpush1.bf16.msra.mxu0 %v2229
  %3214 = vmatprep.subr.bf16.mxu0 %v2234
  %3215 = vmatpush1.bf16.msra.mxu0 %v2233
  %3216 = vmatprep.subr.bf16.mxu0 %v2238
  %3217 = vmatpush1.bf16.msra.mxu0 %v2237
  %3218 = vmatprep.subr.bf16.mxu0 %v2242
  %3219 = vmatpush1.bf16.msra.mxu0 %v2241
  %3220 = vmatprep.subr.bf16.mxu0 %v2246
  %3221 = vmatpush1.bf16.msra.mxu0 %v2245
  %3222 = vmatprep.subr.bf16.mxu0 %v2250
  %3223 = vmatpush1.bf16.msra.mxu0 %v2249
  %3224 = vmatprep.subr.bf16.mxu0 %v2254
  %3225 = vmatpush1.bf16.msra.mxu0 %v2253
  %3226 = vmatprep.mubr.bf16.mxu0 %v564
  %3227 = vmatmul.mubr.bf16.gmra.mrb[0].mxu0 %v563
  %v3228 = vpop.f32.mrb[0].mxu0
  %v3229 = vadd.f32 %v3188, %v3228
  %v3230 = vpop.f32.mrb[0].mxu0
  %v3231 = vadd.f32 %v3190, %v3230
  %v3232 = vpop.f32.mrb[0].mxu0
  %v3233 = vpop.f32.mrb[0].mxu0
  %3234 = vdwg.mxu0
  %3235 = vmatprep.subr.bf16.mxu0 %v2258
  %3236 = vmatpush1.bf16.msra.mxu0 %v2257
  %3237 = vmatprep.subr.bf16.mxu0 %v2262
  %3238 = vmatpush1.bf16.msra.mxu0 %v2261
  %3239 = vmatprep.subr.bf16.mxu0 %v2266
  %3240 = vmatpush1.bf16.msra.mxu0 %v2265
  %3241 = vmatprep.subr.bf16.mxu0 %v2270
  %3242 = vmatpush1.bf16.msra.mxu0 %v2269
  %3243 = vmatprep.subr.bf16.mxu0 %v2274
  %3244 = vmatpush1.bf16.msra.mxu0 %v2273
  %3245 = vmatprep.subr.bf16.mxu0 %v2278
  %3246 = vmatpush1.bf16.msra.mxu0 %v2277
  %3247 = vmatprep.subr.bf16.mxu0 %v2282
  %3248 = vmatpush1.bf16.msra.mxu0 %v2281
  %3249 = vmatprep.subr.bf16.mxu0 %v2286
  %3250 = vmatpush1.bf16.msra.mxu0 %v2285
  %3251 = vmatprep.subr.bf16.mxu0 %v2290
  %3252 = vmatpush1.bf16.msra.mxu0 %v2289
  %3253 = vmatprep.subr.bf16.mxu0 %v2294
  %3254 = vmatpush1.bf16.msra.mxu0 %v2293
  %3255 = vmatprep.subr.bf16.mxu0 %v2298
  %3256 = vmatpush1.bf16.msra.mxu0 %v2297
  %3257 = vmatprep.subr.bf16.mxu0 %v2302
  %3258 = vmatpush1.bf16.msra.mxu0 %v2301
  %3259 = vmatprep.subr.bf16.mxu0 %v2306
  %3260 = vmatpush1.bf16.msra.mxu0 %v2305
  %3261 = vmatprep.subr.bf16.mxu0 %v2310
  %3262 = vmatpush1.bf16.msra.mxu0 %v2309
  %3263 = vmatprep.subr.bf16.mxu0 %v2314
  %3264 = vmatpush1.bf16.msra.mxu0 %v2313
  %3265 = vmatprep.subr.bf16.mxu0 %v2318
  %3266 = vmatpush1.bf16.msra.mxu0 %v2317
  %3267 = vmatprep.mubr.bf16.mxu0 %v566
  %3268 = vmatmul.mubr.bf16.gmra.mrb[0].mxu0 %v565
  %v3269 = vpop.f32.mrb[0].mxu0
  %v3270 = vadd.f32 %v3229, %v3269
  %v3271 = vpop.f32.mrb[0].mxu0
  %v3272 = vadd.f32 %v3231, %v3271
  %v3273 = vpop.f32.mrb[0].mxu0
  %v3274 = vpop.f32.mrb[0].mxu0
  %3275 = vdwg.mxu0
  %3276 = vmatprep.subr.bf16.mxu0 %v2322
  %3277 = vmatpush1.bf16.msra.mxu0 %v2321
  %3278 = vmatprep.subr.bf16.mxu0 %v2326
  %3279 = vmatpush1.bf16.msra.mxu0 %v2325
  %3280 = vmatprep.subr.bf16.mxu0 %v2330
  %3281 = vmatpush1.bf16.msra.mxu0 %v2329
  %3282 = vmatprep.subr.bf16.mxu0 %v2334
  %3283 = vmatpush1.bf16.msra.mxu0 %v2333
  %3284 = vmatprep.subr.bf16.mxu0 %v2338
  %3285 = vmatpush1.bf16.msra.mxu0 %v2337
  %3286 = vmatprep.subr.bf16.mxu0 %v2342
  %3287 = vmatpush1.bf16.msra.mxu0 %v2341
  %3288 = vmatprep.subr.bf16.mxu0 %v2346
  %3289 = vmatpush1.bf16.msra.mxu0 %v2345
  %3290 = vmatprep.subr.bf16.mxu0 %v2350
  %3291 = vmatpush1.bf16.msra.mxu0 %v2349
  %3292 = vmatprep.subr.bf16.mxu0 %v2354
  %3293 = vmatpush1.bf16.msra.mxu0 %v2353
  %3294 = vmatprep.subr.bf16.mxu0 %v2358
  %3295 = vmatpush1.bf16.msra.mxu0 %v2357
  %3296 = vmatprep.subr.bf16.mxu0 %v2362
  %3297 = vmatpush1.bf16.msra.mxu0 %v2361
  %3298 = vmatprep.subr.bf16.mxu0 %v2366
  %3299 = vmatpush1.bf16.msra.mxu0 %v2365
  %3300 = vmatprep.subr.bf16.mxu0 %v2370
  %3301 = vmatpush1.bf16.msra.mxu0 %v2369
  %3302 = vmatprep.subr.bf16.mxu0 %v2374
  %3303 = vmatpush1.bf16.msra.mxu0 %v2373
  %3304 = vmatprep.subr.bf16.mxu0 %v2378
  %3305 = vmatpush1.bf16.msra.mxu0 %v2377
  %3306 = vmatprep.subr.bf16.mxu0 %v2382
  %3307 = vmatpush1.bf16.msra.mxu0 %v2381
  %3308 = vmatprep.mubr.bf16.mxu0 %v568
  %3309 = vmatmul.mubr.bf16.gmra.mrb[0].mxu0 %v567
  %v3310 = vpop.f32.mrb[0].mxu0
  %v3311 = vadd.f32 %v3270, %v3310
  %v3312 = vpop.f32.mrb[0].mxu0
  %v3313 = vadd.f32 %v3272, %v3312
  %v3314 = vpop.f32.mrb[0].mxu0
  %v3315 = vpop.f32.mrb[0].mxu0
  %3316 = vdwg.mxu0
  %3317 = vmatprep.subr.bf16.mxu0 %v2386
  %3318 = vmatpush1.bf16.msra.mxu0 %v2385
  %3319 = vmatprep.subr.bf16.mxu0 %v2390
  %3320 = vmatpush1.bf16.msra.mxu0 %v2389
  %3321 = vmatprep.subr.bf16.mxu0 %v2394
  %3322 = vmatpush1.bf16.msra.mxu0 %v2393
  %3323 = vmatprep.subr.bf16.mxu0 %v2398
  %3324 = vmatpush1.bf16.msra.mxu0 %v2397
  %3325 = vmatprep.subr.bf16.mxu0 %v2402
  %3326 = vmatpush1.bf16.msra.mxu0 %v2401
  %3327 = vmatprep.subr.bf16.mxu0 %v2406
  %3328 = vmatpush1.bf16.msra.mxu0 %v2405
  %3329 = vmatprep.subr.bf16.mxu0 %v2410
  %3330 = vmatpush1.bf16.msra.mxu0 %v2409
  %3331 = vmatprep.subr.bf16.mxu0 %v2414
  %3332 = vmatpush1.bf16.msra.mxu0 %v2413
  %3333 = vmatprep.subr.bf16.mxu0 %v2418
  %3334 = vmatpush1.bf16.msra.mxu0 %v2417
  %3335 = vmatprep.subr.bf16.mxu0 %v2422
  %3336 = vmatpush1.bf16.msra.mxu0 %v2421
  %3337 = vmatprep.subr.bf16.mxu0 %v2426
  %3338 = vmatpush1.bf16.msra.mxu0 %v2425
  %3339 = vmatprep.subr.bf16.mxu0 %v2430
  %3340 = vmatpush1.bf16.msra.mxu0 %v2429
  %3341 = vmatprep.subr.bf16.mxu0 %v2434
  %3342 = vmatpush1.bf16.msra.mxu0 %v2433
  %3343 = vmatprep.subr.bf16.mxu0 %v2438
  %3344 = vmatpush1.bf16.msra.mxu0 %v2437
  %3345 = vmatprep.subr.bf16.mxu0 %v2442
  %3346 = vmatpush1.bf16.msra.mxu0 %v2441
  %3347 = vmatprep.subr.bf16.mxu0 %v2446
  %3348 = vmatpush1.bf16.msra.mxu0 %v2445
  %3349 = vmatprep.mubr.bf16.mxu0 %v570
  %3350 = vmatmul.mubr.bf16.gmra.mrb[0].mxu0 %v569
  %v3351 = vpop.f32.mrb[0].mxu0
  %v3352 = vadd.f32 %v3311, %v3351
  %v3353 = vpop.f32.mrb[0].mxu0
  %v3354 = vadd.f32 %v3313, %v3353
  %v3355 = vpop.f32.mrb[0].mxu0
  %v3356 = vpop.f32.mrb[0].mxu0
  %3357 = vdwg.mxu0
  %3358 = vmatprep.subr.bf16.mxu0 %v2450
  %3359 = vmatpush1.bf16.msra.mxu0 %v2449
  %3360 = vmatprep.subr.bf16.mxu0 %v2454
  %3361 = vmatpush1.bf16.msra.mxu0 %v2453
  %3362 = vmatprep.subr.bf16.mxu0 %v2458
  %3363 = vmatpush1.bf16.msra.mxu0 %v2457
  %3364 = vmatprep.subr.bf16.mxu0 %v2462
  %3365 = vmatpush1.bf16.msra.mxu0 %v2461
  %3366 = vmatprep.subr.bf16.mxu0 %v2466
  %3367 = vmatpush1.bf16.msra.mxu0 %v2465
  %3368 = vmatprep.subr.bf16.mxu0 %v2470
  %3369 = vmatpush1.bf16.msra.mxu0 %v2469
  %3370 = vmatprep.subr.bf16.mxu0 %v2474
  %3371 = vmatpush1.bf16.msra.mxu0 %v2473
  %3372 = vmatprep.subr.bf16.mxu0 %v2478
  %3373 = vmatpush1.bf16.msra.mxu0 %v2477
  %3374 = vmatprep.subr.bf16.mxu0 %v2482
  %3375 = vmatpush1.bf16.msra.mxu0 %v2481
  %3376 = vmatprep.subr.bf16.mxu0 %v2486
  %3377 = vmatpush1.bf16.msra.mxu0 %v2485
  %3378 = vmatprep.subr.bf16.mxu0 %v2490
  %3379 = vmatpush1.bf16.msra.mxu0 %v2489
  %3380 = vmatprep.subr.bf16.mxu0 %v2494
  %3381 = vmatpush1.bf16.msra.mxu0 %v2493
  %3382 = vmatprep.subr.bf16.mxu0 %v2498
  %3383 = vmatpush1.bf16.msra.mxu0 %v2497
  %3384 = vmatprep.subr.bf16.mxu0 %v2502
  %3385 = vmatpush1.bf16.msra.mxu0 %v2501
  %3386 = vmatprep.subr.bf16.mxu0 %v2506
  %3387 = vmatpush1.bf16.msra.mxu0 %v2505
  %3388 = vmatprep.subr.bf16.mxu0 %v2510
  %3389 = vmatpush1.bf16.msra.mxu0 %v2509
  %3390 = vmatprep.mubr.bf16.mxu0 %v572
  %3391 = vmatmul.mubr.bf16.gmra.mrb[0].mxu0 %v571
  %v3392 = vpop.f32.mrb[0].mxu0
  %v3393 = vadd.f32 %v3352, %v3392
  %v3394 = vpop.f32.mrb[0].mxu0
  %v3395 = vadd.f32 %v3354, %v3394
  %v3396 = vpop.f32.mrb[0].mxu0
  %v3397 = vpop.f32.mrb[0].mxu0
  %3398 = vdwg.mxu0
  %3399 = vmatprep.subr.bf16.mxu0 %v2514
  %3400 = vmatpush1.bf16.msra.mxu0 %v2513
  %3401 = vmatprep.subr.bf16.mxu0 %v2518
  %3402 = vmatpush1.bf16.msra.mxu0 %v2517
  %3403 = vmatprep.subr.bf16.mxu0 %v2522
  %3404 = vmatpush1.bf16.msra.mxu0 %v2521
  %3405 = vmatprep.subr.bf16.mxu0 %v2526
  %3406 = vmatpush1.bf16.msra.mxu0 %v2525
  %3407 = vmatprep.subr.bf16.mxu0 %v2530
  %3408 = vmatpush1.bf16.msra.mxu0 %v2529
  %3409 = vmatprep.subr.bf16.mxu0 %v2534
  %3410 = vmatpush1.bf16.msra.mxu0 %v2533
  %3411 = vmatprep.subr.bf16.mxu0 %v2538
  %3412 = vmatpush1.bf16.msra.mxu0 %v2537
  %3413 = vmatprep.subr.bf16.mxu0 %v2542
  %3414 = vmatpush1.bf16.msra.mxu0 %v2541
  %3415 = vmatprep.subr.bf16.mxu0 %v2546
  %3416 = vmatpush1.bf16.msra.mxu0 %v2545
  %3417 = vmatprep.subr.bf16.mxu0 %v2550
  %3418 = vmatpush1.bf16.msra.mxu0 %v2549
  %3419 = vmatprep.subr.bf16.mxu0 %v2554
  %3420 = vmatpush1.bf16.msra.mxu0 %v2553
  %3421 = vmatprep.subr.bf16.mxu0 %v2558
  %3422 = vmatpush1.bf16.msra.mxu0 %v2557
  %3423 = vmatprep.subr.bf16.mxu0 %v2562
  %3424 = vmatpush1.bf16.msra.mxu0 %v2561
  %3425 = vmatprep.subr.bf16.mxu0 %v2566
  %3426 = vmatpush1.bf16.msra.mxu0 %v2565
  %3427 = vmatprep.subr.bf16.mxu0 %v2570
  %3428 = vmatpush1.bf16.msra.mxu0 %v2569
  %3429 = vmatprep.subr.bf16.mxu0 %v2574
  %3430 = vmatpush1.bf16.msra.mxu0 %v2573
  %3431 = vmatprep.mubr.bf16.mxu0 %v574
  %3432 = vmatmul.mubr.bf16.gmra.mrb[0].mxu0 %v573
  %v3433 = vpop.f32.mrb[0].mxu0
  %v3434 = vadd.f32 %v3393, %v3433
  %v3435 = vpop.f32.mrb[0].mxu0
  %v3436 = vadd.f32 %v3395, %v3435
  %v3437 = vpop.f32.mrb[0].mxu0
  %v3438 = vpop.f32.mrb[0].mxu0
  %3439 = vdwg.mxu0
  %3440 = vmatprep.subr.bf16.mxu0 %v2578
  %3441 = vmatpush1.bf16.msra.mxu0 %v2577
  %3442 = vmatprep.subr.bf16.mxu0 %v2582
  %3443 = vmatpush1.bf16.msra.mxu0 %v2581
  %3444 = vmatprep.subr.bf16.mxu0 %v2586
  %3445 = vmatpush1.bf16.msra.mxu0 %v2585
  %3446 = vmatprep.subr.bf16.mxu0 %v2590
  %3447 = vmatpush1.bf16.msra.mxu0 %v2589
  %3448 = vmatprep.subr.bf16.mxu0 %v2594
  %3449 = vmatpush1.bf16.msra.mxu0 %v2593
  %3450 = vmatprep.subr.bf16.mxu0 %v2598
  %3451 = vmatpush1.bf16.msra.mxu0 %v2597
  %3452 = vmatprep.subr.bf16.mxu0 %v2602
  %3453 = vmatpush1.bf16.msra.mxu0 %v2601
  %3454 = vmatprep.subr.bf16.mxu0 %v2606
  %3455 = vmatpush1.bf16.msra.mxu0 %v2605
  %3456 = vmatprep.subr.bf16.mxu0 %v2610
  %3457 = vmatpush1.bf16.msra.mxu0 %v2609
  %3458 = vmatprep.subr.bf16.mxu0 %v2614
  %3459 = vmatpush1.bf16.msra.mxu0 %v2613
  %3460 = vmatprep.subr.bf16.mxu0 %v2618
  %3461 = vmatpush1.bf16.msra.mxu0 %v2617
  %3462 = vmatprep.subr.bf16.mxu0 %v2622
  %3463 = vmatpush1.bf16.msra.mxu0 %v2621
  %3464 = vmatprep.subr.bf16.mxu0 %v2626
  %3465 = vmatpush1.bf16.msra.mxu0 %v2625
  %3466 = vmatprep.subr.bf16.mxu0 %v2630
  %3467 = vmatpush1.bf16.msra.mxu0 %v2629
  %3468 = vmatprep.subr.bf16.mxu0 %v2634
  %3469 = vmatpush1.bf16.msra.mxu0 %v2633
  %3470 = vmatprep.subr.bf16.mxu0 %v2638
  %3471 = vmatpush1.bf16.msra.mxu0 %v2637
  %3472 = vmatprep.mubr.bf16.mxu0 %v576
  %3473 = vmatmul.mubr.bf16.gmra.mrb[0].mxu0 %v575
  %v3474 = vpop.f32.mrb[0].mxu0
  %v3475 = vadd.f32 %v3434, %v3474
  %v3476 = vpop.f32.mrb[0].mxu0
  %v3477 = vadd.f32 %v3436, %v3476
  %v3478 = vpop.f32.mrb[0].mxu0
  %v3479 = vpop.f32.mrb[0].mxu0
  %3480 = vdwg.mxu0
  %3481 = vmatprep.subr.bf16.mxu0 %v2132
  %3482 = vmatpush1.bf16.msra.mxu0 %v2131
  %3483 = vmatprep.subr.bf16.mxu0 %v2136
  %3484 = vmatpush1.bf16.msra.mxu0 %v2135
  %3485 = vmatprep.subr.bf16.mxu0 %v2140
  %3486 = vmatpush1.bf16.msra.mxu0 %v2139
  %3487 = vmatprep.subr.bf16.mxu0 %v2144
  %3488 = vmatpush1.bf16.msra.mxu0 %v2143
  %3489 = vmatprep.subr.bf16.mxu0 %v2148
  %3490 = vmatpush1.bf16.msra.mxu0 %v2147
  %3491 = vmatprep.subr.bf16.mxu0 %v2152
  %3492 = vmatpush1.bf16.msra.mxu0 %v2151
  %3493 = vmatprep.subr.bf16.mxu0 %v2156
  %3494 = vmatpush1.bf16.msra.mxu0 %v2155
  %3495 = vmatprep.subr.bf16.mxu0 %v2160
  %3496 = vmatpush1.bf16.msra.mxu0 %v2159
  %3497 = vmatprep.subr.bf16.mxu0 %v2164
  %3498 = vmatpush1.bf16.msra.mxu0 %v2163
  %3499 = vmatprep.subr.bf16.mxu0 %v2168
  %3500 = vmatpush1.bf16.msra.mxu0 %v2167
  %3501 = vmatprep.subr.bf16.mxu0 %v2172
  %3502 = vmatpush1.bf16.msra.mxu0 %v2171
  %3503 = vmatprep.subr.bf16.mxu0 %v2176
  %3504 = vmatpush1.bf16.msra.mxu0 %v2175
  %3505 = vmatprep.subr.bf16.mxu0 %v2180
  %3506 = vmatpush1.bf16.msra.mxu0 %v2179
  %3507 = vmatprep.subr.bf16.mxu0 %v2184
  %3508 = vmatpush1.bf16.msra.mxu0 %v2183
  %3509 = vmatprep.subr.bf16.mxu0 %v2188
  %3510 = vmatpush1.bf16.msra.mxu0 %v2187
  %3511 = vmatprep.subr.bf16.mxu0 %v2192
  %3512 = vmatpush1.bf16.msra.mxu0 %v2191
  %3513 = vmatprep.mubr.bf16.mxu0 %v562
  %3514 = vmatmul.mubr.bf16.gmra.mrb[0].mxu0 %v561
  %v3515 = vpop.f32.mrb[0].mxu0
  %v3516 = vadd.f32 0.0, %v3515
  %v3517 = vpop.f32.mrb[0].mxu0
  %v3518 = vadd.f32 0.0, %v3517
  %v3519 = vpop.f32.mrb[0].mxu0
  %v3520 = vpop.f32.mrb[0].mxu0
  %3521 = vdwg.mxu0
  %3522 = vmatprep.subr.bf16.mxu0 %v2196
  %3523 = vmatpush1.bf16.msra.mxu0 %v2195
  %3524 = vmatprep.subr.bf16.mxu0 %v2200
  %3525 = vmatpush1.bf16.msra.mxu0 %v2199
  %3526 = vmatprep.subr.bf16.mxu0 %v2204
  %3527 = vmatpush1.bf16.msra.mxu0 %v2203
  %3528 = vmatprep.subr.bf16.mxu0 %v2208
  %3529 = vmatpush1.bf16.msra.mxu0 %v2207
  %3530 = vmatprep.subr.bf16.mxu0 %v2212
  %3531 = vmatpush1.bf16.msra.mxu0 %v2211
  %3532 = vmatprep.subr.bf16.mxu0 %v2216
  %3533 = vmatpush1.bf16.msra.mxu0 %v2215
  %3534 = vmatprep.subr.bf16.mxu0 %v2220
  %3535 = vmatpush1.bf16.msra.mxu0 %v2219
  %3536 = vmatprep.subr.bf16.mxu0 %v2224
  %3537 = vmatpush1.bf16.msra.mxu0 %v2223
  %3538 = vmatprep.subr.bf16.mxu0 %v2228
  %3539 = vmatpush1.bf16.msra.mxu0 %v2227
  %3540 = vmatprep.subr.bf16.mxu0 %v2232
  %3541 = vmatpush1.bf16.msra.mxu0 %v2231
  %3542 = vmatprep.subr.bf16.mxu0 %v2236
  %3543 = vmatpush1.bf16.msra.mxu0 %v2235
  %3544 = vmatprep.subr.bf16.mxu0 %v2240
  %3545 = vmatpush1.bf16.msra.mxu0 %v2239
  %3546 = vmatprep.subr.bf16.mxu0 %v2244
  %3547 = vmatpush1.bf16.msra.mxu0 %v2243
  %3548 = vmatprep.subr.bf16.mxu0 %v2248
  %3549 = vmatpush1.bf16.msra.mxu0 %v2247
  %3550 = vmatprep.subr.bf16.mxu0 %v2252
  %3551 = vmatpush1.bf16.msra.mxu0 %v2251
  %3552 = vmatprep.subr.bf16.mxu0 %v2256
  %3553 = vmatpush1.bf16.msra.mxu0 %v2255
  %3554 = vmatprep.mubr.bf16.mxu0 %v564
  %3555 = vmatmul.mubr.bf16.gmra.mrb[0].mxu0 %v563
  %v3556 = vpop.f32.mrb[0].mxu0
  %v3557 = vadd.f32 %v3516, %v3556
  %v3558 = vpop.f32.mrb[0].mxu0
  %v3559 = vadd.f32 %v3518, %v3558
  %v3560 = vpop.f32.mrb[0].mxu0
  %v3561 = vpop.f32.mrb[0].mxu0
  %3562 = vdwg.mxu0
  %3563 = vmatprep.subr.bf16.mxu0 %v2260
  %3564 = vmatpush1.bf16.msra.mxu0 %v2259
  %3565 = vmatprep.subr.bf16.mxu0 %v2264
  %3566 = vmatpush1.bf16.msra.mxu0 %v2263
  %3567 = vmatprep.subr.bf16.mxu0 %v2268
  %3568 = vmatpush1.bf16.msra.mxu0 %v2267
  %3569 = vmatprep.subr.bf16.mxu0 %v2272
  %3570 = vmatpush1.bf16.msra.mxu0 %v2271
  %3571 = vmatprep.subr.bf16.mxu0 %v2276
  %3572 = vmatpush1.bf16.msra.mxu0 %v2275
  %3573 = vmatprep.subr.bf16.mxu0 %v2280
  %3574 = vmatpush1.bf16.msra.mxu0 %v2279
  %3575 = vmatprep.subr.bf16.mxu0 %v2284
  %3576 = vmatpush1.bf16.msra.mxu0 %v2283
  %3577 = vmatprep.subr.bf16.mxu0 %v2288
  %3578 = vmatpush1.bf16.msra.mxu0 %v2287
  %3579 = vmatprep.subr.bf16.mxu0 %v2292
  %3580 = vmatpush1.bf16.msra.mxu0 %v2291
  %3581 = vmatprep.subr.bf16.mxu0 %v2296
  %3582 = vmatpush1.bf16.msra.mxu0 %v2295
  %3583 = vmatprep.subr.bf16.mxu0 %v2300
  %3584 = vmatpush1.bf16.msra.mxu0 %v2299
  %3585 = vmatprep.subr.bf16.mxu0 %v2304
  %3586 = vmatpush1.bf16.msra.mxu0 %v2303
  %3587 = vmatprep.subr.bf16.mxu0 %v2308
  %3588 = vmatpush1.bf16.msra.mxu0 %v2307
  %3589 = vmatprep.subr.bf16.mxu0 %v2312
  %3590 = vmatpush1.bf16.msra.mxu0 %v2311
  %3591 = vmatprep.subr.bf16.mxu0 %v2316
  %3592 = vmatpush1.bf16.msra.mxu0 %v2315
  %3593 = vmatprep.subr.bf16.mxu0 %v2320
  %3594 = vmatpush1.bf16.msra.mxu0 %v2319
  %3595 = vmatprep.mubr.bf16.mxu0 %v566
  %3596 = vmatmul.mubr.bf16.gmra.mrb[0].mxu0 %v565
  %v3597 = vpop.f32.mrb[0].mxu0
  %v3598 = vadd.f32 %v3557, %v3597
  %v3599 = vpop.f32.mrb[0].mxu0
  %v3600 = vadd.f32 %v3559, %v3599
  %v3601 = vpop.f32.mrb[0].mxu0
  %v3602 = vpop.f32.mrb[0].mxu0
  %3603 = vdwg.mxu0
  %3604 = vmatprep.subr.bf16.mxu0 %v2324
  %3605 = vmatpush1.bf16.msra.mxu0 %v2323
  %3606 = vmatprep.subr.bf16.mxu0 %v2328
  %3607 = vmatpush1.bf16.msra.mxu0 %v2327
  %3608 = vmatprep.subr.bf16.mxu0 %v2332
  %3609 = vmatpush1.bf16.msra.mxu0 %v2331
  %3610 = vmatprep.subr.bf16.mxu0 %v2336
  %3611 = vmatpush1.bf16.msra.mxu0 %v2335
  %3612 = vmatprep.subr.bf16.mxu0 %v2340
  %3613 = vmatpush1.bf16.msra.mxu0 %v2339
  %3614 = vmatprep.subr.bf16.mxu0 %v2344
  %3615 = vmatpush1.bf16.msra.mxu0 %v2343
  %3616 = vmatprep.subr.bf16.mxu0 %v2348
  %3617 = vmatpush1.bf16.msra.mxu0 %v2347
  %3618 = vmatprep.subr.bf16.mxu0 %v2352
  %3619 = vmatpush1.bf16.msra.mxu0 %v2351
  %3620 = vmatprep.subr.bf16.mxu0 %v2356
  %3621 = vmatpush1.bf16.msra.mxu0 %v2355
  %3622 = vmatprep.subr.bf16.mxu0 %v2360
  %3623 = vmatpush1.bf16.msra.mxu0 %v2359
  %3624 = vmatprep.subr.bf16.mxu0 %v2364
  %3625 = vmatpush1.bf16.msra.mxu0 %v2363
  %3626 = vmatprep.subr.bf16.mxu0 %v2368
  %3627 = vmatpush1.bf16.msra.mxu0 %v2367
  %3628 = vmatprep.subr.bf16.mxu0 %v2372
  %3629 = vmatpush1.bf16.msra.mxu0 %v2371
  %3630 = vmatprep.subr.bf16.mxu0 %v2376
  %3631 = vmatpush1.bf16.msra.mxu0 %v2375
  %3632 = vmatprep.subr.bf16.mxu0 %v2380
  %3633 = vmatpush1.bf16.msra.mxu0 %v2379
  %3634 = vmatprep.subr.bf16.mxu0 %v2384
  %3635 = vmatpush1.bf16.msra.mxu0 %v2383
  %3636 = vmatprep.mubr.bf16.mxu0 %v568
  %3637 = vmatmul.mubr.bf16.gmra.mrb[0].mxu0 %v567
  %v3638 = vpop.f32.mrb[0].mxu0
  %v3639 = vadd.f32 %v3598, %v3638
  %v3640 = vpop.f32.mrb[0].mxu0
  %v3641 = vadd.f32 %v3600, %v3640
  %v3642 = vpop.f32.mrb[0].mxu0
  %v3643 = vpop.f32.mrb[0].mxu0
  %3644 = vdwg.mxu0
  %3645 = vmatprep.subr.bf16.mxu0 %v2388
  %3646 = vmatpush1.bf16.msra.mxu0 %v2387
  %3647 = vmatprep.subr.bf16.mxu0 %v2392
  %3648 = vmatpush1.bf16.msra.mxu0 %v2391
  %3649 = vmatprep.subr.bf16.mxu0 %v2396
  %3650 = vmatpush1.bf16.msra.mxu0 %v2395
  %3651 = vmatprep.subr.bf16.mxu0 %v2400
  %3652 = vmatpush1.bf16.msra.mxu0 %v2399
  %3653 = vmatprep.subr.bf16.mxu0 %v2404
  %3654 = vmatpush1.bf16.msra.mxu0 %v2403
  %3655 = vmatprep.subr.bf16.mxu0 %v2408
  %3656 = vmatpush1.bf16.msra.mxu0 %v2407
  %3657 = vmatprep.subr.bf16.mxu0 %v2412
  %3658 = vmatpush1.bf16.msra.mxu0 %v2411
  %3659 = vmatprep.subr.bf16.mxu0 %v2416
  %3660 = vmatpush1.bf16.msra.mxu0 %v2415
  %3661 = vmatprep.subr.bf16.mxu0 %v2420
  %3662 = vmatpush1.bf16.msra.mxu0 %v2419
  %3663 = vmatprep.subr.bf16.mxu0 %v2424
  %3664 = vmatpush1.bf16.msra.mxu0 %v2423
  %3665 = vmatprep.subr.bf16.mxu0 %v2428
  %3666 = vmatpush1.bf16.msra.mxu0 %v2427
  %3667 = vmatprep.subr.bf16.mxu0 %v2432
  %3668 = vmatpush1.bf16.msra.mxu0 %v2431
  %3669 = vmatprep.subr.bf16.mxu0 %v2436
  %3670 = vmatpush1.bf16.msra.mxu0 %v2435
  %3671 = vmatprep.subr.bf16.mxu0 %v2440
  %3672 = vmatpush1.bf16.msra.mxu0 %v2439
  %3673 = vmatprep.subr.bf16.mxu0 %v2444
  %3674 = vmatpush1.bf16.msra.mxu0 %v2443
  %3675 = vmatprep.subr.bf16.mxu0 %v2448
  %3676 = vmatpush1.bf16.msra.mxu0 %v2447
  %3677 = vmatprep.mubr.bf16.mxu0 %v570
  %3678 = vmatmul.mubr.bf16.gmra.mrb[0].mxu0 %v569
  %v3679 = vpop.f32.mrb[0].mxu0
  %v3680 = vadd.f32 %v3639, %v3679
  %v3681 = vpop.f32.mrb[0].mxu0
  %v3682 = vadd.f32 %v3641, %v3681
  %v3683 = vpop.f32.mrb[0].mxu0
  %v3684 = vpop.f32.mrb[0].mxu0
  %3685 = vdwg.mxu0
  %3686 = vmatprep.subr.bf16.mxu0 %v2452
  %3687 = vmatpush1.bf16.msra.mxu0 %v2451
  %3688 = vmatprep.subr.bf16.mxu0 %v2456
  %3689 = vmatpush1.bf16.msra.mxu0 %v2455
  %3690 = vmatprep.subr.bf16.mxu0 %v2460
  %3691 = vmatpush1.bf16.msra.mxu0 %v2459
  %3692 = vmatprep.subr.bf16.mxu0 %v2464
  %3693 = vmatpush1.bf16.msra.mxu0 %v2463
  %3694 = vmatprep.subr.bf16.mxu0 %v2468
  %3695 = vmatpush1.bf16.msra.mxu0 %v2467
  %3696 = vmatprep.subr.bf16.mxu0 %v2472
  %3697 = vmatpush1.bf16.msra.mxu0 %v2471
  %3698 = vmatprep.subr.bf16.mxu0 %v2476
  %3699 = vmatpush1.bf16.msra.mxu0 %v2475
  %3700 = vmatprep.subr.bf16.mxu0 %v2480
  %3701 = vmatpush1.bf16.msra.mxu0 %v2479
  %3702 = vmatprep.subr.bf16.mxu0 %v2484
  %3703 = vmatpush1.bf16.msra.mxu0 %v2483
  %3704 = vmatprep.subr.bf16.mxu0 %v2488
  %3705 = vmatpush1.bf16.msra.mxu0 %v2487
  %3706 = vmatprep.subr.bf16.mxu0 %v2492
  %3707 = vmatpush1.bf16.msra.mxu0 %v2491
  %3708 = vmatprep.subr.bf16.mxu0 %v2496
  %3709 = vmatpush1.bf16.msra.mxu0 %v2495
  %3710 = vmatprep.subr.bf16.mxu0 %v2500
  %3711 = vmatpush1.bf16.msra.mxu0 %v2499
  %3712 = vmatprep.subr.bf16.mxu0 %v2504
  %3713 = vmatpush1.bf16.msra.mxu0 %v2503
  %3714 = vmatprep.subr.bf16.mxu0 %v2508
  %3715 = vmatpush1.bf16.msra.mxu0 %v2507
  %3716 = vmatprep.subr.bf16.mxu0 %v2512
  %3717 = vmatpush1.bf16.msra.mxu0 %v2511
  %3718 = vmatprep.mubr.bf16.mxu0 %v572
  %3719 = vmatmul.mubr.bf16.gmra.mrb[0].mxu0 %v571
  %v3720 = vpop.f32.mrb[0].mxu0
  %v3721 = vadd.f32 %v3680, %v3720
  %v3722 = vpop.f32.mrb[0].mxu0
  %v3723 = vadd.f32 %v3682, %v3722
  %v3724 = vpop.f32.mrb[0].mxu0
  %v3725 = vpop.f32.mrb[0].mxu0
  %3726 = vdwg.mxu0
  %3727 = vmatprep.subr.bf16.mxu0 %v2516
  %3728 = vmatpush1.bf16.msra.mxu0 %v2515
  %3729 = vmatprep.subr.bf16.mxu0 %v2520
  %3730 = vmatpush1.bf16.msra.mxu0 %v2519
  %3731 = vmatprep.subr.bf16.mxu0 %v2524
  %3732 = vmatpush1.bf16.msra.mxu0 %v2523
  %3733 = vmatprep.subr.bf16.mxu0 %v2528
  %3734 = vmatpush1.bf16.msra.mxu0 %v2527
  %3735 = vmatprep.subr.bf16.mxu0 %v2532
  %3736 = vmatpush1.bf16.msra.mxu0 %v2531
  %3737 = vmatprep.subr.bf16.mxu0 %v2536
  %3738 = vmatpush1.bf16.msra.mxu0 %v2535
  %3739 = vmatprep.subr.bf16.mxu0 %v2540
  %3740 = vmatpush1.bf16.msra.mxu0 %v2539
  %3741 = vmatprep.subr.bf16.mxu0 %v2544
  %3742 = vmatpush1.bf16.msra.mxu0 %v2543
  %3743 = vmatprep.subr.bf16.mxu0 %v2548
  %3744 = vmatpush1.bf16.msra.mxu0 %v2547
  %3745 = vmatprep.subr.bf16.mxu0 %v2552
  %3746 = vmatpush1.bf16.msra.mxu0 %v2551
  %3747 = vmatprep.subr.bf16.mxu0 %v2556
  %3748 = vmatpush1.bf16.msra.mxu0 %v2555
  %3749 = vmatprep.subr.bf16.mxu0 %v2560
  %3750 = vmatpush1.bf16.msra.mxu0 %v2559
  %3751 = vmatprep.subr.bf16.mxu0 %v2564
  %3752 = vmatpush1.bf16.msra.mxu0 %v2563
  %3753 = vmatprep.subr.bf16.mxu0 %v2568
  %3754 = vmatpush1.bf16.msra.mxu0 %v2567
  %3755 = vmatprep.subr.bf16.mxu0 %v2572
  %3756 = vmatpush1.bf16.msra.mxu0 %v2571
  %3757 = vmatprep.subr.bf16.mxu0 %v2576
  %3758 = vmatpush1.bf16.msra.mxu0 %v2575
  %3759 = vmatprep.mubr.bf16.mxu0 %v574
  %3760 = vmatmul.mubr.bf16.gmra.mrb[0].mxu0 %v573
  %v3761 = vpop.f32.mrb[0].mxu0
  %v3762 = vadd.f32 %v3721, %v3761
  %v3763 = vpop.f32.mrb[0].mxu0
  %v3764 = vadd.f32 %v3723, %v3763
  %v3765 = vpop.f32.mrb[0].mxu0
  %v3766 = vpop.f32.mrb[0].mxu0
  %3767 = vdwg.mxu0
  %3768 = vmatprep.subr.bf16.mxu0 %v2580
  %3769 = vmatpush1.bf16.msra.mxu0 %v2579
  %3770 = vmatprep.subr.bf16.mxu0 %v2584
  %3771 = vmatpush1.bf16.msra.mxu0 %v2583
  %3772 = vmatprep.subr.bf16.mxu0 %v2588
  %3773 = vmatpush1.bf16.msra.mxu0 %v2587
  %3774 = vmatprep.subr.bf16.mxu0 %v2592
  %3775 = vmatpush1.bf16.msra.mxu0 %v2591
  %3776 = vmatprep.subr.bf16.mxu0 %v2596
  %3777 = vmatpush1.bf16.msra.mxu0 %v2595
  %3778 = vmatprep.subr.bf16.mxu0 %v2600
  %3779 = vmatpush1.bf16.msra.mxu0 %v2599
  %3780 = vmatprep.subr.bf16.mxu0 %v2604
  %3781 = vmatpush1.bf16.msra.mxu0 %v2603
  %3782 = vmatprep.subr.bf16.mxu0 %v2608
  %3783 = vmatpush1.bf16.msra.mxu0 %v2607
  %3784 = vmatprep.subr.bf16.mxu0 %v2612
  %3785 = vmatpush1.bf16.msra.mxu0 %v2611
  %3786 = vmatprep.subr.bf16.mxu0 %v2616
  %3787 = vmatpush1.bf16.msra.mxu0 %v2615
  %3788 = vmatprep.subr.bf16.mxu0 %v2620
  %3789 = vmatpush1.bf16.msra.mxu0 %v2619
  %3790 = vmatprep.subr.bf16.mxu0 %v2624
  %3791 = vmatpush1.bf16.msra.mxu0 %v2623
  %3792 = vmatprep.subr.bf16.mxu0 %v2628
  %3793 = vmatpush1.bf16.msra.mxu0 %v2627
  %3794 = vmatprep.subr.bf16.mxu0 %v2632
  %3795 = vmatpush1.bf16.msra.mxu0 %v2631
  %3796 = vmatprep.subr.bf16.mxu0 %v2636
  %3797 = vmatpush1.bf16.msra.mxu0 %v2635
  %3798 = vmatprep.subr.bf16.mxu0 %v2640
  %3799 = vmatpush1.bf16.msra.mxu0 %v2639
  %3800 = vmatprep.mubr.bf16.mxu0 %v576
  %3801 = vmatmul.mubr.bf16.gmra.mrb[0].mxu0 %v575
  %v3802 = vpop.f32.mrb[0].mxu0
  %v3803 = vadd.f32 %v3762, %v3802
  %v3804 = vpop.f32.mrb[0].mxu0
  %v3805 = vadd.f32 %v3764, %v3804
  %v3806 = vpop.f32.mrb[0].mxu0
  %v3807 = vpop.f32.mrb[0].mxu0
  %3808 = vdwg.mxu0
  %v3809 = vrot.slane %v3475, 4
  %v3810 = vadd.f32 %v3475, %v3809
  %v3811 = vrot.slane %v3810, 2
  %v3812 = vadd.f32 %v3810, %v3811
  %v3813 = vrot.slane %v3812, 1
  %v3814 = vadd.f32 %v3812, %v3813
  %v3815 = vrot.slane %v3477, 4
  %v3816 = vadd.f32 %v3477, %v3815
  %v3817 = vrot.slane %v3816, 2
  %v3818 = vadd.f32 %v3816, %v3817
  %v3819 = vrot.slane %v3818, 1
  %v3820 = vadd.f32 %v3818, %v3819
  %v3821 = vrot.slane %v3803, 4
  %v3822 = vadd.f32 %v3803, %v3821
  %v3823 = vrot.slane %v3822, 2
  %v3824 = vadd.f32 %v3822, %v3823
  %v3825 = vrot.slane %v3824, 1
  %v3826 = vadd.f32 %v3824, %v3825
  %v3827 = vrot.slane %v3805, 4
  %v3828 = vadd.f32 %v3805, %v3827
  %v3829 = vrot.slane %v3828, 2
  %v3830 = vadd.f32 %v3828, %v3829
  %v3831 = vrot.slane %v3830, 1
  %v3832 = vadd.f32 %v3830, %v3831
  %v3833 = vadd.f32 %v3814, %v3832
  %v3834 = vadd.f32 %v3820, %v3814
  %v3835 = vadd.f32 %v3826, %v3820
  %v3836 = vadd.f32 %v3832, %v3826
  %v3837 = vadd.f32 %v3833, %v3826
  %v3838 = vadd.f32 %v3834, %v3832
  %v3839 = vadd.f32 %v3835, %v3814
  %v3840 = vadd.f32 %v3836, %v3820
  %v3841 = vadd.f32 %v3837, %v3820
  %v3842 = vadd.f32 %v3838, %v3826
  %v3843 = vadd.f32 %v3839, %v3832
  %v3844 = vadd.f32 %v3840, %v3814
  %v3845 = vmul.f32 %v3841, 0.03125
  %v3846 = vmul.f32 %v3842, 0.03125
  %v3847 = vmul.f32 %v3843, 0.03125
  %v3848 = vmul.f32 %v3844, 0.03125
  %v3849 = vlaneseq
  %v3850 = vshrl.u32 %v3849, 7
  %v3851 = vsub.s32 0, %v3850
  %v3852 = vrot.slane %v3845, %v3851
  %v3853 = vlaneseq
  %v3854 = vshrl.u32 %v3853, 7
  %v3855 = vsub.s32 0, %v3854
  %v3856 = vrot.slane %v3846, %v3855
  %v3857 = vlaneseq
  %v3858 = vshrl.u32 %v3857, 7
  %v3859 = vsub.s32 0, %v3858
  %v3860 = vrot.slane %v3847, %v3859
  %v3861 = vlaneseq
  %v3862 = vshrl.u32 %v3861, 7
  %v3863 = vsub.s32 0, %v3862
  %v3864 = vrot.slane %v3848, %v3863
  %v3865 = vsub.f32 %v3475, %v3852
  %v3866 = vsub.f32 %v3477, %v3856
  %v3867 = vsub.f32 %v3803, %v3860
  %v3868 = vsub.f32 %v3805, %v3864
  %v3869 = vmul.f32 %v3865, %v3865
  %v3870 = vmul.f32 %v3866, %v3866
  %v3871 = vmul.f32 %v3867, %v3867
  %v3872 = vmul.f32 %v3868, %v3868
  %v3873 = vrot.slane %v3869, 4
  %v3874 = vadd.f32 %v3869, %v3873
  %v3875 = vrot.slane %v3874, 2
  %v3876 = vadd.f32 %v3874, %v3875
  %v3877 = vrot.slane %v3876, 1
  %v3878 = vadd.f32 %v3876, %v3877
  %v3879 = vrot.slane %v3870, 4
  %v3880 = vadd.f32 %v3870, %v3879
  %v3881 = vrot.slane %v3880, 2
  %v3882 = vadd.f32 %v3880, %v3881
  %v3883 = vrot.slane %v3882, 1
  %v3884 = vadd.f32 %v3882, %v3883
  %v3885 = vrot.slane %v3871, 4
  %v3886 = vadd.f32 %v3871, %v3885
  %v3887 = vrot.slane %v3886, 2
  %v3888 = vadd.f32 %v3886, %v3887
  %v3889 = vrot.slane %v3888, 1
  %v3890 = vadd.f32 %v3888, %v3889
  %v3891 = vrot.slane %v3872, 4
  %v3892 = vadd.f32 %v3872, %v3891
  %v3893 = vrot.slane %v3892, 2
  %v3894 = vadd.f32 %v3892, %v3893
  %v3895 = vrot.slane %v3894, 1
  %v3896 = vadd.f32 %v3894, %v3895
  %v3897 = vadd.f32 %v3878, %v3896
  %v3898 = vadd.f32 %v3884, %v3878
  %v3899 = vadd.f32 %v3890, %v3884
  %v3900 = vadd.f32 %v3896, %v3890
  %v3901 = vadd.f32 %v3897, %v3890
  %v3902 = vadd.f32 %v3898, %v3896
  %v3903 = vadd.f32 %v3899, %v3878
  %v3904 = vadd.f32 %v3900, %v3884
  %v3905 = vadd.f32 %v3901, %v3884
  %v3906 = vadd.f32 %v3902, %v3890
  %v3907 = vadd.f32 %v3903, %v3896
  %v3908 = vadd.f32 %v3904, %v3878
  %v3909 = vmul.f32 %v3905, 0.03125
  %v3910 = vmul.f32 %v3906, 0.03125
  %v3911 = vmul.f32 %v3907, 0.03125
  %v3912 = vmul.f32 %v3908, 0.03125
  %v3913 = vadd.f32 %v3909, 1e-05
  %v3914 = vadd.f32 %v3910, 1e-05
  %v3915 = vadd.f32 %v3911, 1e-05
  %v3916 = vadd.f32 %v3912, 1e-05
  %v3917 = vrsqrt.pop %v3913
  %v3918 = vrsqrt.pop %v3914
  %v3919 = vrsqrt.pop %v3915
  %v3920 = vrsqrt.pop %v3916
  %v3921 = vld [vmem:[%s2] sm:$0xf]
  %v3926 = vcombine.low %v3917, %v3918
  %v3927 = vcombine.low %v3919, %v3920
  %v3929 = vunpack.c.l.s4 1966171168
  %v3930 = vunpack.c.0.s8 %v3929
  %v3931 = vlaneseq
  %v3932 = vshrl.u32 %v3931, 7
  %v3933 = vsub.s32 %v3930, %v3932
  %v3934 = vrot.slane %v3926, %v3933
  %v3936 = vunpack.c.l.s4 1966171168
  %v3937 = vunpack.c.0.s8 %v3936
  %v3938 = vlaneseq
  %v3939 = vshrl.u32 %v3938, 7
  %v3940 = vsub.s32 %v3937, %v3939
  %v3941 = vrot.slane %v3927, %v3940
  %v3942 = vcombine.low %v3934, %v3941
  %v3944 = vunpack.c.l.s4 1966171168
  %v3945 = vunpack.c.0.s8 %v3944
  %v3946 = vlaneseq
  %v3947 = vshrl.u32 %v3946, 7
  %v3948 = vsub.s32 %v3945, %v3947
  %v3949 = vrot.slane %v3942, %v3948
  %v3951 = vmul.f32 %v3921, %v3949
  %v3953 = vlaneseq
  %v3954 = vshrl.u32 %v3953, 7
  %v3955 = vsub.s32 0, %v3954
  %v3956 = vrot.slane %v3951, %v3955
  %v3957 = vlaneseq
  %v3958 = vshrl.u32 %v3957, 7
  %v3959 = vsub.s32 1, %v3958
  %v3960 = vrot.slane %v3951, %v3959
  %v3961 = vlaneseq
  %v3962 = vshrl.u32 %v3961, 7
  %v3963 = vsub.s32 2, %v3962
  %v3964 = vrot.slane %v3951, %v3963
  %v3965 = vlaneseq
  %v3966 = vshrl.u32 %v3965, 7
  %v3967 = vsub.s32 3, %v3966
  %v3968 = vrot.slane %v3951, %v3967
  %v3973 = vmul.f32 %v3865, %v3956
  %v3974 = vmul.f32 %v3866, %v3960
  %v3975 = vmul.f32 %v3867, %v3964
  %v3976 = vmul.f32 %v3868, %v3968
  %v3977 = vld [vmem:[%s3] sm:$0xf]
  %v3979 = vlaneseq
  %v3980 = vshrl.u32 %v3979, 7
  %v3981 = vsub.s32 0, %v3980
  %v3982 = vrot.slane %v3977, %v3981
  %v3983 = vlaneseq
  %v3984 = vshrl.u32 %v3983, 7
  %v3985 = vsub.s32 1, %v3984
  %v3986 = vrot.slane %v3977, %v3985
  %v3987 = vlaneseq
  %v3988 = vshrl.u32 %v3987, 7
  %v3989 = vsub.s32 2, %v3988
  %v3990 = vrot.slane %v3977, %v3989
  %v3991 = vlaneseq
  %v3992 = vshrl.u32 %v3991, 7
  %v3993 = vsub.s32 3, %v3992
  %v3994 = vrot.slane %v3977, %v3993
  %v3999 = vadd.f32 %v3973, %v3982
  %v4000 = vadd.f32 %v3974, %v3986
  %v4001 = vadd.f32 %v3975, %v3990
  %v4002 = vadd.f32 %v3976, %v3994
  %vm4003 = vcmp.ge.f32.partialorder %v3999, 0.0
  %vm4004 = vcmp.ge.f32.partialorder %v4000, 0.0
  %vm4005 = vcmp.ge.f32.partialorder %v4001, 0.0
  %vm4006 = vcmp.ge.f32.partialorder %v4002, 0.0
  %v4007 = vmul.f32 %v3999, 0.01
  %v4008 = vmul.f32 %v4000, 0.01
  %v4009 = vmul.f32 %v4001, 0.01
  %v4010 = vmul.f32 %v4002, 0.01
  %v4011 = vsel %vm4003, %v3999, %v4007
  %v4012 = vsel %vm4004, %v4000, %v4008
  %v4013 = vsel %vm4005, %v4001, %v4009
  %v4014 = vsel %vm4006, %v4002, %v4010
  %v4015 = vpack.c.bf16 %v4011, %v4011
  %v4016 = vpack.c.bf16 %v4012, %v4012
  %v4017 = vpack.c.bf16 %v4013, %v4013
  %v4018 = vpack.c.bf16 %v4014, %v4014
  %v4023 = vunpack.c.l.b16 %v4015
  %v4024 = vunpack.c.l.b16 %v4016
  %v4025 = vunpack.c.l.b16 %v4017
  %v4026 = vunpack.c.l.b16 %v4018
  %v4027 = vpack.c.b16 %v4024, %v4023
  %v4028 = vpack.c.b16 %v4026, %v4025
  %4031 = vst [vmem:[%s4] sm:$0xff] %v4027
  %4032 = vst [vmem:[%s4 + $0x8] sm:$0xff] %v4028
  // Predicated region
  $region18: #{decoder_forward.7} parent=0 // pred_check
    _
  $region19: #{decoder_forward.7} parent=0 // pred_check_branch
    %4034 = sbr.rel (0) target = $region21
  $region20: #{decoder_forward.7} parent=0 // pred_region
    _
  $region21: #{decoder_forward.7} parent=0 // pred_fallthru
    _
  // Predicated region
  $region22: #{decoder_forward.7} parent=0 // pred_check
    _
  $region23: #{decoder_forward.7} parent=0 // pred_check_branch
    %4036 = sbr.rel (0) target = $region25
  $region24: #{decoder_forward.7} parent=0 // pred_region
    _
  $region25: #{decoder_forward.7} parent=0 // pred_fallthru
    _

// kernel: tile.53
$region0: #{tile.53}
  #allocation0 [shape = 's32[1]{0}', space=sflag, size = 0x4, scoped, tag = 'scoped memory for tile.53']
  %s0 = inlined_call_operand.vmem [shape: f32[64], index: 0, kind: input, shape index: {}]
  %s1 = inlined_call_operand.vmem [shape: f32[4,64], index: 1, kind: output, shape index: {}]
  // Predicated region
  $region2: #{tile.53} parent=0 // pred_check
    _
  $region3: #{tile.53} parent=0 // pred_check_branch
    %3 = sbr.rel (0) target = $region5
  $region4: #{tile.53} parent=0 // pred_region
    _
  $region5: #{tile.53} parent=0 // pred_fallthru
    _
  %v4 = vld [vmem:[%s0] ss:$0 sm:$0xff]
  %5 = vst [vmem:[%s1] sm:$0xf] %v4

// kernel: tile.54
$region0: #{tile.54}
  %s0 = inlined_call_operand.vmem [shape: f32[4,64], index: 0, kind: input, shape index: {}]
  %s1 = inlined_call_operand.vmem [shape: f32[1,256], index: 1, kind: output, shape index: {}]
  $region1: #{tile.54} parent=0
    #allocation0 [shape = 'u8[8192]{0}', space=vmem, size = 0x2000, scoped, tag = 'scoped mem for output reshape']
    #allocation1 [shape = 'u8[4096]{0}', space=vmem, size = 0x1000, scoped, tag = 'scoped mem for input reshape']
    %s3 = sshllo.u32 0, 4
    %v4 = vld [vmem:[%s0] sm:%s3]
    %5 = vst [vmem:[#allocation1] sm:%s3] %v4
    %s6 = smov 3
    %v7 = vld [vmem:[#allocation1] ss:$2 sm:%s6]
    %vm8 = vcmask 523264
    %9 = vst.msk [vmem:[#allocation0] ss:$8 sm:$0x3] %vm8, %v7
    %s10 = scalar_lea.vmem [#allocation1], 1
    %s11 = smov 3
    %v12 = vld [vmem:[%s10] ss:$2 sm:%s11]
    %13 = vrot.lane.b32.xlu0 %v12, 64
    %v14 = vpop.permute.xlu0 %13
    %vm15 = vcmask 1048064
    %16 = vst.msk [vmem:[#allocation0] ss:$8 sm:$0x3] %vm15, %v14
    %s18 = sshllo.u32 0, 1
    %v20 = vld [vmem:[#allocation0] sm:%s18]
    %s21 = sshllo.u32 0, 1
    %22 = vst [vmem:[%s1] sm:%s21] %v20
    %s23 = scalar_lea.vmem [#allocation0], 8
    %v24 = vld [vmem:[%s23] sm:%s18]
    %s25 = sshllo.u32 0, 1
    %s26 = scalar_lea.vmem %s1, 1
    %27 = vst [vmem:[%s26] sm:%s25] %v24

// kernel: decoder_forward.8
$region0: #{decoder_forward.8}
  #allocation0 [shape = 'u32[]', space=smem, size = 0x4, offset = 0x4, fixed_abs, tag = 'smem constant byte address 0x4 - core index']
  #allocation1 [shape = 'u32[144,128]{1,0:T(1,128)}', space=vmem, size = 0x12000, scoped, tag = 'internal scratch']
  %s0 = inlined_call_operand.vmem [shape: bf16[32,512], index: 0, kind: input, shape index: {}]
  %s1 = inlined_call_operand.vmem [shape: bf16[512,256], index: 1, kind: input, shape index: {}]
  %s2 = inlined_call_operand.vmem [shape: f32[1,256], index: 2, kind: input, shape index: {}]
  %s3 = inlined_call_operand.vmem [shape: f32[1,256], index: 3, kind: input, shape index: {}]
  %s4 = inlined_call_operand.vmem [shape: bf16[32,256], index: 4, kind: output, shape index: {}]
  %s5 = sld [smem:[#allocation0]]
  $region26: #{decoder_forward.8} parent=0
    _
  %s7 = ssub.s32 1, %s5
  %s8 = scalar_select 0, %s7, %s5
  // Predicated region
  $region2: #{decoder_forward.8} parent=0 // pred_check
    _
  $region3: #{decoder_forward.8} parent=0 // pred_check_branch
    %10 = sbr.rel (0) target = $region5
  $region4: #{decoder_forward.8} parent=0 // pred_region
    _
  $region5: #{decoder_forward.8} parent=0 // pred_fallthru
    _
  // Predicated region
  $region6: #{decoder_forward.8} parent=0 // pred_check
    _
  $region7: #{decoder_forward.8} parent=0 // pred_check_branch
    %12 = sbr.rel (0) target = $region9
  $region8: #{decoder_forward.8} parent=0 // pred_region
    _
  $region9: #{decoder_forward.8} parent=0 // pred_fallthru
    _
  // Predicated region
  $region10: #{decoder_forward.8} parent=0 // pred_check
    _
  $region11: #{decoder_forward.8} parent=0 // pred_check_branch
    %14 = sbr.rel (0) target = $region13
  $region12: #{decoder_forward.8} parent=0 // pred_region
    _
  $region13: #{decoder_forward.8} parent=0 // pred_fallthru
    _
  // Predicated region
  $region14: #{decoder_forward.8} parent=0 // pred_check
    _
  $region15: #{decoder_forward.8} parent=0 // pred_check_branch
    %16 = sbr.rel (0) target = $region17
  $region16: #{decoder_forward.8} parent=0 // pred_region
    _
  $region17: #{decoder_forward.8} parent=0 // pred_fallthru
    _
  %v17 = vld [vmem:[%s0] sm:$0xff]
  %v18 = vld [vmem:[%s0 + $0x8] sm:$0xff]
  %v19 = vld [vmem:[%s0 + $0x10] sm:$0xff]
  %v20 = vld [vmem:[%s0 + $0x18] sm:$0xff]
  %v21 = vld [vmem:[%s0 + $0x20] sm:$0xff]
  %v22 = vld [vmem:[%s0 + $0x28] sm:$0xff]
  %v23 = vld [vmem:[%s0 + $0x30] sm:$0xff]
  %v24 = vld [vmem:[%s0 + $0x38] sm:$0xff]
  %v25 = vld [vmem:[%s1] sm:$0xff]
  %v26 = vld [vmem:[%s1 + $0x8] sm:$0xff]
  %v27 = vld [vmem:[%s1 + $0x10] sm:$0xff]
  %v28 = vld [vmem:[%s1 + $0x18] sm:$0xff]
  %v29 = vld [vmem:[%s1 + $0x20] sm:$0xff]
  %v30 = vld [vmem:[%s1 + $0x28] sm:$0xff]
  %v31 = vld [vmem:[%s1 + $0x30] sm:$0xff]
  %v32 = vld [vmem:[%s1 + $0x38] sm:$0xff]
  %v33 = vld [vmem:[%s1 + $0x40] sm:$0xff]
  %v34 = vld [vmem:[%s1 + $0x48] sm:$0xff]
  %v35 = vld [vmem:[%s1 + $0x50] sm:$0xff]
  %v36 = vld [vmem:[%s1 + $0x58] sm:$0xff]
  %v37 = vld [vmem:[%s1 + $0x60] sm:$0xff]
  %v38 = vld [vmem:[%s1 + $0x68] sm:$0xff]
  %v39 = vld [vmem:[%s1 + $0x70] sm:$0xff]
  %v40 = vld [vmem:[%s1 + $0x78] sm:$0xff]
  %v41 = vld [vmem:[%s1 + $0x80] sm:$0xff]
  %v42 = vld [vmem:[%s1 + $0x88] sm:$0xff]
  %v43 = vld [vmem:[%s1 + $0x90] sm:$0xff]
  %v44 = vld [vmem:[%s1 + $0x98] sm:$0xff]
  %v45 = vld [vmem:[%s1 + $0xa0] sm:$0xff]
  %v46 = vld [vmem:[%s1 + $0xa8] sm:$0xff]
  %v47 = vld [vmem:[%s1 + $0xb0] sm:$0xff]
  %v48 = vld [vmem:[%s1 + $0xb8] sm:$0xff]
  %v49 = vld [vmem:[%s1 + $0xc0] sm:$0xff]
  %v50 = vld [vmem:[%s1 + $0xc8] sm:$0xff]
  %v51 = vld [vmem:[%s1 + $0xd0] sm:$0xff]
  %v52 = vld [vmem:[%s1 + $0xd8] sm:$0xff]
  %v53 = vld [vmem:[%s1 + $0xe0] sm:$0xff]
  %v54 = vld [vmem:[%s1 + $0xe8] sm:$0xff]
  %v55 = vld [vmem:[%s1 + $0xf0] sm:$0xff]
  %v56 = vld [vmem:[%s1 + $0xf8] sm:$0xff]
  %v57 = vld [vmem:[%s1 + $0x100] sm:$0xff]
  %v58 = vld [vmem:[%s1 + $0x108] sm:$0xff]
  %v59 = vld [vmem:[%s1 + $0x110] sm:$0xff]
  %v60 = vld [vmem:[%s1 + $0x118] sm:$0xff]
  %v61 = vld [vmem:[%s1 + $0x120] sm:$0xff]
  %v62 = vld [vmem:[%s1 + $0x128] sm:$0xff]
  %v63 = vld [vmem:[%s1 + $0x130] sm:$0xff]
  %v64 = vld [vmem:[%s1 + $0x138] sm:$0xff]
  %v65 = vld [vmem:[%s1 + $0x140] sm:$0xff]
  %v66 = vld [vmem:[%s1 + $0x148] sm:$0xff]
  %v67 = vld [vmem:[%s1 + $0x150] sm:$0xff]
  %v68 = vld [vmem:[%s1 + $0x158] sm:$0xff]
  %v69 = vld [vmem:[%s1 + $0x160] sm:$0xff]
  %v70 = vld [vmem:[%s1 + $0x168] sm:$0xff]
  %v71 = vld [vmem:[%s1 + $0x170] sm:$0xff]
  %v72 = vld [vmem:[%s1 + $0x178] sm:$0xff]
  %v73 = vld [vmem:[%s1 + $0x180] sm:$0xff]
  %v74 = vld [vmem:[%s1 + $0x188] sm:$0xff]
  %v75 = vld [vmem:[%s1 + $0x190] sm:$0xff]
  %v76 = vld [vmem:[%s1 + $0x198] sm:$0xff]
  %v77 = vld [vmem:[%s1 + $0x1a0] sm:$0xff]
  %v78 = vld [vmem:[%s1 + $0x1a8] sm:$0xff]
  %v79 = vld [vmem:[%s1 + $0x1b0] sm:$0xff]
  %v80 = vld [vmem:[%s1 + $0x1b8] sm:$0xff]
  %v81 = vld [vmem:[%s1 + $0x1c0] sm:$0xff]
  %v82 = vld [vmem:[%s1 + $0x1c8] sm:$0xff]
  %v83 = vld [vmem:[%s1 + $0x1d0] sm:$0xff]
  %v84 = vld [vmem:[%s1 + $0x1d8] sm:$0xff]
  %v85 = vld [vmem:[%s1 + $0x1e0] sm:$0xff]
  %v86 = vld [vmem:[%s1 + $0x1e8] sm:$0xff]
  %v87 = vld [vmem:[%s1 + $0x1f0] sm:$0xff]
  %v88 = vld [vmem:[%s1 + $0x1f8] sm:$0xff]
  %v97 = vunpack.c.l.b16 %v17
  %v98 = vunpack.c.h.b16 %v17
  %v99 = vunpack.c.l.b16 %v18
  %v100 = vunpack.c.h.b16 %v18
  %v101 = vunpack.c.l.b16 %v19
  %v102 = vunpack.c.h.b16 %v19
  %v103 = vunpack.c.l.b16 %v20
  %v104 = vunpack.c.h.b16 %v20
  %v105 = vunpack.c.l.b16 %v21
  %v106 = vunpack.c.h.b16 %v21
  %v107 = vunpack.c.l.b16 %v22
  %v108 = vunpack.c.h.b16 %v22
  %v109 = vunpack.c.l.b16 %v23
  %v110 = vunpack.c.h.b16 %v23
  %v111 = vunpack.c.l.b16 %v24
  %v112 = vunpack.c.h.b16 %v24
  %v113 = vpack.c.b16 %v101, %v97
  %v114 = vpack.c.b16 %v102, %v98
  %v115 = vpack.c.b16 %v103, %v99
  %v116 = vpack.c.b16 %v104, %v100
  %v117 = vpack.c.b16 %v109, %v105
  %v118 = vpack.c.b16 %v110, %v106
  %v119 = vpack.c.b16 %v111, %v107
  %v120 = vpack.c.b16 %v112, %v108
  %v193 = vunpack.c.l.b16 %v25
  %v194 = vunpack.c.h.b16 %v25
  %v195 = vunpack.c.l.b16 %v26
  %v196 = vunpack.c.h.b16 %v26
  %v197 = vunpack.c.l.b16 %v27
  %v198 = vunpack.c.h.b16 %v27
  %v199 = vunpack.c.l.b16 %v28
  %v200 = vunpack.c.h.b16 %v28
  %v201 = vunpack.c.l.b16 %v29
  %v202 = vunpack.c.h.b16 %v29
  %v203 = vunpack.c.l.b16 %v30
  %v204 = vunpack.c.h.b16 %v30
  %v205 = vunpack.c.l.b16 %v31
  %v206 = vunpack.c.h.b16 %v31
  %v207 = vunpack.c.l.b16 %v32
  %v208 = vunpack.c.h.b16 %v32
  %v209 = vunpack.c.l.b16 %v33
  %v210 = vunpack.c.h.b16 %v33
  %v211 = vunpack.c.l.b16 %v34
  %v212 = vunpack.c.h.b16 %v34
  %v213 = vunpack.c.l.b16 %v35
  %v214 = vunpack.c.h.b16 %v35
  %v215 = vunpack.c.l.b16 %v36
  %v216 = vunpack.c.h.b16 %v36
  %v217 = vunpack.c.l.b16 %v37
  %v218 = vunpack.c.h.b16 %v37
  %v219 = vunpack.c.l.b16 %v38
  %v220 = vunpack.c.h.b16 %v38
  %v221 = vunpack.c.l.b16 %v39
  %v222 = vunpack.c.h.b16 %v39
  %v223 = vunpack.c.l.b16 %v40
  %v224 = vunpack.c.h.b16 %v40
  %v225 = vunpack.c.l.b16 %v41
  %v226 = vunpack.c.h.b16 %v41
  %v227 = vunpack.c.l.b16 %v42
  %v228 = vunpack.c.h.b16 %v42
  %v229 = vunpack.c.l.b16 %v43
  %v230 = vunpack.c.h.b16 %v43
  %v231 = vunpack.c.l.b16 %v44
  %v232 = vunpack.c.h.b16 %v44
  %v233 = vunpack.c.l.b16 %v45
  %v234 = vunpack.c.h.b16 %v45
  %v235 = vunpack.c.l.b16 %v46
  %v236 = vunpack.c.h.b16 %v46
  %v237 = vunpack.c.l.b16 %v47
  %v238 = vunpack.c.h.b16 %v47
  %v239 = vunpack.c.l.b16 %v48
  %v240 = vunpack.c.h.b16 %v48
  %v241 = vunpack.c.l.b16 %v49
  %v242 = vunpack.c.h.b16 %v49
  %v243 = vunpack.c.l.b16 %v50
  %v244 = vunpack.c.h.b16 %v50
  %v245 = vunpack.c.l.b16 %v51
  %v246 = vunpack.c.h.b16 %v51
  %v247 = vunpack.c.l.b16 %v52
  %v248 = vunpack.c.h.b16 %v52
  %v249 = vunpack.c.l.b16 %v53
  %v250 = vunpack.c.h.b16 %v53
  %v251 = vunpack.c.l.b16 %v54
  %v252 = vunpack.c.h.b16 %v54
  %v253 = vunpack.c.l.b16 %v55
  %v254 = vunpack.c.h.b16 %v55
  %v255 = vunpack.c.l.b16 %v56
  %v256 = vunpack.c.h.b16 %v56
  %v257 = vunpack.c.l.b16 %v57
  %v258 = vunpack.c.h.b16 %v57
  %v259 = vunpack.c.l.b16 %v58
  %v260 = vunpack.c.h.b16 %v58
  %v261 = vunpack.c.l.b16 %v59
  %v262 = vunpack.c.h.b16 %v59
  %v263 = vunpack.c.l.b16 %v60
  %v264 = vunpack.c.h.b16 %v60
  %v265 = vunpack.c.l.b16 %v61
  %v266 = vunpack.c.h.b16 %v61
  %v267 = vunpack.c.l.b16 %v62
  %v268 = vunpack.c.h.b16 %v62
  %v269 = vunpack.c.l.b16 %v63
  %v270 = vunpack.c.h.b16 %v63
  %v271 = vunpack.c.l.b16 %v64
  %v272 = vunpack.c.h.b16 %v64
  %v273 = vunpack.c.l.b16 %v65
  %v274 = vunpack.c.h.b16 %v65
  %v275 = vunpack.c.l.b16 %v66
  %v276 = vunpack.c.h.b16 %v66
  %v277 = vunpack.c.l.b16 %v67
  %v278 = vunpack.c.h.b16 %v67
  %v279 = vunpack.c.l.b16 %v68
  %v280 = vunpack.c.h.b16 %v68
  %v281 = vunpack.c.l.b16 %v69
  %v282 = vunpack.c.h.b16 %v69
  %v283 = vunpack.c.l.b16 %v70
  %v284 = vunpack.c.h.b16 %v70
  %v285 = vunpack.c.l.b16 %v71
  %v286 = vunpack.c.h.b16 %v71
  %v287 = vunpack.c.l.b16 %v72
  %v288 = vunpack.c.h.b16 %v72
  %v289 = vunpack.c.l.b16 %v73
  %v290 = vunpack.c.h.b16 %v73
  %v291 = vunpack.c.l.b16 %v74
  %v292 = vunpack.c.h.b16 %v74
  %v293 = vunpack.c.l.b16 %v75
  %v294 = vunpack.c.h.b16 %v75
  %v295 = vunpack.c.l.b16 %v76
  %v296 = vunpack.c.h.b16 %v76
  %v297 = vunpack.c.l.b16 %v77
  %v298 = vunpack.c.h.b16 %v77
  %v299 = vunpack.c.l.b16 %v78
  %v300 = vunpack.c.h.b16 %v78
  %v301 = vunpack.c.l.b16 %v79
  %v302 = vunpack.c.h.b16 %v79
  %v303 = vunpack.c.l.b16 %v80
  %v304 = vunpack.c.h.b16 %v80
  %v305 = vunpack.c.l.b16 %v81
  %v306 = vunpack.c.h.b16 %v81
  %v307 = vunpack.c.l.b16 %v82
  %v308 = vunpack.c.h.b16 %v82
  %v309 = vunpack.c.l.b16 %v83
  %v310 = vunpack.c.h.b16 %v83
  %v311 = vunpack.c.l.b16 %v84
  %v312 = vunpack.c.h.b16 %v84
  %v313 = vunpack.c.l.b16 %v85
  %v314 = vunpack.c.h.b16 %v85
  %v315 = vunpack.c.l.b16 %v86
  %v316 = vunpack.c.h.b16 %v86
  %v317 = vunpack.c.l.b16 %v87
  %v318 = vunpack.c.h.b16 %v87
  %v319 = vunpack.c.l.b16 %v88
  %v320 = vunpack.c.h.b16 %v88
  %v321 = vpack.c.b16 %v195, %v193
  %v322 = vpack.c.b16 %v196, %v194
  %v323 = vpack.c.b16 %v199, %v197
  %v324 = vpack.c.b16 %v200, %v198
  %v325 = vpack.c.b16 %v203, %v201
  %v326 = vpack.c.b16 %v204, %v202
  %v327 = vpack.c.b16 %v207, %v205
  %v328 = vpack.c.b16 %v208, %v206
  %v329 = vpack.c.b16 %v211, %v209
  %v330 = vpack.c.b16 %v212, %v210
  %v331 = vpack.c.b16 %v215, %v213
  %v332 = vpack.c.b16 %v216, %v214
  %v333 = vpack.c.b16 %v219, %v217
  %v334 = vpack.c.b16 %v220, %v218
  %v335 = vpack.c.b16 %v223, %v221
  %v336 = vpack.c.b16 %v224, %v222
  %v337 = vpack.c.b16 %v227, %v225
  %v338 = vpack.c.b16 %v228, %v226
  %v339 = vpack.c.b16 %v231, %v229
  %v340 = vpack.c.b16 %v232, %v230
  %v341 = vpack.c.b16 %v235, %v233
  %v342 = vpack.c.b16 %v236, %v234
  %v343 = vpack.c.b16 %v239, %v237
  %v344 = vpack.c.b16 %v240, %v238
  %v345 = vpack.c.b16 %v243, %v241
  %v346 = vpack.c.b16 %v244, %v242
  %v347 = vpack.c.b16 %v247, %v245
  %v348 = vpack.c.b16 %v248, %v246
  %v349 = vpack.c.b16 %v251, %v249
  %v350 = vpack.c.b16 %v252, %v250
  %v351 = vpack.c.b16 %v255, %v253
  %v352 = vpack.c.b16 %v256, %v254
  %v353 = vpack.c.b16 %v259, %v257
  %v354 = vpack.c.b16 %v260, %v258
  %v355 = vpack.c.b16 %v263, %v261
  %v356 = vpack.c.b16 %v264, %v262
  %v357 = vpack.c.b16 %v267, %v265
  %v358 = vpack.c.b16 %v268, %v266
  %v359 = vpack.c.b16 %v271, %v269
  %v360 = vpack.c.b16 %v272, %v270
  %v361 = vpack.c.b16 %v275, %v273
  %v362 = vpack.c.b16 %v276, %v274
  %v363 = vpack.c.b16 %v279, %v277
  %v364 = vpack.c.b16 %v280, %v278
  %v365 = vpack.c.b16 %v283, %v281
  %v366 = vpack.c.b16 %v284, %v282
  %v367 = vpack.c.b16 %v287, %v285
  %v368 = vpack.c.b16 %v288, %v286
  %v369 = vpack.c.b16 %v291, %v289
  %v370 = vpack.c.b16 %v292, %v290
  %v371 = vpack.c.b16 %v295, %v293
  %v372 = vpack.c.b16 %v296, %v294
  %v373 = vpack.c.b16 %v299, %v297
  %v374 = vpack.c.b16 %v300, %v298
  %v375 = vpack.c.b16 %v303, %v301
  %v376 = vpack.c.b16 %v304, %v302
  %v377 = vpack.c.b16 %v307, %v305
  %v378 = vpack.c.b16 %v308, %v306
  %v379 = vpack.c.b16 %v311, %v309
  %v380 = vpack.c.b16 %v312, %v310
  %v381 = vpack.c.b16 %v315, %v313
  %v382 = vpack.c.b16 %v316, %v314
  %v383 = vpack.c.b16 %v319, %v317
  %v384 = vpack.c.b16 %v320, %v318
  %449 = vmatprep.subr.bf16.mxu0 %v322
  %450 = vmatpush1.bf16.msra.mxu0 %v321
  %451 = vmatprep.subr.bf16.mxu0 %v324
  %452 = vmatpush1.bf16.msra.mxu0 %v323
  %453 = vmatprep.subr.bf16.mxu0 %v326
  %454 = vmatpush1.bf16.msra.mxu0 %v325
  %455 = vmatprep.subr.bf16.mxu0 %v328
  %456 = vmatpush1.bf16.msra.mxu0 %v327
  %457 = vmatprep.subr.bf16.mxu0 %v330
  %458 = vmatpush1.bf16.msra.mxu0 %v329
  %459 = vmatprep.subr.bf16.mxu0 %v332
  %460 = vmatpush1.bf16.msra.mxu0 %v331
  %461 = vmatprep.subr.bf16.mxu0 %v334
  %462 = vmatpush1.bf16.msra.mxu0 %v333
  %463 = vmatprep.subr.bf16.mxu0 %v336
  %464 = vmatpush1.bf16.msra.mxu0 %v335
  %465 = vmatprep.subr.bf16.mxu0 %v338
  %466 = vmatpush1.bf16.msra.mxu0 %v337
  %467 = vmatprep.subr.bf16.mxu0 %v340
  %468 = vmatpush1.bf16.msra.mxu0 %v339
  %469 = vmatprep.subr.bf16.mxu0 %v342
  %470 = vmatpush1.bf16.msra.mxu0 %v341
  %471 = vmatprep.subr.bf16.mxu0 %v344
  %472 = vmatpush1.bf16.msra.mxu0 %v343
  %473 = vmatprep.subr.bf16.mxu0 %v346
  %474 = vmatpush1.bf16.msra.mxu0 %v345
  %475 = vmatprep.subr.bf16.mxu0 %v348
  %476 = vmatpush1.bf16.msra.mxu0 %v347
  %477 = vmatprep.subr.bf16.mxu0 %v350
  %478 = vmatpush1.bf16.msra.mxu0 %v349
  %479 = vmatprep.subr.bf16.mxu0 %v352
  %480 = vmatpush1.bf16.msra.mxu0 %v351
  %481 = vmatprep.mubr.bf16.mxu0 %v114
  %482 = vmatmul.mubr.bf16.gmra.mrb[0].mxu0 %v113
  %v483 = vpop.f32.mrb[0].mxu0
  %v484 = vadd.f32 0.0, %v483
  %v485 = vpop.f32.mrb[0].mxu0
  %v486 = vadd.f32 0.0, %v485
  %v487 = vpop.f32.mrb[0].mxu0
  %v488 = vadd.f32 0.0, %v487
  %v489 = vpop.f32.mrb[0].mxu0
  %v490 = vadd.f32 0.0, %v489
  %491 = vmatprep.mubr.bf16.mxu0 %v118
  %492 = vmatmul.mubr.bf16.gmra.mrb[0].mxu0 %v117
  %v493 = vpop.f32.mrb[0].mxu0
  %v494 = vadd.f32 0.0, %v493
  %v495 = vpop.f32.mrb[0].mxu0
  %v496 = vadd.f32 0.0, %v495
  %v497 = vpop.f32.mrb[0].mxu0
  %v498 = vadd.f32 0.0, %v497
  %v499 = vpop.f32.mrb[0].mxu0
  %v500 = vadd.f32 0.0, %v499
  %501 = vdwg.mxu0
  %502 = vmatprep.subr.bf16.mxu0 %v354
  %503 = vmatpush1.bf16.msra.mxu0 %v353
  %504 = vmatprep.subr.bf16.mxu0 %v356
  %505 = vmatpush1.bf16.msra.mxu0 %v355
  %506 = vmatprep.subr.bf16.mxu0 %v358
  %507 = vmatpush1.bf16.msra.mxu0 %v357
  %508 = vmatprep.subr.bf16.mxu0 %v360
  %509 = vmatpush1.bf16.msra.mxu0 %v359
  %510 = vmatprep.subr.bf16.mxu0 %v362
  %511 = vmatpush1.bf16.msra.mxu0 %v361
  %512 = vmatprep.subr.bf16.mxu0 %v364
  %513 = vmatpush1.bf16.msra.mxu0 %v363
  %514 = vmatprep.subr.bf16.mxu0 %v366
  %515 = vmatpush1.bf16.msra.mxu0 %v365
  %516 = vmatprep.subr.bf16.mxu0 %v368
  %517 = vmatpush1.bf16.msra.mxu0 %v367
  %518 = vmatprep.subr.bf16.mxu0 %v370
  %519 = vmatpush1.bf16.msra.mxu0 %v369
  %520 = vmatprep.subr.bf16.mxu0 %v372
  %521 = vmatpush1.bf16.msra.mxu0 %v371
  %522 = vmatprep.subr.bf16.mxu0 %v374
  %523 = vmatpush1.bf16.msra.mxu0 %v373
  %524 = vmatprep.subr.bf16.mxu0 %v376
  %525 = vmatpush1.bf16.msra.mxu0 %v375
  %526 = vmatprep.subr.bf16.mxu0 %v378
  %527 = vmatpush1.bf16.msra.mxu0 %v377
  %528 = vmatprep.subr.bf16.mxu0 %v380
  %529 = vmatpush1.bf16.msra.mxu0 %v379
  %530 = vmatprep.subr.bf16.mxu0 %v382
  %531 = vmatpush1.bf16.msra.mxu0 %v381
  %532 = vmatprep.subr.bf16.mxu0 %v384
  %533 = vmatpush1.bf16.msra.mxu0 %v383
  %534 = vmatprep.mubr.bf16.mxu0 %v116
  %535 = vmatmul.mubr.bf16.gmra.mrb[0].mxu0 %v115
  %v536 = vpop.f32.mrb[0].mxu0
  %v537 = vadd.f32 %v484, %v536
  %v538 = vpop.f32.mrb[0].mxu0
  %v539 = vadd.f32 %v486, %v538
  %v540 = vpop.f32.mrb[0].mxu0
  %v541 = vadd.f32 %v488, %v540
  %v542 = vpop.f32.mrb[0].mxu0
  %v543 = vadd.f32 %v490, %v542
  %544 = vmatprep.mubr.bf16.mxu0 %v120
  %545 = vmatmul.mubr.bf16.gmra.mrb[0].mxu0 %v119
  %v546 = vpop.f32.mrb[0].mxu0
  %v547 = vadd.f32 %v494, %v546
  %v548 = vpop.f32.mrb[0].mxu0
  %v549 = vadd.f32 %v496, %v548
  %v550 = vpop.f32.mrb[0].mxu0
  %v551 = vadd.f32 %v498, %v550
  %v552 = vpop.f32.mrb[0].mxu0
  %v553 = vadd.f32 %v500, %v552
  %554 = vdwg.mxu0
  %v555 = vadd.f32 %v537, %v541
  %v556 = vadd.f32 %v555, %v547
  %v557 = vadd.f32 %v556, %v551
  %v558 = vrot.slane %v557, 4
  %v559 = vadd.f32 %v557, %v558
  %v560 = vrot.slane %v559, 2
  %v561 = vadd.f32 %v559, %v560
  %v562 = vrot.slane %v561, 1
  %v563 = vadd.f32 %v561, %v562
  %v564 = vadd.f32 %v539, %v543
  %v565 = vadd.f32 %v564, %v549
  %v566 = vadd.f32 %v565, %v553
  %v567 = vrot.slane %v566, 4
  %v568 = vadd.f32 %v566, %v567
  %v569 = vrot.slane %v568, 2
  %v570 = vadd.f32 %v568, %v569
  %v571 = vrot.slane %v570, 1
  %v572 = vadd.f32 %v570, %v571
  %573 = vrot.lane.b32.xlu0 %v563, 64
  %v574 = vpop.permute.xlu0 %573
  %575 = vrot.lane.b32.xlu0 %v572, 64
  %v576 = vpop.permute.xlu0 %575
  %v577 = vlaneseq
  %v578 = vand.u32 %v577, 127
  %vm579 = vcmp.lt.s32.totalorder %v578, 64
  %v580 = vsel %vm579, %v574, %v576
  %v581 = vsel %vm579, %v576, %v574
  %v582 = vadd.f32 %v563, %v581
  %v583 = vadd.f32 %v572, %v580
  %v584 = vadd.f32 %v582, %v572
  %v585 = vadd.f32 %v583, %v563
  %v586 = vadd.f32 %v584, %v580
  %v587 = vadd.f32 %v585, %v581
  %v588 = vmul.f32 %v586, 0.0078125
  %v589 = vmul.f32 %v587, 0.0078125
  %v590 = vlaneseq
  %v591 = vshrl.u32 %v590, 7
  %v592 = vsub.s32 0, %v591
  %v593 = vrot.slane %v588, %v592
  %v594 = vlaneseq
  %v595 = vshrl.u32 %v594, 7
  %v596 = vsub.s32 0, %v595
  %v597 = vrot.slane %v589, %v596
  %v598 = vsub.f32 %v537, %v593
  %v599 = vsub.f32 %v539, %v597
  %v600 = vsub.f32 %v541, %v593
  %v601 = vsub.f32 %v543, %v597
  %v602 = vsub.f32 %v547, %v593
  %v603 = vsub.f32 %v549, %v597
  %v604 = vsub.f32 %v551, %v593
  %v605 = vsub.f32 %v553, %v597
  %v606 = vmul.f32 %v598, %v598
  %v607 = vmul.f32 %v599, %v599
  %v608 = vmul.f32 %v600, %v600
  %v609 = vmul.f32 %v601, %v601
  %v610 = vmul.f32 %v602, %v602
  %v611 = vmul.f32 %v603, %v603
  %v612 = vmul.f32 %v604, %v604
  %v613 = vmul.f32 %v605, %v605
  %v614 = vadd.f32 %v606, %v608
  %v615 = vadd.f32 %v614, %v610
  %v616 = vadd.f32 %v615, %v612
  %v617 = vrot.slane %v616, 4
  %v618 = vadd.f32 %v616, %v617
  %v619 = vrot.slane %v618, 2
  %v620 = vadd.f32 %v618, %v619
  %v621 = vrot.slane %v620, 1
  %v622 = vadd.f32 %v620, %v621
  %v623 = vadd.f32 %v607, %v609
  %v624 = vadd.f32 %v623, %v611
  %v625 = vadd.f32 %v624, %v613
  %v626 = vrot.slane %v625, 4
  %v627 = vadd.f32 %v625, %v626
  %v628 = vrot.slane %v627, 2
  %v629 = vadd.f32 %v627, %v628
  %v630 = vrot.slane %v629, 1
  %v631 = vadd.f32 %v629, %v630
  %632 = vrot.lane.b32.xlu0 %v622, 64
  %v633 = vpop.permute.xlu0 %632
  %634 = vrot.lane.b32.xlu0 %v631, 64
  %v635 = vpop.permute.xlu0 %634
  %v636 = vsel %vm579, %v633, %v635
  %v637 = vsel %vm579, %v635, %v633
  %v638 = vadd.f32 %v622, %v637
  %v639 = vadd.f32 %v631, %v636
  %v640 = vadd.f32 %v638, %v631
  %v641 = vadd.f32 %v639, %v622
  %v642 = vadd.f32 %v640, %v636
  %v643 = vadd.f32 %v641, %v637
  %v644 = vmul.f32 %v642, 0.0078125
  %v645 = vmul.f32 %v643, 0.0078125
  %v646 = vadd.f32 %v644, 1e-05
  %v647 = vadd.f32 %v645, 1e-05
  %v648 = vrsqrt.pop %v646
  %v649 = vrsqrt.pop %v647
  %v650 = vld [vmem:[%s2] sm:$0x3]
  %v653 = vcombine.low %v648, %v649
  %v655 = vunpack.c.l.s4 1966171168
  %v656 = vunpack.c.0.s8 %v655
  %v657 = vlaneseq
  %v658 = vshrl.u32 %v657, 7
  %v659 = vsub.s32 %v656, %v658
  %v660 = vrot.slane %v653, %v659
  %v662 = vunpack.c.l.s4 1966171168
  %v663 = vunpack.c.0.s8 %v662
  %v664 = vlaneseq
  %v665 = vshrl.u32 %v664, 7
  %v666 = vsub.s32 %v663, %v665
  %v667 = vrot.slane %v660, %v666
  %v669 = vmul.f32 %v650, %v667
  %v671 = vlaneseq
  %v672 = vshrl.u32 %v671, 7
  %v673 = vsub.s32 0, %v672
  %v674 = vrot.slane %v669, %v673
  %v675 = vlaneseq
  %v676 = vshrl.u32 %v675, 7
  %v677 = vsub.s32 1, %v676
  %v678 = vrot.slane %v669, %v677
  %v681 = vmul.f32 %v598, %v674
  %v682 = vmul.f32 %v599, %v678
  %v683 = vmul.f32 %v600, %v674
  %v684 = vmul.f32 %v601, %v678
  %v685 = vmul.f32 %v602, %v674
  %v686 = vmul.f32 %v603, %v678
  %v687 = vmul.f32 %v604, %v674
  %v688 = vmul.f32 %v605, %v678
  %v689 = vld [vmem:[%s3] sm:$0x3]
  %v691 = vlaneseq
  %v692 = vshrl.u32 %v691, 7
  %v693 = vsub.s32 0, %v692
  %v694 = vrot.slane %v689, %v693
  %v695 = vlaneseq
  %v696 = vshrl.u32 %v695, 7
  %v697 = vsub.s32 1, %v696
  %v698 = vrot.slane %v689, %v697
  %v701 = vadd.f32 %v681, %v694
  %v702 = vadd.f32 %v682, %v698
  %v703 = vadd.f32 %v683, %v694
  %v704 = vadd.f32 %v684, %v698
  %v705 = vadd.f32 %v685, %v694
  %v706 = vadd.f32 %v686, %v698
  %v707 = vadd.f32 %v687, %v694
  %v708 = vadd.f32 %v688, %v698
  %vm709 = vcmp.ge.f32.partialorder %v701, 0.0
  %vm710 = vcmp.ge.f32.partialorder %v702, 0.0
  %vm711 = vcmp.ge.f32.partialorder %v703, 0.0
  %vm712 = vcmp.ge.f32.partialorder %v704, 0.0
  %vm713 = vcmp.ge.f32.partialorder %v705, 0.0
  %vm714 = vcmp.ge.f32.partialorder %v706, 0.0
  %vm715 = vcmp.ge.f32.partialorder %v707, 0.0
  %vm716 = vcmp.ge.f32.partialorder %v708, 0.0
  %v717 = vmul.f32 %v701, 0.01
  %v718 = vmul.f32 %v702, 0.01
  %v719 = vmul.f32 %v703, 0.01
  %v720 = vmul.f32 %v704, 0.01
  %v721 = vmul.f32 %v705, 0.01
  %v722 = vmul.f32 %v706, 0.01
  %v723 = vmul.f32 %v707, 0.01
  %v724 = vmul.f32 %v708, 0.01
  %v725 = vsel %vm709, %v701, %v717
  %v726 = vsel %vm710, %v702, %v718
  %v727 = vsel %vm711, %v703, %v719
  %v728 = vsel %vm712, %v704, %v720
  %v729 = vsel %vm713, %v705, %v721
  %v730 = vsel %vm714, %v706, %v722
  %v731 = vsel %vm715, %v707, %v723
  %v732 = vsel %vm716, %v708, %v724
  %v733 = vpack.c.bf16 %v727, %v725
  %v734 = vpack.c.bf16 %v728, %v726
  %v735 = vpack.c.bf16 %v731, %v729
  %v736 = vpack.c.bf16 %v732, %v730
  %v741 = vunpack.c.l.b16 %v733
  %v742 = vunpack.c.l.b16 %v734
  %v743 = vunpack.c.h.b16 %v733
  %v744 = vunpack.c.h.b16 %v734
  %v745 = vunpack.c.l.b16 %v735
  %v746 = vunpack.c.l.b16 %v736
  %v747 = vunpack.c.h.b16 %v735
  %v748 = vunpack.c.h.b16 %v736
  %v749 = vpack.c.b16 %v742, %v741
  %v750 = vpack.c.b16 %v744, %v743
  %v751 = vpack.c.b16 %v746, %v745
  %v752 = vpack.c.b16 %v748, %v747
  %757 = vst [vmem:[%s4] sm:$0xff] %v749
  %758 = vst [vmem:[%s4 + $0x8] sm:$0xff] %v750
  %759 = vst [vmem:[%s4 + $0x10] sm:$0xff] %v751
  %760 = vst [vmem:[%s4 + $0x18] sm:$0xff] %v752
  // Predicated region
  $region18: #{decoder_forward.8} parent=0 // pred_check
    _
  $region19: #{decoder_forward.8} parent=0 // pred_check_branch
    %762 = sbr.rel (0) target = $region21
  $region20: #{decoder_forward.8} parent=0 // pred_region
    _
  $region21: #{decoder_forward.8} parent=0 // pred_fallthru
    _
  // Predicated region
  $region22: #{decoder_forward.8} parent=0 // pred_check
    _
  $region23: #{decoder_forward.8} parent=0 // pred_check_branch
    %764 = sbr.rel (0) target = $region25
  $region24: #{decoder_forward.8} parent=0 // pred_region
    _
  $region25: #{decoder_forward.8} parent=0 // pred_fallthru
    _

// kernel: tile.63
$region0: #{tile.63}
  #allocation0 [shape = 's32[1]{0}', space=sflag, size = 0x4, scoped, tag = 'scoped memory for tile.63']
  %s0 = inlined_call_operand.vmem [shape: f32[32], index: 0, kind: input, shape index: {}]
  %s1 = inlined_call_operand.vmem [shape: f32[4,32], index: 1, kind: output, shape index: {}]
  // Predicated region
  $region2: #{tile.63} parent=0 // pred_check
    _
  $region3: #{tile.63} parent=0 // pred_check_branch
    %3 = sbr.rel (0) target = $region5
  $region4: #{tile.63} parent=0 // pred_region
    _
  $region5: #{tile.63} parent=0 // pred_fallthru
    _
  %v4 = vld [vmem:[%s0] ss:$0 sm:$0xff]
  %5 = vst [vmem:[%s1] sm:$0xf] %v4

// kernel: tile.64
$region0: #{tile.64}
  %s0 = inlined_call_operand.vmem [shape: f32[4,32], index: 0, kind: input, shape index: {}]
  %s1 = inlined_call_operand.vmem [shape: f32[1,128], index: 1, kind: output, shape index: {}]
  $region1: #{tile.64} parent=0
    #allocation0 [shape = 'u8[4096]{0}', space=vmem, size = 0x1000, scoped, tag = 'scoped mem for output reshape']
    #allocation1 [shape = 'u8[4096]{0}', space=vmem, size = 0x1000, scoped, tag = 'scoped mem for input reshape']
    %s3 = sshllo.u32 0, 4
    %v4 = vld [vmem:[%s0] sm:%s3]
    %5 = vst [vmem:[#allocation1] sm:%s3] %v4
    %v6 = vld [vmem:[#allocation1] sm:$0x1]
    %vm7 = vcmask 261120
    %8 = vst.msk [vmem:[#allocation0] sm:$0x1] %vm7, %v6
    %s9 = scalar_lea.vmem [#allocation1], 3
    %v10 = vld [vmem:[%s9] sm:$0x1]
    %11 = vrot.lane.b32.xlu0 %v10, 96
    %v12 = vpop.permute.xlu0 %11
    %vm13 = vcmask 1048320
    %14 = vst.msk [vmem:[#allocation0] sm:$0x1] %vm13, %v12
    %s15 = scalar_lea.vmem [#allocation1], 2
    %v16 = vld [vmem:[%s15] sm:$0x1]
    %17 = vrot.lane.b32.xlu0 %v16, 64
    %v18 = vpop.permute.xlu0 %17
    %vm19 = vcmask 785920
    %20 = vst.msk [vmem:[#allocation0] sm:$0x1] %vm19, %v18
    %s21 = scalar_lea.vmem [#allocation1], 1
    %v22 = vld [vmem:[%s21] sm:$0x1]
    %23 = vrot.lane.b32.xlu0 %v22, 32
    %v24 = vpop.permute.xlu0 %23
    %vm25 = vcmask 523520
    %26 = vst.msk [vmem:[#allocation0] sm:$0x1] %vm25, %v24
    %s28 = sshllo.u32 0, 1
    %v30 = vld [vmem:[#allocation0] sm:%s28]
    %s31 = sshllo.u32 0, 1
    %32 = vst [vmem:[%s1] sm:%s31] %v30

// kernel: decoder_forward.9
$region0: #{decoder_forward.9}
  #allocation0 [shape = 'u32[]', space=smem, size = 0x4, offset = 0x4, fixed_abs, tag = 'smem constant byte address 0x4 - core index']
  #allocation1 [shape = 'u32[144,128]{1,0:T(1,128)}', space=vmem, size = 0x12000, scoped, tag = 'internal scratch']
  %s0 = inlined_call_operand.vmem [shape: bf16[128,256], index: 0, kind: input, shape index: {}]
  %s1 = inlined_call_operand.vmem [shape: bf16[256,128], index: 1, kind: input, shape index: {}]
  %s2 = inlined_call_operand.vmem [shape: f32[1,128], index: 2, kind: input, shape index: {}]
  %s3 = inlined_call_operand.vmem [shape: f32[1,128], index: 3, kind: input, shape index: {}]
  %s4 = inlined_call_operand.vmem [shape: bf16[128,128], index: 4, kind: output, shape index: {}]
  %s5 = sld [smem:[#allocation0]]
  $region26: #{decoder_forward.9} parent=0
    _
  %s7 = ssub.s32 1, %s5
  %s8 = scalar_select 0, %s7, %s5
  // Predicated region
  $region2: #{decoder_forward.9} parent=0 // pred_check
    _
  $region3: #{decoder_forward.9} parent=0 // pred_check_branch
    %10 = sbr.rel (0) target = $region5
  $region4: #{decoder_forward.9} parent=0 // pred_region
    _
  $region5: #{decoder_forward.9} parent=0 // pred_fallthru
    _
  // Predicated region
  $region6: #{decoder_forward.9} parent=0 // pred_check
    _
  $region7: #{decoder_forward.9} parent=0 // pred_check_branch
    %12 = sbr.rel (0) target = $region9
  $region8: #{decoder_forward.9} parent=0 // pred_region
    _
  $region9: #{decoder_forward.9} parent=0 // pred_fallthru
    _
  // Predicated region
  $region10: #{decoder_forward.9} parent=0 // pred_check
    _
  $region11: #{decoder_forward.9} parent=0 // pred_check_branch
    %14 = sbr.rel (0) target = $region13
  $region12: #{decoder_forward.9} parent=0 // pred_region
    _
  $region13: #{decoder_forward.9} parent=0 // pred_fallthru
    _
  // Predicated region
  $region14: #{decoder_forward.9} parent=0 // pred_check
    _
  $region15: #{decoder_forward.9} parent=0 // pred_check_branch
    %16 = sbr.rel (0) target = $region17
  $region16: #{decoder_forward.9} parent=0 // pred_region
    _
  $region17: #{decoder_forward.9} parent=0 // pred_fallthru
    _
  %v18 = vld [vmem:[%s0] sm:$0xff]
  %v19 = vld [vmem:[%s0 + $0x8] sm:$0xff]
  %v20 = vld [vmem:[%s0 + $0x10] sm:$0xff]
  %v21 = vld [vmem:[%s0 + $0x18] sm:$0xff]
  %v22 = vld [vmem:[%s0 + $0x20] sm:$0xff]
  %v23 = vld [vmem:[%s0 + $0x28] sm:$0xff]
  %v24 = vld [vmem:[%s0 + $0x30] sm:$0xff]
  %v25 = vld [vmem:[%s0 + $0x38] sm:$0xff]
  %v26 = vld [vmem:[%s0 + $0x40] sm:$0xff]
  %v27 = vld [vmem:[%s0 + $0x48] sm:$0xff]
  %v28 = vld [vmem:[%s0 + $0x50] sm:$0xff]
  %v29 = vld [vmem:[%s0 + $0x58] sm:$0xff]
  %v30 = vld [vmem:[%s0 + $0x60] sm:$0xff]
  %v31 = vld [vmem:[%s0 + $0x68] sm:$0xff]
  %v32 = vld [vmem:[%s0 + $0x70] sm:$0xff]
  %v33 = vld [vmem:[%s0 + $0x78] sm:$0xff]
  %v34 = vld [vmem:[%s1] sm:$0xf]
  %v35 = vld [vmem:[%s1 + $0x4] sm:$0xf]
  %v36 = vld [vmem:[%s1 + $0x8] sm:$0xf]
  %v37 = vld [vmem:[%s1 + $0xc] sm:$0xf]
  %v38 = vld [vmem:[%s1 + $0x10] sm:$0xf]
  %v39 = vld [vmem:[%s1 + $0x14] sm:$0xf]
  %v40 = vld [vmem:[%s1 + $0x18] sm:$0xf]
  %v41 = vld [vmem:[%s1 + $0x1c] sm:$0xf]
  %v42 = vld [vmem:[%s1 + $0x20] sm:$0xf]
  %v43 = vld [vmem:[%s1 + $0x24] sm:$0xf]
  %v44 = vld [vmem:[%s1 + $0x28] sm:$0xf]
  %v45 = vld [vmem:[%s1 + $0x2c] sm:$0xf]
  %v46 = vld [vmem:[%s1 + $0x30] sm:$0xf]
  %v47 = vld [vmem:[%s1 + $0x34] sm:$0xf]
  %v48 = vld [vmem:[%s1 + $0x38] sm:$0xf]
  %v49 = vld [vmem:[%s1 + $0x3c] sm:$0xf]
  %v50 = vld [vmem:[%s1 + $0x40] sm:$0xf]
  %v51 = vld [vmem:[%s1 + $0x44] sm:$0xf]
  %v52 = vld [vmem:[%s1 + $0x48] sm:$0xf]
  %v53 = vld [vmem:[%s1 + $0x4c] sm:$0xf]
  %v54 = vld [vmem:[%s1 + $0x50] sm:$0xf]
  %v55 = vld [vmem:[%s1 + $0x54] sm:$0xf]
  %v56 = vld [vmem:[%s1 + $0x58] sm:$0xf]
  %v57 = vld [vmem:[%s1 + $0x5c] sm:$0xf]
  %v58 = vld [vmem:[%s1 + $0x60] sm:$0xf]
  %v59 = vld [vmem:[%s1 + $0x64] sm:$0xf]
  %v60 = vld [vmem:[%s1 + $0x68] sm:$0xf]
  %v61 = vld [vmem:[%s1 + $0x6c] sm:$0xf]
  %v62 = vld [vmem:[%s1 + $0x70] sm:$0xf]
  %v63 = vld [vmem:[%s1 + $0x74] sm:$0xf]
  %v64 = vld [vmem:[%s1 + $0x78] sm:$0xf]
  %v65 = vld [vmem:[%s1 + $0x7c] sm:$0xf]
  %v82 = vunpack.c.l.b16 %v18
  %v83 = vunpack.c.h.b16 %v18
  %v84 = vunpack.c.l.b16 %v19
  %v85 = vunpack.c.h.b16 %v19
  %v86 = vunpack.c.l.b16 %v20
  %v87 = vunpack.c.h.b16 %v20
  %v88 = vunpack.c.l.b16 %v21
  %v89 = vunpack.c.h.b16 %v21
  %v90 = vunpack.c.l.b16 %v22
  %v91 = vunpack.c.h.b16 %v22
  %v92 = vunpack.c.l.b16 %v23
  %v93 = vunpack.c.h.b16 %v23
  %v94 = vunpack.c.l.b16 %v24
  %v95 = vunpack.c.h.b16 %v24
  %v96 = vunpack.c.l.b16 %v25
  %v97 = vunpack.c.h.b16 %v25
  %v98 = vunpack.c.l.b16 %v26
  %v99 = vunpack.c.h.b16 %v26
  %v100 = vunpack.c.l.b16 %v27
  %v101 = vunpack.c.h.b16 %v27
  %v102 = vunpack.c.l.b16 %v28
  %v103 = vunpack.c.h.b16 %v28
  %v104 = vunpack.c.l.b16 %v29
  %v105 = vunpack.c.h.b16 %v29
  %v106 = vunpack.c.l.b16 %v30
  %v107 = vunpack.c.h.b16 %v30
  %v108 = vunpack.c.l.b16 %v31
  %v109 = vunpack.c.h.b16 %v31
  %v110 = vunpack.c.l.b16 %v32
  %v111 = vunpack.c.h.b16 %v32
  %v112 = vunpack.c.l.b16 %v33
  %v113 = vunpack.c.h.b16 %v33
  %v114 = vpack.c.b16 %v84, %v82
  %v115 = vpack.c.b16 %v85, %v83
  %v116 = vpack.c.b16 %v88, %v86
  %v117 = vpack.c.b16 %v89, %v87
  %v118 = vpack.c.b16 %v92, %v90
  %v119 = vpack.c.b16 %v93, %v91
  %v120 = vpack.c.b16 %v96, %v94
  %v121 = vpack.c.b16 %v97, %v95
  %v122 = vpack.c.b16 %v100, %v98
  %v123 = vpack.c.b16 %v101, %v99
  %v124 = vpack.c.b16 %v104, %v102
  %v125 = vpack.c.b16 %v105, %v103
  %v126 = vpack.c.b16 %v108, %v106
  %v127 = vpack.c.b16 %v109, %v107
  %v128 = vpack.c.b16 %v112, %v110
  %v129 = vpack.c.b16 %v113, %v111
  %v178 = vunpack.c.l.b16 %v34
  %v179 = vunpack.c.l.b16 %v35
  %v180 = vunpack.c.l.b16 %v36
  %v181 = vunpack.c.l.b16 %v37
  %v182 = vunpack.c.l.b16 %v38
  %v183 = vunpack.c.l.b16 %v39
  %v184 = vunpack.c.l.b16 %v40
  %v185 = vunpack.c.l.b16 %v41
  %v186 = vunpack.c.l.b16 %v42
  %v187 = vunpack.c.l.b16 %v43
  %v188 = vunpack.c.l.b16 %v44
  %v189 = vunpack.c.l.b16 %v45
  %v190 = vunpack.c.l.b16 %v46
  %v191 = vunpack.c.l.b16 %v47
  %v192 = vunpack.c.l.b16 %v48
  %v193 = vunpack.c.l.b16 %v49
  %v194 = vunpack.c.l.b16 %v50
  %v195 = vunpack.c.l.b16 %v51
  %v196 = vunpack.c.l.b16 %v52
  %v197 = vunpack.c.l.b16 %v53
  %v198 = vunpack.c.l.b16 %v54
  %v199 = vunpack.c.l.b16 %v55
  %v200 = vunpack.c.l.b16 %v56
  %v201 = vunpack.c.l.b16 %v57
  %v202 = vunpack.c.l.b16 %v58
  %v203 = vunpack.c.l.b16 %v59
  %v204 = vunpack.c.l.b16 %v60
  %v205 = vunpack.c.l.b16 %v61
  %v206 = vunpack.c.l.b16 %v62
  %v207 = vunpack.c.l.b16 %v63
  %v208 = vunpack.c.l.b16 %v64
  %v209 = vunpack.c.l.b16 %v65
  %v210 = vpack.c.b16 %v179, %v178
  %v211 = vpack.c.b16 %v181, %v180
  %v212 = vpack.c.b16 %v183, %v182
  %v213 = vpack.c.b16 %v185, %v184
  %v214 = vpack.c.b16 %v187, %v186
  %v215 = vpack.c.b16 %v189, %v188
  %v216 = vpack.c.b16 %v191, %v190
  %v217 = vpack.c.b16 %v193, %v192
  %v218 = vpack.c.b16 %v195, %v194
  %v219 = vpack.c.b16 %v197, %v196
  %v220 = vpack.c.b16 %v199, %v198
  %v221 = vpack.c.b16 %v201, %v200
  %v222 = vpack.c.b16 %v203, %v202
  %v223 = vpack.c.b16 %v205, %v204
  %v224 = vpack.c.b16 %v207, %v206
  %v225 = vpack.c.b16 %v209, %v208
  %242 = vmatprep.subr.bf16.mxu0 0
  %243 = vmatpush1.bf16.msra.mxu0 %v210
  %244 = vmatprep.subr.bf16.mxu0 0
  %245 = vmatpush1.bf16.msra.mxu0 %v211
  %246 = vmatprep.subr.bf16.mxu0 0
  %247 = vmatpush1.bf16.msra.mxu0 %v212
  %248 = vmatprep.subr.bf16.mxu0 0
  %249 = vmatpush1.bf16.msra.mxu0 %v213
  %250 = vmatprep.subr.bf16.mxu0 0
  %251 = vmatpush1.bf16.msra.mxu0 %v214
  %252 = vmatprep.subr.bf16.mxu0 0
  %253 = vmatpush1.bf16.msra.mxu0 %v215
  %254 = vmatprep.subr.bf16.mxu0 0
  %255 = vmatpush1.bf16.msra.mxu0 %v216
  %256 = vmatprep.subr.bf16.mxu0 0
  %257 = vmatpush1.bf16.msra.mxu0 %v217
  %258 = vmatprep.subr.bf16.mxu0 0
  %259 = vmatpush1.bf16.msra.mxu0 %v218
  %260 = vmatprep.subr.bf16.mxu0 0
  %261 = vmatpush1.bf16.msra.mxu0 %v219
  %262 = vmatprep.subr.bf16.mxu0 0
  %263 = vmatpush1.bf16.msra.mxu0 %v220
  %264 = vmatprep.subr.bf16.mxu0 0
  %265 = vmatpush1.bf16.msra.mxu0 %v221
  %266 = vmatprep.subr.bf16.mxu0 0
  %267 = vmatpush1.bf16.msra.mxu0 %v222
  %268 = vmatprep.subr.bf16.mxu0 0
  %269 = vmatpush1.bf16.msra.mxu0 %v223
  %270 = vmatprep.subr.bf16.mxu0 0
  %271 = vmatpush1.bf16.msra.mxu0 %v224
  %272 = vmatprep.subr.bf16.mxu0 0
  %273 = vmatpush1.bf16.msra.mxu0 %v225
  %274 = vmatprep.mubr.bf16.mxu0 %v115
  %275 = vmatmul.mubr.bf16.gmra.mrb[0].mxu0 %v114
  %v276 = vpop.f32.mrb[0].mxu0
  %v277 = vadd.f32 0.0, %v276
  %v278 = vpop.f32.mrb[0].mxu0
  %v279 = vpop.f32.mrb[0].mxu0
  %v280 = vadd.f32 0.0, %v279
  %v281 = vpop.f32.mrb[0].mxu0
  %282 = vmatprep.mubr.bf16.mxu0 %v117
  %283 = vmatmul.mubr.bf16.gmra.mrb[0].mxu0 %v116
  %v284 = vpop.f32.mrb[0].mxu0
  %v285 = vadd.f32 0.0, %v284
  %v286 = vpop.f32.mrb[0].mxu0
  %v287 = vpop.f32.mrb[0].mxu0
  %v288 = vadd.f32 0.0, %v287
  %v289 = vpop.f32.mrb[0].mxu0
  %290 = vmatprep.mubr.bf16.mxu0 %v119
  %291 = vmatmul.mubr.bf16.gmra.mrb[0].mxu0 %v118
  %v292 = vpop.f32.mrb[0].mxu0
  %v293 = vadd.f32 0.0, %v292
  %v294 = vpop.f32.mrb[0].mxu0
  %v295 = vpop.f32.mrb[0].mxu0
  %v296 = vadd.f32 0.0, %v295
  %v297 = vpop.f32.mrb[0].mxu0
  %298 = vmatprep.mubr.bf16.mxu0 %v121
  %299 = vmatmul.mubr.bf16.gmra.mrb[0].mxu0 %v120
  %v300 = vpop.f32.mrb[0].mxu0
  %v301 = vadd.f32 0.0, %v300
  %v302 = vpop.f32.mrb[0].mxu0
  %v303 = vpop.f32.mrb[0].mxu0
  %v304 = vadd.f32 0.0, %v303
  %v305 = vpop.f32.mrb[0].mxu0
  %306 = vmatprep.mubr.bf16.mxu0 %v123
  %307 = vmatmul.mubr.bf16.gmra.mrb[0].mxu0 %v122
  %v308 = vpop.f32.mrb[0].mxu0
  %v309 = vadd.f32 0.0, %v308
  %v310 = vpop.f32.mrb[0].mxu0
  %v311 = vpop.f32.mrb[0].mxu0
  %v312 = vadd.f32 0.0, %v311
  %v313 = vpop.f32.mrb[0].mxu0
  %314 = vmatprep.mubr.bf16.mxu0 %v125
  %315 = vmatmul.mubr.bf16.gmra.mrb[0].mxu0 %v124
  %v316 = vpop.f32.mrb[0].mxu0
  %v317 = vadd.f32 0.0, %v316
  %v318 = vpop.f32.mrb[0].mxu0
  %v319 = vpop.f32.mrb[0].mxu0
  %v320 = vadd.f32 0.0, %v319
  %v321 = vpop.f32.mrb[0].mxu0
  %322 = vmatprep.mubr.bf16.mxu0 %v127
  %323 = vmatmul.mubr.bf16.gmra.mrb[0].mxu0 %v126
  %v324 = vpop.f32.mrb[0].mxu0
  %v325 = vadd.f32 0.0, %v324
  %v326 = vpop.f32.mrb[0].mxu0
  %v327 = vpop.f32.mrb[0].mxu0
  %v328 = vadd.f32 0.0, %v327
  %v329 = vpop.f32.mrb[0].mxu0
  %330 = vmatprep.mubr.bf16.mxu0 %v129
  %331 = vmatmul.mubr.bf16.gmra.mrb[0].mxu0 %v128
  %v332 = vpop.f32.mrb[0].mxu0
  %v333 = vadd.f32 0.0, %v332
  %v334 = vpop.f32.mrb[0].mxu0
  %v335 = vpop.f32.mrb[0].mxu0
  %v336 = vadd.f32 0.0, %v335
  %v337 = vpop.f32.mrb[0].mxu0
  %338 = vdwg.mxu0
  %v339 = vadd.f32 %v277, %v280
  %v340 = vadd.f32 %v339, %v285
  %v341 = vadd.f32 %v340, %v288
  %v342 = vadd.f32 %v341, %v293
  %v343 = vadd.f32 %v342, %v296
  %v344 = vadd.f32 %v343, %v301
  %v345 = vadd.f32 %v344, %v304
  %v346 = vadd.f32 %v345, %v309
  %v347 = vadd.f32 %v346, %v312
  %v348 = vadd.f32 %v347, %v317
  %v349 = vadd.f32 %v348, %v320
  %v350 = vadd.f32 %v349, %v325
  %v351 = vadd.f32 %v350, %v328
  %v352 = vadd.f32 %v351, %v333
  %v353 = vadd.f32 %v352, %v336
  %v354 = vrot.slane %v353, 4
  %v355 = vadd.f32 %v353, %v354
  %v356 = vrot.slane %v355, 2
  %v357 = vadd.f32 %v355, %v356
  %v358 = vrot.slane %v357, 1
  %v359 = vadd.f32 %v357, %v358
  %360 = vrot.lane.b32.xlu0 %v359, 32
  %v361 = vpop.permute.xlu0 %360
  %v362 = vadd.f32 %v359, %v361
  %363 = vrot.lane.b32.xlu0 %v359, 64
  %v364 = vpop.permute.xlu0 %363
  %v365 = vadd.f32 %v362, %v364
  %366 = vrot.lane.b32.xlu0 %v359, 96
  %v367 = vpop.permute.xlu0 %366
  %v368 = vadd.f32 %v365, %v367
  %v369 = vmul.f32 %v368, 0.001953125
  %v370 = vlaneseq
  %v371 = vshrl.u32 %v370, 7
  %v372 = vsub.s32 0, %v371
  %v373 = vrot.slane %v369, %v372
  %v374 = vsub.f32 %v277, %v373
  %v375 = vsub.f32 %v280, %v373
  %v376 = vsub.f32 %v285, %v373
  %v377 = vsub.f32 %v288, %v373
  %v378 = vsub.f32 %v293, %v373
  %v379 = vsub.f32 %v296, %v373
  %v380 = vsub.f32 %v301, %v373
  %v381 = vsub.f32 %v304, %v373
  %v382 = vsub.f32 %v309, %v373
  %v383 = vsub.f32 %v312, %v373
  %v384 = vsub.f32 %v317, %v373
  %v385 = vsub.f32 %v320, %v373
  %v386 = vsub.f32 %v325, %v373
  %v387 = vsub.f32 %v328, %v373
  %v388 = vsub.f32 %v333, %v373
  %v389 = vsub.f32 %v336, %v373
  %v390 = vmul.f32 %v374, %v374
  %v391 = vmul.f32 %v375, %v375
  %v392 = vmul.f32 %v376, %v376
  %v393 = vmul.f32 %v377, %v377
  %v394 = vmul.f32 %v378, %v378
  %v395 = vmul.f32 %v379, %v379
  %v396 = vmul.f32 %v380, %v380
  %v397 = vmul.f32 %v381, %v381
  %v398 = vmul.f32 %v382, %v382
  %v399 = vmul.f32 %v383, %v383
  %v400 = vmul.f32 %v384, %v384
  %v401 = vmul.f32 %v385, %v385
  %v402 = vmul.f32 %v386, %v386
  %v403 = vmul.f32 %v387, %v387
  %v404 = vmul.f32 %v388, %v388
  %v405 = vmul.f32 %v389, %v389
  %v406 = vadd.f32 %v390, %v391
  %v407 = vadd.f32 %v406, %v392
  %v408 = vadd.f32 %v407, %v393
  %v409 = vadd.f32 %v408, %v394
  %v410 = vadd.f32 %v409, %v395
  %v411 = vadd.f32 %v410, %v396
  %v412 = vadd.f32 %v411, %v397
  %v413 = vadd.f32 %v412, %v398
  %v414 = vadd.f32 %v413, %v399
  %v415 = vadd.f32 %v414, %v400
  %v416 = vadd.f32 %v415, %v401
  %v417 = vadd.f32 %v416, %v402
  %v418 = vadd.f32 %v417, %v403
  %v419 = vadd.f32 %v418, %v404
  %v420 = vadd.f32 %v419, %v405
  %v421 = vrot.slane %v420, 4
  %v422 = vadd.f32 %v420, %v421
  %v423 = vrot.slane %v422, 2
  %v424 = vadd.f32 %v422, %v423
  %v425 = vrot.slane %v424, 1
  %v426 = vadd.f32 %v424, %v425
  %427 = vrot.lane.b32.xlu0 %v426, 32
  %v428 = vpop.permute.xlu0 %427
  %v429 = vadd.f32 %v426, %v428
  %430 = vrot.lane.b32.xlu0 %v426, 64
  %v431 = vpop.permute.xlu0 %430
  %v432 = vadd.f32 %v429, %v431
  %433 = vrot.lane.b32.xlu0 %v426, 96
  %v434 = vpop.permute.xlu0 %433
  %v435 = vadd.f32 %v432, %v434
  %v436 = vmul.f32 %v435, 0.001953125
  %v437 = vadd.f32 %v436, 1e-05
  %v438 = vrsqrt.pop %v437
  %v439 = vld [vmem:[%s2] sm:$0x1]
  %v440 = vmul.f32 %v439, %v438
  %v442 = vlaneseq
  %v443 = vshrl.u32 %v442, 7
  %v444 = vsub.s32 0, %v443
  %v445 = vrot.slane %v440, %v444
  %v447 = vmul.f32 %v374, %v445
  %v448 = vmul.f32 %v375, %v445
  %v449 = vmul.f32 %v376, %v445
  %v450 = vmul.f32 %v377, %v445
  %v451 = vmul.f32 %v378, %v445
  %v452 = vmul.f32 %v379, %v445
  %v453 = vmul.f32 %v380, %v445
  %v454 = vmul.f32 %v381, %v445
  %v455 = vmul.f32 %v382, %v445
  %v456 = vmul.f32 %v383, %v445
  %v457 = vmul.f32 %v384, %v445
  %v458 = vmul.f32 %v385, %v445
  %v459 = vmul.f32 %v386, %v445
  %v460 = vmul.f32 %v387, %v445
  %v461 = vmul.f32 %v388, %v445
  %v462 = vmul.f32 %v389, %v445
  %v463 = vld [vmem:[%s3] sm:$0x1]
  %v465 = vlaneseq
  %v466 = vshrl.u32 %v465, 7
  %v467 = vsub.s32 0, %v466
  %v468 = vrot.slane %v463, %v467
  %v470 = vadd.f32 %v447, %v468
  %v471 = vadd.f32 %v448, %v468
  %v472 = vadd.f32 %v449, %v468
  %v473 = vadd.f32 %v450, %v468
  %v474 = vadd.f32 %v451, %v468
  %v475 = vadd.f32 %v452, %v468
  %v476 = vadd.f32 %v453, %v468
  %v477 = vadd.f32 %v454, %v468
  %v478 = vadd.f32 %v455, %v468
  %v479 = vadd.f32 %v456, %v468
  %v480 = vadd.f32 %v457, %v468
  %v481 = vadd.f32 %v458, %v468
  %v482 = vadd.f32 %v459, %v468
  %v483 = vadd.f32 %v460, %v468
  %v484 = vadd.f32 %v461, %v468
  %v485 = vadd.f32 %v462, %v468
  %vm486 = vcmp.ge.f32.partialorder %v470, 0.0
  %vm487 = vcmp.ge.f32.partialorder %v471, 0.0
  %vm488 = vcmp.ge.f32.partialorder %v472, 0.0
  %vm489 = vcmp.ge.f32.partialorder %v473, 0.0
  %vm490 = vcmp.ge.f32.partialorder %v474, 0.0
  %vm491 = vcmp.ge.f32.partialorder %v475, 0.0
  %vm492 = vcmp.ge.f32.partialorder %v476, 0.0
  %vm493 = vcmp.ge.f32.partialorder %v477, 0.0
  %vm494 = vcmp.ge.f32.partialorder %v478, 0.0
  %vm495 = vcmp.ge.f32.partialorder %v479, 0.0
  %vm496 = vcmp.ge.f32.partialorder %v480, 0.0
  %vm497 = vcmp.ge.f32.partialorder %v481, 0.0
  %vm498 = vcmp.ge.f32.partialorder %v482, 0.0
  %vm499 = vcmp.ge.f32.partialorder %v483, 0.0
  %vm500 = vcmp.ge.f32.partialorder %v484, 0.0
  %vm501 = vcmp.ge.f32.partialorder %v485, 0.0
  %v502 = vmul.f32 %v470, 0.01
  %v503 = vmul.f32 %v471, 0.01
  %v504 = vmul.f32 %v472, 0.01
  %v505 = vmul.f32 %v473, 0.01
  %v506 = vmul.f32 %v474, 0.01
  %v507 = vmul.f32 %v475, 0.01
  %v508 = vmul.f32 %v476, 0.01
  %v509 = vmul.f32 %v477, 0.01
  %v510 = vmul.f32 %v478, 0.01
  %v511 = vmul.f32 %v479, 0.01
  %v512 = vmul.f32 %v480, 0.01
  %v513 = vmul.f32 %v481, 0.01
  %v514 = vmul.f32 %v482, 0.01
  %v515 = vmul.f32 %v483, 0.01
  %v516 = vmul.f32 %v484, 0.01
  %v517 = vmul.f32 %v485, 0.01
  %v518 = vsel %vm486, %v470, %v502
  %v519 = vsel %vm487, %v471, %v503
  %v520 = vsel %vm488, %v472, %v504
  %v521 = vsel %vm489, %v473, %v505
  %v522 = vsel %vm490, %v474, %v506
  %v523 = vsel %vm491, %v475, %v507
  %v524 = vsel %vm492, %v476, %v508
  %v525 = vsel %vm493, %v477, %v509
  %v526 = vsel %vm494, %v478, %v510
  %v527 = vsel %vm495, %v479, %v511
  %v528 = vsel %vm496, %v480, %v512
  %v529 = vsel %vm497, %v481, %v513
  %v530 = vsel %vm498, %v482, %v514
  %v531 = vsel %vm499, %v483, %v515
  %v532 = vsel %vm500, %v484, %v516
  %v533 = vsel %vm501, %v485, %v517
  %v534 = vpack.c.bf16 %v519, %v518
  %v535 = vpack.c.bf16 %v521, %v520
  %v536 = vpack.c.bf16 %v523, %v522
  %v537 = vpack.c.bf16 %v525, %v524
  %v538 = vpack.c.bf16 %v527, %v526
  %v539 = vpack.c.bf16 %v529, %v528
  %v540 = vpack.c.bf16 %v531, %v530
  %v541 = vpack.c.bf16 %v533, %v532
  %v550 = vunpack.c.l.b16 %v534
  %v551 = vunpack.c.h.b16 %v534
  %v552 = vunpack.c.l.b16 %v535
  %v553 = vunpack.c.h.b16 %v535
  %v554 = vunpack.c.l.b16 %v536
  %v555 = vunpack.c.h.b16 %v536
  %v556 = vunpack.c.l.b16 %v537
  %v557 = vunpack.c.h.b16 %v537
  %v558 = vunpack.c.l.b16 %v538
  %v559 = vunpack.c.h.b16 %v538
  %v560 = vunpack.c.l.b16 %v539
  %v561 = vunpack.c.h.b16 %v539
  %v562 = vunpack.c.l.b16 %v540
  %v563 = vunpack.c.h.b16 %v540
  %v564 = vunpack.c.l.b16 %v541
  %v565 = vunpack.c.h.b16 %v541
  %v566 = vpack.c.b16 %v550, %v550
  %v567 = vpack.c.b16 %v551, %v551
  %v568 = vpack.c.b16 %v552, %v552
  %v569 = vpack.c.b16 %v553, %v553
  %v570 = vpack.c.b16 %v554, %v554
  %v571 = vpack.c.b16 %v555, %v555
  %v572 = vpack.c.b16 %v556, %v556
  %v573 = vpack.c.b16 %v557, %v557
  %v574 = vpack.c.b16 %v558, %v558
  %v575 = vpack.c.b16 %v559, %v559
  %v576 = vpack.c.b16 %v560, %v560
  %v577 = vpack.c.b16 %v561, %v561
  %v578 = vpack.c.b16 %v562, %v562
  %v579 = vpack.c.b16 %v563, %v563
  %v580 = vpack.c.b16 %v564, %v564
  %v581 = vpack.c.b16 %v565, %v565
  %598 = vst [vmem:[%s4] sm:$0xf] %v566
  %599 = vst [vmem:[%s4 + $0x4] sm:$0xf] %v567
  %600 = vst [vmem:[%s4 + $0x8] sm:$0xf] %v568
  %601 = vst [vmem:[%s4 + $0xc] sm:$0xf] %v569
  %602 = vst [vmem:[%s4 + $0x10] sm:$0xf] %v570
  %603 = vst [vmem:[%s4 + $0x14] sm:$0xf] %v571
  %604 = vst [vmem:[%s4 + $0x18] sm:$0xf] %v572
  %605 = vst [vmem:[%s4 + $0x1c] sm:$0xf] %v573
  %606 = vst [vmem:[%s4 + $0x20] sm:$0xf] %v574
  %607 = vst [vmem:[%s4 + $0x24] sm:$0xf] %v575
  %608 = vst [vmem:[%s4 + $0x28] sm:$0xf] %v576
  %609 = vst [vmem:[%s4 + $0x2c] sm:$0xf] %v577
  %610 = vst [vmem:[%s4 + $0x30] sm:$0xf] %v578
  %611 = vst [vmem:[%s4 + $0x34] sm:$0xf] %v579
  %612 = vst [vmem:[%s4 + $0x38] sm:$0xf] %v580
  %613 = vst [vmem:[%s4 + $0x3c] sm:$0xf] %v581
  // Predicated region
  $region18: #{decoder_forward.9} parent=0 // pred_check
    _
  $region19: #{decoder_forward.9} parent=0 // pred_check_branch
    %615 = sbr.rel (0) target = $region21
  $region20: #{decoder_forward.9} parent=0 // pred_region
    _
  $region21: #{decoder_forward.9} parent=0 // pred_fallthru
    _
  // Predicated region
  $region22: #{decoder_forward.9} parent=0 // pred_check
    _
  $region23: #{decoder_forward.9} parent=0 // pred_check_branch
    %617 = sbr.rel (0) target = $region25
  $region24: #{decoder_forward.9} parent=0 // pred_region
    _
  $region25: #{decoder_forward.9} parent=0 // pred_fallthru
    _

// kernel: decoder_forward.10
$region0: #{decoder_forward.10}
  #allocation0 [shape = 'u32[]', space=smem, size = 0x4, offset = 0x4, fixed_abs, tag = 'smem constant byte address 0x4 - core index']
  #allocation1 [shape = 'u32[144,128]{1,0:T(1,128)}', space=vmem, size = 0x12000, scoped, tag = 'internal scratch']
  %s0 = inlined_call_operand.vmem [shape: bf16[512,128], index: 0, kind: input, shape index: {}]
  %s1 = inlined_call_operand.vmem [shape: bf16[128,128], index: 1, kind: input, shape index: {}]
  %s2 = inlined_call_operand.vmem [shape: f32[1,128], index: 2, kind: input, shape index: {}]
  %s3 = inlined_call_operand.vmem [shape: f32[1,128], index: 3, kind: input, shape index: {}]
  %s4 = inlined_call_operand.vmem [shape: bf16[512,128], index: 4, kind: output, shape index: {}]
  %s5 = sld [smem:[#allocation0]]
  $region26: #{decoder_forward.10} parent=0
    _
  %s7 = ssub.s32 1, %s5
  %s8 = scalar_select 0, %s7, %s5
  // Predicated region
  $region2: #{decoder_forward.10} parent=0 // pred_check
    _
  $region3: #{decoder_forward.10} parent=0 // pred_check_branch
    %10 = sbr.rel (0) target = $region5
  $region4: #{decoder_forward.10} parent=0 // pred_region
    _
  $region5: #{decoder_forward.10} parent=0 // pred_fallthru
    _
  // Predicated region
  $region6: #{decoder_forward.10} parent=0 // pred_check
    _
  $region7: #{decoder_forward.10} parent=0 // pred_check_branch
    %12 = sbr.rel (0) target = $region9
  $region8: #{decoder_forward.10} parent=0 // pred_region
    _
  $region9: #{decoder_forward.10} parent=0 // pred_fallthru
    _
  // Predicated region
  $region10: #{decoder_forward.10} parent=0 // pred_check
    _
  $region11: #{decoder_forward.10} parent=0 // pred_check_branch
    %14 = sbr.rel (0) target = $region13
  $region12: #{decoder_forward.10} parent=0 // pred_region
    _
  $region13: #{decoder_forward.10} parent=0 // pred_fallthru
    _
  // Predicated region
  $region14: #{decoder_forward.10} parent=0 // pred_check
    _
  $region15: #{decoder_forward.10} parent=0 // pred_check_branch
    %16 = sbr.rel (0) target = $region17
  $region16: #{decoder_forward.10} parent=0 // pred_region
    _
  $region17: #{decoder_forward.10} parent=0 // pred_fallthru
    _
  %v18 = vld [vmem:[%s0] sm:$0xf]
  %v19 = vld [vmem:[%s0 + $0x4] sm:$0xf]
  %v20 = vld [vmem:[%s0 + $0x8] sm:$0xf]
  %v21 = vld [vmem:[%s0 + $0xc] sm:$0xf]
  %v22 = vld [vmem:[%s0 + $0x10] sm:$0xf]
  %v23 = vld [vmem:[%s0 + $0x14] sm:$0xf]
  %v24 = vld [vmem:[%s0 + $0x18] sm:$0xf]
  %v25 = vld [vmem:[%s0 + $0x1c] sm:$0xf]
  %v26 = vld [vmem:[%s0 + $0x20] sm:$0xf]
  %v27 = vld [vmem:[%s0 + $0x24] sm:$0xf]
  %v28 = vld [vmem:[%s0 + $0x28] sm:$0xf]
  %v29 = vld [vmem:[%s0 + $0x2c] sm:$0xf]
  %v30 = vld [vmem:[%s0 + $0x30] sm:$0xf]
  %v31 = vld [vmem:[%s0 + $0x34] sm:$0xf]
  %v32 = vld [vmem:[%s0 + $0x38] sm:$0xf]
  %v33 = vld [vmem:[%s0 + $0x3c] sm:$0xf]
  %v34 = vld [vmem:[%s0 + $0x40] sm:$0xf]
  %v35 = vld [vmem:[%s0 + $0x44] sm:$0xf]
  %v36 = vld [vmem:[%s0 + $0x48] sm:$0xf]
  %v37 = vld [vmem:[%s0 + $0x4c] sm:$0xf]
  %v38 = vld [vmem:[%s0 + $0x50] sm:$0xf]
  %v39 = vld [vmem:[%s0 + $0x54] sm:$0xf]
  %v40 = vld [vmem:[%s0 + $0x58] sm:$0xf]
  %v41 = vld [vmem:[%s0 + $0x5c] sm:$0xf]
  %v42 = vld [vmem:[%s0 + $0x60] sm:$0xf]
  %v43 = vld [vmem:[%s0 + $0x64] sm:$0xf]
  %v44 = vld [vmem:[%s0 + $0x68] sm:$0xf]
  %v45 = vld [vmem:[%s0 + $0x6c] sm:$0xf]
  %v46 = vld [vmem:[%s0 + $0x70] sm:$0xf]
  %v47 = vld [vmem:[%s0 + $0x74] sm:$0xf]
  %v48 = vld [vmem:[%s0 + $0x78] sm:$0xf]
  %v49 = vld [vmem:[%s0 + $0x7c] sm:$0xf]
  %v50 = vld [vmem:[%s0 + $0x80] sm:$0xf]
  %v51 = vld [vmem:[%s0 + $0x84] sm:$0xf]
  %v52 = vld [vmem:[%s0 + $0x88] sm:$0xf]
  %v53 = vld [vmem:[%s0 + $0x8c] sm:$0xf]
  %v54 = vld [vmem:[%s0 + $0x90] sm:$0xf]
  %v55 = vld [vmem:[%s0 + $0x94] sm:$0xf]
  %v56 = vld [vmem:[%s0 + $0x98] sm:$0xf]
  %v57 = vld [vmem:[%s0 + $0x9c] sm:$0xf]
  %v58 = vld [vmem:[%s0 + $0xa0] sm:$0xf]
  %v59 = vld [vmem:[%s0 + $0xa4] sm:$0xf]
  %v60 = vld [vmem:[%s0 + $0xa8] sm:$0xf]
  %v61 = vld [vmem:[%s0 + $0xac] sm:$0xf]
  %v62 = vld [vmem:[%s0 + $0xb0] sm:$0xf]
  %v63 = vld [vmem:[%s0 + $0xb4] sm:$0xf]
  %v64 = vld [vmem:[%s0 + $0xb8] sm:$0xf]
  %v65 = vld [vmem:[%s0 + $0xbc] sm:$0xf]
  %v66 = vld [vmem:[%s0 + $0xc0] sm:$0xf]
  %v67 = vld [vmem:[%s0 + $0xc4] sm:$0xf]
  %v68 = vld [vmem:[%s0 + $0xc8] sm:$0xf]
  %v69 = vld [vmem:[%s0 + $0xcc] sm:$0xf]
  %v70 = vld [vmem:[%s0 + $0xd0] sm:$0xf]
  %v71 = vld [vmem:[%s0 + $0xd4] sm:$0xf]
  %v72 = vld [vmem:[%s0 + $0xd8] sm:$0xf]
  %v73 = vld [vmem:[%s0 + $0xdc] sm:$0xf]
  %v74 = vld [vmem:[%s0 + $0xe0] sm:$0xf]
  %v75 = vld [vmem:[%s0 + $0xe4] sm:$0xf]
  %v76 = vld [vmem:[%s0 + $0xe8] sm:$0xf]
  %v77 = vld [vmem:[%s0 + $0xec] sm:$0xf]
  %v78 = vld [vmem:[%s0 + $0xf0] sm:$0xf]
  %v79 = vld [vmem:[%s0 + $0xf4] sm:$0xf]
  %v80 = vld [vmem:[%s0 + $0xf8] sm:$0xf]
  %v81 = vld [vmem:[%s0 + $0xfc] sm:$0xf]
  %v82 = vld [vmem:[%s1] sm:$0xf]
  %v83 = vld [vmem:[%s1 + $0x4] sm:$0xf]
  %v84 = vld [vmem:[%s1 + $0x8] sm:$0xf]
  %v85 = vld [vmem:[%s1 + $0xc] sm:$0xf]
  %v86 = vld [vmem:[%s1 + $0x10] sm:$0xf]
  %v87 = vld [vmem:[%s1 + $0x14] sm:$0xf]
  %v88 = vld [vmem:[%s1 + $0x18] sm:$0xf]
  %v89 = vld [vmem:[%s1 + $0x1c] sm:$0xf]
  %v90 = vld [vmem:[%s1 + $0x20] sm:$0xf]
  %v91 = vld [vmem:[%s1 + $0x24] sm:$0xf]
  %v92 = vld [vmem:[%s1 + $0x28] sm:$0xf]
  %v93 = vld [vmem:[%s1 + $0x2c] sm:$0xf]
  %v94 = vld [vmem:[%s1 + $0x30] sm:$0xf]
  %v95 = vld [vmem:[%s1 + $0x34] sm:$0xf]
  %v96 = vld [vmem:[%s1 + $0x38] sm:$0xf]
  %v97 = vld [vmem:[%s1 + $0x3c] sm:$0xf]
  %v162 = vunpack.c.l.b16 %v18
  %v163 = vunpack.c.l.b16 %v19
  %v164 = vunpack.c.l.b16 %v20
  %v165 = vunpack.c.l.b16 %v21
  %v166 = vunpack.c.l.b16 %v22
  %v167 = vunpack.c.l.b16 %v23
  %v168 = vunpack.c.l.b16 %v24
  %v169 = vunpack.c.l.b16 %v25
  %v170 = vunpack.c.l.b16 %v26
  %v171 = vunpack.c.l.b16 %v27
  %v172 = vunpack.c.l.b16 %v28
  %v173 = vunpack.c.l.b16 %v29
  %v174 = vunpack.c.l.b16 %v30
  %v175 = vunpack.c.l.b16 %v31
  %v176 = vunpack.c.l.b16 %v32
  %v177 = vunpack.c.l.b16 %v33
  %v178 = vunpack.c.l.b16 %v34
  %v179 = vunpack.c.l.b16 %v35
  %v180 = vunpack.c.l.b16 %v36
  %v181 = vunpack.c.l.b16 %v37
  %v182 = vunpack.c.l.b16 %v38
  %v183 = vunpack.c.l.b16 %v39
  %v184 = vunpack.c.l.b16 %v40
  %v185 = vunpack.c.l.b16 %v41
  %v186 = vunpack.c.l.b16 %v42
  %v187 = vunpack.c.l.b16 %v43
  %v188 = vunpack.c.l.b16 %v44
  %v189 = vunpack.c.l.b16 %v45
  %v190 = vunpack.c.l.b16 %v46
  %v191 = vunpack.c.l.b16 %v47
  %v192 = vunpack.c.l.b16 %v48
  %v193 = vunpack.c.l.b16 %v49
  %v194 = vunpack.c.l.b16 %v50
  %v195 = vunpack.c.l.b16 %v51
  %v196 = vunpack.c.l.b16 %v52
  %v197 = vunpack.c.l.b16 %v53
  %v198 = vunpack.c.l.b16 %v54
  %v199 = vunpack.c.l.b16 %v55
  %v200 = vunpack.c.l.b16 %v56
  %v201 = vunpack.c.l.b16 %v57
  %v202 = vunpack.c.l.b16 %v58
  %v203 = vunpack.c.l.b16 %v59
  %v204 = vunpack.c.l.b16 %v60
  %v205 = vunpack.c.l.b16 %v61
  %v206 = vunpack.c.l.b16 %v62
  %v207 = vunpack.c.l.b16 %v63
  %v208 = vunpack.c.l.b16 %v64
  %v209 = vunpack.c.l.b16 %v65
  %v210 = vunpack.c.l.b16 %v66
  %v211 = vunpack.c.l.b16 %v67
  %v212 = vunpack.c.l.b16 %v68
  %v213 = vunpack.c.l.b16 %v69
  %v214 = vunpack.c.l.b16 %v70
  %v215 = vunpack.c.l.b16 %v71
  %v216 = vunpack.c.l.b16 %v72
  %v217 = vunpack.c.l.b16 %v73
  %v218 = vunpack.c.l.b16 %v74
  %v219 = vunpack.c.l.b16 %v75
  %v220 = vunpack.c.l.b16 %v76
  %v221 = vunpack.c.l.b16 %v77
  %v222 = vunpack.c.l.b16 %v78
  %v223 = vunpack.c.l.b16 %v79
  %v224 = vunpack.c.l.b16 %v80
  %v225 = vunpack.c.l.b16 %v81
  %v226 = vpack.c.b16 %v163, %v162
  %v227 = vpack.c.b16 %v165, %v164
  %v228 = vpack.c.b16 %v167, %v166
  %v229 = vpack.c.b16 %v169, %v168
  %v230 = vpack.c.b16 %v171, %v170
  %v231 = vpack.c.b16 %v173, %v172
  %v232 = vpack.c.b16 %v175, %v174
  %v233 = vpack.c.b16 %v177, %v176
  %v234 = vpack.c.b16 %v179, %v178
  %v235 = vpack.c.b16 %v181, %v180
  %v236 = vpack.c.b16 %v183, %v182
  %v237 = vpack.c.b16 %v185, %v184
  %v238 = vpack.c.b16 %v187, %v186
  %v239 = vpack.c.b16 %v189, %v188
  %v240 = vpack.c.b16 %v191, %v190
  %v241 = vpack.c.b16 %v193, %v192
  %v242 = vpack.c.b16 %v195, %v194
  %v243 = vpack.c.b16 %v197, %v196
  %v244 = vpack.c.b16 %v199, %v198
  %v245 = vpack.c.b16 %v201, %v200
  %v246 = vpack.c.b16 %v203, %v202
  %v247 = vpack.c.b16 %v205, %v204
  %v248 = vpack.c.b16 %v207, %v206
  %v249 = vpack.c.b16 %v209, %v208
  %v250 = vpack.c.b16 %v211, %v210
  %v251 = vpack.c.b16 %v213, %v212
  %v252 = vpack.c.b16 %v215, %v214
  %v253 = vpack.c.b16 %v217, %v216
  %v254 = vpack.c.b16 %v219, %v218
  %v255 = vpack.c.b16 %v221, %v220
  %v256 = vpack.c.b16 %v223, %v222
  %v257 = vpack.c.b16 %v225, %v224
  %v306 = vunpack.c.l.b16 %v82
  %v307 = vunpack.c.l.b16 %v83
  %v308 = vunpack.c.l.b16 %v84
  %v309 = vunpack.c.l.b16 %v85
  %v310 = vunpack.c.l.b16 %v86
  %v311 = vunpack.c.l.b16 %v87
  %v312 = vunpack.c.l.b16 %v88
  %v313 = vunpack.c.l.b16 %v89
  %v314 = vunpack.c.l.b16 %v90
  %v315 = vunpack.c.l.b16 %v91
  %v316 = vunpack.c.l.b16 %v92
  %v317 = vunpack.c.l.b16 %v93
  %v318 = vunpack.c.l.b16 %v94
  %v319 = vunpack.c.l.b16 %v95
  %v320 = vunpack.c.l.b16 %v96
  %v321 = vunpack.c.l.b16 %v97
  %v322 = vpack.c.b16 %v307, %v306
  %v323 = vpack.c.b16 %v309, %v308
  %v324 = vpack.c.b16 %v311, %v310
  %v325 = vpack.c.b16 %v313, %v312
  %v326 = vpack.c.b16 %v315, %v314
  %v327 = vpack.c.b16 %v317, %v316
  %v328 = vpack.c.b16 %v319, %v318
  %v329 = vpack.c.b16 %v321, %v320
  %338 = vmatprep.subr.bf16.mxu0 0
  %339 = vmatpush1.bf16.msra.mxu0 %v322
  %340 = vmatprep.subr.bf16.mxu0 0
  %341 = vmatpush1.bf16.msra.mxu0 %v323
  %342 = vmatprep.subr.bf16.mxu0 0
  %343 = vmatpush1.bf16.msra.mxu0 %v324
  %344 = vmatprep.subr.bf16.mxu0 0
  %345 = vmatpush1.bf16.msra.mxu0 %v325
  %346 = vmatprep.subr.bf16.mxu0 0
  %347 = vmatpush1.bf16.msra.mxu0 %v326
  %348 = vmatprep.subr.bf16.mxu0 0
  %349 = vmatpush1.bf16.msra.mxu0 %v327
  %350 = vmatprep.subr.bf16.mxu0 0
  %351 = vmatpush1.bf16.msra.mxu0 %v328
  %352 = vmatprep.subr.bf16.mxu0 0
  %353 = vmatpush1.bf16.msra.mxu0 %v329
  %354 = vmatprep.subr.bf16.mxu0 0
  %355 = vmatpush1.bf16.msra.mxu0 0
  %356 = vmatprep.subr.bf16.mxu0 0
  %357 = vmatpush1.bf16.msra.mxu0 0
  %358 = vmatprep.subr.bf16.mxu0 0
  %359 = vmatpush1.bf16.msra.mxu0 0
  %360 = vmatprep.subr.bf16.mxu0 0
  %361 = vmatpush1.bf16.msra.mxu0 0
  %362 = vmatprep.subr.bf16.mxu0 0
  %363 = vmatpush1.bf16.msra.mxu0 0
  %364 = vmatprep.subr.bf16.mxu0 0
  %365 = vmatpush1.bf16.msra.mxu0 0
  %366 = vmatprep.subr.bf16.mxu0 0
  %367 = vmatpush1.bf16.msra.mxu0 0
  %368 = vmatprep.subr.bf16.mxu0 0
  %369 = vmatpush1.bf16.msra.mxu0 0
  %370 = vmatprep.mubr.bf16.mxu0 0
  %371 = vmatmul.mubr.bf16.gmra.mrb[0].mxu0 %v226
  %v372 = vpop.f32.mrb[0].mxu0
  %v373 = vadd.f32 0.0, %v372
  %v374 = vpop.f32.mrb[0].mxu0
  %v375 = vpop.f32.mrb[0].mxu0
  %v376 = vadd.f32 0.0, %v375
  %v377 = vpop.f32.mrb[0].mxu0
  %378 = vmatprep.mubr.bf16.mxu0 0
  %379 = vmatmul.mubr.bf16.gmra.mrb[0].mxu0 %v227
  %v380 = vpop.f32.mrb[0].mxu0
  %v381 = vadd.f32 0.0, %v380
  %v382 = vpop.f32.mrb[0].mxu0
  %v383 = vpop.f32.mrb[0].mxu0
  %v384 = vadd.f32 0.0, %v383
  %v385 = vpop.f32.mrb[0].mxu0
  %386 = vmatprep.mubr.bf16.mxu0 0
  %387 = vmatmul.mubr.bf16.gmra.mrb[0].mxu0 %v228
  %v388 = vpop.f32.mrb[0].mxu0
  %v389 = vadd.f32 0.0, %v388
  %v390 = vpop.f32.mrb[0].mxu0
  %v391 = vpop.f32.mrb[0].mxu0
  %v392 = vadd.f32 0.0, %v391
  %v393 = vpop.f32.mrb[0].mxu0
  %394 = vmatprep.mubr.bf16.mxu0 0
  %395 = vmatmul.mubr.bf16.gmra.mrb[0].mxu0 %v229
  %v396 = vpop.f32.mrb[0].mxu0
  %v397 = vadd.f32 0.0, %v396
  %v398 = vpop.f32.mrb[0].mxu0
  %v399 = vpop.f32.mrb[0].mxu0
  %v400 = vadd.f32 0.0, %v399
  %v401 = vpop.f32.mrb[0].mxu0
  %402 = vmatprep.mubr.bf16.mxu0 0
  %403 = vmatmul.mubr.bf16.gmra.mrb[0].mxu0 %v230
  %v404 = vpop.f32.mrb[0].mxu0
  %v405 = vadd.f32 0.0, %v404
  %v406 = vpop.f32.mrb[0].mxu0
  %v407 = vpop.f32.mrb[0].mxu0
  %v408 = vadd.f32 0.0, %v407
  %v409 = vpop.f32.mrb[0].mxu0
  %410 = vmatprep.mubr.bf16.mxu0 0
  %411 = vmatmul.mubr.bf16.gmra.mrb[0].mxu0 %v231
  %v412 = vpop.f32.mrb[0].mxu0
  %v413 = vadd.f32 0.0, %v412
  %v414 = vpop.f32.mrb[0].mxu0
  %v415 = vpop.f32.mrb[0].mxu0
  %v416 = vadd.f32 0.0, %v415
  %v417 = vpop.f32.mrb[0].mxu0
  %418 = vmatprep.mubr.bf16.mxu0 0
  %419 = vmatmul.mubr.bf16.gmra.mrb[0].mxu0 %v232
  %v420 = vpop.f32.mrb[0].mxu0
  %v421 = vadd.f32 0.0, %v420
  %v422 = vpop.f32.mrb[0].mxu0
  %v423 = vpop.f32.mrb[0].mxu0
  %v424 = vadd.f32 0.0, %v423
  %v425 = vpop.f32.mrb[0].mxu0
  %426 = vmatprep.mubr.bf16.mxu0 0
  %427 = vmatmul.mubr.bf16.gmra.mrb[0].mxu0 %v233
  %v428 = vpop.f32.mrb[0].mxu0
  %v429 = vadd.f32 0.0, %v428
  %v430 = vpop.f32.mrb[0].mxu0
  %v431 = vpop.f32.mrb[0].mxu0
  %v432 = vadd.f32 0.0, %v431
  %v433 = vpop.f32.mrb[0].mxu0
  %434 = vmatprep.mubr.bf16.mxu0 0
  %435 = vmatmul.mubr.bf16.gmra.mrb[0].mxu0 %v234
  %v436 = vpop.f32.mrb[0].mxu0
  %v437 = vadd.f32 0.0, %v436
  %v438 = vpop.f32.mrb[0].mxu0
  %v439 = vpop.f32.mrb[0].mxu0
  %v440 = vadd.f32 0.0, %v439
  %v441 = vpop.f32.mrb[0].mxu0
  %442 = vmatprep.mubr.bf16.mxu0 0
  %443 = vmatmul.mubr.bf16.gmra.mrb[0].mxu0 %v235
  %v444 = vpop.f32.mrb[0].mxu0
  %v445 = vadd.f32 0.0, %v444
  %v446 = vpop.f32.mrb[0].mxu0
  %v447 = vpop.f32.mrb[0].mxu0
  %v448 = vadd.f32 0.0, %v447
  %v449 = vpop.f32.mrb[0].mxu0
  %450 = vmatprep.mubr.bf16.mxu0 0
  %451 = vmatmul.mubr.bf16.gmra.mrb[0].mxu0 %v236
  %v452 = vpop.f32.mrb[0].mxu0
  %v453 = vadd.f32 0.0, %v452
  %v454 = vpop.f32.mrb[0].mxu0
  %v455 = vpop.f32.mrb[0].mxu0
  %v456 = vadd.f32 0.0, %v455
  %v457 = vpop.f32.mrb[0].mxu0
  %458 = vmatprep.mubr.bf16.mxu0 0
  %459 = vmatmul.mubr.bf16.gmra.mrb[0].mxu0 %v237
  %v460 = vpop.f32.mrb[0].mxu0
  %v461 = vadd.f32 0.0, %v460
  %v462 = vpop.f32.mrb[0].mxu0
  %v463 = vpop.f32.mrb[0].mxu0
  %v464 = vadd.f32 0.0, %v463
  %v465 = vpop.f32.mrb[0].mxu0
  %466 = vmatprep.mubr.bf16.mxu0 0
  %467 = vmatmul.mubr.bf16.gmra.mrb[0].mxu0 %v238
  %v468 = vpop.f32.mrb[0].mxu0
  %v469 = vadd.f32 0.0, %v468
  %v470 = vpop.f32.mrb[0].mxu0
  %v471 = vpop.f32.mrb[0].mxu0
  %v472 = vadd.f32 0.0, %v471
  %v473 = vpop.f32.mrb[0].mxu0
  %474 = vmatprep.mubr.bf16.mxu0 0
  %475 = vmatmul.mubr.bf16.gmra.mrb[0].mxu0 %v239
  %v476 = vpop.f32.mrb[0].mxu0
  %v477 = vadd.f32 0.0, %v476
  %v478 = vpop.f32.mrb[0].mxu0
  %v479 = vpop.f32.mrb[0].mxu0
  %v480 = vadd.f32 0.0, %v479
  %v481 = vpop.f32.mrb[0].mxu0
  %482 = vmatprep.mubr.bf16.mxu0 0
  %483 = vmatmul.mubr.bf16.gmra.mrb[0].mxu0 %v240
  %v484 = vpop.f32.mrb[0].mxu0
  %v485 = vadd.f32 0.0, %v484
  %v486 = vpop.f32.mrb[0].mxu0
  %v487 = vpop.f32.mrb[0].mxu0
  %v488 = vadd.f32 0.0, %v487
  %v489 = vpop.f32.mrb[0].mxu0
  %490 = vmatprep.mubr.bf16.mxu0 0
  %491 = vmatmul.mubr.bf16.gmra.mrb[0].mxu0 %v241
  %v492 = vpop.f32.mrb[0].mxu0
  %v493 = vadd.f32 0.0, %v492
  %v494 = vpop.f32.mrb[0].mxu0
  %v495 = vpop.f32.mrb[0].mxu0
  %v496 = vadd.f32 0.0, %v495
  %v497 = vpop.f32.mrb[0].mxu0
  %498 = vmatprep.mubr.bf16.mxu0 0
  %499 = vmatmul.mubr.bf16.gmra.mrb[0].mxu0 %v242
  %v500 = vpop.f32.mrb[0].mxu0
  %v501 = vadd.f32 0.0, %v500
  %v502 = vpop.f32.mrb[0].mxu0
  %v503 = vpop.f32.mrb[0].mxu0
  %v504 = vadd.f32 0.0, %v503
  %v505 = vpop.f32.mrb[0].mxu0
  %506 = vmatprep.mubr.bf16.mxu0 0
  %507 = vmatmul.mubr.bf16.gmra.mrb[0].mxu0 %v243
  %v508 = vpop.f32.mrb[0].mxu0
  %v509 = vadd.f32 0.0, %v508
  %v510 = vpop.f32.mrb[0].mxu0
  %v511 = vpop.f32.mrb[0].mxu0
  %v512 = vadd.f32 0.0, %v511
  %v513 = vpop.f32.mrb[0].mxu0
  %514 = vmatprep.mubr.bf16.mxu0 0
  %515 = vmatmul.mubr.bf16.gmra.mrb[0].mxu0 %v244
  %v516 = vpop.f32.mrb[0].mxu0
  %v517 = vadd.f32 0.0, %v516
  %v518 = vpop.f32.mrb[0].mxu0
  %v519 = vpop.f32.mrb[0].mxu0
  %v520 = vadd.f32 0.0, %v519
  %v521 = vpop.f32.mrb[0].mxu0
  %522 = vmatprep.mubr.bf16.mxu0 0
  %523 = vmatmul.mubr.bf16.gmra.mrb[0].mxu0 %v245
  %v524 = vpop.f32.mrb[0].mxu0
  %v525 = vadd.f32 0.0, %v524
  %v526 = vpop.f32.mrb[0].mxu0
  %v527 = vpop.f32.mrb[0].mxu0
  %v528 = vadd.f32 0.0, %v527
  %v529 = vpop.f32.mrb[0].mxu0
  %530 = vmatprep.mubr.bf16.mxu0 0
  %531 = vmatmul.mubr.bf16.gmra.mrb[0].mxu0 %v246
  %v532 = vpop.f32.mrb[0].mxu0
  %v533 = vadd.f32 0.0, %v532
  %v534 = vpop.f32.mrb[0].mxu0
  %v535 = vpop.f32.mrb[0].mxu0
  %v536 = vadd.f32 0.0, %v535
  %v537 = vpop.f32.mrb[0].mxu0
  %538 = vmatprep.mubr.bf16.mxu0 0
  %539 = vmatmul.mubr.bf16.gmra.mrb[0].mxu0 %v247
  %v540 = vpop.f32.mrb[0].mxu0
  %v541 = vadd.f32 0.0, %v540
  %v542 = vpop.f32.mrb[0].mxu0
  %v543 = vpop.f32.mrb[0].mxu0
  %v544 = vadd.f32 0.0, %v543
  %v545 = vpop.f32.mrb[0].mxu0
  %546 = vmatprep.mubr.bf16.mxu0 0
  %547 = vmatmul.mubr.bf16.gmra.mrb[0].mxu0 %v248
  %v548 = vpop.f32.mrb[0].mxu0
  %v549 = vadd.f32 0.0, %v548
  %v550 = vpop.f32.mrb[0].mxu0
  %v551 = vpop.f32.mrb[0].mxu0
  %v552 = vadd.f32 0.0, %v551
  %v553 = vpop.f32.mrb[0].mxu0
  %554 = vmatprep.mubr.bf16.mxu0 0
  %555 = vmatmul.mubr.bf16.gmra.mrb[0].mxu0 %v249
  %v556 = vpop.f32.mrb[0].mxu0
  %v557 = vadd.f32 0.0, %v556
  %v558 = vpop.f32.mrb[0].mxu0
  %v559 = vpop.f32.mrb[0].mxu0
  %v560 = vadd.f32 0.0, %v559
  %v561 = vpop.f32.mrb[0].mxu0
  %562 = vmatprep.mubr.bf16.mxu0 0
  %563 = vmatmul.mubr.bf16.gmra.mrb[0].mxu0 %v250
  %v564 = vpop.f32.mrb[0].mxu0
  %v565 = vadd.f32 0.0, %v564
  %v566 = vpop.f32.mrb[0].mxu0
  %v567 = vpop.f32.mrb[0].mxu0
  %v568 = vadd.f32 0.0, %v567
  %v569 = vpop.f32.mrb[0].mxu0
  %570 = vmatprep.mubr.bf16.mxu0 0
  %571 = vmatmul.mubr.bf16.gmra.mrb[0].mxu0 %v251
  %v572 = vpop.f32.mrb[0].mxu0
  %v573 = vadd.f32 0.0, %v572
  %v574 = vpop.f32.mrb[0].mxu0
  %v575 = vpop.f32.mrb[0].mxu0
  %v576 = vadd.f32 0.0, %v575
  %v577 = vpop.f32.mrb[0].mxu0
  %578 = vmatprep.mubr.bf16.mxu0 0
  %579 = vmatmul.mubr.bf16.gmra.mrb[0].mxu0 %v252
  %v580 = vpop.f32.mrb[0].mxu0
  %v581 = vadd.f32 0.0, %v580
  %v582 = vpop.f32.mrb[0].mxu0
  %v583 = vpop.f32.mrb[0].mxu0
  %v584 = vadd.f32 0.0, %v583
  %v585 = vpop.f32.mrb[0].mxu0
  %586 = vmatprep.mubr.bf16.mxu0 0
  %587 = vmatmul.mubr.bf16.gmra.mrb[0].mxu0 %v253
  %v588 = vpop.f32.mrb[0].mxu0
  %v589 = vadd.f32 0.0, %v588
  %v590 = vpop.f32.mrb[0].mxu0
  %v591 = vpop.f32.mrb[0].mxu0
  %v592 = vadd.f32 0.0, %v591
  %v593 = vpop.f32.mrb[0].mxu0
  %594 = vmatprep.mubr.bf16.mxu0 0
  %595 = vmatmul.mubr.bf16.gmra.mrb[0].mxu0 %v254
  %v596 = vpop.f32.mrb[0].mxu0
  %v597 = vadd.f32 0.0, %v596
  %v598 = vpop.f32.mrb[0].mxu0
  %v599 = vpop.f32.mrb[0].mxu0
  %v600 = vadd.f32 0.0, %v599
  %v601 = vpop.f32.mrb[0].mxu0
  %602 = vmatprep.mubr.bf16.mxu0 0
  %603 = vmatmul.mubr.bf16.gmra.mrb[0].mxu0 %v255
  %v604 = vpop.f32.mrb[0].mxu0
  %v605 = vadd.f32 0.0, %v604
  %v606 = vpop.f32.mrb[0].mxu0
  %v607 = vpop.f32.mrb[0].mxu0
  %v608 = vadd.f32 0.0, %v607
  %v609 = vpop.f32.mrb[0].mxu0
  %610 = vmatprep.mubr.bf16.mxu0 0
  %611 = vmatmul.mubr.bf16.gmra.mrb[0].mxu0 %v256
  %v612 = vpop.f32.mrb[0].mxu0
  %v613 = vadd.f32 0.0, %v612
  %v614 = vpop.f32.mrb[0].mxu0
  %v615 = vpop.f32.mrb[0].mxu0
  %v616 = vadd.f32 0.0, %v615
  %v617 = vpop.f32.mrb[0].mxu0
  %618 = vmatprep.mubr.bf16.mxu0 0
  %619 = vmatmul.mubr.bf16.gmra.mrb[0].mxu0 %v257
  %v620 = vpop.f32.mrb[0].mxu0
  %v621 = vadd.f32 0.0, %v620
  %v622 = vpop.f32.mrb[0].mxu0
  %v623 = vpop.f32.mrb[0].mxu0
  %v624 = vadd.f32 0.0, %v623
  %v625 = vpop.f32.mrb[0].mxu0
  %626 = vdwg.mxu0
  %v627 = vadd.f32 %v373, %v376
  %v628 = vadd.f32 %v627, %v381
  %v629 = vadd.f32 %v628, %v384
  %v630 = vadd.f32 %v629, %v389
  %v631 = vadd.f32 %v630, %v392
  %v632 = vadd.f32 %v631, %v397
  %v633 = vadd.f32 %v632, %v400
  %v634 = vadd.f32 %v633, %v405
  %v635 = vadd.f32 %v634, %v408
  %v636 = vadd.f32 %v635, %v413
  %v637 = vadd.f32 %v636, %v416
  %v638 = vadd.f32 %v637, %v421
  %v639 = vadd.f32 %v638, %v424
  %v640 = vadd.f32 %v639, %v429
  %v641 = vadd.f32 %v640, %v432
  %v642 = vadd.f32 %v641, %v437
  %v643 = vadd.f32 %v642, %v440
  %v644 = vadd.f32 %v643, %v445
  %v645 = vadd.f32 %v644, %v448
  %v646 = vadd.f32 %v645, %v453
  %v647 = vadd.f32 %v646, %v456
  %v648 = vadd.f32 %v647, %v461
  %v649 = vadd.f32 %v648, %v464
  %v650 = vadd.f32 %v649, %v469
  %v651 = vadd.f32 %v650, %v472
  %v652 = vadd.f32 %v651, %v477
  %v653 = vadd.f32 %v652, %v480
  %v654 = vadd.f32 %v653, %v485
  %v655 = vadd.f32 %v654, %v488
  %v656 = vadd.f32 %v655, %v493
  %v657 = vadd.f32 %v656, %v496
  %v658 = vadd.f32 %v657, %v501
  %v659 = vadd.f32 %v658, %v504
  %v660 = vadd.f32 %v659, %v509
  %v661 = vadd.f32 %v660, %v512
  %v662 = vadd.f32 %v661, %v517
  %v663 = vadd.f32 %v662, %v520
  %v664 = vadd.f32 %v663, %v525
  %v665 = vadd.f32 %v664, %v528
  %v666 = vadd.f32 %v665, %v533
  %v667 = vadd.f32 %v666, %v536
  %v668 = vadd.f32 %v667, %v541
  %v669 = vadd.f32 %v668, %v544
  %v670 = vadd.f32 %v669, %v549
  %v671 = vadd.f32 %v670, %v552
  %v672 = vadd.f32 %v671, %v557
  %v673 = vadd.f32 %v672, %v560
  %v674 = vadd.f32 %v673, %v565
  %v675 = vadd.f32 %v674, %v568
  %v676 = vadd.f32 %v675, %v573
  %v677 = vadd.f32 %v676, %v576
  %v678 = vadd.f32 %v677, %v581
  %v679 = vadd.f32 %v678, %v584
  %v680 = vadd.f32 %v679, %v589
  %v681 = vadd.f32 %v680, %v592
  %v682 = vadd.f32 %v681, %v597
  %v683 = vadd.f32 %v682, %v600
  %v684 = vadd.f32 %v683, %v605
  %v685 = vadd.f32 %v684, %v608
  %v686 = vadd.f32 %v685, %v613
  %v687 = vadd.f32 %v686, %v616
  %v688 = vadd.f32 %v687, %v621
  %v689 = vadd.f32 %v688, %v624
  %v690 = vrot.slane %v689, 4
  %v691 = vadd.f32 %v689, %v690
  %v692 = vrot.slane %v691, 2
  %v693 = vadd.f32 %v691, %v692
  %v694 = vrot.slane %v693, 1
  %v695 = vadd.f32 %v693, %v694
  %696 = vrot.lane.b32.xlu0 %v695, 32
  %v697 = vpop.permute.xlu0 %696
  %v698 = vadd.f32 %v695, %v697
  %699 = vrot.lane.b32.xlu0 %v695, 64
  %v700 = vpop.permute.xlu0 %699
  %v701 = vadd.f32 %v698, %v700
  %702 = vrot.lane.b32.xlu0 %v695, 96
  %v703 = vpop.permute.xlu0 %702
  %v704 = vadd.f32 %v701, %v703
  %v705 = vmul.f32 %v704, 0.00048828125
  %v706 = vlaneseq
  %v707 = vshrl.u32 %v706, 7
  %v708 = vsub.s32 0, %v707
  %v709 = vrot.slane %v705, %v708
  %v710 = vsub.f32 %v373, %v709
  %v711 = vsub.f32 %v376, %v709
  %v712 = vsub.f32 %v381, %v709
  %v713 = vsub.f32 %v384, %v709
  %v714 = vsub.f32 %v389, %v709
  %v715 = vsub.f32 %v392, %v709
  %v716 = vsub.f32 %v397, %v709
  %v717 = vsub.f32 %v400, %v709
  %v718 = vsub.f32 %v405, %v709
  %v719 = vsub.f32 %v408, %v709
  %v720 = vsub.f32 %v413, %v709
  %v721 = vsub.f32 %v416, %v709
  %v722 = vsub.f32 %v421, %v709
  %v723 = vsub.f32 %v424, %v709
  %v724 = vsub.f32 %v429, %v709
  %v725 = vsub.f32 %v432, %v709
  %v726 = vsub.f32 %v437, %v709
  %v727 = vsub.f32 %v440, %v709
  %v728 = vsub.f32 %v445, %v709
  %v729 = vsub.f32 %v448, %v709
  %v730 = vsub.f32 %v453, %v709
  %v731 = vsub.f32 %v456, %v709
  %v732 = vsub.f32 %v461, %v709
  %v733 = vsub.f32 %v464, %v709
  %v734 = vsub.f32 %v469, %v709
  %v735 = vsub.f32 %v472, %v709
  %v736 = vsub.f32 %v477, %v709
  %v737 = vsub.f32 %v480, %v709
  %v738 = vsub.f32 %v485, %v709
  %v739 = vsub.f32 %v488, %v709
  %v740 = vsub.f32 %v493, %v709
  %v741 = vsub.f32 %v496, %v709
  %v742 = vsub.f32 %v501, %v709
  %v743 = vsub.f32 %v504, %v709
  %v744 = vsub.f32 %v509, %v709
  %v745 = vsub.f32 %v512, %v709
  %v746 = vsub.f32 %v517, %v709
  %v747 = vsub.f32 %v520, %v709
  %v748 = vsub.f32 %v525, %v709
  %v749 = vsub.f32 %v528, %v709
  %v750 = vsub.f32 %v533, %v709
  %v751 = vsub.f32 %v536, %v709
  %v752 = vsub.f32 %v541, %v709
  %v753 = vsub.f32 %v544, %v709
  %v754 = vsub.f32 %v549, %v709
  %v755 = vsub.f32 %v552, %v709
  %v756 = vsub.f32 %v557, %v709
  %v757 = vsub.f32 %v560, %v709
  %v758 = vsub.f32 %v565, %v709
  %v759 = vsub.f32 %v568, %v709
  %v760 = vsub.f32 %v573, %v709
  %v761 = vsub.f32 %v576, %v709
  %v762 = vsub.f32 %v581, %v709
  %v763 = vsub.f32 %v584, %v709
  %v764 = vsub.f32 %v589, %v709
  %v765 = vsub.f32 %v592, %v709
  %v766 = vsub.f32 %v597, %v709
  %v767 = vsub.f32 %v600, %v709
  %v768 = vsub.f32 %v605, %v709
  %v769 = vsub.f32 %v608, %v709
  %v770 = vsub.f32 %v613, %v709
  %v771 = vsub.f32 %v616, %v709
  %v772 = vsub.f32 %v621, %v709
  %v773 = vsub.f32 %v624, %v709
  %v774 = vmul.f32 %v710, %v710
  %v775 = vmul.f32 %v711, %v711
  %v776 = vmul.f32 %v712, %v712
  %v777 = vmul.f32 %v713, %v713
  %v778 = vmul.f32 %v714, %v714
  %v779 = vmul.f32 %v715, %v715
  %v780 = vmul.f32 %v716, %v716
  %v781 = vmul.f32 %v717, %v717
  %v782 = vmul.f32 %v718, %v718
  %v783 = vmul.f32 %v719, %v719
  %v784 = vmul.f32 %v720, %v720
  %v785 = vmul.f32 %v721, %v721
  %v786 = vmul.f32 %v722, %v722
  %v787 = vmul.f32 %v723, %v723
  %v788 = vmul.f32 %v724, %v724
  %v789 = vmul.f32 %v725, %v725
  %v790 = vmul.f32 %v726, %v726
  %v791 = vmul.f32 %v727, %v727
  %v792 = vmul.f32 %v728, %v728
  %v793 = vmul.f32 %v729, %v729
  %v794 = vmul.f32 %v730, %v730
  %v795 = vmul.f32 %v731, %v731
  %v796 = vmul.f32 %v732, %v732
  %v797 = vmul.f32 %v733, %v733
  %v798 = vmul.f32 %v734, %v734
  %v799 = vmul.f32 %v735, %v735
  %v800 = vmul.f32 %v736, %v736
  %v801 = vmul.f32 %v737, %v737
  %v802 = vmul.f32 %v738, %v738
  %v803 = vmul.f32 %v739, %v739
  %v804 = vmul.f32 %v740, %v740
  %v805 = vmul.f32 %v741, %v741
  %v806 = vmul.f32 %v742, %v742
  %v807 = vmul.f32 %v743, %v743
  %v808 = vmul.f32 %v744, %v744
  %v809 = vmul.f32 %v745, %v745
  %v810 = vmul.f32 %v746, %v746
  %v811 = vmul.f32 %v747, %v747
  %v812 = vmul.f32 %v748, %v748
  %v813 = vmul.f32 %v749, %v749
  %v814 = vmul.f32 %v750, %v750
  %v815 = vmul.f32 %v751, %v751
  %v816 = vmul.f32 %v752, %v752
  %v817 = vmul.f32 %v753, %v753
  %v818 = vmul.f32 %v754, %v754
  %v819 = vmul.f32 %v755, %v755
  %v820 = vmul.f32 %v756, %v756
  %v821 = vmul.f32 %v757, %v757
  %v822 = vmul.f32 %v758, %v758
  %v823 = vmul.f32 %v759, %v759
  %v824 = vmul.f32 %v760, %v760
  %v825 = vmul.f32 %v761, %v761
  %v826 = vmul.f32 %v762, %v762
  %v827 = vmul.f32 %v763, %v763
  %v828 = vmul.f32 %v764, %v764
  %v829 = vmul.f32 %v765, %v765
  %v830 = vmul.f32 %v766, %v766
  %v831 = vmul.f32 %v767, %v767
  %v832 = vmul.f32 %v768, %v768
  %v833 = vmul.f32 %v769, %v769
  %v834 = vmul.f32 %v770, %v770
  %v835 = vmul.f32 %v771, %v771
  %v836 = vmul.f32 %v772, %v772
  %v837 = vmul.f32 %v773, %v773
  %v838 = vadd.f32 %v774, %v775
  %v839 = vadd.f32 %v838, %v776
  %v840 = vadd.f32 %v839, %v777
  %v841 = vadd.f32 %v840, %v778
  %v842 = vadd.f32 %v841, %v779
  %v843 = vadd.f32 %v842, %v780
  %v844 = vadd.f32 %v843, %v781
  %v845 = vadd.f32 %v844, %v782
  %v846 = vadd.f32 %v845, %v783
  %v847 = vadd.f32 %v846, %v784
  %v848 = vadd.f32 %v847, %v785
  %v849 = vadd.f32 %v848, %v786
  %v850 = vadd.f32 %v849, %v787
  %v851 = vadd.f32 %v850, %v788
  %v852 = vadd.f32 %v851, %v789
  %v853 = vadd.f32 %v852, %v790
  %v854 = vadd.f32 %v853, %v791
  %v855 = vadd.f32 %v854, %v792
  %v856 = vadd.f32 %v855, %v793
  %v857 = vadd.f32 %v856, %v794
  %v858 = vadd.f32 %v857, %v795
  %v859 = vadd.f32 %v858, %v796
  %v860 = vadd.f32 %v859, %v797
  %v861 = vadd.f32 %v860, %v798
  %v862 = vadd.f32 %v861, %v799
  %v863 = vadd.f32 %v862, %v800
  %v864 = vadd.f32 %v863, %v801
  %v865 = vadd.f32 %v864, %v802
  %v866 = vadd.f32 %v865, %v803
  %v867 = vadd.f32 %v866, %v804
  %v868 = vadd.f32 %v867, %v805
  %v869 = vadd.f32 %v868, %v806
  %v870 = vadd.f32 %v869, %v807
  %v871 = vadd.f32 %v870, %v808
  %v872 = vadd.f32 %v871, %v809
  %v873 = vadd.f32 %v872, %v810
  %v874 = vadd.f32 %v873, %v811
  %v875 = vadd.f32 %v874, %v812
  %v876 = vadd.f32 %v875, %v813
  %v877 = vadd.f32 %v876, %v814
  %v878 = vadd.f32 %v877, %v815
  %v879 = vadd.f32 %v878, %v816
  %v880 = vadd.f32 %v879, %v817
  %v881 = vadd.f32 %v880, %v818
  %v882 = vadd.f32 %v881, %v819
  %v883 = vadd.f32 %v882, %v820
  %v884 = vadd.f32 %v883, %v821
  %v885 = vadd.f32 %v884, %v822
  %v886 = vadd.f32 %v885, %v823
  %v887 = vadd.f32 %v886, %v824
  %v888 = vadd.f32 %v887, %v825
  %v889 = vadd.f32 %v888, %v826
  %v890 = vadd.f32 %v889, %v827
  %v891 = vadd.f32 %v890, %v828
  %v892 = vadd.f32 %v891, %v829
  %v893 = vadd.f32 %v892, %v830
  %v894 = vadd.f32 %v893, %v831
  %v895 = vadd.f32 %v894, %v832
  %v896 = vadd.f32 %v895, %v833
  %v897 = vadd.f32 %v896, %v834
  %v898 = vadd.f32 %v897, %v835
  %v899 = vadd.f32 %v898, %v836
  %v900 = vadd.f32 %v899, %v837
  %v901 = vrot.slane %v900, 4
  %v902 = vadd.f32 %v900, %v901
  %v903 = vrot.slane %v902, 2
  %v904 = vadd.f32 %v902, %v903
  %v905 = vrot.slane %v904, 1
  %v906 = vadd.f32 %v904, %v905
  %907 = vrot.lane.b32.xlu0 %v906, 32
  %v908 = vpop.permute.xlu0 %907
  %v909 = vadd.f32 %v906, %v908
  %910 = vrot.lane.b32.xlu0 %v906, 64
  %v911 = vpop.permute.xlu0 %910
  %v912 = vadd.f32 %v909, %v911
  %913 = vrot.lane.b32.xlu0 %v906, 96
  %v914 = vpop.permute.xlu0 %913
  %v915 = vadd.f32 %v912, %v914
  %v916 = vmul.f32 %v915, 0.00048828125
  %v917 = vadd.f32 %v916, 1e-05
  %v918 = vrsqrt.pop %v917
  %v919 = vld [vmem:[%s2] sm:$0x1]
  %v920 = vmul.f32 %v919, %v918
  %v922 = vlaneseq
  %v923 = vshrl.u32 %v922, 7
  %v924 = vsub.s32 0, %v923
  %v925 = vrot.slane %v920, %v924
  %v927 = vmul.f32 %v710, %v925
  %v928 = vmul.f32 %v711, %v925
  %v929 = vmul.f32 %v712, %v925
  %v930 = vmul.f32 %v713, %v925
  %v931 = vmul.f32 %v714, %v925
  %v932 = vmul.f32 %v715, %v925
  %v933 = vmul.f32 %v716, %v925
  %v934 = vmul.f32 %v717, %v925
  %v935 = vmul.f32 %v718, %v925
  %v936 = vmul.f32 %v719, %v925
  %v937 = vmul.f32 %v720, %v925
  %v938 = vmul.f32 %v721, %v925
  %v939 = vmul.f32 %v722, %v925
  %v940 = vmul.f32 %v723, %v925
  %v941 = vmul.f32 %v724, %v925
  %v942 = vmul.f32 %v725, %v925
  %v943 = vmul.f32 %v726, %v925
  %v944 = vmul.f32 %v727, %v925
  %v945 = vmul.f32 %v728, %v925
  %v946 = vmul.f32 %v729, %v925
  %v947 = vmul.f32 %v730, %v925
  %v948 = vmul.f32 %v731, %v925
  %v949 = vmul.f32 %v732, %v925
  %v950 = vmul.f32 %v733, %v925
  %v951 = vmul.f32 %v734, %v925
  %v952 = vmul.f32 %v735, %v925
  %v953 = vmul.f32 %v736, %v925
  %v954 = vmul.f32 %v737, %v925
  %v955 = vmul.f32 %v738, %v925
  %v956 = vmul.f32 %v739, %v925
  %v957 = vmul.f32 %v740, %v925
  %v958 = vmul.f32 %v741, %v925
  %v959 = vmul.f32 %v742, %v925
  %v960 = vmul.f32 %v743, %v925
  %v961 = vmul.f32 %v744, %v925
  %v962 = vmul.f32 %v745, %v925
  %v963 = vmul.f32 %v746, %v925
  %v964 = vmul.f32 %v747, %v925
  %v965 = vmul.f32 %v748, %v925
  %v966 = vmul.f32 %v749, %v925
  %v967 = vmul.f32 %v750, %v925
  %v968 = vmul.f32 %v751, %v925
  %v969 = vmul.f32 %v752, %v925
  %v970 = vmul.f32 %v753, %v925
  %v971 = vmul.f32 %v754, %v925
  %v972 = vmul.f32 %v755, %v925
  %v973 = vmul.f32 %v756, %v925
  %v974 = vmul.f32 %v757, %v925
  %v975 = vmul.f32 %v758, %v925
  %v976 = vmul.f32 %v759, %v925
  %v977 = vmul.f32 %v760, %v925
  %v978 = vmul.f32 %v761, %v925
  %v979 = vmul.f32 %v762, %v925
  %v980 = vmul.f32 %v763, %v925
  %v981 = vmul.f32 %v764, %v925
  %v982 = vmul.f32 %v765, %v925
  %v983 = vmul.f32 %v766, %v925
  %v984 = vmul.f32 %v767, %v925
  %v985 = vmul.f32 %v768, %v925
  %v986 = vmul.f32 %v769, %v925
  %v987 = vmul.f32 %v770, %v925
  %v988 = vmul.f32 %v771, %v925
  %v989 = vmul.f32 %v772, %v925
  %v990 = vmul.f32 %v773, %v925
  %v991 = vld [vmem:[%s3] sm:$0x1]
  %v993 = vlaneseq
  %v994 = vshrl.u32 %v993, 7
  %v995 = vsub.s32 0, %v994
  %v996 = vrot.slane %v991, %v995
  %v998 = vadd.f32 %v927, %v996
  %v999 = vadd.f32 %v928, %v996
  %v1000 = vadd.f32 %v929, %v996
  %v1001 = vadd.f32 %v930, %v996
  %v1002 = vadd.f32 %v931, %v996
  %v1003 = vadd.f32 %v932, %v996
  %v1004 = vadd.f32 %v933, %v996
  %v1005 = vadd.f32 %v934, %v996
  %v1006 = vadd.f32 %v935, %v996
  %v1007 = vadd.f32 %v936, %v996
  %v1008 = vadd.f32 %v937, %v996
  %v1009 = vadd.f32 %v938, %v996
  %v1010 = vadd.f32 %v939, %v996
  %v1011 = vadd.f32 %v940, %v996
  %v1012 = vadd.f32 %v941, %v996
  %v1013 = vadd.f32 %v942, %v996
  %v1014 = vadd.f32 %v943, %v996
  %v1015 = vadd.f32 %v944, %v996
  %v1016 = vadd.f32 %v945, %v996
  %v1017 = vadd.f32 %v946, %v996
  %v1018 = vadd.f32 %v947, %v996
  %v1019 = vadd.f32 %v948, %v996
  %v1020 = vadd.f32 %v949, %v996
  %v1021 = vadd.f32 %v950, %v996
  %v1022 = vadd.f32 %v951, %v996
  %v1023 = vadd.f32 %v952, %v996
  %v1024 = vadd.f32 %v953, %v996
  %v1025 = vadd.f32 %v954, %v996
  %v1026 = vadd.f32 %v955, %v996
  %v1027 = vadd.f32 %v956, %v996
  %v1028 = vadd.f32 %v957, %v996
  %v1029 = vadd.f32 %v958, %v996
  %v1030 = vadd.f32 %v959, %v996
  %v1031 = vadd.f32 %v960, %v996
  %v1032 = vadd.f32 %v961, %v996
  %v1033 = vadd.f32 %v962, %v996
  %v1034 = vadd.f32 %v963, %v996
  %v1035 = vadd.f32 %v964, %v996
  %v1036 = vadd.f32 %v965, %v996
  %v1037 = vadd.f32 %v966, %v996
  %v1038 = vadd.f32 %v967, %v996
  %v1039 = vadd.f32 %v968, %v996
  %v1040 = vadd.f32 %v969, %v996
  %v1041 = vadd.f32 %v970, %v996
  %v1042 = vadd.f32 %v971, %v996
  %v1043 = vadd.f32 %v972, %v996
  %v1044 = vadd.f32 %v973, %v996
  %v1045 = vadd.f32 %v974, %v996
  %v1046 = vadd.f32 %v975, %v996
  %v1047 = vadd.f32 %v976, %v996
  %v1048 = vadd.f32 %v977, %v996
  %v1049 = vadd.f32 %v978, %v996
  %v1050 = vadd.f32 %v979, %v996
  %v1051 = vadd.f32 %v980, %v996
  %v1052 = vadd.f32 %v981, %v996
  %v1053 = vadd.f32 %v982, %v996
  %v1054 = vadd.f32 %v983, %v996
  %v1055 = vadd.f32 %v984, %v996
  %v1056 = vadd.f32 %v985, %v996
  %v1057 = vadd.f32 %v986, %v996
  %v1058 = vadd.f32 %v987, %v996
  %v1059 = vadd.f32 %v988, %v996
  %v1060 = vadd.f32 %v989, %v996
  %v1061 = vadd.f32 %v990, %v996
  %vm1062 = vcmp.ge.f32.partialorder %v998, 0.0
  %vm1063 = vcmp.ge.f32.partialorder %v999, 0.0
  %vm1064 = vcmp.ge.f32.partialorder %v1000, 0.0
  %vm1065 = vcmp.ge.f32.partialorder %v1001, 0.0
  %vm1066 = vcmp.ge.f32.partialorder %v1002, 0.0
  %vm1067 = vcmp.ge.f32.partialorder %v1003, 0.0
  %vm1068 = vcmp.ge.f32.partialorder %v1004, 0.0
  %vm1069 = vcmp.ge.f32.partialorder %v1005, 0.0
  %vm1070 = vcmp.ge.f32.partialorder %v1006, 0.0
  %vm1071 = vcmp.ge.f32.partialorder %v1007, 0.0
  %vm1072 = vcmp.ge.f32.partialorder %v1008, 0.0
  %vm1073 = vcmp.ge.f32.partialorder %v1009, 0.0
  %vm1074 = vcmp.ge.f32.partialorder %v1010, 0.0
  %vm1075 = vcmp.ge.f32.partialorder %v1011, 0.0
  %vm1076 = vcmp.ge.f32.partialorder %v1012, 0.0
  %vm1077 = vcmp.ge.f32.partialorder %v1013, 0.0
  %vm1078 = vcmp.ge.f32.partialorder %v1014, 0.0
  %vm1079 = vcmp.ge.f32.partialorder %v1015, 0.0
  %vm1080 = vcmp.ge.f32.partialorder %v1016, 0.0
  %vm1081 = vcmp.ge.f32.partialorder %v1017, 0.0
  %vm1082 = vcmp.ge.f32.partialorder %v1018, 0.0
  %vm1083 = vcmp.ge.f32.partialorder %v1019, 0.0
  %vm1084 = vcmp.ge.f32.partialorder %v1020, 0.0
  %vm1085 = vcmp.ge.f32.partialorder %v1021, 0.0
  %vm1086 = vcmp.ge.f32.partialorder %v1022, 0.0
  %vm1087 = vcmp.ge.f32.partialorder %v1023, 0.0
  %vm1088 = vcmp.ge.f32.partialorder %v1024, 0.0
  %vm1089 = vcmp.ge.f32.partialorder %v1025, 0.0
  %vm1090 = vcmp.ge.f32.partialorder %v1026, 0.0
  %vm1091 = vcmp.ge.f32.partialorder %v1027, 0.0
  %vm1092 = vcmp.ge.f32.partialorder %v1028, 0.0
  %vm1093 = vcmp.ge.f32.partialorder %v1029, 0.0
  %vm1094 = vcmp.ge.f32.partialorder %v1030, 0.0
  %vm1095 = vcmp.ge.f32.partialorder %v1031, 0.0
  %vm1096 = vcmp.ge.f32.partialorder %v1032, 0.0
  %vm1097 = vcmp.ge.f32.partialorder %v1033, 0.0
  %vm1098 = vcmp.ge.f32.partialorder %v1034, 0.0
  %vm1099 = vcmp.ge.f32.partialorder %v1035, 0.0
  %vm1100 = vcmp.ge.f32.partialorder %v1036, 0.0
  %vm1101 = vcmp.ge.f32.partialorder %v1037, 0.0
  %vm1102 = vcmp.ge.f32.partialorder %v1038, 0.0
  %vm1103 = vcmp.ge.f32.partialorder %v1039, 0.0
  %vm1104 = vcmp.ge.f32.partialorder %v1040, 0.0
  %vm1105 = vcmp.ge.f32.partialorder %v1041, 0.0
  %vm1106 = vcmp.ge.f32.partialorder %v1042, 0.0
  %vm1107 = vcmp.ge.f32.partialorder %v1043, 0.0
  %vm1108 = vcmp.ge.f32.partialorder %v1044, 0.0
  %vm1109 = vcmp.ge.f32.partialorder %v1045, 0.0
  %vm1110 = vcmp.ge.f32.partialorder %v1046, 0.0
  %vm1111 = vcmp.ge.f32.partialorder %v1047, 0.0
  %vm1112 = vcmp.ge.f32.partialorder %v1048, 0.0
  %vm1113 = vcmp.ge.f32.partialorder %v1049, 0.0
  %vm1114 = vcmp.ge.f32.partialorder %v1050, 0.0
  %vm1115 = vcmp.ge.f32.partialorder %v1051, 0.0
  %vm1116 = vcmp.ge.f32.partialorder %v1052, 0.0
  %vm1117 = vcmp.ge.f32.partialorder %v1053, 0.0
  %vm1118 = vcmp.ge.f32.partialorder %v1054, 0.0
  %vm1119 = vcmp.ge.f32.partialorder %v1055, 0.0
  %vm1120 = vcmp.ge.f32.partialorder %v1056, 0.0
  %vm1121 = vcmp.ge.f32.partialorder %v1057, 0.0
  %vm1122 = vcmp.ge.f32.partialorder %v1058, 0.0
  %vm1123 = vcmp.ge.f32.partialorder %v1059, 0.0
  %vm1124 = vcmp.ge.f32.partialorder %v1060, 0.0
  %vm1125 = vcmp.ge.f32.partialorder %v1061, 0.0
  %v1126 = vmul.f32 %v998, 0.01
  %v1127 = vmul.f32 %v999, 0.01
  %v1128 = vmul.f32 %v1000, 0.01
  %v1129 = vmul.f32 %v1001, 0.01
  %v1130 = vmul.f32 %v1002, 0.01
  %v1131 = vmul.f32 %v1003, 0.01
  %v1132 = vmul.f32 %v1004, 0.01
  %v1133 = vmul.f32 %v1005, 0.01
  %v1134 = vmul.f32 %v1006, 0.01
  %v1135 = vmul.f32 %v1007, 0.01
  %v1136 = vmul.f32 %v1008, 0.01
  %v1137 = vmul.f32 %v1009, 0.01
  %v1138 = vmul.f32 %v1010, 0.01
  %v1139 = vmul.f32 %v1011, 0.01
  %v1140 = vmul.f32 %v1012, 0.01
  %v1141 = vmul.f32 %v1013, 0.01
  %v1142 = vmul.f32 %v1014, 0.01
  %v1143 = vmul.f32 %v1015, 0.01
  %v1144 = vmul.f32 %v1016, 0.01
  %v1145 = vmul.f32 %v1017, 0.01
  %v1146 = vmul.f32 %v1018, 0.01
  %v1147 = vmul.f32 %v1019, 0.01
  %v1148 = vmul.f32 %v1020, 0.01
  %v1149 = vmul.f32 %v1021, 0.01
  %v1150 = vmul.f32 %v1022, 0.01
  %v1151 = vmul.f32 %v1023, 0.01
  %v1152 = vmul.f32 %v1024, 0.01
  %v1153 = vmul.f32 %v1025, 0.01
  %v1154 = vmul.f32 %v1026, 0.01
  %v1155 = vmul.f32 %v1027, 0.01
  %v1156 = vmul.f32 %v1028, 0.01
  %v1157 = vmul.f32 %v1029, 0.01
  %v1158 = vmul.f32 %v1030, 0.01
  %v1159 = vmul.f32 %v1031, 0.01
  %v1160 = vmul.f32 %v1032, 0.01
  %v1161 = vmul.f32 %v1033, 0.01
  %v1162 = vmul.f32 %v1034, 0.01
  %v1163 = vmul.f32 %v1035, 0.01
  %v1164 = vmul.f32 %v1036, 0.01
  %v1165 = vmul.f32 %v1037, 0.01
  %v1166 = vmul.f32 %v1038, 0.01
  %v1167 = vmul.f32 %v1039, 0.01
  %v1168 = vmul.f32 %v1040, 0.01
  %v1169 = vmul.f32 %v1041, 0.01
  %v1170 = vmul.f32 %v1042, 0.01
  %v1171 = vmul.f32 %v1043, 0.01
  %v1172 = vmul.f32 %v1044, 0.01
  %v1173 = vmul.f32 %v1045, 0.01
  %v1174 = vmul.f32 %v1046, 0.01
  %v1175 = vmul.f32 %v1047, 0.01
  %v1176 = vmul.f32 %v1048, 0.01
  %v1177 = vmul.f32 %v1049, 0.01
  %v1178 = vmul.f32 %v1050, 0.01
  %v1179 = vmul.f32 %v1051, 0.01
  %v1180 = vmul.f32 %v1052, 0.01
  %v1181 = vmul.f32 %v1053, 0.01
  %v1182 = vmul.f32 %v1054, 0.01
  %v1183 = vmul.f32 %v1055, 0.01
  %v1184 = vmul.f32 %v1056, 0.01
  %v1185 = vmul.f32 %v1057, 0.01
  %v1186 = vmul.f32 %v1058, 0.01
  %v1187 = vmul.f32 %v1059, 0.01
  %v1188 = vmul.f32 %v1060, 0.01
  %v1189 = vmul.f32 %v1061, 0.01
  %v1190 = vsel %vm1062, %v998, %v1126
  %v1191 = vsel %vm1063, %v999, %v1127
  %v1192 = vsel %vm1064, %v1000, %v1128
  %v1193 = vsel %vm1065, %v1001, %v1129
  %v1194 = vsel %vm1066, %v1002, %v1130
  %v1195 = vsel %vm1067, %v1003, %v1131
  %v1196 = vsel %vm1068, %v1004, %v1132
  %v1197 = vsel %vm1069, %v1005, %v1133
  %v1198 = vsel %vm1070, %v1006, %v1134
  %v1199 = vsel %vm1071, %v1007, %v1135
  %v1200 = vsel %vm1072, %v1008, %v1136
  %v1201 = vsel %vm1073, %v1009, %v1137
  %v1202 = vsel %vm1074, %v1010, %v1138
  %v1203 = vsel %vm1075, %v1011, %v1139
  %v1204 = vsel %vm1076, %v1012, %v1140
  %v1205 = vsel %vm1077, %v1013, %v1141
  %v1206 = vsel %vm1078, %v1014, %v1142
  %v1207 = vsel %vm1079, %v1015, %v1143
  %v1208 = vsel %vm1080, %v1016, %v1144
  %v1209 = vsel %vm1081, %v1017, %v1145
  %v1210 = vsel %vm1082, %v1018, %v1146
  %v1211 = vsel %vm1083, %v1019, %v1147
  %v1212 = vsel %vm1084, %v1020, %v1148
  %v1213 = vsel %vm1085, %v1021, %v1149
  %v1214 = vsel %vm1086, %v1022, %v1150
  %v1215 = vsel %vm1087, %v1023, %v1151
  %v1216 = vsel %vm1088, %v1024, %v1152
  %v1217 = vsel %vm1089, %v1025, %v1153
  %v1218 = vsel %vm1090, %v1026, %v1154
  %v1219 = vsel %vm1091, %v1027, %v1155
  %v1220 = vsel %vm1092, %v1028, %v1156
  %v1221 = vsel %vm1093, %v1029, %v1157
  %v1222 = vsel %vm1094, %v1030, %v1158
  %v1223 = vsel %vm1095, %v1031, %v1159
  %v1224 = vsel %vm1096, %v1032, %v1160
  %v1225 = vsel %vm1097, %v1033, %v1161
  %v1226 = vsel %vm1098, %v1034, %v1162
  %v1227 = vsel %vm1099, %v1035, %v1163
  %v1228 = vsel %vm1100, %v1036, %v1164
  %v1229 = vsel %vm1101, %v1037, %v1165
  %v1230 = vsel %vm1102, %v1038, %v1166
  %v1231 = vsel %vm1103, %v1039, %v1167
  %v1232 = vsel %vm1104, %v1040, %v1168
  %v1233 = vsel %vm1105, %v1041, %v1169
  %v1234 = vsel %vm1106, %v1042, %v1170
  %v1235 = vsel %vm1107, %v1043, %v1171
  %v1236 = vsel %vm1108, %v1044, %v1172
  %v1237 = vsel %vm1109, %v1045, %v1173
  %v1238 = vsel %vm1110, %v1046, %v1174
  %v1239 = vsel %vm1111, %v1047, %v1175
  %v1240 = vsel %vm1112, %v1048, %v1176
  %v1241 = vsel %vm1113, %v1049, %v1177
  %v1242 = vsel %vm1114, %v1050, %v1178
  %v1243 = vsel %vm1115, %v1051, %v1179
  %v1244 = vsel %vm1116, %v1052, %v1180
  %v1245 = vsel %vm1117, %v1053, %v1181
  %v1246 = vsel %vm1118, %v1054, %v1182
  %v1247 = vsel %vm1119, %v1055, %v1183
  %v1248 = vsel %vm1120, %v1056, %v1184
  %v1249 = vsel %vm1121, %v1057, %v1185
  %v1250 = vsel %vm1122, %v1058, %v1186
  %v1251 = vsel %vm1123, %v1059, %v1187
  %v1252 = vsel %vm1124, %v1060, %v1188
  %v1253 = vsel %vm1125, %v1061, %v1189
  %v1254 = vpack.c.bf16 %v1191, %v1190
  %v1255 = vpack.c.bf16 %v1193, %v1192
  %v1256 = vpack.c.bf16 %v1195, %v1194
  %v1257 = vpack.c.bf16 %v1197, %v1196
  %v1258 = vpack.c.bf16 %v1199, %v1198
  %v1259 = vpack.c.bf16 %v1201, %v1200
  %v1260 = vpack.c.bf16 %v1203, %v1202
  %v1261 = vpack.c.bf16 %v1205, %v1204
  %v1262 = vpack.c.bf16 %v1207, %v1206
  %v1263 = vpack.c.bf16 %v1209, %v1208
  %v1264 = vpack.c.bf16 %v1211, %v1210
  %v1265 = vpack.c.bf16 %v1213, %v1212
  %v1266 = vpack.c.bf16 %v1215, %v1214
  %v1267 = vpack.c.bf16 %v1217, %v1216
  %v1268 = vpack.c.bf16 %v1219, %v1218
  %v1269 = vpack.c.bf16 %v1221, %v1220
  %v1270 = vpack.c.bf16 %v1223, %v1222
  %v1271 = vpack.c.bf16 %v1225, %v1224
  %v1272 = vpack.c.bf16 %v1227, %v1226
  %v1273 = vpack.c.bf16 %v1229, %v1228
  %v1274 = vpack.c.bf16 %v1231, %v1230
  %v1275 = vpack.c.bf16 %v1233, %v1232
  %v1276 = vpack.c.bf16 %v1235, %v1234
  %v1277 = vpack.c.bf16 %v1237, %v1236
  %v1278 = vpack.c.bf16 %v1239, %v1238
  %v1279 = vpack.c.bf16 %v1241, %v1240
  %v1280 = vpack.c.bf16 %v1243, %v1242
  %v1281 = vpack.c.bf16 %v1245, %v1244
  %v1282 = vpack.c.bf16 %v1247, %v1246
  %v1283 = vpack.c.bf16 %v1249, %v1248
  %v1284 = vpack.c.bf16 %v1251, %v1250
  %v1285 = vpack.c.bf16 %v1253, %v1252
  %v1318 = vunpack.c.l.b16 %v1254
  %v1319 = vunpack.c.h.b16 %v1254
  %v1320 = vunpack.c.l.b16 %v1255
  %v1321 = vunpack.c.h.b16 %v1255
  %v1322 = vunpack.c.l.b16 %v1256
  %v1323 = vunpack.c.h.b16 %v1256
  %v1324 = vunpack.c.l.b16 %v1257
  %v1325 = vunpack.c.h.b16 %v1257
  %v1326 = vunpack.c.l.b16 %v1258
  %v1327 = vunpack.c.h.b16 %v1258
  %v1328 = vunpack.c.l.b16 %v1259
  %v1329 = vunpack.c.h.b16 %v1259
  %v1330 = vunpack.c.l.b16 %v1260
  %v1331 = vunpack.c.h.b16 %v1260
  %v1332 = vunpack.c.l.b16 %v1261
  %v1333 = vunpack.c.h.b16 %v1261
  %v1334 = vunpack.c.l.b16 %v1262
  %v1335 = vunpack.c.h.b16 %v1262
  %v1336 = vunpack.c.l.b16 %v1263
  %v1337 = vunpack.c.h.b16 %v1263
  %v1338 = vunpack.c.l.b16 %v1264
  %v1339 = vunpack.c.h.b16 %v1264
  %v1340 = vunpack.c.l.b16 %v1265
  %v1341 = vunpack.c.h.b16 %v1265
  %v1342 = vunpack.c.l.b16 %v1266
  %v1343 = vunpack.c.h.b16 %v1266
  %v1344 = vunpack.c.l.b16 %v1267
  %v1345 = vunpack.c.h.b16 %v1267
  %v1346 = vunpack.c.l.b16 %v1268
  %v1347 = vunpack.c.h.b16 %v1268
  %v1348 = vunpack.c.l.b16 %v1269
  %v1349 = vunpack.c.h.b16 %v1269
  %v1350 = vunpack.c.l.b16 %v1270
  %v1351 = vunpack.c.h.b16 %v1270
  %v1352 = vunpack.c.l.b16 %v1271
  %v1353 = vunpack.c.h.b16 %v1271
  %v1354 = vunpack.c.l.b16 %v1272
  %v1355 = vunpack.c.h.b16 %v1272
  %v1356 = vunpack.c.l.b16 %v1273
  %v1357 = vunpack.c.h.b16 %v1273
  %v1358 = vunpack.c.l.b16 %v1274
  %v1359 = vunpack.c.h.b16 %v1274
  %v1360 = vunpack.c.l.b16 %v1275
  %v1361 = vunpack.c.h.b16 %v1275
  %v1362 = vunpack.c.l.b16 %v1276
  %v1363 = vunpack.c.h.b16 %v1276
  %v1364 = vunpack.c.l.b16 %v1277
  %v1365 = vunpack.c.h.b16 %v1277
  %v1366 = vunpack.c.l.b16 %v1278
  %v1367 = vunpack.c.h.b16 %v1278
  %v1368 = vunpack.c.l.b16 %v1279
  %v1369 = vunpack.c.h.b16 %v1279
  %v1370 = vunpack.c.l.b16 %v1280
  %v1371 = vunpack.c.h.b16 %v1280
  %v1372 = vunpack.c.l.b16 %v1281
  %v1373 = vunpack.c.h.b16 %v1281
  %v1374 = vunpack.c.l.b16 %v1282
  %v1375 = vunpack.c.h.b16 %v1282
  %v1376 = vunpack.c.l.b16 %v1283
  %v1377 = vunpack.c.h.b16 %v1283
  %v1378 = vunpack.c.l.b16 %v1284
  %v1379 = vunpack.c.h.b16 %v1284
  %v1380 = vunpack.c.l.b16 %v1285
  %v1381 = vunpack.c.h.b16 %v1285
  %v1382 = vpack.c.b16 %v1318, %v1318
  %v1383 = vpack.c.b16 %v1319, %v1319
  %v1384 = vpack.c.b16 %v1320, %v1320
  %v1385 = vpack.c.b16 %v1321, %v1321
  %v1386 = vpack.c.b16 %v1322, %v1322
  %v1387 = vpack.c.b16 %v1323, %v1323
  %v1388 = vpack.c.b16 %v1324, %v1324
  %v1389 = vpack.c.b16 %v1325, %v1325
  %v1390 = vpack.c.b16 %v1326, %v1326
  %v1391 = vpack.c.b16 %v1327, %v1327
  %v1392 = vpack.c.b16 %v1328, %v1328
  %v1393 = vpack.c.b16 %v1329, %v1329
  %v1394 = vpack.c.b16 %v1330, %v1330
  %v1395 = vpack.c.b16 %v1331, %v1331
  %v1396 = vpack.c.b16 %v1332, %v1332
  %v1397 = vpack.c.b16 %v1333, %v1333
  %v1398 = vpack.c.b16 %v1334, %v1334
  %v1399 = vpack.c.b16 %v1335, %v1335
  %v1400 = vpack.c.b16 %v1336, %v1336
  %v1401 = vpack.c.b16 %v1337, %v1337
  %v1402 = vpack.c.b16 %v1338, %v1338
  %v1403 = vpack.c.b16 %v1339, %v1339
  %v1404 = vpack.c.b16 %v1340, %v1340
  %v1405 = vpack.c.b16 %v1341, %v1341
  %v1406 = vpack.c.b16 %v1342, %v1342
  %v1407 = vpack.c.b16 %v1343, %v1343
  %v1408 = vpack.c.b16 %v1344, %v1344
  %v1409 = vpack.c.b16 %v1345, %v1345
  %v1410 = vpack.c.b16 %v1346, %v1346
  %v1411 = vpack.c.b16 %v1347, %v1347
  %v1412 = vpack.c.b16 %v1348, %v1348
  %v1413 = vpack.c.b16 %v1349, %v1349
  %v1414 = vpack.c.b16 %v1350, %v1350
  %v1415 = vpack.c.b16 %v1351, %v1351
  %v1416 = vpack.c.b16 %v1352, %v1352
  %v1417 = vpack.c.b16 %v1353, %v1353
  %v1418 = vpack.c.b16 %v1354, %v1354
  %v1419 = vpack.c.b16 %v1355, %v1355
  %v1420 = vpack.c.b16 %v1356, %v1356
  %v1421 = vpack.c.b16 %v1357, %v1357
  %v1422 = vpack.c.b16 %v1358, %v1358
  %v1423 = vpack.c.b16 %v1359, %v1359
  %v1424 = vpack.c.b16 %v1360, %v1360
  %v1425 = vpack.c.b16 %v1361, %v1361
  %v1426 = vpack.c.b16 %v1362, %v1362
  %v1427 = vpack.c.b16 %v1363, %v1363
  %v1428 = vpack.c.b16 %v1364, %v1364
  %v1429 = vpack.c.b16 %v1365, %v1365
  %v1430 = vpack.c.b16 %v1366, %v1366
  %v1431 = vpack.c.b16 %v1367, %v1367
  %v1432 = vpack.c.b16 %v1368, %v1368
  %v1433 = vpack.c.b16 %v1369, %v1369
  %v1434 = vpack.c.b16 %v1370, %v1370
  %v1435 = vpack.c.b16 %v1371, %v1371
  %v1436 = vpack.c.b16 %v1372, %v1372
  %v1437 = vpack.c.b16 %v1373, %v1373
  %v1438 = vpack.c.b16 %v1374, %v1374
  %v1439 = vpack.c.b16 %v1375, %v1375
  %v1440 = vpack.c.b16 %v1376, %v1376
  %v1441 = vpack.c.b16 %v1377, %v1377
  %v1442 = vpack.c.b16 %v1378, %v1378
  %v1443 = vpack.c.b16 %v1379, %v1379
  %v1444 = vpack.c.b16 %v1380, %v1380
  %v1445 = vpack.c.b16 %v1381, %v1381
  %1510 = vst [vmem:[%s4] sm:$0xf] %v1382
  %1511 = vst [vmem:[%s4 + $0x4] sm:$0xf] %v1383
  %1512 = vst [vmem:[%s4 + $0x8] sm:$0xf] %v1384
  %1513 = vst [vmem:[%s4 + $0xc] sm:$0xf] %v1385
  %1514 = vst [vmem:[%s4 + $0x10] sm:$0xf] %v1386
  %1515 = vst [vmem:[%s4 + $0x14] sm:$0xf] %v1387
  %1516 = vst [vmem:[%s4 + $0x18] sm:$0xf] %v1388
  %1517 = vst [vmem:[%s4 + $0x1c] sm:$0xf] %v1389
  %1518 = vst [vmem:[%s4 + $0x20] sm:$0xf] %v1390
  %1519 = vst [vmem:[%s4 + $0x24] sm:$0xf] %v1391
  %1520 = vst [vmem:[%s4 + $0x28] sm:$0xf] %v1392
  %1521 = vst [vmem:[%s4 + $0x2c] sm:$0xf] %v1393
  %1522 = vst [vmem:[%s4 + $0x30] sm:$0xf] %v1394
  %1523 = vst [vmem:[%s4 + $0x34] sm:$0xf] %v1395
  %1524 = vst [vmem:[%s4 + $0x38] sm:$0xf] %v1396
  %1525 = vst [vmem:[%s4 + $0x3c] sm:$0xf] %v1397
  %1526 = vst [vmem:[%s4 + $0x40] sm:$0xf] %v1398
  %1527 = vst [vmem:[%s4 + $0x44] sm:$0xf] %v1399
  %1528 = vst [vmem:[%s4 + $0x48] sm:$0xf] %v1400
  %1529 = vst [vmem:[%s4 + $0x4c] sm:$0xf] %v1401
  %1530 = vst [vmem:[%s4 + $0x50] sm:$0xf] %v1402
  %1531 = vst [vmem:[%s4 + $0x54] sm:$0xf] %v1403
  %1532 = vst [vmem:[%s4 + $0x58] sm:$0xf] %v1404
  %1533 = vst [vmem:[%s4 + $0x5c] sm:$0xf] %v1405
  %1534 = vst [vmem:[%s4 + $0x60] sm:$0xf] %v1406
  %1535 = vst [vmem:[%s4 + $0x64] sm:$0xf] %v1407
  %1536 = vst [vmem:[%s4 + $0x68] sm:$0xf] %v1408
  %1537 = vst [vmem:[%s4 + $0x6c] sm:$0xf] %v1409
  %1538 = vst [vmem:[%s4 + $0x70] sm:$0xf] %v1410
  %1539 = vst [vmem:[%s4 + $0x74] sm:$0xf] %v1411
  %1540 = vst [vmem:[%s4 + $0x78] sm:$0xf] %v1412
  %1541 = vst [vmem:[%s4 + $0x7c] sm:$0xf] %v1413
  %1542 = vst [vmem:[%s4 + $0x80] sm:$0xf] %v1414
  %1543 = vst [vmem:[%s4 + $0x84] sm:$0xf] %v1415
  %1544 = vst [vmem:[%s4 + $0x88] sm:$0xf] %v1416
  %1545 = vst [vmem:[%s4 + $0x8c] sm:$0xf] %v1417
  %1546 = vst [vmem:[%s4 + $0x90] sm:$0xf] %v1418
  %1547 = vst [vmem:[%s4 + $0x94] sm:$0xf] %v1419
  %1548 = vst [vmem:[%s4 + $0x98] sm:$0xf] %v1420
  %1549 = vst [vmem:[%s4 + $0x9c] sm:$0xf] %v1421
  %1550 = vst [vmem:[%s4 + $0xa0] sm:$0xf] %v1422
  %1551 = vst [vmem:[%s4 + $0xa4] sm:$0xf] %v1423
  %1552 = vst [vmem:[%s4 + $0xa8] sm:$0xf] %v1424
  %1553 = vst [vmem:[%s4 + $0xac] sm:$0xf] %v1425
  %1554 = vst [vmem:[%s4 + $0xb0] sm:$0xf] %v1426
  %1555 = vst [vmem:[%s4 + $0xb4] sm:$0xf] %v1427
  %1556 = vst [vmem:[%s4 + $0xb8] sm:$0xf] %v1428
  %1557 = vst [vmem:[%s4 + $0xbc] sm:$0xf] %v1429
  %1558 = vst [vmem:[%s4 + $0xc0] sm:$0xf] %v1430
  %1559 = vst [vmem:[%s4 + $0xc4] sm:$0xf] %v1431
  %1560 = vst [vmem:[%s4 + $0xc8] sm:$0xf] %v1432
  %1561 = vst [vmem:[%s4 + $0xcc] sm:$0xf] %v1433
  %1562 = vst [vmem:[%s4 + $0xd0] sm:$0xf] %v1434
  %1563 = vst [vmem:[%s4 + $0xd4] sm:$0xf] %v1435
  %1564 = vst [vmem:[%s4 + $0xd8] sm:$0xf] %v1436
  %1565 = vst [vmem:[%s4 + $0xdc] sm:$0xf] %v1437
  %1566 = vst [vmem:[%s4 + $0xe0] sm:$0xf] %v1438
  %1567 = vst [vmem:[%s4 + $0xe4] sm:$0xf] %v1439
  %1568 = vst [vmem:[%s4 + $0xe8] sm:$0xf] %v1440
  %1569 = vst [vmem:[%s4 + $0xec] sm:$0xf] %v1441
  %1570 = vst [vmem:[%s4 + $0xf0] sm:$0xf] %v1442
  %1571 = vst [vmem:[%s4 + $0xf4] sm:$0xf] %v1443
  %1572 = vst [vmem:[%s4 + $0xf8] sm:$0xf] %v1444
  %1573 = vst [vmem:[%s4 + $0xfc] sm:$0xf] %v1445
  // Predicated region
  $region18: #{decoder_forward.10} parent=0 // pred_check
    _
  $region19: #{decoder_forward.10} parent=0 // pred_check_branch
    %1575 = sbr.rel (0) target = $region21
  $region20: #{decoder_forward.10} parent=0 // pred_region
    _
  $region21: #{decoder_forward.10} parent=0 // pred_fallthru
    _
  // Predicated region
  $region22: #{decoder_forward.10} parent=0 // pred_check
    _
  $region23: #{decoder_forward.10} parent=0 // pred_check_branch
    %1577 = sbr.rel (0) target = $region25
  $region24: #{decoder_forward.10} parent=0 // pred_region
    _
  $region25: #{decoder_forward.10} parent=0 // pred_fallthru
    _

// kernel: decoder_forward.11
$region0: #{decoder_forward.11}
  #allocation0 [shape = 'u32[]', space=smem, size = 0x4, offset = 0x4, fixed_abs, tag = 'smem constant byte address 0x4 - core index']
  #allocation1 [shape = 'u32[144,128]{1,0:T(1,128)}', space=vmem, size = 0x12000, scoped, tag = 'internal scratch']
  %s0 = inlined_call_operand.vmem [shape: bf16[2048,288], index: 0, kind: input, shape index: {}]
  %s1 = inlined_call_operand.vmem [shape: bf16[288,128], index: 1, kind: input, shape index: {}]
  %s2 = inlined_call_operand.vmem [shape: f32[1,128], index: 2, kind: input, shape index: {}]
  %s3 = inlined_call_operand.vmem [shape: f32[2048,128], index: 3, kind: output, shape index: {}]
  %s4 = sld [smem:[#allocation0]]
  $region45: #{decoder_forward.11} parent=0
    _
  %s6 = ssub.s32 1, %s4
  %s7 = scalar_select 0, %s6, %s4
  loop: start=0, step=1, limit=4
  $region2: #{decoder_forward.11} parent=0 // loop_pre_header
    _
  $region3: #{decoder_forward.11} parent=0 // loop_header
    %s9 = sphi 0, %s13
    %p10 = scmp.ge.s32.totalorder %s9, 4
    %s19 = sphi 0, %s21
    %s22 = sphi 0, %s19
    %s23 = sphi 0, %s22
    %s39 = sphi 0, %s23
    %s43 = sphi 0, %s43
    %s45 = sphi 0, %s43
    %s46 = sphi 0, %s45
    %s60 = sphi 0, %s46
    %s64 = sphi 0, %s64
    %s66 = sphi 0, %s64
    %s67 = sphi 0, %s66
    %s81 = sphi 0, %s67
    %s87 = sphi 0, %s89
    %s90 = sphi 0, %s87
    %s91 = sphi 0, %s90
    %s107 = sphi 0, %s91
  $region4: #{decoder_forward.11} parent=0 // loop_header_branch
    %12 = sbr.rel (%p10) target = $region8
  $region5: #{decoder_forward.11} parent=0 // loop_body
    %s14 = ssub.s32 %s9, 1
    %s15 = ssub.s32 %s9, 2
    %s16 = sadd.s32 %s9, 1
    %s17 = ssub.s32 %s9, %s16
    %p18 = scmp.eq.s32.totalorder %s17, 0
    %s20 = sadd.s32 %s19, 1
    %s21 = scalar_select %p18, %s19, %s20
    %p24 = pneg %p18
    %p25 = scmp.eq.s32.totalorder %s9, 1
    %p26 = por %p24, %p25
    %p27 = scmp.ne.s32.totalorder %s19, %s22
    %p28 = scmp.eq.s32.totalorder %s9, 0
    %p29 = por %p27, %p28
    %p30 = scmp.ne.s32.totalorder %s19, %s22
    %p31 = scmp.eq.s32.totalorder %s14, 1
    %p32 = por %p30, %p31
    %p33 = scmp.ne.s32.totalorder %s22, %s23
    %p34 = scmp.eq.s32.totalorder %s14, 0
    %p35 = por %p33, %p34
    %p36 = scmp.ne.s32.totalorder %s22, %s23
    %p37 = scmp.eq.s32.totalorder %s15, 1
    %p38 = por %p36, %p37
    %p40 = scmp.ne.s32.totalorder %s23, %s39
    %p41 = scmp.eq.s32.totalorder %s15, 0
    %p42 = por %p40, %p41
    %s44 = sadd.s32 %s43, 1
    %p47 = scmp.eq.s32.totalorder %s9, 1
    %p48 = scmp.ne.s32.totalorder %s43, %s45
    %p49 = scmp.eq.s32.totalorder %s9, 0
    %p50 = por %p48, %p49
    %p51 = scmp.ne.s32.totalorder %s43, %s45
    %p52 = scmp.eq.s32.totalorder %s14, 1
    %p53 = por %p51, %p52
    %p54 = scmp.ne.s32.totalorder %s45, %s46
    %p55 = scmp.eq.s32.totalorder %s14, 0
    %p56 = por %p54, %p55
    %p57 = scmp.ne.s32.totalorder %s45, %s46
    %p58 = scmp.eq.s32.totalorder %s15, 1
    %p59 = por %p57, %p58
    %p61 = scmp.ne.s32.totalorder %s46, %s60
    %p62 = scmp.eq.s32.totalorder %s15, 0
    %p63 = por %p61, %p62
    %s65 = sadd.s32 %s64, 1
    %p68 = scmp.eq.s32.totalorder %s9, 1
    %p69 = scmp.ne.s32.totalorder %s64, %s66
    %p70 = scmp.eq.s32.totalorder %s9, 0
    %p71 = por %p69, %p70
    %p72 = scmp.ne.s32.totalorder %s64, %s66
    %p73 = scmp.eq.s32.totalorder %s14, 1
    %p74 = por %p72, %p73
    %p75 = scmp.ne.s32.totalorder %s66, %s67
    %p76 = scmp.eq.s32.totalorder %s14, 0
    %p77 = por %p75, %p76
    %p78 = scmp.ne.s32.totalorder %s66, %s67
    %p79 = scmp.eq.s32.totalorder %s15, 1
    %p80 = por %p78, %p79
    %p82 = scmp.ne.s32.totalorder %s67, %s81
    %p83 = scmp.eq.s32.totalorder %s15, 0
    %p84 = por %p82, %p83
    %s85 = ssub.s32 %s9, %s16
    %p86 = scmp.eq.s32.totalorder %s85, 0
    %s88 = sadd.s32 %s87, 1
    %s89 = scalar_select %p86, %s87, %s88
    %p92 = pneg %p86
    %p93 = scmp.eq.s32.totalorder %s9, 1
    %p94 = por %p92, %p93
    %p95 = scmp.ne.s32.totalorder %s87, %s90
    %p96 = scmp.eq.s32.totalorder %s9, 0
    %p97 = por %p95, %p96
    %p98 = scmp.ne.s32.totalorder %s87, %s90
    %p99 = scmp.eq.s32.totalorder %s14, 1
    %p100 = por %p98, %p99
    %p101 = scmp.ne.s32.totalorder %s90, %s91
    %p102 = scmp.eq.s32.totalorder %s14, 0
    %p103 = por %p101, %p102
    %p104 = scmp.ne.s32.totalorder %s90, %s91
    %p105 = scmp.eq.s32.totalorder %s15, 1
    %p106 = por %p104, %p105
    %p108 = scmp.ne.s32.totalorder %s91, %s107
    %p109 = scmp.eq.s32.totalorder %s15, 0
    %p110 = por %p108, %p109
    %p111 = scmp.le.s32.totalorder 1, %s9
    %p112 = scmp.lt.s32.totalorder %s9, 3
    %p113 = pnand %p111, %p112
    %p114 = pneg %p113
    // Predicated region
    $region9: #{decoder_forward.11} parent=5 // pred_check
      _
    $region10: #{decoder_forward.11} parent=5 // pred_check_branch
      %116 = sbr.rel (%p113) target = $region12
    $region11: #{decoder_forward.11} parent=5 // pred_region
      %s117 = ssub.s32 %s9, 1
      // Predicated region
      $region13: #{decoder_forward.11} parent=11 // pred_check
        %p118 = pneg %p56
      $region14: #{decoder_forward.11} parent=11 // pred_check_branch
        %120 = sbr.rel (%p118) target = $region16
      $region15: #{decoder_forward.11} parent=11 // pred_region
        _
      $region16: #{decoder_forward.11} parent=11 // pred_fallthru
        _
      // Predicated region
      $region17: #{decoder_forward.11} parent=11 // pred_check
        %p121 = pneg %p77
      $region18: #{decoder_forward.11} parent=11 // pred_check_branch
        %123 = sbr.rel (%p121) target = $region20
      $region19: #{decoder_forward.11} parent=11 // pred_region
        _
      $region20: #{decoder_forward.11} parent=11 // pred_fallthru
        _
    $region12: #{decoder_forward.11} parent=5 // pred_fallthru
      _
    %p124 = scmp.lt.s32.totalorder %s9, 2
    // Predicated region
    $region21: #{decoder_forward.11} parent=5 // pred_check
      %p125 = pneg %p124
    $region22: #{decoder_forward.11} parent=5 // pred_check_branch
      %127 = sbr.rel (%p125) target = $region24
    $region23: #{decoder_forward.11} parent=5 // pred_region
      // Predicated region
      $region25: #{decoder_forward.11} parent=23 // pred_check
        %p128 = pneg %p29
      $region26: #{decoder_forward.11} parent=23 // pred_check_branch
        %130 = sbr.rel (%p128) target = $region28
      $region27: #{decoder_forward.11} parent=23 // pred_region
        %s131 = smul.u32 128, %s9
        %p132 = scmp.lt.s32.totalorder %s131, 255
        %s133 = scalar_select %p132, %s131, 255
        %s134 = smul.addr %s133, 3
        %s135 = smul.addr %s134, 4
        %s136 = scalar_lea.vmem %s0, %s135
        %s137 = smul.u32 128, %s9
      $region28: #{decoder_forward.11} parent=23 // pred_fallthru
        _
    $region24: #{decoder_forward.11} parent=5 // pred_fallthru
      _
    %p138 = scmp.le.s32.totalorder 1, %s9
    %p139 = scmp.lt.s32.totalorder %s9, 3
    %p140 = pnand %p138, %p139
    %p141 = pneg %p140
    // Predicated region
    $region29: #{decoder_forward.11} parent=5 // pred_check
      _
    $region30: #{decoder_forward.11} parent=5 // pred_check_branch
      %143 = sbr.rel (%p140) target = $region32
    $region31: #{decoder_forward.11} parent=5 // pred_region
      %s144 = ssub.s32 %s9, 1
      %s145 = smul.u32 128, %s14
      %p146 = scmp.lt.s32.totalorder %s145, 255
      %s147 = scalar_select %p146, %s145, 255
      %s148 = smul.addr %s147, 3
      %s149 = smul.addr %s148, 4
      %s150 = scalar_lea.vmem %s0, %s149
      %p151 = pneg %p35
      %p152 = pneg %p32
      %p153 = pneg %p56
      %p154 = pneg %p53
      %p155 = pneg %p77
      %p156 = pneg %p74
      %p157 = pneg %p103
      %p158 = pneg %p100
      %s159 = smul.u32 128, %s14
      %p160 = scmp.lt.s32.totalorder %s159, 255
      %s161 = scalar_select %p160, %s159, 255
      %s162 = smul.addr %s161, 8
      %s163 = scalar_lea.vmem %s3, %s162
      %s164 = smul.u32 128, %s14
      %p165 = scmp.lt.s32.totalorder %s164, 255
      %s166 = scalar_select %p165, %s164, 255
      %s167 = smul.addr %s166, 3
      %s168 = smul.addr %s167, 4
      %s169 = scalar_lea.vmem %s0, %s168
      %s170 = smul.u32 128, %s14
      %s171 = smul.u32 128, %s14
      %p172 = scmp.lt.s32.totalorder %s171, 255
      %s173 = scalar_select %p172, %s171, 255
      %s174 = smul.addr %s173, 8
      %s175 = scalar_lea.vmem %s3, %s174
      %s176 = smul.u32 128, %s14
      %v178 = vld [vmem:[%s169] sm:$0xff]
      %v179 = vld [vmem:[%s169 + $0x8] sm:$0xf]
      %v180 = vld [vmem:[%s169 + $0xc] sm:$0xff]
      %v181 = vld [vmem:[%s169 + $0x14] sm:$0xf]
      %v182 = vld [vmem:[%s169 + $0x18] sm:$0xff]
      %v183 = vld [vmem:[%s169 + $0x20] sm:$0xf]
      %v184 = vld [vmem:[%s169 + $0x24] sm:$0xff]
      %v185 = vld [vmem:[%s169 + $0x2c] sm:$0xf]
      %v186 = vld [vmem:[%s169 + $0x30] sm:$0xff]
      %v187 = vld [vmem:[%s169 + $0x38] sm:$0xf]
      %v188 = vld [vmem:[%s169 + $0x3c] sm:$0xff]
      %v189 = vld [vmem:[%s169 + $0x44] sm:$0xf]
      %v190 = vld [vmem:[%s169 + $0x48] sm:$0xff]
      %v191 = vld [vmem:[%s169 + $0x50] sm:$0xf]
      %v192 = vld [vmem:[%s169 + $0x54] sm:$0xff]
      %v193 = vld [vmem:[%s169 + $0x5c] sm:$0xf]
      %v194 = vld [vmem:[%s169 + $0x60] sm:$0xff]
      %v195 = vld [vmem:[%s169 + $0x68] sm:$0xf]
      %v196 = vld [vmem:[%s169 + $0x6c] sm:$0xff]
      %v197 = vld [vmem:[%s169 + $0x74] sm:$0xf]
      %v198 = vld [vmem:[%s169 + $0x78] sm:$0xff]
      %v199 = vld [vmem:[%s169 + $0x80] sm:$0xf]
      %v200 = vld [vmem:[%s169 + $0x84] sm:$0xff]
      %v201 = vld [vmem:[%s169 + $0x8c] sm:$0xf]
      %v202 = vld [vmem:[%s169 + $0x90] sm:$0xff]
      %v203 = vld [vmem:[%s169 + $0x98] sm:$0xf]
      %v204 = vld [vmem:[%s169 + $0x9c] sm:$0xff]
      %v205 = vld [vmem:[%s169 + $0xa4] sm:$0xf]
      %v206 = vld [vmem:[%s169 + $0xa8] sm:$0xff]
      %v207 = vld [vmem:[%s169 + $0xb0] sm:$0xf]
      %v208 = vld [vmem:[%s169 + $0xb4] sm:$0xff]
      %v209 = vld [vmem:[%s169 + $0xbc] sm:$0xf]
      %v210 = vld [vmem:[%s169 + $0xc0] sm:$0xff]
      %v211 = vld [vmem:[%s169 + $0xc8] sm:$0xf]
      %v212 = vld [vmem:[%s169 + $0xcc] sm:$0xff]
      %v213 = vld [vmem:[%s169 + $0xd4] sm:$0xf]
      %v214 = vld [vmem:[%s169 + $0xd8] sm:$0xff]
      %v215 = vld [vmem:[%s169 + $0xe0] sm:$0xf]
      %v216 = vld [vmem:[%s169 + $0xe4] sm:$0xff]
      %v217 = vld [vmem:[%s169 + $0xec] sm:$0xf]
      %v218 = vld [vmem:[%s169 + $0xf0] sm:$0xff]
      %v219 = vld [vmem:[%s169 + $0xf8] sm:$0xf]
      %v220 = vld [vmem:[%s169 + $0xfc] sm:$0xff]
      %v221 = vld [vmem:[%s169 + $0x104] sm:$0xf]
      %v222 = vld [vmem:[%s169 + $0x108] sm:$0xff]
      %v223 = vld [vmem:[%s169 + $0x110] sm:$0xf]
      %v224 = vld [vmem:[%s169 + $0x114] sm:$0xff]
      %v225 = vld [vmem:[%s169 + $0x11c] sm:$0xf]
      %v226 = vld [vmem:[%s169 + $0x120] sm:$0xff]
      %v227 = vld [vmem:[%s169 + $0x128] sm:$0xf]
      %v228 = vld [vmem:[%s169 + $0x12c] sm:$0xff]
      %v229 = vld [vmem:[%s169 + $0x134] sm:$0xf]
      %v230 = vld [vmem:[%s169 + $0x138] sm:$0xff]
      %v231 = vld [vmem:[%s169 + $0x140] sm:$0xf]
      %v232 = vld [vmem:[%s169 + $0x144] sm:$0xff]
      %v233 = vld [vmem:[%s169 + $0x14c] sm:$0xf]
      %v234 = vld [vmem:[%s169 + $0x150] sm:$0xff]
      %v235 = vld [vmem:[%s169 + $0x158] sm:$0xf]
      %v236 = vld [vmem:[%s169 + $0x15c] sm:$0xff]
      %v237 = vld [vmem:[%s169 + $0x164] sm:$0xf]
      %v238 = vld [vmem:[%s169 + $0x168] sm:$0xff]
      %v239 = vld [vmem:[%s169 + $0x170] sm:$0xf]
      %v240 = vld [vmem:[%s169 + $0x174] sm:$0xff]
      %v241 = vld [vmem:[%s169 + $0x17c] sm:$0xf]
      %v242 = vld [vmem:[%s169 + $0x180] sm:$0xff]
      %v243 = vld [vmem:[%s169 + $0x188] sm:$0xf]
      %v244 = vld [vmem:[%s169 + $0x18c] sm:$0xff]
      %v245 = vld [vmem:[%s169 + $0x194] sm:$0xf]
      %v246 = vld [vmem:[%s169 + $0x198] sm:$0xff]
      %v247 = vld [vmem:[%s169 + $0x1a0] sm:$0xf]
      %v248 = vld [vmem:[%s169 + $0x1a4] sm:$0xff]
      %v249 = vld [vmem:[%s169 + $0x1ac] sm:$0xf]
      %v250 = vld [vmem:[%s169 + $0x1b0] sm:$0xff]
      %v251 = vld [vmem:[%s169 + $0x1b8] sm:$0xf]
      %v252 = vld [vmem:[%s169 + $0x1bc] sm:$0xff]
      %v253 = vld [vmem:[%s169 + $0x1c4] sm:$0xf]
      %v254 = vld [vmem:[%s169 + $0x1c8] sm:$0xff]
      %v255 = vld [vmem:[%s169 + $0x1d0] sm:$0xf]
      %v256 = vld [vmem:[%s169 + $0x1d4] sm:$0xff]
      %v257 = vld [vmem:[%s169 + $0x1dc] sm:$0xf]
      %v258 = vld [vmem:[%s169 + $0x1e0] sm:$0xff]
      %v259 = vld [vmem:[%s169 + $0x1e8] sm:$0xf]
      %v260 = vld [vmem:[%s169 + $0x1ec] sm:$0xff]
      %v261 = vld [vmem:[%s169 + $0x1f4] sm:$0xf]
      %v262 = vld [vmem:[%s169 + $0x1f8] sm:$0xff]
      %v263 = vld [vmem:[%s169 + $0x200] sm:$0xf]
      %v264 = vld [vmem:[%s169 + $0x204] sm:$0xff]
      %v265 = vld [vmem:[%s169 + $0x20c] sm:$0xf]
      %v266 = vld [vmem:[%s169 + $0x210] sm:$0xff]
      %v267 = vld [vmem:[%s169 + $0x218] sm:$0xf]
      %v268 = vld [vmem:[%s169 + $0x21c] sm:$0xff]
      %v269 = vld [vmem:[%s169 + $0x224] sm:$0xf]
      %v270 = vld [vmem:[%s169 + $0x228] sm:$0xff]
      %v271 = vld [vmem:[%s169 + $0x230] sm:$0xf]
      %v272 = vld [vmem:[%s169 + $0x234] sm:$0xff]
      %v273 = vld [vmem:[%s169 + $0x23c] sm:$0xf]
      %v274 = vld [vmem:[%s169 + $0x240] sm:$0xff]
      %v275 = vld [vmem:[%s169 + $0x248] sm:$0xf]
      %v276 = vld [vmem:[%s169 + $0x24c] sm:$0xff]
      %v277 = vld [vmem:[%s169 + $0x254] sm:$0xf]
      %v278 = vld [vmem:[%s169 + $0x258] sm:$0xff]
      %v279 = vld [vmem:[%s169 + $0x260] sm:$0xf]
      %v280 = vld [vmem:[%s169 + $0x264] sm:$0xff]
      %v281 = vld [vmem:[%s169 + $0x26c] sm:$0xf]
      %v282 = vld [vmem:[%s169 + $0x270] sm:$0xff]
      %v283 = vld [vmem:[%s169 + $0x278] sm:$0xf]
      %v284 = vld [vmem:[%s169 + $0x27c] sm:$0xff]
      %v285 = vld [vmem:[%s169 + $0x284] sm:$0xf]
      %v286 = vld [vmem:[%s169 + $0x288] sm:$0xff]
      %v287 = vld [vmem:[%s169 + $0x290] sm:$0xf]
      %v288 = vld [vmem:[%s169 + $0x294] sm:$0xff]
      %v289 = vld [vmem:[%s169 + $0x29c] sm:$0xf]
      %v290 = vld [vmem:[%s169 + $0x2a0] sm:$0xff]
      %v291 = vld [vmem:[%s169 + $0x2a8] sm:$0xf]
      %v292 = vld [vmem:[%s169 + $0x2ac] sm:$0xff]
      %v293 = vld [vmem:[%s169 + $0x2b4] sm:$0xf]
      %v294 = vld [vmem:[%s169 + $0x2b8] sm:$0xff]
      %v295 = vld [vmem:[%s169 + $0x2c0] sm:$0xf]
      %v296 = vld [vmem:[%s169 + $0x2c4] sm:$0xff]
      %v297 = vld [vmem:[%s169 + $0x2cc] sm:$0xf]
      %v298 = vld [vmem:[%s169 + $0x2d0] sm:$0xff]
      %v299 = vld [vmem:[%s169 + $0x2d8] sm:$0xf]
      %v300 = vld [vmem:[%s169 + $0x2dc] sm:$0xff]
      %v301 = vld [vmem:[%s169 + $0x2e4] sm:$0xf]
      %v302 = vld [vmem:[%s169 + $0x2e8] sm:$0xff]
      %v303 = vld [vmem:[%s169 + $0x2f0] sm:$0xf]
      %v304 = vld [vmem:[%s169 + $0x2f4] sm:$0xff]
      %v305 = vld [vmem:[%s169 + $0x2fc] sm:$0xf]
      %v306 = vld [vmem:[%s169 + $0x300] sm:$0xff]
      %v307 = vld [vmem:[%s169 + $0x308] sm:$0xf]
      %v308 = vld [vmem:[%s169 + $0x30c] sm:$0xff]
      %v309 = vld [vmem:[%s169 + $0x314] sm:$0xf]
      %v310 = vld [vmem:[%s169 + $0x318] sm:$0xff]
      %v311 = vld [vmem:[%s169 + $0x320] sm:$0xf]
      %v312 = vld [vmem:[%s169 + $0x324] sm:$0xff]
      %v313 = vld [vmem:[%s169 + $0x32c] sm:$0xf]
      %v314 = vld [vmem:[%s169 + $0x330] sm:$0xff]
      %v315 = vld [vmem:[%s169 + $0x338] sm:$0xf]
      %v316 = vld [vmem:[%s169 + $0x33c] sm:$0xff]
      %v317 = vld [vmem:[%s169 + $0x344] sm:$0xf]
      %v318 = vld [vmem:[%s169 + $0x348] sm:$0xff]
      %v319 = vld [vmem:[%s169 + $0x350] sm:$0xf]
      %v320 = vld [vmem:[%s169 + $0x354] sm:$0xff]
      %v321 = vld [vmem:[%s169 + $0x35c] sm:$0xf]
      %v322 = vld [vmem:[%s169 + $0x360] sm:$0xff]
      %v323 = vld [vmem:[%s169 + $0x368] sm:$0xf]
      %v324 = vld [vmem:[%s169 + $0x36c] sm:$0xff]
      %v325 = vld [vmem:[%s169 + $0x374] sm:$0xf]
      %v326 = vld [vmem:[%s169 + $0x378] sm:$0xff]
      %v327 = vld [vmem:[%s169 + $0x380] sm:$0xf]
      %v328 = vld [vmem:[%s169 + $0x384] sm:$0xff]
      %v329 = vld [vmem:[%s169 + $0x38c] sm:$0xf]
      %v330 = vld [vmem:[%s169 + $0x390] sm:$0xff]
      %v331 = vld [vmem:[%s169 + $0x398] sm:$0xf]
      %v332 = vld [vmem:[%s169 + $0x39c] sm:$0xff]
      %v333 = vld [vmem:[%s169 + $0x3a4] sm:$0xf]
      %v334 = vld [vmem:[%s169 + $0x3a8] sm:$0xff]
      %v335 = vld [vmem:[%s169 + $0x3b0] sm:$0xf]
      %v336 = vld [vmem:[%s169 + $0x3b4] sm:$0xff]
      %v337 = vld [vmem:[%s169 + $0x3bc] sm:$0xf]
      %v338 = vld [vmem:[%s169 + $0x3c0] sm:$0xff]
      %v339 = vld [vmem:[%s169 + $0x3c8] sm:$0xf]
      %v340 = vld [vmem:[%s169 + $0x3cc] sm:$0xff]
      %v341 = vld [vmem:[%s169 + $0x3d4] sm:$0xf]
      %v342 = vld [vmem:[%s169 + $0x3d8] sm:$0xff]
      %v343 = vld [vmem:[%s169 + $0x3e0] sm:$0xf]
      %v344 = vld [vmem:[%s169 + $0x3e4] sm:$0xff]
      %v345 = vld [vmem:[%s169 + $0x3ec] sm:$0xf]
      %v346 = vld [vmem:[%s169 + $0x3f0] sm:$0xff]
      %v347 = vld [vmem:[%s169 + $0x3f8] sm:$0xf]
      %v348 = vld [vmem:[%s169 + $0x3fc] sm:$0xff]
      %v349 = vld [vmem:[%s169 + $0x404] sm:$0xf]
      %v350 = vld [vmem:[%s169 + $0x408] sm:$0xff]
      %v351 = vld [vmem:[%s169 + $0x410] sm:$0xf]
      %v352 = vld [vmem:[%s169 + $0x414] sm:$0xff]
      %v353 = vld [vmem:[%s169 + $0x41c] sm:$0xf]
      %v354 = vld [vmem:[%s169 + $0x420] sm:$0xff]
      %v355 = vld [vmem:[%s169 + $0x428] sm:$0xf]
      %v356 = vld [vmem:[%s169 + $0x42c] sm:$0xff]
      %v357 = vld [vmem:[%s169 + $0x434] sm:$0xf]
      %v358 = vld [vmem:[%s169 + $0x438] sm:$0xff]
      %v359 = vld [vmem:[%s169 + $0x440] sm:$0xf]
      %v360 = vld [vmem:[%s169 + $0x444] sm:$0xff]
      %v361 = vld [vmem:[%s169 + $0x44c] sm:$0xf]
      %v362 = vld [vmem:[%s169 + $0x450] sm:$0xff]
      %v363 = vld [vmem:[%s169 + $0x458] sm:$0xf]
      %v364 = vld [vmem:[%s169 + $0x45c] sm:$0xff]
      %v365 = vld [vmem:[%s169 + $0x464] sm:$0xf]
      %v366 = vld [vmem:[%s169 + $0x468] sm:$0xff]
      %v367 = vld [vmem:[%s169 + $0x470] sm:$0xf]
      %v368 = vld [vmem:[%s169 + $0x474] sm:$0xff]
      %v369 = vld [vmem:[%s169 + $0x47c] sm:$0xf]
      %v370 = vld [vmem:[%s169 + $0x480] sm:$0xff]
      %v371 = vld [vmem:[%s169 + $0x488] sm:$0xf]
      %v372 = vld [vmem:[%s169 + $0x48c] sm:$0xff]
      %v373 = vld [vmem:[%s169 + $0x494] sm:$0xf]
      %v374 = vld [vmem:[%s169 + $0x498] sm:$0xff]
      %v375 = vld [vmem:[%s169 + $0x4a0] sm:$0xf]
      %v376 = vld [vmem:[%s169 + $0x4a4] sm:$0xff]
      %v377 = vld [vmem:[%s169 + $0x4ac] sm:$0xf]
      %v378 = vld [vmem:[%s169 + $0x4b0] sm:$0xff]
      %v379 = vld [vmem:[%s169 + $0x4b8] sm:$0xf]
      %v380 = vld [vmem:[%s169 + $0x4bc] sm:$0xff]
      %v381 = vld [vmem:[%s169 + $0x4c4] sm:$0xf]
      %v382 = vld [vmem:[%s169 + $0x4c8] sm:$0xff]
      %v383 = vld [vmem:[%s169 + $0x4d0] sm:$0xf]
      %v384 = vld [vmem:[%s169 + $0x4d4] sm:$0xff]
      %v385 = vld [vmem:[%s169 + $0x4dc] sm:$0xf]
      %v386 = vld [vmem:[%s169 + $0x4e0] sm:$0xff]
      %v387 = vld [vmem:[%s169 + $0x4e8] sm:$0xf]
      %v388 = vld [vmem:[%s169 + $0x4ec] sm:$0xff]
      %v389 = vld [vmem:[%s169 + $0x4f4] sm:$0xf]
      %v390 = vld [vmem:[%s169 + $0x4f8] sm:$0xff]
      %v391 = vld [vmem:[%s169 + $0x500] sm:$0xf]
      %v392 = vld [vmem:[%s169 + $0x504] sm:$0xff]
      %v393 = vld [vmem:[%s169 + $0x50c] sm:$0xf]
      %v394 = vld [vmem:[%s169 + $0x510] sm:$0xff]
      %v395 = vld [vmem:[%s169 + $0x518] sm:$0xf]
      %v396 = vld [vmem:[%s169 + $0x51c] sm:$0xff]
      %v397 = vld [vmem:[%s169 + $0x524] sm:$0xf]
      %v398 = vld [vmem:[%s169 + $0x528] sm:$0xff]
      %v399 = vld [vmem:[%s169 + $0x530] sm:$0xf]
      %v400 = vld [vmem:[%s169 + $0x534] sm:$0xff]
      %v401 = vld [vmem:[%s169 + $0x53c] sm:$0xf]
      %v402 = vld [vmem:[%s169 + $0x540] sm:$0xff]
      %v403 = vld [vmem:[%s169 + $0x548] sm:$0xf]
      %v404 = vld [vmem:[%s169 + $0x54c] sm:$0xff]
      %v405 = vld [vmem:[%s169 + $0x554] sm:$0xf]
      %v406 = vld [vmem:[%s169 + $0x558] sm:$0xff]
      %v407 = vld [vmem:[%s169 + $0x560] sm:$0xf]
      %v408 = vld [vmem:[%s169 + $0x564] sm:$0xff]
      %v409 = vld [vmem:[%s169 + $0x56c] sm:$0xf]
      %v410 = vld [vmem:[%s169 + $0x570] sm:$0xff]
      %v411 = vld [vmem:[%s169 + $0x578] sm:$0xf]
      %v412 = vld [vmem:[%s169 + $0x57c] sm:$0xff]
      %v413 = vld [vmem:[%s169 + $0x584] sm:$0xf]
      %v414 = vld [vmem:[%s169 + $0x588] sm:$0xff]
      %v415 = vld [vmem:[%s169 + $0x590] sm:$0xf]
      %v416 = vld [vmem:[%s169 + $0x594] sm:$0xff]
      %v417 = vld [vmem:[%s169 + $0x59c] sm:$0xf]
      %v418 = vld [vmem:[%s169 + $0x5a0] sm:$0xff]
      %v419 = vld [vmem:[%s169 + $0x5a8] sm:$0xf]
      %v420 = vld [vmem:[%s169 + $0x5ac] sm:$0xff]
      %v421 = vld [vmem:[%s169 + $0x5b4] sm:$0xf]
      %v422 = vld [vmem:[%s169 + $0x5b8] sm:$0xff]
      %v423 = vld [vmem:[%s169 + $0x5c0] sm:$0xf]
      %v424 = vld [vmem:[%s169 + $0x5c4] sm:$0xff]
      %v425 = vld [vmem:[%s169 + $0x5cc] sm:$0xf]
      %v426 = vld [vmem:[%s169 + $0x5d0] sm:$0xff]
      %v427 = vld [vmem:[%s169 + $0x5d8] sm:$0xf]
      %v428 = vld [vmem:[%s169 + $0x5dc] sm:$0xff]
      %v429 = vld [vmem:[%s169 + $0x5e4] sm:$0xf]
      %v430 = vld [vmem:[%s169 + $0x5e8] sm:$0xff]
      %v431 = vld [vmem:[%s169 + $0x5f0] sm:$0xf]
      %v432 = vld [vmem:[%s169 + $0x5f4] sm:$0xff]
      %v433 = vld [vmem:[%s169 + $0x5fc] sm:$0xf]
      %v434 = vld [vmem:[%s1] sm:$0xf]
      %v435 = vld [vmem:[%s1 + $0x4] sm:$0xf]
      %v436 = vld [vmem:[%s1 + $0x8] sm:$0xf]
      %v437 = vld [vmem:[%s1 + $0xc] sm:$0xf]
      %v438 = vld [vmem:[%s1 + $0x10] sm:$0xf]
      %v439 = vld [vmem:[%s1 + $0x14] sm:$0xf]
      %v440 = vld [vmem:[%s1 + $0x18] sm:$0xf]
      %v441 = vld [vmem:[%s1 + $0x1c] sm:$0xf]
      %v442 = vld [vmem:[%s1 + $0x20] sm:$0xf]
      %v443 = vld [vmem:[%s1 + $0x24] sm:$0xf]
      %v444 = vld [vmem:[%s1 + $0x28] sm:$0xf]
      %v445 = vld [vmem:[%s1 + $0x2c] sm:$0xf]
      %v446 = vld [vmem:[%s1 + $0x30] sm:$0xf]
      %v447 = vld [vmem:[%s1 + $0x34] sm:$0xf]
      %v448 = vld [vmem:[%s1 + $0x38] sm:$0xf]
      %v449 = vld [vmem:[%s1 + $0x3c] sm:$0xf]
      %v450 = vld [vmem:[%s1 + $0x40] sm:$0xf]
      %v451 = vld [vmem:[%s1 + $0x44] sm:$0xf]
      %v452 = vld [vmem:[%s1 + $0x48] sm:$0xf]
      %v453 = vld [vmem:[%s1 + $0x4c] sm:$0xf]
      %v454 = vld [vmem:[%s1 + $0x50] sm:$0xf]
      %v455 = vld [vmem:[%s1 + $0x54] sm:$0xf]
      %v456 = vld [vmem:[%s1 + $0x58] sm:$0xf]
      %v457 = vld [vmem:[%s1 + $0x5c] sm:$0xf]
      %v458 = vld [vmem:[%s1 + $0x60] sm:$0xf]
      %v459 = vld [vmem:[%s1 + $0x64] sm:$0xf]
      %v460 = vld [vmem:[%s1 + $0x68] sm:$0xf]
      %v461 = vld [vmem:[%s1 + $0x6c] sm:$0xf]
      %v462 = vld [vmem:[%s1 + $0x70] sm:$0xf]
      %v463 = vld [vmem:[%s1 + $0x74] sm:$0xf]
      %v464 = vld [vmem:[%s1 + $0x78] sm:$0xf]
      %v465 = vld [vmem:[%s1 + $0x7c] sm:$0xf]
      %v466 = vld [vmem:[%s1 + $0x80] sm:$0xf]
      %v467 = vld [vmem:[%s1 + $0x84] sm:$0xf]
      %v468 = vld [vmem:[%s1 + $0x88] sm:$0xf]
      %v469 = vld [vmem:[%s1 + $0x8c] sm:$0xf]
      %v470 = vld [vmem:[%s2] sm:$0x1]
      %v472 = vlaneseq
      %v473 = vshrl.u32 %v472, 7
      %v474 = vsub.s32 0, %v473
      %v475 = vrot.slane %v470, %v474
      %v733 = vunpack.c.l.b16 %v178
      %v734 = vunpack.c.h.b16 %v178
      %v735 = vunpack.c.l.b16 %v179
      %v736 = vunpack.c.l.b16 %v180
      %v737 = vunpack.c.h.b16 %v180
      %v738 = vunpack.c.l.b16 %v181
      %v739 = vunpack.c.l.b16 %v182
      %v740 = vunpack.c.h.b16 %v182
      %v741 = vunpack.c.l.b16 %v183
      %v742 = vunpack.c.l.b16 %v184
      %v743 = vunpack.c.h.b16 %v184
      %v744 = vunpack.c.l.b16 %v185
      %v745 = vunpack.c.l.b16 %v186
      %v746 = vunpack.c.h.b16 %v186
      %v747 = vunpack.c.l.b16 %v187
      %v748 = vunpack.c.l.b16 %v188
      %v749 = vunpack.c.h.b16 %v188
      %v750 = vunpack.c.l.b16 %v189
      %v751 = vunpack.c.l.b16 %v190
      %v752 = vunpack.c.h.b16 %v190
      %v753 = vunpack.c.l.b16 %v191
      %v754 = vunpack.c.l.b16 %v192
      %v755 = vunpack.c.h.b16 %v192
      %v756 = vunpack.c.l.b16 %v193
      %v757 = vunpack.c.l.b16 %v194
      %v758 = vunpack.c.h.b16 %v194
      %v759 = vunpack.c.l.b16 %v195
      %v760 = vunpack.c.l.b16 %v196
      %v761 = vunpack.c.h.b16 %v196
      %v762 = vunpack.c.l.b16 %v197
      %v763 = vunpack.c.l.b16 %v198
      %v764 = vunpack.c.h.b16 %v198
      %v765 = vunpack.c.l.b16 %v199
      %v766 = vunpack.c.l.b16 %v200
      %v767 = vunpack.c.h.b16 %v200
      %v768 = vunpack.c.l.b16 %v201
      %v769 = vunpack.c.l.b16 %v202
      %v770 = vunpack.c.h.b16 %v202
      %v771 = vunpack.c.l.b16 %v203
      %v772 = vunpack.c.l.b16 %v204
      %v773 = vunpack.c.h.b16 %v204
      %v774 = vunpack.c.l.b16 %v205
      %v775 = vunpack.c.l.b16 %v206
      %v776 = vunpack.c.h.b16 %v206
      %v777 = vunpack.c.l.b16 %v207
      %v778 = vunpack.c.l.b16 %v208
      %v779 = vunpack.c.h.b16 %v208
      %v780 = vunpack.c.l.b16 %v209
      %v781 = vunpack.c.l.b16 %v210
      %v782 = vunpack.c.h.b16 %v210
      %v783 = vunpack.c.l.b16 %v211
      %v784 = vunpack.c.l.b16 %v212
      %v785 = vunpack.c.h.b16 %v212
      %v786 = vunpack.c.l.b16 %v213
      %v787 = vunpack.c.l.b16 %v214
      %v788 = vunpack.c.h.b16 %v214
      %v789 = vunpack.c.l.b16 %v215
      %v790 = vunpack.c.l.b16 %v216
      %v791 = vunpack.c.h.b16 %v216
      %v792 = vunpack.c.l.b16 %v217
      %v793 = vunpack.c.l.b16 %v218
      %v794 = vunpack.c.h.b16 %v218
      %v795 = vunpack.c.l.b16 %v219
      %v796 = vunpack.c.l.b16 %v220
      %v797 = vunpack.c.h.b16 %v220
      %v798 = vunpack.c.l.b16 %v221
      %v799 = vunpack.c.l.b16 %v222
      %v800 = vunpack.c.h.b16 %v222
      %v801 = vunpack.c.l.b16 %v223
      %v802 = vunpack.c.l.b16 %v224
      %v803 = vunpack.c.h.b16 %v224
      %v804 = vunpack.c.l.b16 %v225
      %v805 = vunpack.c.l.b16 %v226
      %v806 = vunpack.c.h.b16 %v226
      %v807 = vunpack.c.l.b16 %v227
      %v808 = vunpack.c.l.b16 %v228
      %v809 = vunpack.c.h.b16 %v228
      %v810 = vunpack.c.l.b16 %v229
      %v811 = vunpack.c.l.b16 %v230
      %v812 = vunpack.c.h.b16 %v230
      %v813 = vunpack.c.l.b16 %v231
      %v814 = vunpack.c.l.b16 %v232
      %v815 = vunpack.c.h.b16 %v232
      %v816 = vunpack.c.l.b16 %v233
      %v817 = vunpack.c.l.b16 %v234
      %v818 = vunpack.c.h.b16 %v234
      %v819 = vunpack.c.l.b16 %v235
      %v820 = vunpack.c.l.b16 %v236
      %v821 = vunpack.c.h.b16 %v236
      %v822 = vunpack.c.l.b16 %v237
      %v823 = vunpack.c.l.b16 %v238
      %v824 = vunpack.c.h.b16 %v238
      %v825 = vunpack.c.l.b16 %v239
      %v826 = vunpack.c.l.b16 %v240
      %v827 = vunpack.c.h.b16 %v240
      %v828 = vunpack.c.l.b16 %v241
      %v829 = vunpack.c.l.b16 %v242
      %v830 = vunpack.c.h.b16 %v242
      %v831 = vunpack.c.l.b16 %v243
      %v832 = vunpack.c.l.b16 %v244
      %v833 = vunpack.c.h.b16 %v244
      %v834 = vunpack.c.l.b16 %v245
      %v835 = vunpack.c.l.b16 %v246
      %v836 = vunpack.c.h.b16 %v246
      %v837 = vunpack.c.l.b16 %v247
      %v838 = vunpack.c.l.b16 %v248
      %v839 = vunpack.c.h.b16 %v248
      %v840 = vunpack.c.l.b16 %v249
      %v841 = vunpack.c.l.b16 %v250
      %v842 = vunpack.c.h.b16 %v250
      %v843 = vunpack.c.l.b16 %v251
      %v844 = vunpack.c.l.b16 %v252
      %v845 = vunpack.c.h.b16 %v252
      %v846 = vunpack.c.l.b16 %v253
      %v847 = vunpack.c.l.b16 %v254
      %v848 = vunpack.c.h.b16 %v254
      %v849 = vunpack.c.l.b16 %v255
      %v850 = vunpack.c.l.b16 %v256
      %v851 = vunpack.c.h.b16 %v256
      %v852 = vunpack.c.l.b16 %v257
      %v853 = vunpack.c.l.b16 %v258
      %v854 = vunpack.c.h.b16 %v258
      %v855 = vunpack.c.l.b16 %v259
      %v856 = vunpack.c.l.b16 %v260
      %v857 = vunpack.c.h.b16 %v260
      %v858 = vunpack.c.l.b16 %v261
      %v859 = vunpack.c.l.b16 %v262
      %v860 = vunpack.c.h.b16 %v262
      %v861 = vunpack.c.l.b16 %v263
      %v862 = vunpack.c.l.b16 %v264
      %v863 = vunpack.c.h.b16 %v264
      %v864 = vunpack.c.l.b16 %v265
      %v865 = vunpack.c.l.b16 %v266
      %v866 = vunpack.c.h.b16 %v266
      %v867 = vunpack.c.l.b16 %v267
      %v868 = vunpack.c.l.b16 %v268
      %v869 = vunpack.c.h.b16 %v268
      %v870 = vunpack.c.l.b16 %v269
      %v871 = vunpack.c.l.b16 %v270
      %v872 = vunpack.c.h.b16 %v270
      %v873 = vunpack.c.l.b16 %v271
      %v874 = vunpack.c.l.b16 %v272
      %v875 = vunpack.c.h.b16 %v272
      %v876 = vunpack.c.l.b16 %v273
      %v877 = vunpack.c.l.b16 %v274
      %v878 = vunpack.c.h.b16 %v274
      %v879 = vunpack.c.l.b16 %v275
      %v880 = vunpack.c.l.b16 %v276
      %v881 = vunpack.c.h.b16 %v276
      %v882 = vunpack.c.l.b16 %v277
      %v883 = vunpack.c.l.b16 %v278
      %v884 = vunpack.c.h.b16 %v278
      %v885 = vunpack.c.l.b16 %v279
      %v886 = vunpack.c.l.b16 %v280
      %v887 = vunpack.c.h.b16 %v280
      %v888 = vunpack.c.l.b16 %v281
      %v889 = vunpack.c.l.b16 %v282
      %v890 = vunpack.c.h.b16 %v282
      %v891 = vunpack.c.l.b16 %v283
      %v892 = vunpack.c.l.b16 %v284
      %v893 = vunpack.c.h.b16 %v284
      %v894 = vunpack.c.l.b16 %v285
      %v895 = vunpack.c.l.b16 %v286
      %v896 = vunpack.c.h.b16 %v286
      %v897 = vunpack.c.l.b16 %v287
      %v898 = vunpack.c.l.b16 %v288
      %v899 = vunpack.c.h.b16 %v288
      %v900 = vunpack.c.l.b16 %v289
      %v901 = vunpack.c.l.b16 %v290
      %v902 = vunpack.c.h.b16 %v290
      %v903 = vunpack.c.l.b16 %v291
      %v904 = vunpack.c.l.b16 %v292
      %v905 = vunpack.c.h.b16 %v292
      %v906 = vunpack.c.l.b16 %v293
      %v907 = vunpack.c.l.b16 %v294
      %v908 = vunpack.c.h.b16 %v294
      %v909 = vunpack.c.l.b16 %v295
      %v910 = vunpack.c.l.b16 %v296
      %v911 = vunpack.c.h.b16 %v296
      %v912 = vunpack.c.l.b16 %v297
      %v913 = vunpack.c.l.b16 %v298
      %v914 = vunpack.c.h.b16 %v298
      %v915 = vunpack.c.l.b16 %v299
      %v916 = vunpack.c.l.b16 %v300
      %v917 = vunpack.c.h.b16 %v300
      %v918 = vunpack.c.l.b16 %v301
      %v919 = vunpack.c.l.b16 %v302
      %v920 = vunpack.c.h.b16 %v302
      %v921 = vunpack.c.l.b16 %v303
      %v922 = vunpack.c.l.b16 %v304
      %v923 = vunpack.c.h.b16 %v304
      %v924 = vunpack.c.l.b16 %v305
      %v925 = vunpack.c.l.b16 %v306
      %v926 = vunpack.c.h.b16 %v306
      %v927 = vunpack.c.l.b16 %v307
      %v928 = vunpack.c.l.b16 %v308
      %v929 = vunpack.c.h.b16 %v308
      %v930 = vunpack.c.l.b16 %v309
      %v931 = vunpack.c.l.b16 %v310
      %v932 = vunpack.c.h.b16 %v310
      %v933 = vunpack.c.l.b16 %v311
      %v934 = vunpack.c.l.b16 %v312
      %v935 = vunpack.c.h.b16 %v312
      %v936 = vunpack.c.l.b16 %v313
      %v937 = vunpack.c.l.b16 %v314
      %v938 = vunpack.c.h.b16 %v314
      %v939 = vunpack.c.l.b16 %v315
      %v940 = vunpack.c.l.b16 %v316
      %v941 = vunpack.c.h.b16 %v316
      %v942 = vunpack.c.l.b16 %v317
      %v943 = vunpack.c.l.b16 %v318
      %v944 = vunpack.c.h.b16 %v318
      %v945 = vunpack.c.l.b16 %v319
      %v946 = vunpack.c.l.b16 %v320
      %v947 = vunpack.c.h.b16 %v320
      %v948 = vunpack.c.l.b16 %v321
      %v949 = vunpack.c.l.b16 %v322
      %v950 = vunpack.c.h.b16 %v322
      %v951 = vunpack.c.l.b16 %v323
      %v952 = vunpack.c.l.b16 %v324
      %v953 = vunpack.c.h.b16 %v324
      %v954 = vunpack.c.l.b16 %v325
      %v955 = vunpack.c.l.b16 %v326
      %v956 = vunpack.c.h.b16 %v326
      %v957 = vunpack.c.l.b16 %v327
      %v958 = vunpack.c.l.b16 %v328
      %v959 = vunpack.c.h.b16 %v328
      %v960 = vunpack.c.l.b16 %v329
      %v961 = vunpack.c.l.b16 %v330
      %v962 = vunpack.c.h.b16 %v330
      %v963 = vunpack.c.l.b16 %v331
      %v964 = vunpack.c.l.b16 %v332
      %v965 = vunpack.c.h.b16 %v332
      %v966 = vunpack.c.l.b16 %v333
      %v967 = vunpack.c.l.b16 %v334
      %v968 = vunpack.c.h.b16 %v334
      %v969 = vunpack.c.l.b16 %v335
      %v970 = vunpack.c.l.b16 %v336
      %v971 = vunpack.c.h.b16 %v336
      %v972 = vunpack.c.l.b16 %v337
      %v973 = vunpack.c.l.b16 %v338
      %v974 = vunpack.c.h.b16 %v338
      %v975 = vunpack.c.l.b16 %v339
      %v976 = vunpack.c.l.b16 %v340
      %v977 = vunpack.c.h.b16 %v340
      %v978 = vunpack.c.l.b16 %v341
      %v979 = vunpack.c.l.b16 %v342
      %v980 = vunpack.c.h.b16 %v342
      %v981 = vunpack.c.l.b16 %v343
      %v982 = vunpack.c.l.b16 %v344
      %v983 = vunpack.c.h.b16 %v344
      %v984 = vunpack.c.l.b16 %v345
      %v985 = vunpack.c.l.b16 %v346
      %v986 = vunpack.c.h.b16 %v346
      %v987 = vunpack.c.l.b16 %v347
      %v988 = vunpack.c.l.b16 %v348
      %v989 = vunpack.c.h.b16 %v348
      %v990 = vunpack.c.l.b16 %v349
      %v991 = vunpack.c.l.b16 %v350
      %v992 = vunpack.c.h.b16 %v350
      %v993 = vunpack.c.l.b16 %v351
      %v994 = vunpack.c.l.b16 %v352
      %v995 = vunpack.c.h.b16 %v352
      %v996 = vunpack.c.l.b16 %v353
      %v997 = vunpack.c.l.b16 %v354
      %v998 = vunpack.c.h.b16 %v354
      %v999 = vunpack.c.l.b16 %v355
      %v1000 = vunpack.c.l.b16 %v356
      %v1001 = vunpack.c.h.b16 %v356
      %v1002 = vunpack.c.l.b16 %v357
      %v1003 = vunpack.c.l.b16 %v358
      %v1004 = vunpack.c.h.b16 %v358
      %v1005 = vunpack.c.l.b16 %v359
      %v1006 = vunpack.c.l.b16 %v360
      %v1007 = vunpack.c.h.b16 %v360
      %v1008 = vunpack.c.l.b16 %v361
      %v1009 = vunpack.c.l.b16 %v362
      %v1010 = vunpack.c.h.b16 %v362
      %v1011 = vunpack.c.l.b16 %v363
      %v1012 = vunpack.c.l.b16 %v364
      %v1013 = vunpack.c.h.b16 %v364
      %v1014 = vunpack.c.l.b16 %v365
      %v1015 = vunpack.c.l.b16 %v366
      %v1016 = vunpack.c.h.b16 %v366
      %v1017 = vunpack.c.l.b16 %v367
      %v1018 = vunpack.c.l.b16 %v368
      %v1019 = vunpack.c.h.b16 %v368
      %v1020 = vunpack.c.l.b16 %v369
      %v1021 = vunpack.c.l.b16 %v370
      %v1022 = vunpack.c.h.b16 %v370
      %v1023 = vunpack.c.l.b16 %v371
      %v1024 = vunpack.c.l.b16 %v372
      %v1025 = vunpack.c.h.b16 %v372
      %v1026 = vunpack.c.l.b16 %v373
      %v1027 = vunpack.c.l.b16 %v374
      %v1028 = vunpack.c.h.b16 %v374
      %v1029 = vunpack.c.l.b16 %v375
      %v1030 = vunpack.c.l.b16 %v376
      %v1031 = vunpack.c.h.b16 %v376
      %v1032 = vunpack.c.l.b16 %v377
      %v1033 = vunpack.c.l.b16 %v378
      %v1034 = vunpack.c.h.b16 %v378
      %v1035 = vunpack.c.l.b16 %v379
      %v1036 = vunpack.c.l.b16 %v380
      %v1037 = vunpack.c.h.b16 %v380
      %v1038 = vunpack.c.l.b16 %v381
      %v1039 = vunpack.c.l.b16 %v382
      %v1040 = vunpack.c.h.b16 %v382
      %v1041 = vunpack.c.l.b16 %v383
      %v1042 = vunpack.c.l.b16 %v384
      %v1043 = vunpack.c.h.b16 %v384
      %v1044 = vunpack.c.l.b16 %v385
      %v1045 = vunpack.c.l.b16 %v386
      %v1046 = vunpack.c.h.b16 %v386
      %v1047 = vunpack.c.l.b16 %v387
      %v1048 = vunpack.c.l.b16 %v388
      %v1049 = vunpack.c.h.b16 %v388
      %v1050 = vunpack.c.l.b16 %v389
      %v1051 = vunpack.c.l.b16 %v390
      %v1052 = vunpack.c.h.b16 %v390
      %v1053 = vunpack.c.l.b16 %v391
      %v1054 = vunpack.c.l.b16 %v392
      %v1055 = vunpack.c.h.b16 %v392
      %v1056 = vunpack.c.l.b16 %v393
      %v1057 = vunpack.c.l.b16 %v394
      %v1058 = vunpack.c.h.b16 %v394
      %v1059 = vunpack.c.l.b16 %v395
      %v1060 = vunpack.c.l.b16 %v396
      %v1061 = vunpack.c.h.b16 %v396
      %v1062 = vunpack.c.l.b16 %v397
      %v1063 = vunpack.c.l.b16 %v398
      %v1064 = vunpack.c.h.b16 %v398
      %v1065 = vunpack.c.l.b16 %v399
      %v1066 = vunpack.c.l.b16 %v400
      %v1067 = vunpack.c.h.b16 %v400
      %v1068 = vunpack.c.l.b16 %v401
      %v1069 = vunpack.c.l.b16 %v402
      %v1070 = vunpack.c.h.b16 %v402
      %v1071 = vunpack.c.l.b16 %v403
      %v1072 = vunpack.c.l.b16 %v404
      %v1073 = vunpack.c.h.b16 %v404
      %v1074 = vunpack.c.l.b16 %v405
      %v1075 = vunpack.c.l.b16 %v406
      %v1076 = vunpack.c.h.b16 %v406
      %v1077 = vunpack.c.l.b16 %v407
      %v1078 = vunpack.c.l.b16 %v408
      %v1079 = vunpack.c.h.b16 %v408
      %v1080 = vunpack.c.l.b16 %v409
      %v1081 = vunpack.c.l.b16 %v410
      %v1082 = vunpack.c.h.b16 %v410
      %v1083 = vunpack.c.l.b16 %v411
      %v1084 = vunpack.c.l.b16 %v412
      %v1085 = vunpack.c.h.b16 %v412
      %v1086 = vunpack.c.l.b16 %v413
      %v1087 = vunpack.c.l.b16 %v414
      %v1088 = vunpack.c.h.b16 %v414
      %v1089 = vunpack.c.l.b16 %v415
      %v1090 = vunpack.c.l.b16 %v416
      %v1091 = vunpack.c.h.b16 %v416
      %v1092 = vunpack.c.l.b16 %v417
      %v1093 = vunpack.c.l.b16 %v418
      %v1094 = vunpack.c.h.b16 %v418
      %v1095 = vunpack.c.l.b16 %v419
      %v1096 = vunpack.c.l.b16 %v420
      %v1097 = vunpack.c.h.b16 %v420
      %v1098 = vunpack.c.l.b16 %v421
      %v1099 = vunpack.c.l.b16 %v422
      %v1100 = vunpack.c.h.b16 %v422
      %v1101 = vunpack.c.l.b16 %v423
      %v1102 = vunpack.c.l.b16 %v424
      %v1103 = vunpack.c.h.b16 %v424
      %v1104 = vunpack.c.l.b16 %v425
      %v1105 = vunpack.c.l.b16 %v426
      %v1106 = vunpack.c.h.b16 %v426
      %v1107 = vunpack.c.l.b16 %v427
      %v1108 = vunpack.c.l.b16 %v428
      %v1109 = vunpack.c.h.b16 %v428
      %v1110 = vunpack.c.l.b16 %v429
      %v1111 = vunpack.c.l.b16 %v430
      %v1112 = vunpack.c.h.b16 %v430
      %v1113 = vunpack.c.l.b16 %v431
      %v1114 = vunpack.c.l.b16 %v432
      %v1115 = vunpack.c.h.b16 %v432
      %v1116 = vunpack.c.l.b16 %v433
      %v1117 = vpack.c.b16 %v736, %v733
      %v1118 = vpack.c.b16 %v737, %v734
      %v1119 = vpack.c.b16 %v738, %v735
      %v1120 = vpack.c.b16 %v742, %v739
      %v1121 = vpack.c.b16 %v743, %v740
      %v1122 = vpack.c.b16 %v744, %v741
      %v1123 = vpack.c.b16 %v748, %v745
      %v1124 = vpack.c.b16 %v749, %v746
      %v1125 = vpack.c.b16 %v750, %v747
      %v1126 = vpack.c.b16 %v754, %v751
      %v1127 = vpack.c.b16 %v755, %v752
      %v1128 = vpack.c.b16 %v756, %v753
      %v1129 = vpack.c.b16 %v760, %v757
      %v1130 = vpack.c.b16 %v761, %v758
      %v1131 = vpack.c.b16 %v762, %v759
      %v1132 = vpack.c.b16 %v766, %v763
      %v1133 = vpack.c.b16 %v767, %v764
      %v1134 = vpack.c.b16 %v768, %v765
      %v1135 = vpack.c.b16 %v772, %v769
      %v1136 = vpack.c.b16 %v773, %v770
      %v1137 = vpack.c.b16 %v774, %v771
      %v1138 = vpack.c.b16 %v778, %v775
      %v1139 = vpack.c.b16 %v779, %v776
      %v1140 = vpack.c.b16 %v780, %v777
      %v1141 = vpack.c.b16 %v784, %v781
      %v1142 = vpack.c.b16 %v785, %v782
      %v1143 = vpack.c.b16 %v786, %v783
      %v1144 = vpack.c.b16 %v790, %v787
      %v1145 = vpack.c.b16 %v791, %v788
      %v1146 = vpack.c.b16 %v792, %v789
      %v1147 = vpack.c.b16 %v796, %v793
      %v1148 = vpack.c.b16 %v797, %v794
      %v1149 = vpack.c.b16 %v798, %v795
      %v1150 = vpack.c.b16 %v802, %v799
      %v1151 = vpack.c.b16 %v803, %v800
      %v1152 = vpack.c.b16 %v804, %v801
      %v1153 = vpack.c.b16 %v808, %v805
      %v1154 = vpack.c.b16 %v809, %v806
      %v1155 = vpack.c.b16 %v810, %v807
      %v1156 = vpack.c.b16 %v814, %v811
      %v1157 = vpack.c.b16 %v815, %v812
      %v1158 = vpack.c.b16 %v816, %v813
      %v1159 = vpack.c.b16 %v820, %v817
      %v1160 = vpack.c.b16 %v821, %v818
      %v1161 = vpack.c.b16 %v822, %v819
      %v1162 = vpack.c.b16 %v826, %v823
      %v1163 = vpack.c.b16 %v827, %v824
      %v1164 = vpack.c.b16 %v828, %v825
      %v1165 = vpack.c.b16 %v832, %v829
      %v1166 = vpack.c.b16 %v833, %v830
      %v1167 = vpack.c.b16 %v834, %v831
      %v1168 = vpack.c.b16 %v838, %v835
      %v1169 = vpack.c.b16 %v839, %v836
      %v1170 = vpack.c.b16 %v840, %v837
      %v1171 = vpack.c.b16 %v844, %v841
      %v1172 = vpack.c.b16 %v845, %v842
      %v1173 = vpack.c.b16 %v846, %v843
      %v1174 = vpack.c.b16 %v850, %v847
      %v1175 = vpack.c.b16 %v851, %v848
      %v1176 = vpack.c.b16 %v852, %v849
      %v1177 = vpack.c.b16 %v856, %v853
      %v1178 = vpack.c.b16 %v857, %v854
      %v1179 = vpack.c.b16 %v858, %v855
      %v1180 = vpack.c.b16 %v862, %v859
      %v1181 = vpack.c.b16 %v863, %v860
      %v1182 = vpack.c.b16 %v864, %v861
      %v1183 = vpack.c.b16 %v868, %v865
      %v1184 = vpack.c.b16 %v869, %v866
      %v1185 = vpack.c.b16 %v870, %v867
      %v1186 = vpack.c.b16 %v874, %v871
      %v1187 = vpack.c.b16 %v875, %v872
      %v1188 = vpack.c.b16 %v876, %v873
      %v1189 = vpack.c.b16 %v880, %v877
      %v1190 = vpack.c.b16 %v881, %v878
      %v1191 = vpack.c.b16 %v882, %v879
      %v1192 = vpack.c.b16 %v886, %v883
      %v1193 = vpack.c.b16 %v887, %v884
      %v1194 = vpack.c.b16 %v888, %v885
      %v1195 = vpack.c.b16 %v892, %v889
      %v1196 = vpack.c.b16 %v893, %v890
      %v1197 = vpack.c.b16 %v894, %v891
      %v1198 = vpack.c.b16 %v898, %v895
      %v1199 = vpack.c.b16 %v899, %v896
      %v1200 = vpack.c.b16 %v900, %v897
      %v1201 = vpack.c.b16 %v904, %v901
      %v1202 = vpack.c.b16 %v905, %v902
      %v1203 = vpack.c.b16 %v906, %v903
      %v1204 = vpack.c.b16 %v910, %v907
      %v1205 = vpack.c.b16 %v911, %v908
      %v1206 = vpack.c.b16 %v912, %v909
      %v1207 = vpack.c.b16 %v916, %v913
      %v1208 = vpack.c.b16 %v917, %v914
      %v1209 = vpack.c.b16 %v918, %v915
      %v1210 = vpack.c.b16 %v922, %v919
      %v1211 = vpack.c.b16 %v923, %v920
      %v1212 = vpack.c.b16 %v924, %v921
      %v1213 = vpack.c.b16 %v928, %v925
      %v1214 = vpack.c.b16 %v929, %v926
      %v1215 = vpack.c.b16 %v930, %v927
      %v1216 = vpack.c.b16 %v934, %v931
      %v1217 = vpack.c.b16 %v935, %v932
      %v1218 = vpack.c.b16 %v936, %v933
      %v1219 = vpack.c.b16 %v940, %v937
      %v1220 = vpack.c.b16 %v941, %v938
      %v1221 = vpack.c.b16 %v942, %v939
      %v1222 = vpack.c.b16 %v946, %v943
      %v1223 = vpack.c.b16 %v947, %v944
      %v1224 = vpack.c.b16 %v948, %v945
      %v1225 = vpack.c.b16 %v952, %v949
      %v1226 = vpack.c.b16 %v953, %v950
      %v1227 = vpack.c.b16 %v954, %v951
      %v1228 = vpack.c.b16 %v958, %v955
      %v1229 = vpack.c.b16 %v959, %v956
      %v1230 = vpack.c.b16 %v960, %v957
      %v1231 = vpack.c.b16 %v964, %v961
      %v1232 = vpack.c.b16 %v965, %v962
      %v1233 = vpack.c.b16 %v966, %v963
      %v1234 = vpack.c.b16 %v970, %v967
      %v1235 = vpack.c.b16 %v971, %v968
      %v1236 = vpack.c.b16 %v972, %v969
      %v1237 = vpack.c.b16 %v976, %v973
      %v1238 = vpack.c.b16 %v977, %v974
      %v1239 = vpack.c.b16 %v978, %v975
      %v1240 = vpack.c.b16 %v982, %v979
      %v1241 = vpack.c.b16 %v983, %v980
      %v1242 = vpack.c.b16 %v984, %v981
      %v1243 = vpack.c.b16 %v988, %v985
      %v1244 = vpack.c.b16 %v989, %v986
      %v1245 = vpack.c.b16 %v990, %v987
      %v1246 = vpack.c.b16 %v994, %v991
      %v1247 = vpack.c.b16 %v995, %v992
      %v1248 = vpack.c.b16 %v996, %v993
      %v1249 = vpack.c.b16 %v1000, %v997
      %v1250 = vpack.c.b16 %v1001, %v998
      %v1251 = vpack.c.b16 %v1002, %v999
      %v1252 = vpack.c.b16 %v1006, %v1003
      %v1253 = vpack.c.b16 %v1007, %v1004
      %v1254 = vpack.c.b16 %v1008, %v1005
      %v1255 = vpack.c.b16 %v1012, %v1009
      %v1256 = vpack.c.b16 %v1013, %v1010
      %v1257 = vpack.c.b16 %v1014, %v1011
      %v1258 = vpack.c.b16 %v1018, %v1015
      %v1259 = vpack.c.b16 %v1019, %v1016
      %v1260 = vpack.c.b16 %v1020, %v1017
      %v1261 = vpack.c.b16 %v1024, %v1021
      %v1262 = vpack.c.b16 %v1025, %v1022
      %v1263 = vpack.c.b16 %v1026, %v1023
      %v1264 = vpack.c.b16 %v1030, %v1027
      %v1265 = vpack.c.b16 %v1031, %v1028
      %v1266 = vpack.c.b16 %v1032, %v1029
      %v1267 = vpack.c.b16 %v1036, %v1033
      %v1268 = vpack.c.b16 %v1037, %v1034
      %v1269 = vpack.c.b16 %v1038, %v1035
      %v1270 = vpack.c.b16 %v1042, %v1039
      %v1271 = vpack.c.b16 %v1043, %v1040
      %v1272 = vpack.c.b16 %v1044, %v1041
      %v1273 = vpack.c.b16 %v1048, %v1045
      %v1274 = vpack.c.b16 %v1049, %v1046
      %v1275 = vpack.c.b16 %v1050, %v1047
      %v1276 = vpack.c.b16 %v1054, %v1051
      %v1277 = vpack.c.b16 %v1055, %v1052
      %v1278 = vpack.c.b16 %v1056, %v1053
      %v1279 = vpack.c.b16 %v1060, %v1057
      %v1280 = vpack.c.b16 %v1061, %v1058
      %v1281 = vpack.c.b16 %v1062, %v1059
      %v1282 = vpack.c.b16 %v1066, %v1063
      %v1283 = vpack.c.b16 %v1067, %v1064
      %v1284 = vpack.c.b16 %v1068, %v1065
      %v1285 = vpack.c.b16 %v1072, %v1069
      %v1286 = vpack.c.b16 %v1073, %v1070
      %v1287 = vpack.c.b16 %v1074, %v1071
      %v1288 = vpack.c.b16 %v1078, %v1075
      %v1289 = vpack.c.b16 %v1079, %v1076
      %v1290 = vpack.c.b16 %v1080, %v1077
      %v1291 = vpack.c.b16 %v1084, %v1081
      %v1292 = vpack.c.b16 %v1085, %v1082
      %v1293 = vpack.c.b16 %v1086, %v1083
      %v1294 = vpack.c.b16 %v1090, %v1087
      %v1295 = vpack.c.b16 %v1091, %v1088
      %v1296 = vpack.c.b16 %v1092, %v1089
      %v1297 = vpack.c.b16 %v1096, %v1093
      %v1298 = vpack.c.b16 %v1097, %v1094
      %v1299 = vpack.c.b16 %v1098, %v1095
      %v1300 = vpack.c.b16 %v1102, %v1099
      %v1301 = vpack.c.b16 %v1103, %v1100
      %v1302 = vpack.c.b16 %v1104, %v1101
      %v1303 = vpack.c.b16 %v1108, %v1105
      %v1304 = vpack.c.b16 %v1109, %v1106
      %v1305 = vpack.c.b16 %v1110, %v1107
      %v1306 = vpack.c.b16 %v1114, %v1111
      %v1307 = vpack.c.b16 %v1115, %v1112
      %v1308 = vpack.c.b16 %v1116, %v1113
      %v1473 = vunpack.c.l.b16 %v434
      %v1474 = vunpack.c.l.b16 %v435
      %v1475 = vunpack.c.l.b16 %v436
      %v1476 = vunpack.c.l.b16 %v437
      %v1477 = vunpack.c.l.b16 %v438
      %v1478 = vunpack.c.l.b16 %v439
      %v1479 = vunpack.c.l.b16 %v440
      %v1480 = vunpack.c.l.b16 %v441
      %v1481 = vunpack.c.l.b16 %v442
      %v1482 = vunpack.c.l.b16 %v443
      %v1483 = vunpack.c.l.b16 %v444
      %v1484 = vunpack.c.l.b16 %v445
      %v1485 = vunpack.c.l.b16 %v446
      %v1486 = vunpack.c.l.b16 %v447
      %v1487 = vunpack.c.l.b16 %v448
      %v1488 = vunpack.c.l.b16 %v449
      %v1489 = vunpack.c.l.b16 %v450
      %v1490 = vunpack.c.l.b16 %v451
      %v1491 = vunpack.c.l.b16 %v452
      %v1492 = vunpack.c.l.b16 %v453
      %v1493 = vunpack.c.l.b16 %v454
      %v1494 = vunpack.c.l.b16 %v455
      %v1495 = vunpack.c.l.b16 %v456
      %v1496 = vunpack.c.l.b16 %v457
      %v1497 = vunpack.c.l.b16 %v458
      %v1498 = vunpack.c.l.b16 %v459
      %v1499 = vunpack.c.l.b16 %v460
      %v1500 = vunpack.c.l.b16 %v461
      %v1501 = vunpack.c.l.b16 %v462
      %v1502 = vunpack.c.l.b16 %v463
      %v1503 = vunpack.c.l.b16 %v464
      %v1504 = vunpack.c.l.b16 %v465
      %v1505 = vunpack.c.l.b16 %v466
      %v1506 = vunpack.c.l.b16 %v467
      %v1507 = vunpack.c.l.b16 %v468
      %v1508 = vunpack.c.l.b16 %v469
      %v1509 = vpack.c.b16 %v1474, %v1473
      %v1510 = vpack.c.b16 %v1476, %v1475
      %v1511 = vpack.c.b16 %v1478, %v1477
      %v1512 = vpack.c.b16 %v1480, %v1479
      %v1513 = vpack.c.b16 %v1482, %v1481
      %v1514 = vpack.c.b16 %v1484, %v1483
      %v1515 = vpack.c.b16 %v1486, %v1485
      %v1516 = vpack.c.b16 %v1488, %v1487
      %v1517 = vpack.c.b16 %v1490, %v1489
      %v1518 = vpack.c.b16 %v1492, %v1491
      %v1519 = vpack.c.b16 %v1494, %v1493
      %v1520 = vpack.c.b16 %v1496, %v1495
      %v1521 = vpack.c.b16 %v1498, %v1497
      %v1522 = vpack.c.b16 %v1500, %v1499
      %v1523 = vpack.c.b16 %v1502, %v1501
      %v1524 = vpack.c.b16 %v1504, %v1503
      %v1525 = vpack.c.b16 %v1506, %v1505
      %v1526 = vpack.c.b16 %v1508, %v1507
      %vm1545 = vcmask 261120
      %v1547 = vsel %vm1545, %v1119, 0
      %v1550 = vsel %vm1545, %v1122, 0
      %v1553 = vsel %vm1545, %v1125, 0
      %v1556 = vsel %vm1545, %v1128, 0
      %v1559 = vsel %vm1545, %v1131, 0
      %v1562 = vsel %vm1545, %v1134, 0
      %v1565 = vsel %vm1545, %v1137, 0
      %v1568 = vsel %vm1545, %v1140, 0
      %v1571 = vsel %vm1545, %v1143, 0
      %v1574 = vsel %vm1545, %v1146, 0
      %v1577 = vsel %vm1545, %v1149, 0
      %v1580 = vsel %vm1545, %v1152, 0
      %v1583 = vsel %vm1545, %v1155, 0
      %v1586 = vsel %vm1545, %v1158, 0
      %v1589 = vsel %vm1545, %v1161, 0
      %v1592 = vsel %vm1545, %v1164, 0
      %v1595 = vsel %vm1545, %v1167, 0
      %v1598 = vsel %vm1545, %v1170, 0
      %v1601 = vsel %vm1545, %v1173, 0
      %v1604 = vsel %vm1545, %v1176, 0
      %v1607 = vsel %vm1545, %v1179, 0
      %v1610 = vsel %vm1545, %v1182, 0
      %v1613 = vsel %vm1545, %v1185, 0
      %v1616 = vsel %vm1545, %v1188, 0
      %v1619 = vsel %vm1545, %v1191, 0
      %v1622 = vsel %vm1545, %v1194, 0
      %v1625 = vsel %vm1545, %v1197, 0
      %v1628 = vsel %vm1545, %v1200, 0
      %v1631 = vsel %vm1545, %v1203, 0
      %v1634 = vsel %vm1545, %v1206, 0
      %v1637 = vsel %vm1545, %v1209, 0
      %v1640 = vsel %vm1545, %v1212, 0
      %v1643 = vsel %vm1545, %v1215, 0
      %v1646 = vsel %vm1545, %v1218, 0
      %v1649 = vsel %vm1545, %v1221, 0
      %v1652 = vsel %vm1545, %v1224, 0
      %v1655 = vsel %vm1545, %v1227, 0
      %v1658 = vsel %vm1545, %v1230, 0
      %v1661 = vsel %vm1545, %v1233, 0
      %v1664 = vsel %vm1545, %v1236, 0
      %v1667 = vsel %vm1545, %v1239, 0
      %v1670 = vsel %vm1545, %v1242, 0
      %v1673 = vsel %vm1545, %v1245, 0
      %v1676 = vsel %vm1545, %v1248, 0
      %v1679 = vsel %vm1545, %v1251, 0
      %v1682 = vsel %vm1545, %v1254, 0
      %v1685 = vsel %vm1545, %v1257, 0
      %v1688 = vsel %vm1545, %v1260, 0
      %v1691 = vsel %vm1545, %v1263, 0
      %v1694 = vsel %vm1545, %v1266, 0
      %v1697 = vsel %vm1545, %v1269, 0
      %v1700 = vsel %vm1545, %v1272, 0
      %v1703 = vsel %vm1545, %v1275, 0
      %v1706 = vsel %vm1545, %v1278, 0
      %v1709 = vsel %vm1545, %v1281, 0
      %v1712 = vsel %vm1545, %v1284, 0
      %v1715 = vsel %vm1545, %v1287, 0
      %v1718 = vsel %vm1545, %v1290, 0
      %v1721 = vsel %vm1545, %v1293, 0
      %v1724 = vsel %vm1545, %v1296, 0
      %v1727 = vsel %vm1545, %v1299, 0
      %v1730 = vsel %vm1545, %v1302, 0
      %v1733 = vsel %vm1545, %v1305, 0
      %v1736 = vsel %vm1545, %v1308, 0
      %1738 = vmatprep.subr.bf16.mxu0 0
      %1739 = vmatpush1.bf16.msra.mxu0 %v1509
      %1740 = vmatprep.subr.bf16.mxu0 0
      %1741 = vmatpush1.bf16.msra.mxu0 %v1510
      %1742 = vmatprep.subr.bf16.mxu0 0
      %1743 = vmatpush1.bf16.msra.mxu0 %v1511
      %1744 = vmatprep.subr.bf16.mxu0 0
      %1745 = vmatpush1.bf16.msra.mxu0 %v1512
      %1746 = vmatprep.subr.bf16.mxu0 0
      %1747 = vmatpush1.bf16.msra.mxu0 %v1513
      %1748 = vmatprep.subr.bf16.mxu0 0
      %1749 = vmatpush1.bf16.msra.mxu0 %v1514
      %1750 = vmatprep.subr.bf16.mxu0 0
      %1751 = vmatpush1.bf16.msra.mxu0 %v1515
      %1752 = vmatprep.subr.bf16.mxu0 0
      %1753 = vmatpush1.bf16.msra.mxu0 %v1516
      %1754 = vmatprep.subr.bf16.mxu0 0
      %1755 = vmatpush1.bf16.msra.mxu0 %v1517
      %1756 = vmatprep.subr.bf16.mxu0 0
      %1757 = vmatpush1.bf16.msra.mxu0 %v1518
      %1758 = vmatprep.subr.bf16.mxu0 0
      %1759 = vmatpush1.bf16.msra.mxu0 %v1519
      %1760 = vmatprep.subr.bf16.mxu0 0
      %1761 = vmatpush1.bf16.msra.mxu0 %v1520
      %1762 = vmatprep.subr.bf16.mxu0 0
      %1763 = vmatpush1.bf16.msra.mxu0 %v1521
      %1764 = vmatprep.subr.bf16.mxu0 0
      %1765 = vmatpush1.bf16.msra.mxu0 %v1522
      %1766 = vmatprep.subr.bf16.mxu0 0
      %1767 = vmatpush1.bf16.msra.mxu0 %v1523
      %1768 = vmatprep.subr.bf16.mxu0 0
      %1769 = vmatpush1.bf16.msra.mxu0 %v1524
      %1770 = vmatprep.mubr.bf16.mxu0 %v1118
      %1771 = vmatmul.mubr.bf16.gmra.mrb[0].mxu0 %v1117
      %v1772 = vpop.f32.mrb[0].mxu0
      %v1773 = vadd.f32 %v475, %v1772
      %v1774 = vpop.f32.mrb[0].mxu0
      %v1775 = vpop.f32.mrb[0].mxu0
      %v1776 = vadd.f32 %v475, %v1775
      %v1777 = vpop.f32.mrb[0].mxu0
      %1778 = vmatprep.mubr.bf16.mxu0 %v1121
      %1779 = vmatmul.mubr.bf16.gmra.mrb[0].mxu0 %v1120
      %v1780 = vpop.f32.mrb[0].mxu0
      %v1781 = vadd.f32 %v475, %v1780
      %v1782 = vpop.f32.mrb[0].mxu0
      %v1783 = vpop.f32.mrb[0].mxu0
      %v1784 = vadd.f32 %v475, %v1783
      %v1785 = vpop.f32.mrb[0].mxu0
      %1786 = vmatprep.mubr.bf16.mxu0 %v1124
      %1787 = vmatmul.mubr.bf16.gmra.mrb[0].mxu0 %v1123
      %v1788 = vpop.f32.mrb[0].mxu0
      %v1789 = vadd.f32 %v475, %v1788
      %v1790 = vpop.f32.mrb[0].mxu0
      %v1791 = vpop.f32.mrb[0].mxu0
      %v1792 = vadd.f32 %v475, %v1791
      %v1793 = vpop.f32.mrb[0].mxu0
      %1794 = vmatprep.mubr.bf16.mxu0 %v1127
      %1795 = vmatmul.mubr.bf16.gmra.mrb[0].mxu0 %v1126
      %v1796 = vpop.f32.mrb[0].mxu0
      %v1797 = vadd.f32 %v475, %v1796
      %v1798 = vpop.f32.mrb[0].mxu0
      %v1799 = vpop.f32.mrb[0].mxu0
      %v1800 = vadd.f32 %v475, %v1799
      %v1801 = vpop.f32.mrb[0].mxu0
      %1802 = vmatprep.mubr.bf16.mxu0 %v1130
      %1803 = vmatmul.mubr.bf16.gmra.mrb[0].mxu0 %v1129
      %v1804 = vpop.f32.mrb[0].mxu0
      %v1805 = vadd.f32 %v475, %v1804
      %v1806 = vpop.f32.mrb[0].mxu0
      %v1807 = vpop.f32.mrb[0].mxu0
      %v1808 = vadd.f32 %v475, %v1807
      %v1809 = vpop.f32.mrb[0].mxu0
      %1810 = vmatprep.mubr.bf16.mxu0 %v1133
      %1811 = vmatmul.mubr.bf16.gmra.mrb[0].mxu0 %v1132
      %v1812 = vpop.f32.mrb[0].mxu0
      %v1813 = vadd.f32 %v475, %v1812
      %v1814 = vpop.f32.mrb[0].mxu0
      %v1815 = vpop.f32.mrb[0].mxu0
      %v1816 = vadd.f32 %v475, %v1815
      %v1817 = vpop.f32.mrb[0].mxu0
      %1818 = vmatprep.mubr.bf16.mxu0 %v1136
      %1819 = vmatmul.mubr.bf16.gmra.mrb[0].mxu0 %v1135
      %v1820 = vpop.f32.mrb[0].mxu0
      %v1821 = vadd.f32 %v475, %v1820
      %v1822 = vpop.f32.mrb[0].mxu0
      %v1823 = vpop.f32.mrb[0].mxu0
      %v1824 = vadd.f32 %v475, %v1823
      %v1825 = vpop.f32.mrb[0].mxu0
      %1826 = vmatprep.mubr.bf16.mxu0 %v1139
      %1827 = vmatmul.mubr.bf16.gmra.mrb[0].mxu0 %v1138
      %v1828 = vpop.f32.mrb[0].mxu0
      %v1829 = vadd.f32 %v475, %v1828
      %v1830 = vpop.f32.mrb[0].mxu0
      %v1831 = vpop.f32.mrb[0].mxu0
      %v1832 = vadd.f32 %v475, %v1831
      %v1833 = vpop.f32.mrb[0].mxu0
      %1834 = vmatprep.mubr.bf16.mxu0 %v1142
      %1835 = vmatmul.mubr.bf16.gmra.mrb[0].mxu0 %v1141
      %v1836 = vpop.f32.mrb[0].mxu0
      %v1837 = vadd.f32 %v475, %v1836
      %v1838 = vpop.f32.mrb[0].mxu0
      %v1839 = vpop.f32.mrb[0].mxu0
      %v1840 = vadd.f32 %v475, %v1839
      %v1841 = vpop.f32.mrb[0].mxu0
      %1842 = vmatprep.mubr.bf16.mxu0 %v1145
      %1843 = vmatmul.mubr.bf16.gmra.mrb[0].mxu0 %v1144
      %v1844 = vpop.f32.mrb[0].mxu0
      %v1845 = vadd.f32 %v475, %v1844
      %v1846 = vpop.f32.mrb[0].mxu0
      %v1847 = vpop.f32.mrb[0].mxu0
      %v1848 = vadd.f32 %v475, %v1847
      %v1849 = vpop.f32.mrb[0].mxu0
      %1850 = vmatprep.mubr.bf16.mxu0 %v1148
      %1851 = vmatmul.mubr.bf16.gmra.mrb[0].mxu0 %v1147
      %v1852 = vpop.f32.mrb[0].mxu0
      %v1853 = vadd.f32 %v475, %v1852
      %v1854 = vpop.f32.mrb[0].mxu0
      %v1855 = vpop.f32.mrb[0].mxu0
      %v1856 = vadd.f32 %v475, %v1855
      %v1857 = vpop.f32.mrb[0].mxu0
      %1858 = vmatprep.mubr.bf16.mxu0 %v1151
      %1859 = vmatmul.mubr.bf16.gmra.mrb[0].mxu0 %v1150
      %v1860 = vpop.f32.mrb[0].mxu0
      %v1861 = vadd.f32 %v475, %v1860
      %v1862 = vpop.f32.mrb[0].mxu0
      %v1863 = vpop.f32.mrb[0].mxu0
      %v1864 = vadd.f32 %v475, %v1863
      %v1865 = vpop.f32.mrb[0].mxu0
      %1866 = vmatprep.mubr.bf16.mxu0 %v1154
      %1867 = vmatmul.mubr.bf16.gmra.mrb[0].mxu0 %v1153
      %v1868 = vpop.f32.mrb[0].mxu0
      %v1869 = vadd.f32 %v475, %v1868
      %v1870 = vpop.f32.mrb[0].mxu0
      %v1871 = vpop.f32.mrb[0].mxu0
      %v1872 = vadd.f32 %v475, %v1871
      %v1873 = vpop.f32.mrb[0].mxu0
      %1874 = vmatprep.mubr.bf16.mxu0 %v1157
      %1875 = vmatmul.mubr.bf16.gmra.mrb[0].mxu0 %v1156
      %v1876 = vpop.f32.mrb[0].mxu0
      %v1877 = vadd.f32 %v475, %v1876
      %v1878 = vpop.f32.mrb[0].mxu0
      %v1879 = vpop.f32.mrb[0].mxu0
      %v1880 = vadd.f32 %v475, %v1879
      %v1881 = vpop.f32.mrb[0].mxu0
      %1882 = vmatprep.mubr.bf16.mxu0 %v1160
      %1883 = vmatmul.mubr.bf16.gmra.mrb[0].mxu0 %v1159
      %v1884 = vpop.f32.mrb[0].mxu0
      %v1885 = vadd.f32 %v475, %v1884
      %v1886 = vpop.f32.mrb[0].mxu0
      %v1887 = vpop.f32.mrb[0].mxu0
      %v1888 = vadd.f32 %v475, %v1887
      %v1889 = vpop.f32.mrb[0].mxu0
      %1890 = vmatprep.mubr.bf16.mxu0 %v1163
      %1891 = vmatmul.mubr.bf16.gmra.mrb[0].mxu0 %v1162
      %v1892 = vpop.f32.mrb[0].mxu0
      %v1893 = vadd.f32 %v475, %v1892
      %v1894 = vpop.f32.mrb[0].mxu0
      %v1895 = vpop.f32.mrb[0].mxu0
      %v1896 = vadd.f32 %v475, %v1895
      %v1897 = vpop.f32.mrb[0].mxu0
      %1898 = vmatprep.mubr.bf16.mxu0 %v1166
      %1899 = vmatmul.mubr.bf16.gmra.mrb[0].mxu0 %v1165
      %v1900 = vpop.f32.mrb[0].mxu0
      %v1901 = vadd.f32 %v475, %v1900
      %v1902 = vpop.f32.mrb[0].mxu0
      %v1903 = vpop.f32.mrb[0].mxu0
      %v1904 = vadd.f32 %v475, %v1903
      %v1905 = vpop.f32.mrb[0].mxu0
      %1906 = vmatprep.mubr.bf16.mxu0 %v1169
      %1907 = vmatmul.mubr.bf16.gmra.mrb[0].mxu0 %v1168
      %v1908 = vpop.f32.mrb[0].mxu0
      %v1909 = vadd.f32 %v475, %v1908
      %v1910 = vpop.f32.mrb[0].mxu0
      %v1911 = vpop.f32.mrb[0].mxu0
      %v1912 = vadd.f32 %v475, %v1911
      %v1913 = vpop.f32.mrb[0].mxu0
      %1914 = vmatprep.mubr.bf16.mxu0 %v1172
      %1915 = vmatmul.mubr.bf16.gmra.mrb[0].mxu0 %v1171
      %v1916 = vpop.f32.mrb[0].mxu0
      %v1917 = vadd.f32 %v475, %v1916
      %v1918 = vpop.f32.mrb[0].mxu0
      %v1919 = vpop.f32.mrb[0].mxu0
      %v1920 = vadd.f32 %v475, %v1919
      %v1921 = vpop.f32.mrb[0].mxu0
      %1922 = vmatprep.mubr.bf16.mxu0 %v1175
      %1923 = vmatmul.mubr.bf16.gmra.mrb[0].mxu0 %v1174
      %v1924 = vpop.f32.mrb[0].mxu0
      %v1925 = vadd.f32 %v475, %v1924
      %v1926 = vpop.f32.mrb[0].mxu0
      %v1927 = vpop.f32.mrb[0].mxu0
      %v1928 = vadd.f32 %v475, %v1927
      %v1929 = vpop.f32.mrb[0].mxu0
      %1930 = vmatprep.mubr.bf16.mxu0 %v1178
      %1931 = vmatmul.mubr.bf16.gmra.mrb[0].mxu0 %v1177
      %v1932 = vpop.f32.mrb[0].mxu0
      %v1933 = vadd.f32 %v475, %v1932
      %v1934 = vpop.f32.mrb[0].mxu0
      %v1935 = vpop.f32.mrb[0].mxu0
      %v1936 = vadd.f32 %v475, %v1935
      %v1937 = vpop.f32.mrb[0].mxu0
      %1938 = vmatprep.mubr.bf16.mxu0 %v1181
      %1939 = vmatmul.mubr.bf16.gmra.mrb[0].mxu0 %v1180
      %v1940 = vpop.f32.mrb[0].mxu0
      %v1941 = vadd.f32 %v475, %v1940
      %v1942 = vpop.f32.mrb[0].mxu0
      %v1943 = vpop.f32.mrb[0].mxu0
      %v1944 = vadd.f32 %v475, %v1943
      %v1945 = vpop.f32.mrb[0].mxu0
      %1946 = vmatprep.mubr.bf16.mxu0 %v1184
      %1947 = vmatmul.mubr.bf16.gmra.mrb[0].mxu0 %v1183
      %v1948 = vpop.f32.mrb[0].mxu0
      %v1949 = vadd.f32 %v475, %v1948
      %v1950 = vpop.f32.mrb[0].mxu0
      %v1951 = vpop.f32.mrb[0].mxu0
      %v1952 = vadd.f32 %v475, %v1951
      %v1953 = vpop.f32.mrb[0].mxu0
      %1954 = vmatprep.mubr.bf16.mxu0 %v1187
      %1955 = vmatmul.mubr.bf16.gmra.mrb[0].mxu0 %v1186
      %v1956 = vpop.f32.mrb[0].mxu0
      %v1957 = vadd.f32 %v475, %v1956
      %v1958 = vpop.f32.mrb[0].mxu0
      %v1959 = vpop.f32.mrb[0].mxu0
      %v1960 = vadd.f32 %v475, %v1959
      %v1961 = vpop.f32.mrb[0].mxu0
      %1962 = vmatprep.mubr.bf16.mxu0 %v1190
      %1963 = vmatmul.mubr.bf16.gmra.mrb[0].mxu0 %v1189
      %v1964 = vpop.f32.mrb[0].mxu0
      %v1965 = vadd.f32 %v475, %v1964
      %v1966 = vpop.f32.mrb[0].mxu0
      %v1967 = vpop.f32.mrb[0].mxu0
      %v1968 = vadd.f32 %v475, %v1967
      %v1969 = vpop.f32.mrb[0].mxu0
      %1970 = vmatprep.mubr.bf16.mxu0 %v1193
      %1971 = vmatmul.mubr.bf16.gmra.mrb[0].mxu0 %v1192
      %v1972 = vpop.f32.mrb[0].mxu0
      %v1973 = vadd.f32 %v475, %v1972
      %v1974 = vpop.f32.mrb[0].mxu0
      %v1975 = vpop.f32.mrb[0].mxu0
      %v1976 = vadd.f32 %v475, %v1975
      %v1977 = vpop.f32.mrb[0].mxu0
      %1978 = vmatprep.mubr.bf16.mxu0 %v1196
      %1979 = vmatmul.mubr.bf16.gmra.mrb[0].mxu0 %v1195
      %v1980 = vpop.f32.mrb[0].mxu0
      %v1981 = vadd.f32 %v475, %v1980
      %v1982 = vpop.f32.mrb[0].mxu0
      %v1983 = vpop.f32.mrb[0].mxu0
      %v1984 = vadd.f32 %v475, %v1983
      %v1985 = vpop.f32.mrb[0].mxu0
      %1986 = vmatprep.mubr.bf16.mxu0 %v1199
      %1987 = vmatmul.mubr.bf16.gmra.mrb[0].mxu0 %v1198
      %v1988 = vpop.f32.mrb[0].mxu0
      %v1989 = vadd.f32 %v475, %v1988
      %v1990 = vpop.f32.mrb[0].mxu0
      %v1991 = vpop.f32.mrb[0].mxu0
      %v1992 = vadd.f32 %v475, %v1991
      %v1993 = vpop.f32.mrb[0].mxu0
      %1994 = vmatprep.mubr.bf16.mxu0 %v1202
      %1995 = vmatmul.mubr.bf16.gmra.mrb[0].mxu0 %v1201
      %v1996 = vpop.f32.mrb[0].mxu0
      %v1997 = vadd.f32 %v475, %v1996
      %v1998 = vpop.f32.mrb[0].mxu0
      %v1999 = vpop.f32.mrb[0].mxu0
      %v2000 = vadd.f32 %v475, %v1999
      %v2001 = vpop.f32.mrb[0].mxu0
      %2002 = vmatprep.mubr.bf16.mxu0 %v1205
      %2003 = vmatmul.mubr.bf16.gmra.mrb[0].mxu0 %v1204
      %v2004 = vpop.f32.mrb[0].mxu0
      %v2005 = vadd.f32 %v475, %v2004
      %v2006 = vpop.f32.mrb[0].mxu0
      %v2007 = vpop.f32.mrb[0].mxu0
      %v2008 = vadd.f32 %v475, %v2007
      %v2009 = vpop.f32.mrb[0].mxu0
      %2010 = vmatprep.mubr.bf16.mxu0 %v1208
      %2011 = vmatmul.mubr.bf16.gmra.mrb[0].mxu0 %v1207
      %v2012 = vpop.f32.mrb[0].mxu0
      %v2013 = vadd.f32 %v475, %v2012
      %v2014 = vpop.f32.mrb[0].mxu0
      %v2015 = vpop.f32.mrb[0].mxu0
      %v2016 = vadd.f32 %v475, %v2015
      %v2017 = vpop.f32.mrb[0].mxu0
      %2018 = vmatprep.mubr.bf16.mxu0 %v1211
      %2019 = vmatmul.mubr.bf16.gmra.mrb[0].mxu0 %v1210
      %v2020 = vpop.f32.mrb[0].mxu0
      %v2021 = vadd.f32 %v475, %v2020
      %v2022 = vpop.f32.mrb[0].mxu0
      %v2023 = vpop.f32.mrb[0].mxu0
      %v2024 = vadd.f32 %v475, %v2023
      %v2025 = vpop.f32.mrb[0].mxu0
      %2026 = vmatprep.mubr.bf16.mxu0 %v1214
      %2027 = vmatmul.mubr.bf16.gmra.mrb[0].mxu0 %v1213
      %v2028 = vpop.f32.mrb[0].mxu0
      %v2029 = vadd.f32 %v475, %v2028
      %v2030 = vpop.f32.mrb[0].mxu0
      %v2031 = vpop.f32.mrb[0].mxu0
      %v2032 = vadd.f32 %v475, %v2031
      %v2033 = vpop.f32.mrb[0].mxu0
      %2034 = vmatprep.mubr.bf16.mxu0 %v1217
      %2035 = vmatmul.mubr.bf16.gmra.mrb[0].mxu0 %v1216
      %v2036 = vpop.f32.mrb[0].mxu0
      %v2037 = vadd.f32 %v475, %v2036
      %v2038 = vpop.f32.mrb[0].mxu0
      %v2039 = vpop.f32.mrb[0].mxu0
      %v2040 = vadd.f32 %v475, %v2039
      %v2041 = vpop.f32.mrb[0].mxu0
      %2042 = vmatprep.mubr.bf16.mxu0 %v1220
      %2043 = vmatmul.mubr.bf16.gmra.mrb[0].mxu0 %v1219
      %v2044 = vpop.f32.mrb[0].mxu0
      %v2045 = vadd.f32 %v475, %v2044
      %v2046 = vpop.f32.mrb[0].mxu0
      %v2047 = vpop.f32.mrb[0].mxu0
      %v2048 = vadd.f32 %v475, %v2047
      %v2049 = vpop.f32.mrb[0].mxu0
      %2050 = vmatprep.mubr.bf16.mxu0 %v1223
      %2051 = vmatmul.mubr.bf16.gmra.mrb[0].mxu0 %v1222
      %v2052 = vpop.f32.mrb[0].mxu0
      %v2053 = vadd.f32 %v475, %v2052
      %v2054 = vpop.f32.mrb[0].mxu0
      %v2055 = vpop.f32.mrb[0].mxu0
      %v2056 = vadd.f32 %v475, %v2055
      %v2057 = vpop.f32.mrb[0].mxu0
      %2058 = vmatprep.mubr.bf16.mxu0 %v1226
      %2059 = vmatmul.mubr.bf16.gmra.mrb[0].mxu0 %v1225
      %v2060 = vpop.f32.mrb[0].mxu0
      %v2061 = vadd.f32 %v475, %v2060
      %v2062 = vpop.f32.mrb[0].mxu0
      %v2063 = vpop.f32.mrb[0].mxu0
      %v2064 = vadd.f32 %v475, %v2063
      %v2065 = vpop.f32.mrb[0].mxu0
      %2066 = vmatprep.mubr.bf16.mxu0 %v1229
      %2067 = vmatmul.mubr.bf16.gmra.mrb[0].mxu0 %v1228
      %v2068 = vpop.f32.mrb[0].mxu0
      %v2069 = vadd.f32 %v475, %v2068
      %v2070 = vpop.f32.mrb[0].mxu0
      %v2071 = vpop.f32.mrb[0].mxu0
      %v2072 = vadd.f32 %v475, %v2071
      %v2073 = vpop.f32.mrb[0].mxu0
      %2074 = vmatprep.mubr.bf16.mxu0 %v1232
      %2075 = vmatmul.mubr.bf16.gmra.mrb[0].mxu0 %v1231
      %v2076 = vpop.f32.mrb[0].mxu0
      %v2077 = vadd.f32 %v475, %v2076
      %v2078 = vpop.f32.mrb[0].mxu0
      %v2079 = vpop.f32.mrb[0].mxu0
      %v2080 = vadd.f32 %v475, %v2079
      %v2081 = vpop.f32.mrb[0].mxu0
      %2082 = vmatprep.mubr.bf16.mxu0 %v1235
      %2083 = vmatmul.mubr.bf16.gmra.mrb[0].mxu0 %v1234
      %v2084 = vpop.f32.mrb[0].mxu0
      %v2085 = vadd.f32 %v475, %v2084
      %v2086 = vpop.f32.mrb[0].mxu0
      %v2087 = vpop.f32.mrb[0].mxu0
      %v2088 = vadd.f32 %v475, %v2087
      %v2089 = vpop.f32.mrb[0].mxu0
      %2090 = vmatprep.mubr.bf16.mxu0 %v1238
      %2091 = vmatmul.mubr.bf16.gmra.mrb[0].mxu0 %v1237
      %v2092 = vpop.f32.mrb[0].mxu0
      %v2093 = vadd.f32 %v475, %v2092
      %v2094 = vpop.f32.mrb[0].mxu0
      %v2095 = vpop.f32.mrb[0].mxu0
      %v2096 = vadd.f32 %v475, %v2095
      %v2097 = vpop.f32.mrb[0].mxu0
      %2098 = vmatprep.mubr.bf16.mxu0 %v1241
      %2099 = vmatmul.mubr.bf16.gmra.mrb[0].mxu0 %v1240
      %v2100 = vpop.f32.mrb[0].mxu0
      %v2101 = vadd.f32 %v475, %v2100
      %v2102 = vpop.f32.mrb[0].mxu0
      %v2103 = vpop.f32.mrb[0].mxu0
      %v2104 = vadd.f32 %v475, %v2103
      %v2105 = vpop.f32.mrb[0].mxu0
      %2106 = vmatprep.mubr.bf16.mxu0 %v1244
      %2107 = vmatmul.mubr.bf16.gmra.mrb[0].mxu0 %v1243
      %v2108 = vpop.f32.mrb[0].mxu0
      %v2109 = vadd.f32 %v475, %v2108
      %v2110 = vpop.f32.mrb[0].mxu0
      %v2111 = vpop.f32.mrb[0].mxu0
      %v2112 = vadd.f32 %v475, %v2111
      %v2113 = vpop.f32.mrb[0].mxu0
      %2114 = vmatprep.mubr.bf16.mxu0 %v1247
      %2115 = vmatmul.mubr.bf16.gmra.mrb[0].mxu0 %v1246
      %v2116 = vpop.f32.mrb[0].mxu0
      %v2117 = vadd.f32 %v475, %v2116
      %v2118 = vpop.f32.mrb[0].mxu0
      %v2119 = vpop.f32.mrb[0].mxu0
      %v2120 = vadd.f32 %v475, %v2119
      %v2121 = vpop.f32.mrb[0].mxu0
      %2122 = vmatprep.mubr.bf16.mxu0 %v1250
      %2123 = vmatmul.mubr.bf16.gmra.mrb[0].mxu0 %v1249
      %v2124 = vpop.f32.mrb[0].mxu0
      %v2125 = vadd.f32 %v475, %v2124
      %v2126 = vpop.f32.mrb[0].mxu0
      %v2127 = vpop.f32.mrb[0].mxu0
      %v2128 = vadd.f32 %v475, %v2127
      %v2129 = vpop.f32.mrb[0].mxu0
      %2130 = vmatprep.mubr.bf16.mxu0 %v1253
      %2131 = vmatmul.mubr.bf16.gmra.mrb[0].mxu0 %v1252
      %v2132 = vpop.f32.mrb[0].mxu0
      %v2133 = vadd.f32 %v475, %v2132
      %v2134 = vpop.f32.mrb[0].mxu0
      %v2135 = vpop.f32.mrb[0].mxu0
      %v2136 = vadd.f32 %v475, %v2135
      %v2137 = vpop.f32.mrb[0].mxu0
      %2138 = vmatprep.mubr.bf16.mxu0 %v1256
      %2139 = vmatmul.mubr.bf16.gmra.mrb[0].mxu0 %v1255
      %v2140 = vpop.f32.mrb[0].mxu0
      %v2141 = vadd.f32 %v475, %v2140
      %v2142 = vpop.f32.mrb[0].mxu0
      %v2143 = vpop.f32.mrb[0].mxu0
      %v2144 = vadd.f32 %v475, %v2143
      %v2145 = vpop.f32.mrb[0].mxu0
      %2146 = vmatprep.mubr.bf16.mxu0 %v1259
      %2147 = vmatmul.mubr.bf16.gmra.mrb[0].mxu0 %v1258
      %v2148 = vpop.f32.mrb[0].mxu0
      %v2149 = vadd.f32 %v475, %v2148
      %v2150 = vpop.f32.mrb[0].mxu0
      %v2151 = vpop.f32.mrb[0].mxu0
      %v2152 = vadd.f32 %v475, %v2151
      %v2153 = vpop.f32.mrb[0].mxu0
      %2154 = vmatprep.mubr.bf16.mxu0 %v1262
      %2155 = vmatmul.mubr.bf16.gmra.mrb[0].mxu0 %v1261
      %v2156 = vpop.f32.mrb[0].mxu0
      %v2157 = vadd.f32 %v475, %v2156
      %v2158 = vpop.f32.mrb[0].mxu0
      %v2159 = vpop.f32.mrb[0].mxu0
      %v2160 = vadd.f32 %v475, %v2159
      %v2161 = vpop.f32.mrb[0].mxu0
      %2162 = vmatprep.mubr.bf16.mxu0 %v1265
      %2163 = vmatmul.mubr.bf16.gmra.mrb[0].mxu0 %v1264
      %v2164 = vpop.f32.mrb[0].mxu0
      %v2165 = vadd.f32 %v475, %v2164
      %v2166 = vpop.f32.mrb[0].mxu0
      %v2167 = vpop.f32.mrb[0].mxu0
      %v2168 = vadd.f32 %v475, %v2167
      %v2169 = vpop.f32.mrb[0].mxu0
      %2170 = vmatprep.mubr.bf16.mxu0 %v1268
      %2171 = vmatmul.mubr.bf16.gmra.mrb[0].mxu0 %v1267
      %v2172 = vpop.f32.mrb[0].mxu0
      %v2173 = vadd.f32 %v475, %v2172
      %v2174 = vpop.f32.mrb[0].mxu0
      %v2175 = vpop.f32.mrb[0].mxu0
      %v2176 = vadd.f32 %v475, %v2175
      %v2177 = vpop.f32.mrb[0].mxu0
      %2178 = vmatprep.mubr.bf16.mxu0 %v1271
      %2179 = vmatmul.mubr.bf16.gmra.mrb[0].mxu0 %v1270
      %v2180 = vpop.f32.mrb[0].mxu0
      %v2181 = vadd.f32 %v475, %v2180
      %v2182 = vpop.f32.mrb[0].mxu0
      %v2183 = vpop.f32.mrb[0].mxu0
      %v2184 = vadd.f32 %v475, %v2183
      %v2185 = vpop.f32.mrb[0].mxu0
      %2186 = vmatprep.mubr.bf16.mxu0 %v1274
      %2187 = vmatmul.mubr.bf16.gmra.mrb[0].mxu0 %v1273
      %v2188 = vpop.f32.mrb[0].mxu0
      %v2189 = vadd.f32 %v475, %v2188
      %v2190 = vpop.f32.mrb[0].mxu0
      %v2191 = vpop.f32.mrb[0].mxu0
      %v2192 = vadd.f32 %v475, %v2191
      %v2193 = vpop.f32.mrb[0].mxu0
      %2194 = vmatprep.mubr.bf16.mxu0 %v1277
      %2195 = vmatmul.mubr.bf16.gmra.mrb[0].mxu0 %v1276
      %v2196 = vpop.f32.mrb[0].mxu0
      %v2197 = vadd.f32 %v475, %v2196
      %v2198 = vpop.f32.mrb[0].mxu0
      %v2199 = vpop.f32.mrb[0].mxu0
      %v2200 = vadd.f32 %v475, %v2199
      %v2201 = vpop.f32.mrb[0].mxu0
      %2202 = vmatprep.mubr.bf16.mxu0 %v1280
      %2203 = vmatmul.mubr.bf16.gmra.mrb[0].mxu0 %v1279
      %v2204 = vpop.f32.mrb[0].mxu0
      %v2205 = vadd.f32 %v475, %v2204
      %v2206 = vpop.f32.mrb[0].mxu0
      %v2207 = vpop.f32.mrb[0].mxu0
      %v2208 = vadd.f32 %v475, %v2207
      %v2209 = vpop.f32.mrb[0].mxu0
      %2210 = vmatprep.mubr.bf16.mxu0 %v1283
      %2211 = vmatmul.mubr.bf16.gmra.mrb[0].mxu0 %v1282
      %v2212 = vpop.f32.mrb[0].mxu0
      %v2213 = vadd.f32 %v475, %v2212
      %v2214 = vpop.f32.mrb[0].mxu0
      %v2215 = vpop.f32.mrb[0].mxu0
      %v2216 = vadd.f32 %v475, %v2215
      %v2217 = vpop.f32.mrb[0].mxu0
      %2218 = vmatprep.mubr.bf16.mxu0 %v1286
      %2219 = vmatmul.mubr.bf16.gmra.mrb[0].mxu0 %v1285
      %v2220 = vpop.f32.mrb[0].mxu0
      %v2221 = vadd.f32 %v475, %v2220
      %v2222 = vpop.f32.mrb[0].mxu0
      %v2223 = vpop.f32.mrb[0].mxu0
      %v2224 = vadd.f32 %v475, %v2223
      %v2225 = vpop.f32.mrb[0].mxu0
      %2226 = vmatprep.mubr.bf16.mxu0 %v1289
      %2227 = vmatmul.mubr.bf16.gmra.mrb[0].mxu0 %v1288
      %v2228 = vpop.f32.mrb[0].mxu0
      %v2229 = vadd.f32 %v475, %v2228
      %v2230 = vpop.f32.mrb[0].mxu0
      %v2231 = vpop.f32.mrb[0].mxu0
      %v2232 = vadd.f32 %v475, %v2231
      %v2233 = vpop.f32.mrb[0].mxu0
      %2234 = vmatprep.mubr.bf16.mxu0 %v1292
      %2235 = vmatmul.mubr.bf16.gmra.mrb[0].mxu0 %v1291
      %v2236 = vpop.f32.mrb[0].mxu0
      %v2237 = vadd.f32 %v475, %v2236
      %v2238 = vpop.f32.mrb[0].mxu0
      %v2239 = vpop.f32.mrb[0].mxu0
      %v2240 = vadd.f32 %v475, %v2239
      %v2241 = vpop.f32.mrb[0].mxu0
      %2242 = vmatprep.mubr.bf16.mxu0 %v1295
      %2243 = vmatmul.mubr.bf16.gmra.mrb[0].mxu0 %v1294
      %v2244 = vpop.f32.mrb[0].mxu0
      %v2245 = vadd.f32 %v475, %v2244
      %v2246 = vpop.f32.mrb[0].mxu0
      %v2247 = vpop.f32.mrb[0].mxu0
      %v2248 = vadd.f32 %v475, %v2247
      %v2249 = vpop.f32.mrb[0].mxu0
      %2250 = vmatprep.mubr.bf16.mxu0 %v1298
      %2251 = vmatmul.mubr.bf16.gmra.mrb[0].mxu0 %v1297
      %v2252 = vpop.f32.mrb[0].mxu0
      %v2253 = vadd.f32 %v475, %v2252
      %v2254 = vpop.f32.mrb[0].mxu0
      %v2255 = vpop.f32.mrb[0].mxu0
      %v2256 = vadd.f32 %v475, %v2255
      %v2257 = vpop.f32.mrb[0].mxu0
      %2258 = vmatprep.mubr.bf16.mxu0 %v1301
      %2259 = vmatmul.mubr.bf16.gmra.mrb[0].mxu0 %v1300
      %v2260 = vpop.f32.mrb[0].mxu0
      %v2261 = vadd.f32 %v475, %v2260
      %v2262 = vpop.f32.mrb[0].mxu0
      %v2263 = vpop.f32.mrb[0].mxu0
      %v2264 = vadd.f32 %v475, %v2263
      %v2265 = vpop.f32.mrb[0].mxu0
      %2266 = vmatprep.mubr.bf16.mxu0 %v1304
      %2267 = vmatmul.mubr.bf16.gmra.mrb[0].mxu0 %v1303
      %v2268 = vpop.f32.mrb[0].mxu0
      %v2269 = vadd.f32 %v475, %v2268
      %v2270 = vpop.f32.mrb[0].mxu0
      %v2271 = vpop.f32.mrb[0].mxu0
      %v2272 = vadd.f32 %v475, %v2271
      %v2273 = vpop.f32.mrb[0].mxu0
      %2274 = vmatprep.mubr.bf16.mxu0 %v1307
      %2275 = vmatmul.mubr.bf16.gmra.mrb[0].mxu0 %v1306
      %v2276 = vpop.f32.mrb[0].mxu0
      %v2277 = vadd.f32 %v475, %v2276
      %v2278 = vpop.f32.mrb[0].mxu0
      %v2279 = vpop.f32.mrb[0].mxu0
      %v2280 = vadd.f32 %v475, %v2279
      %v2281 = vpop.f32.mrb[0].mxu0
      %2282 = vdwg.mxu0
      %2283 = vmatprep.subr.bf16.mxu0 0
      %2284 = vmatpush1.bf16.msra.mxu0 %v1525
      %2285 = vmatprep.subr.bf16.mxu0 0
      %2286 = vmatpush1.bf16.msra.mxu0 %v1526
      %2287 = vmatprep.subr.bf16.mxu0 0
      %2288 = vmatpush1.bf16.msra.mxu0 0
      %2289 = vmatprep.subr.bf16.mxu0 0
      %2290 = vmatpush1.bf16.msra.mxu0 0
      %2291 = vmatprep.subr.bf16.mxu0 0
      %2292 = vmatpush1.bf16.msra.mxu0 0
      %2293 = vmatprep.subr.bf16.mxu0 0
      %2294 = vmatpush1.bf16.msra.mxu0 0
      %2295 = vmatprep.subr.bf16.mxu0 0
      %2296 = vmatpush1.bf16.msra.mxu0 0
      %2297 = vmatprep.subr.bf16.mxu0 0
      %2298 = vmatpush1.bf16.msra.mxu0 0
      %2299 = vmatprep.subr.bf16.mxu0 0
      %2300 = vmatpush1.bf16.msra.mxu0 0
      %2301 = vmatprep.subr.bf16.mxu0 0
      %2302 = vmatpush1.bf16.msra.mxu0 0
      %2303 = vmatprep.subr.bf16.mxu0 0
      %2304 = vmatpush1.bf16.msra.mxu0 0
      %2305 = vmatprep.subr.bf16.mxu0 0
      %2306 = vmatpush1.bf16.msra.mxu0 0
      %2307 = vmatprep.subr.bf16.mxu0 0
      %2308 = vmatpush1.bf16.msra.mxu0 0
      %2309 = vmatprep.subr.bf16.mxu0 0
      %2310 = vmatpush1.bf16.msra.mxu0 0
      %2311 = vmatprep.subr.bf16.mxu0 0
      %2312 = vmatpush1.bf16.msra.mxu0 0
      %2313 = vmatprep.subr.bf16.mxu0 0
      %2314 = vmatpush1.bf16.msra.mxu0 0
      %2315 = vmatprep.mubr.bf16.mxu0 0
      %2316 = vmatmul.mubr.bf16.gmra.mrb[0].mxu0 %v1547
      %v2317 = vpop.f32.mrb[0].mxu0
      %v2318 = vadd.f32 %v1773, %v2317
      %v2319 = vpop.f32.mrb[0].mxu0
      %v2320 = vpop.f32.mrb[0].mxu0
      %v2321 = vadd.f32 %v1776, %v2320
      %v2322 = vpop.f32.mrb[0].mxu0
      %2323 = vmatprep.mubr.bf16.mxu0 0
      %2324 = vmatmul.mubr.bf16.gmra.mrb[0].mxu0 %v1550
      %v2325 = vpop.f32.mrb[0].mxu0
      %v2326 = vadd.f32 %v1781, %v2325
      %v2327 = vpop.f32.mrb[0].mxu0
      %v2328 = vpop.f32.mrb[0].mxu0
      %v2329 = vadd.f32 %v1784, %v2328
      %v2330 = vpop.f32.mrb[0].mxu0
      %2331 = vmatprep.mubr.bf16.mxu0 0
      %2332 = vmatmul.mubr.bf16.gmra.mrb[0].mxu0 %v1553
      %v2333 = vpop.f32.mrb[0].mxu0
      %v2334 = vadd.f32 %v1789, %v2333
      %v2335 = vpop.f32.mrb[0].mxu0
      %v2336 = vpop.f32.mrb[0].mxu0
      %v2337 = vadd.f32 %v1792, %v2336
      %v2338 = vpop.f32.mrb[0].mxu0
      %2339 = vmatprep.mubr.bf16.mxu0 0
      %2340 = vmatmul.mubr.bf16.gmra.mrb[0].mxu0 %v1556
      %v2341 = vpop.f32.mrb[0].mxu0
      %v2342 = vadd.f32 %v1797, %v2341
      %v2343 = vpop.f32.mrb[0].mxu0
      %v2344 = vpop.f32.mrb[0].mxu0
      %v2345 = vadd.f32 %v1800, %v2344
      %v2346 = vpop.f32.mrb[0].mxu0
      %2347 = vmatprep.mubr.bf16.mxu0 0
      %2348 = vmatmul.mubr.bf16.gmra.mrb[0].mxu0 %v1559
      %v2349 = vpop.f32.mrb[0].mxu0
      %v2350 = vadd.f32 %v1805, %v2349
      %v2351 = vpop.f32.mrb[0].mxu0
      %v2352 = vpop.f32.mrb[0].mxu0
      %v2353 = vadd.f32 %v1808, %v2352
      %v2354 = vpop.f32.mrb[0].mxu0
      %2355 = vmatprep.mubr.bf16.mxu0 0
      %2356 = vmatmul.mubr.bf16.gmra.mrb[0].mxu0 %v1562
      %v2357 = vpop.f32.mrb[0].mxu0
      %v2358 = vadd.f32 %v1813, %v2357
      %v2359 = vpop.f32.mrb[0].mxu0
      %v2360 = vpop.f32.mrb[0].mxu0
      %v2361 = vadd.f32 %v1816, %v2360
      %v2362 = vpop.f32.mrb[0].mxu0
      %2363 = vmatprep.mubr.bf16.mxu0 0
      %2364 = vmatmul.mubr.bf16.gmra.mrb[0].mxu0 %v1565
      %v2365 = vpop.f32.mrb[0].mxu0
      %v2366 = vadd.f32 %v1821, %v2365
      %v2367 = vpop.f32.mrb[0].mxu0
      %v2368 = vpop.f32.mrb[0].mxu0
      %v2369 = vadd.f32 %v1824, %v2368
      %v2370 = vpop.f32.mrb[0].mxu0
      %2371 = vmatprep.mubr.bf16.mxu0 0
      %2372 = vmatmul.mubr.bf16.gmra.mrb[0].mxu0 %v1568
      %v2373 = vpop.f32.mrb[0].mxu0
      %v2374 = vadd.f32 %v1829, %v2373
      %v2375 = vpop.f32.mrb[0].mxu0
      %v2376 = vpop.f32.mrb[0].mxu0
      %v2377 = vadd.f32 %v1832, %v2376
      %v2378 = vpop.f32.mrb[0].mxu0
      %2379 = vmatprep.mubr.bf16.mxu0 0
      %2380 = vmatmul.mubr.bf16.gmra.mrb[0].mxu0 %v1571
      %v2381 = vpop.f32.mrb[0].mxu0
      %v2382 = vadd.f32 %v1837, %v2381
      %v2383 = vpop.f32.mrb[0].mxu0
      %v2384 = vpop.f32.mrb[0].mxu0
      %v2385 = vadd.f32 %v1840, %v2384
      %v2386 = vpop.f32.mrb[0].mxu0
      %2387 = vmatprep.mubr.bf16.mxu0 0
      %2388 = vmatmul.mubr.bf16.gmra.mrb[0].mxu0 %v1574
      %v2389 = vpop.f32.mrb[0].mxu0
      %v2390 = vadd.f32 %v1845, %v2389
      %v2391 = vpop.f32.mrb[0].mxu0
      %v2392 = vpop.f32.mrb[0].mxu0
      %v2393 = vadd.f32 %v1848, %v2392
      %v2394 = vpop.f32.mrb[0].mxu0
      %2395 = vmatprep.mubr.bf16.mxu0 0
      %2396 = vmatmul.mubr.bf16.gmra.mrb[0].mxu0 %v1577
      %v2397 = vpop.f32.mrb[0].mxu0
      %v2398 = vadd.f32 %v1853, %v2397
      %v2399 = vpop.f32.mrb[0].mxu0
      %v2400 = vpop.f32.mrb[0].mxu0
      %v2401 = vadd.f32 %v1856, %v2400
      %v2402 = vpop.f32.mrb[0].mxu0
      %2403 = vmatprep.mubr.bf16.mxu0 0
      %2404 = vmatmul.mubr.bf16.gmra.mrb[0].mxu0 %v1580
      %v2405 = vpop.f32.mrb[0].mxu0
      %v2406 = vadd.f32 %v1861, %v2405
      %v2407 = vpop.f32.mrb[0].mxu0
      %v2408 = vpop.f32.mrb[0].mxu0
      %v2409 = vadd.f32 %v1864, %v2408
      %v2410 = vpop.f32.mrb[0].mxu0
      %2411 = vmatprep.mubr.bf16.mxu0 0
      %2412 = vmatmul.mubr.bf16.gmra.mrb[0].mxu0 %v1583
      %v2413 = vpop.f32.mrb[0].mxu0
      %v2414 = vadd.f32 %v1869, %v2413
      %v2415 = vpop.f32.mrb[0].mxu0
      %v2416 = vpop.f32.mrb[0].mxu0
      %v2417 = vadd.f32 %v1872, %v2416
      %v2418 = vpop.f32.mrb[0].mxu0
      %2419 = vmatprep.mubr.bf16.mxu0 0
      %2420 = vmatmul.mubr.bf16.gmra.mrb[0].mxu0 %v1586
      %v2421 = vpop.f32.mrb[0].mxu0
      %v2422 = vadd.f32 %v1877, %v2421
      %v2423 = vpop.f32.mrb[0].mxu0
      %v2424 = vpop.f32.mrb[0].mxu0
      %v2425 = vadd.f32 %v1880, %v2424
      %v2426 = vpop.f32.mrb[0].mxu0
      %2427 = vmatprep.mubr.bf16.mxu0 0
      %2428 = vmatmul.mubr.bf16.gmra.mrb[0].mxu0 %v1589
      %v2429 = vpop.f32.mrb[0].mxu0
      %v2430 = vadd.f32 %v1885, %v2429
      %v2431 = vpop.f32.mrb[0].mxu0
      %v2432 = vpop.f32.mrb[0].mxu0
      %v2433 = vadd.f32 %v1888, %v2432
      %v2434 = vpop.f32.mrb[0].mxu0
      %2435 = vmatprep.mubr.bf16.mxu0 0
      %2436 = vmatmul.mubr.bf16.gmra.mrb[0].mxu0 %v1592
      %v2437 = vpop.f32.mrb[0].mxu0
      %v2438 = vadd.f32 %v1893, %v2437
      %v2439 = vpop.f32.mrb[0].mxu0
      %v2440 = vpop.f32.mrb[0].mxu0
      %v2441 = vadd.f32 %v1896, %v2440
      %v2442 = vpop.f32.mrb[0].mxu0
      %2443 = vmatprep.mubr.bf16.mxu0 0
      %2444 = vmatmul.mubr.bf16.gmra.mrb[0].mxu0 %v1595
      %v2445 = vpop.f32.mrb[0].mxu0
      %v2446 = vadd.f32 %v1901, %v2445
      %v2447 = vpop.f32.mrb[0].mxu0
      %v2448 = vpop.f32.mrb[0].mxu0
      %v2449 = vadd.f32 %v1904, %v2448
      %v2450 = vpop.f32.mrb[0].mxu0
      %2451 = vmatprep.mubr.bf16.mxu0 0
      %2452 = vmatmul.mubr.bf16.gmra.mrb[0].mxu0 %v1598
      %v2453 = vpop.f32.mrb[0].mxu0
      %v2454 = vadd.f32 %v1909, %v2453
      %v2455 = vpop.f32.mrb[0].mxu0
      %v2456 = vpop.f32.mrb[0].mxu0
      %v2457 = vadd.f32 %v1912, %v2456
      %v2458 = vpop.f32.mrb[0].mxu0
      %2459 = vmatprep.mubr.bf16.mxu0 0
      %2460 = vmatmul.mubr.bf16.gmra.mrb[0].mxu0 %v1601
      %v2461 = vpop.f32.mrb[0].mxu0
      %v2462 = vadd.f32 %v1917, %v2461
      %v2463 = vpop.f32.mrb[0].mxu0
      %v2464 = vpop.f32.mrb[0].mxu0
      %v2465 = vadd.f32 %v1920, %v2464
      %v2466 = vpop.f32.mrb[0].mxu0
      %2467 = vmatprep.mubr.bf16.mxu0 0
      %2468 = vmatmul.mubr.bf16.gmra.mrb[0].mxu0 %v1604
      %v2469 = vpop.f32.mrb[0].mxu0
      %v2470 = vadd.f32 %v1925, %v2469
      %v2471 = vpop.f32.mrb[0].mxu0
      %v2472 = vpop.f32.mrb[0].mxu0
      %v2473 = vadd.f32 %v1928, %v2472
      %v2474 = vpop.f32.mrb[0].mxu0
      %2475 = vmatprep.mubr.bf16.mxu0 0
      %2476 = vmatmul.mubr.bf16.gmra.mrb[0].mxu0 %v1607
      %v2477 = vpop.f32.mrb[0].mxu0
      %v2478 = vadd.f32 %v1933, %v2477
      %v2479 = vpop.f32.mrb[0].mxu0
      %v2480 = vpop.f32.mrb[0].mxu0
      %v2481 = vadd.f32 %v1936, %v2480
      %v2482 = vpop.f32.mrb[0].mxu0
      %2483 = vmatprep.mubr.bf16.mxu0 0
      %2484 = vmatmul.mubr.bf16.gmra.mrb[0].mxu0 %v1610
      %v2485 = vpop.f32.mrb[0].mxu0
      %v2486 = vadd.f32 %v1941, %v2485
      %v2487 = vpop.f32.mrb[0].mxu0
      %v2488 = vpop.f32.mrb[0].mxu0
      %v2489 = vadd.f32 %v1944, %v2488
      %v2490 = vpop.f32.mrb[0].mxu0
      %2491 = vmatprep.mubr.bf16.mxu0 0
      %2492 = vmatmul.mubr.bf16.gmra.mrb[0].mxu0 %v1613
      %v2493 = vpop.f32.mrb[0].mxu0
      %v2494 = vadd.f32 %v1949, %v2493
      %v2495 = vpop.f32.mrb[0].mxu0
      %v2496 = vpop.f32.mrb[0].mxu0
      %v2497 = vadd.f32 %v1952, %v2496
      %v2498 = vpop.f32.mrb[0].mxu0
      %2499 = vmatprep.mubr.bf16.mxu0 0
      %2500 = vmatmul.mubr.bf16.gmra.mrb[0].mxu0 %v1616
      %v2501 = vpop.f32.mrb[0].mxu0
      %v2502 = vadd.f32 %v1957, %v2501
      %v2503 = vpop.f32.mrb[0].mxu0
      %v2504 = vpop.f32.mrb[0].mxu0
      %v2505 = vadd.f32 %v1960, %v2504
      %v2506 = vpop.f32.mrb[0].mxu0
      %2507 = vmatprep.mubr.bf16.mxu0 0
      %2508 = vmatmul.mubr.bf16.gmra.mrb[0].mxu0 %v1619
      %v2509 = vpop.f32.mrb[0].mxu0
      %v2510 = vadd.f32 %v1965, %v2509
      %v2511 = vpop.f32.mrb[0].mxu0
      %v2512 = vpop.f32.mrb[0].mxu0
      %v2513 = vadd.f32 %v1968, %v2512
      %v2514 = vpop.f32.mrb[0].mxu0
      %2515 = vmatprep.mubr.bf16.mxu0 0
      %2516 = vmatmul.mubr.bf16.gmra.mrb[0].mxu0 %v1622
      %v2517 = vpop.f32.mrb[0].mxu0
      %v2518 = vadd.f32 %v1973, %v2517
      %v2519 = vpop.f32.mrb[0].mxu0
      %v2520 = vpop.f32.mrb[0].mxu0
      %v2521 = vadd.f32 %v1976, %v2520
      %v2522 = vpop.f32.mrb[0].mxu0
      %2523 = vmatprep.mubr.bf16.mxu0 0
      %2524 = vmatmul.mubr.bf16.gmra.mrb[0].mxu0 %v1625
      %v2525 = vpop.f32.mrb[0].mxu0
      %v2526 = vadd.f32 %v1981, %v2525
      %v2527 = vpop.f32.mrb[0].mxu0
      %v2528 = vpop.f32.mrb[0].mxu0
      %v2529 = vadd.f32 %v1984, %v2528
      %v2530 = vpop.f32.mrb[0].mxu0
      %2531 = vmatprep.mubr.bf16.mxu0 0
      %2532 = vmatmul.mubr.bf16.gmra.mrb[0].mxu0 %v1628
      %v2533 = vpop.f32.mrb[0].mxu0
      %v2534 = vadd.f32 %v1989, %v2533
      %v2535 = vpop.f32.mrb[0].mxu0
      %v2536 = vpop.f32.mrb[0].mxu0
      %v2537 = vadd.f32 %v1992, %v2536
      %v2538 = vpop.f32.mrb[0].mxu0
      %2539 = vmatprep.mubr.bf16.mxu0 0
      %2540 = vmatmul.mubr.bf16.gmra.mrb[0].mxu0 %v1631
      %v2541 = vpop.f32.mrb[0].mxu0
      %v2542 = vadd.f32 %v1997, %v2541
      %v2543 = vpop.f32.mrb[0].mxu0
      %v2544 = vpop.f32.mrb[0].mxu0
      %v2545 = vadd.f32 %v2000, %v2544
      %v2546 = vpop.f32.mrb[0].mxu0
      %2547 = vmatprep.mubr.bf16.mxu0 0
      %2548 = vmatmul.mubr.bf16.gmra.mrb[0].mxu0 %v1634
      %v2549 = vpop.f32.mrb[0].mxu0
      %v2550 = vadd.f32 %v2005, %v2549
      %v2551 = vpop.f32.mrb[0].mxu0
      %v2552 = vpop.f32.mrb[0].mxu0
      %v2553 = vadd.f32 %v2008, %v2552
      %v2554 = vpop.f32.mrb[0].mxu0
      %2555 = vmatprep.mubr.bf16.mxu0 0
      %2556 = vmatmul.mubr.bf16.gmra.mrb[0].mxu0 %v1637
      %v2557 = vpop.f32.mrb[0].mxu0
      %v2558 = vadd.f32 %v2013, %v2557
      %v2559 = vpop.f32.mrb[0].mxu0
      %v2560 = vpop.f32.mrb[0].mxu0
      %v2561 = vadd.f32 %v2016, %v2560
      %v2562 = vpop.f32.mrb[0].mxu0
      %2563 = vmatprep.mubr.bf16.mxu0 0
      %2564 = vmatmul.mubr.bf16.gmra.mrb[0].mxu0 %v1640
      %v2565 = vpop.f32.mrb[0].mxu0
      %v2566 = vadd.f32 %v2021, %v2565
      %v2567 = vpop.f32.mrb[0].mxu0
      %v2568 = vpop.f32.mrb[0].mxu0
      %v2569 = vadd.f32 %v2024, %v2568
      %v2570 = vpop.f32.mrb[0].mxu0
      %2571 = vmatprep.mubr.bf16.mxu0 0
      %2572 = vmatmul.mubr.bf16.gmra.mrb[0].mxu0 %v1643
      %v2573 = vpop.f32.mrb[0].mxu0
      %v2574 = vadd.f32 %v2029, %v2573
      %v2575 = vpop.f32.mrb[0].mxu0
      %v2576 = vpop.f32.mrb[0].mxu0
      %v2577 = vadd.f32 %v2032, %v2576
      %v2578 = vpop.f32.mrb[0].mxu0
      %2579 = vmatprep.mubr.bf16.mxu0 0
      %2580 = vmatmul.mubr.bf16.gmra.mrb[0].mxu0 %v1646
      %v2581 = vpop.f32.mrb[0].mxu0
      %v2582 = vadd.f32 %v2037, %v2581
      %v2583 = vpop.f32.mrb[0].mxu0
      %v2584 = vpop.f32.mrb[0].mxu0
      %v2585 = vadd.f32 %v2040, %v2584
      %v2586 = vpop.f32.mrb[0].mxu0
      %2587 = vmatprep.mubr.bf16.mxu0 0
      %2588 = vmatmul.mubr.bf16.gmra.mrb[0].mxu0 %v1649
      %v2589 = vpop.f32.mrb[0].mxu0
      %v2590 = vadd.f32 %v2045, %v2589
      %v2591 = vpop.f32.mrb[0].mxu0
      %v2592 = vpop.f32.mrb[0].mxu0
      %v2593 = vadd.f32 %v2048, %v2592
      %v2594 = vpop.f32.mrb[0].mxu0
      %2595 = vmatprep.mubr.bf16.mxu0 0
      %2596 = vmatmul.mubr.bf16.gmra.mrb[0].mxu0 %v1652
      %v2597 = vpop.f32.mrb[0].mxu0
      %v2598 = vadd.f32 %v2053, %v2597
      %v2599 = vpop.f32.mrb[0].mxu0
      %v2600 = vpop.f32.mrb[0].mxu0
      %v2601 = vadd.f32 %v2056, %v2600
      %v2602 = vpop.f32.mrb[0].mxu0
      %2603 = vmatprep.mubr.bf16.mxu0 0
      %2604 = vmatmul.mubr.bf16.gmra.mrb[0].mxu0 %v1655
      %v2605 = vpop.f32.mrb[0].mxu0
      %v2606 = vadd.f32 %v2061, %v2605
      %v2607 = vpop.f32.mrb[0].mxu0
      %v2608 = vpop.f32.mrb[0].mxu0
      %v2609 = vadd.f32 %v2064, %v2608
      %v2610 = vpop.f32.mrb[0].mxu0
      %2611 = vmatprep.mubr.bf16.mxu0 0
      %2612 = vmatmul.mubr.bf16.gmra.mrb[0].mxu0 %v1658
      %v2613 = vpop.f32.mrb[0].mxu0
      %v2614 = vadd.f32 %v2069, %v2613
      %v2615 = vpop.f32.mrb[0].mxu0
      %v2616 = vpop.f32.mrb[0].mxu0
      %v2617 = vadd.f32 %v2072, %v2616
      %v2618 = vpop.f32.mrb[0].mxu0
      %2619 = vmatprep.mubr.bf16.mxu0 0
      %2620 = vmatmul.mubr.bf16.gmra.mrb[0].mxu0 %v1661
      %v2621 = vpop.f32.mrb[0].mxu0
      %v2622 = vadd.f32 %v2077, %v2621
      %v2623 = vpop.f32.mrb[0].mxu0
      %v2624 = vpop.f32.mrb[0].mxu0
      %v2625 = vadd.f32 %v2080, %v2624
      %v2626 = vpop.f32.mrb[0].mxu0
      %2627 = vmatprep.mubr.bf16.mxu0 0
      %2628 = vmatmul.mubr.bf16.gmra.mrb[0].mxu0 %v1664
      %v2629 = vpop.f32.mrb[0].mxu0
      %v2630 = vadd.f32 %v2085, %v2629
      %v2631 = vpop.f32.mrb[0].mxu0
      %v2632 = vpop.f32.mrb[0].mxu0
      %v2633 = vadd.f32 %v2088, %v2632
      %v2634 = vpop.f32.mrb[0].mxu0
      %2635 = vmatprep.mubr.bf16.mxu0 0
      %2636 = vmatmul.mubr.bf16.gmra.mrb[0].mxu0 %v1667
      %v2637 = vpop.f32.mrb[0].mxu0
      %v2638 = vadd.f32 %v2093, %v2637
      %v2639 = vpop.f32.mrb[0].mxu0
      %v2640 = vpop.f32.mrb[0].mxu0
      %v2641 = vadd.f32 %v2096, %v2640
      %v2642 = vpop.f32.mrb[0].mxu0
      %2643 = vmatprep.mubr.bf16.mxu0 0
      %2644 = vmatmul.mubr.bf16.gmra.mrb[0].mxu0 %v1670
      %v2645 = vpop.f32.mrb[0].mxu0
      %v2646 = vadd.f32 %v2101, %v2645
      %v2647 = vpop.f32.mrb[0].mxu0
      %v2648 = vpop.f32.mrb[0].mxu0
      %v2649 = vadd.f32 %v2104, %v2648
      %v2650 = vpop.f32.mrb[0].mxu0
      %2651 = vmatprep.mubr.bf16.mxu0 0
      %2652 = vmatmul.mubr.bf16.gmra.mrb[0].mxu0 %v1673
      %v2653 = vpop.f32.mrb[0].mxu0
      %v2654 = vadd.f32 %v2109, %v2653
      %v2655 = vpop.f32.mrb[0].mxu0
      %v2656 = vpop.f32.mrb[0].mxu0
      %v2657 = vadd.f32 %v2112, %v2656
      %v2658 = vpop.f32.mrb[0].mxu0
      %2659 = vmatprep.mubr.bf16.mxu0 0
      %2660 = vmatmul.mubr.bf16.gmra.mrb[0].mxu0 %v1676
      %v2661 = vpop.f32.mrb[0].mxu0
      %v2662 = vadd.f32 %v2117, %v2661
      %v2663 = vpop.f32.mrb[0].mxu0
      %v2664 = vpop.f32.mrb[0].mxu0
      %v2665 = vadd.f32 %v2120, %v2664
      %v2666 = vpop.f32.mrb[0].mxu0
      %2667 = vmatprep.mubr.bf16.mxu0 0
      %2668 = vmatmul.mubr.bf16.gmra.mrb[0].mxu0 %v1679
      %v2669 = vpop.f32.mrb[0].mxu0
      %v2670 = vadd.f32 %v2125, %v2669
      %v2671 = vpop.f32.mrb[0].mxu0
      %v2672 = vpop.f32.mrb[0].mxu0
      %v2673 = vadd.f32 %v2128, %v2672
      %v2674 = vpop.f32.mrb[0].mxu0
      %2675 = vmatprep.mubr.bf16.mxu0 0
      %2676 = vmatmul.mubr.bf16.gmra.mrb[0].mxu0 %v1682
      %v2677 = vpop.f32.mrb[0].mxu0
      %v2678 = vadd.f32 %v2133, %v2677
      %v2679 = vpop.f32.mrb[0].mxu0
      %v2680 = vpop.f32.mrb[0].mxu0
      %v2681 = vadd.f32 %v2136, %v2680
      %v2682 = vpop.f32.mrb[0].mxu0
      %2683 = vmatprep.mubr.bf16.mxu0 0
      %2684 = vmatmul.mubr.bf16.gmra.mrb[0].mxu0 %v1685
      %v2685 = vpop.f32.mrb[0].mxu0
      %v2686 = vadd.f32 %v2141, %v2685
      %v2687 = vpop.f32.mrb[0].mxu0
      %v2688 = vpop.f32.mrb[0].mxu0
      %v2689 = vadd.f32 %v2144, %v2688
      %v2690 = vpop.f32.mrb[0].mxu0
      %2691 = vmatprep.mubr.bf16.mxu0 0
      %2692 = vmatmul.mubr.bf16.gmra.mrb[0].mxu0 %v1688
      %v2693 = vpop.f32.mrb[0].mxu0
      %v2694 = vadd.f32 %v2149, %v2693
      %v2695 = vpop.f32.mrb[0].mxu0
      %v2696 = vpop.f32.mrb[0].mxu0
      %v2697 = vadd.f32 %v2152, %v2696
      %v2698 = vpop.f32.mrb[0].mxu0
      %2699 = vmatprep.mubr.bf16.mxu0 0
      %2700 = vmatmul.mubr.bf16.gmra.mrb[0].mxu0 %v1691
      %v2701 = vpop.f32.mrb[0].mxu0
      %v2702 = vadd.f32 %v2157, %v2701
      %v2703 = vpop.f32.mrb[0].mxu0
      %v2704 = vpop.f32.mrb[0].mxu0
      %v2705 = vadd.f32 %v2160, %v2704
      %v2706 = vpop.f32.mrb[0].mxu0
      %2707 = vmatprep.mubr.bf16.mxu0 0
      %2708 = vmatmul.mubr.bf16.gmra.mrb[0].mxu0 %v1694
      %v2709 = vpop.f32.mrb[0].mxu0
      %v2710 = vadd.f32 %v2165, %v2709
      %v2711 = vpop.f32.mrb[0].mxu0
      %v2712 = vpop.f32.mrb[0].mxu0
      %v2713 = vadd.f32 %v2168, %v2712
      %v2714 = vpop.f32.mrb[0].mxu0
      %2715 = vmatprep.mubr.bf16.mxu0 0
      %2716 = vmatmul.mubr.bf16.gmra.mrb[0].mxu0 %v1697
      %v2717 = vpop.f32.mrb[0].mxu0
      %v2718 = vadd.f32 %v2173, %v2717
      %v2719 = vpop.f32.mrb[0].mxu0
      %v2720 = vpop.f32.mrb[0].mxu0
      %v2721 = vadd.f32 %v2176, %v2720
      %v2722 = vpop.f32.mrb[0].mxu0
      %2723 = vmatprep.mubr.bf16.mxu0 0
      %2724 = vmatmul.mubr.bf16.gmra.mrb[0].mxu0 %v1700
      %v2725 = vpop.f32.mrb[0].mxu0
      %v2726 = vadd.f32 %v2181, %v2725
      %v2727 = vpop.f32.mrb[0].mxu0
      %v2728 = vpop.f32.mrb[0].mxu0
      %v2729 = vadd.f32 %v2184, %v2728
      %v2730 = vpop.f32.mrb[0].mxu0
      %2731 = vmatprep.mubr.bf16.mxu0 0
      %2732 = vmatmul.mubr.bf16.gmra.mrb[0].mxu0 %v1703
      %v2733 = vpop.f32.mrb[0].mxu0
      %v2734 = vadd.f32 %v2189, %v2733
      %v2735 = vpop.f32.mrb[0].mxu0
      %v2736 = vpop.f32.mrb[0].mxu0
      %v2737 = vadd.f32 %v2192, %v2736
      %v2738 = vpop.f32.mrb[0].mxu0
      %2739 = vmatprep.mubr.bf16.mxu0 0
      %2740 = vmatmul.mubr.bf16.gmra.mrb[0].mxu0 %v1706
      %v2741 = vpop.f32.mrb[0].mxu0
      %v2742 = vadd.f32 %v2197, %v2741
      %v2743 = vpop.f32.mrb[0].mxu0
      %v2744 = vpop.f32.mrb[0].mxu0
      %v2745 = vadd.f32 %v2200, %v2744
      %v2746 = vpop.f32.mrb[0].mxu0
      %2747 = vmatprep.mubr.bf16.mxu0 0
      %2748 = vmatmul.mubr.bf16.gmra.mrb[0].mxu0 %v1709
      %v2749 = vpop.f32.mrb[0].mxu0
      %v2750 = vadd.f32 %v2205, %v2749
      %v2751 = vpop.f32.mrb[0].mxu0
      %v2752 = vpop.f32.mrb[0].mxu0
      %v2753 = vadd.f32 %v2208, %v2752
      %v2754 = vpop.f32.mrb[0].mxu0
      %2755 = vmatprep.mubr.bf16.mxu0 0
      %2756 = vmatmul.mubr.bf16.gmra.mrb[0].mxu0 %v1712
      %v2757 = vpop.f32.mrb[0].mxu0
      %v2758 = vadd.f32 %v2213, %v2757
      %v2759 = vpop.f32.mrb[0].mxu0
      %v2760 = vpop.f32.mrb[0].mxu0
      %v2761 = vadd.f32 %v2216, %v2760
      %v2762 = vpop.f32.mrb[0].mxu0
      %2763 = vmatprep.mubr.bf16.mxu0 0
      %2764 = vmatmul.mubr.bf16.gmra.mrb[0].mxu0 %v1715
      %v2765 = vpop.f32.mrb[0].mxu0
      %v2766 = vadd.f32 %v2221, %v2765
      %v2767 = vpop.f32.mrb[0].mxu0
      %v2768 = vpop.f32.mrb[0].mxu0
      %v2769 = vadd.f32 %v2224, %v2768
      %v2770 = vpop.f32.mrb[0].mxu0
      %2771 = vmatprep.mubr.bf16.mxu0 0
      %2772 = vmatmul.mubr.bf16.gmra.mrb[0].mxu0 %v1718
      %v2773 = vpop.f32.mrb[0].mxu0
      %v2774 = vadd.f32 %v2229, %v2773
      %v2775 = vpop.f32.mrb[0].mxu0
      %v2776 = vpop.f32.mrb[0].mxu0
      %v2777 = vadd.f32 %v2232, %v2776
      %v2778 = vpop.f32.mrb[0].mxu0
      %2779 = vmatprep.mubr.bf16.mxu0 0
      %2780 = vmatmul.mubr.bf16.gmra.mrb[0].mxu0 %v1721
      %v2781 = vpop.f32.mrb[0].mxu0
      %v2782 = vadd.f32 %v2237, %v2781
      %v2783 = vpop.f32.mrb[0].mxu0
      %v2784 = vpop.f32.mrb[0].mxu0
      %v2785 = vadd.f32 %v2240, %v2784
      %v2786 = vpop.f32.mrb[0].mxu0
      %2787 = vmatprep.mubr.bf16.mxu0 0
      %2788 = vmatmul.mubr.bf16.gmra.mrb[0].mxu0 %v1724
      %v2789 = vpop.f32.mrb[0].mxu0
      %v2790 = vadd.f32 %v2245, %v2789
      %v2791 = vpop.f32.mrb[0].mxu0
      %v2792 = vpop.f32.mrb[0].mxu0
      %v2793 = vadd.f32 %v2248, %v2792
      %v2794 = vpop.f32.mrb[0].mxu0
      %2795 = vmatprep.mubr.bf16.mxu0 0
      %2796 = vmatmul.mubr.bf16.gmra.mrb[0].mxu0 %v1727
      %v2797 = vpop.f32.mrb[0].mxu0
      %v2798 = vadd.f32 %v2253, %v2797
      %v2799 = vpop.f32.mrb[0].mxu0
      %v2800 = vpop.f32.mrb[0].mxu0
      %v2801 = vadd.f32 %v2256, %v2800
      %v2802 = vpop.f32.mrb[0].mxu0
      %2803 = vmatprep.mubr.bf16.mxu0 0
      %2804 = vmatmul.mubr.bf16.gmra.mrb[0].mxu0 %v1730
      %v2805 = vpop.f32.mrb[0].mxu0
      %v2806 = vadd.f32 %v2261, %v2805
      %v2807 = vpop.f32.mrb[0].mxu0
      %v2808 = vpop.f32.mrb[0].mxu0
      %v2809 = vadd.f32 %v2264, %v2808
      %v2810 = vpop.f32.mrb[0].mxu0
      %2811 = vmatprep.mubr.bf16.mxu0 0
      %2812 = vmatmul.mubr.bf16.gmra.mrb[0].mxu0 %v1733
      %v2813 = vpop.f32.mrb[0].mxu0
      %v2814 = vadd.f32 %v2269, %v2813
      %v2815 = vpop.f32.mrb[0].mxu0
      %v2816 = vpop.f32.mrb[0].mxu0
      %v2817 = vadd.f32 %v2272, %v2816
      %v2818 = vpop.f32.mrb[0].mxu0
      %2819 = vmatprep.mubr.bf16.mxu0 0
      %2820 = vmatmul.mubr.bf16.gmra.mrb[0].mxu0 %v1736
      %v2821 = vpop.f32.mrb[0].mxu0
      %v2822 = vadd.f32 %v2277, %v2821
      %v2823 = vpop.f32.mrb[0].mxu0
      %v2824 = vpop.f32.mrb[0].mxu0
      %v2825 = vadd.f32 %v2280, %v2824
      %v2826 = vpop.f32.mrb[0].mxu0
      %2827 = vdwg.mxu0
      %2828 = vst [vmem:[%s175] sm:$0xff] %v2318
      %2829 = vst [vmem:[%s175 + $0x8] sm:$0xff] %v2321
      %2830 = vst [vmem:[%s175 + $0x10] sm:$0xff] %v2326
      %2831 = vst [vmem:[%s175 + $0x18] sm:$0xff] %v2329
      %2832 = vst [vmem:[%s175 + $0x20] sm:$0xff] %v2334
      %2833 = vst [vmem:[%s175 + $0x28] sm:$0xff] %v2337
      %2834 = vst [vmem:[%s175 + $0x30] sm:$0xff] %v2342
      %2835 = vst [vmem:[%s175 + $0x38] sm:$0xff] %v2345
      %2836 = vst [vmem:[%s175 + $0x40] sm:$0xff] %v2350
      %2837 = vst [vmem:[%s175 + $0x48] sm:$0xff] %v2353
      %2838 = vst [vmem:[%s175 + $0x50] sm:$0xff] %v2358
      %2839 = vst [vmem:[%s175 + $0x58] sm:$0xff] %v2361
      %2840 = vst [vmem:[%s175 + $0x60] sm:$0xff] %v2366
      %2841 = vst [vmem:[%s175 + $0x68] sm:$0xff] %v2369
      %2842 = vst [vmem:[%s175 + $0x70] sm:$0xff] %v2374
      %2843 = vst [vmem:[%s175 + $0x78] sm:$0xff] %v2377
      %2844 = vst [vmem:[%s175 + $0x80] sm:$0xff] %v2382
      %2845 = vst [vmem:[%s175 + $0x88] sm:$0xff] %v2385
      %2846 = vst [vmem:[%s175 + $0x90] sm:$0xff] %v2390
      %2847 = vst [vmem:[%s175 + $0x98] sm:$0xff] %v2393
      %2848 = vst [vmem:[%s175 + $0xa0] sm:$0xff] %v2398
      %2849 = vst [vmem:[%s175 + $0xa8] sm:$0xff] %v2401
      %2850 = vst [vmem:[%s175 + $0xb0] sm:$0xff] %v2406
      %2851 = vst [vmem:[%s175 + $0xb8] sm:$0xff] %v2409
      %2852 = vst [vmem:[%s175 + $0xc0] sm:$0xff] %v2414
      %2853 = vst [vmem:[%s175 + $0xc8] sm:$0xff] %v2417
      %2854 = vst [vmem:[%s175 + $0xd0] sm:$0xff] %v2422
      %2855 = vst [vmem:[%s175 + $0xd8] sm:$0xff] %v2425
      %2856 = vst [vmem:[%s175 + $0xe0] sm:$0xff] %v2430
      %2857 = vst [vmem:[%s175 + $0xe8] sm:$0xff] %v2433
      %2858 = vst [vmem:[%s175 + $0xf0] sm:$0xff] %v2438
      %2859 = vst [vmem:[%s175 + $0xf8] sm:$0xff] %v2441
      %2860 = vst [vmem:[%s175 + $0x100] sm:$0xff] %v2446
      %2861 = vst [vmem:[%s175 + $0x108] sm:$0xff] %v2449
      %2862 = vst [vmem:[%s175 + $0x110] sm:$0xff] %v2454
      %2863 = vst [vmem:[%s175 + $0x118] sm:$0xff] %v2457
      %2864 = vst [vmem:[%s175 + $0x120] sm:$0xff] %v2462
      %2865 = vst [vmem:[%s175 + $0x128] sm:$0xff] %v2465
      %2866 = vst [vmem:[%s175 + $0x130] sm:$0xff] %v2470
      %2867 = vst [vmem:[%s175 + $0x138] sm:$0xff] %v2473
      %2868 = vst [vmem:[%s175 + $0x140] sm:$0xff] %v2478
      %2869 = vst [vmem:[%s175 + $0x148] sm:$0xff] %v2481
      %2870 = vst [vmem:[%s175 + $0x150] sm:$0xff] %v2486
      %2871 = vst [vmem:[%s175 + $0x158] sm:$0xff] %v2489
      %2872 = vst [vmem:[%s175 + $0x160] sm:$0xff] %v2494
      %2873 = vst [vmem:[%s175 + $0x168] sm:$0xff] %v2497
      %2874 = vst [vmem:[%s175 + $0x170] sm:$0xff] %v2502
      %2875 = vst [vmem:[%s175 + $0x178] sm:$0xff] %v2505
      %2876 = vst [vmem:[%s175 + $0x180] sm:$0xff] %v2510
      %2877 = vst [vmem:[%s175 + $0x188] sm:$0xff] %v2513
      %2878 = vst [vmem:[%s175 + $0x190] sm:$0xff] %v2518
      %2879 = vst [vmem:[%s175 + $0x198] sm:$0xff] %v2521
      %2880 = vst [vmem:[%s175 + $0x1a0] sm:$0xff] %v2526
      %2881 = vst [vmem:[%s175 + $0x1a8] sm:$0xff] %v2529
      %2882 = vst [vmem:[%s175 + $0x1b0] sm:$0xff] %v2534
      %2883 = vst [vmem:[%s175 + $0x1b8] sm:$0xff] %v2537
      %2884 = vst [vmem:[%s175 + $0x1c0] sm:$0xff] %v2542
      %2885 = vst [vmem:[%s175 + $0x1c8] sm:$0xff] %v2545
      %2886 = vst [vmem:[%s175 + $0x1d0] sm:$0xff] %v2550
      %2887 = vst [vmem:[%s175 + $0x1d8] sm:$0xff] %v2553
      %2888 = vst [vmem:[%s175 + $0x1e0] sm:$0xff] %v2558
      %2889 = vst [vmem:[%s175 + $0x1e8] sm:$0xff] %v2561
      %2890 = vst [vmem:[%s175 + $0x1f0] sm:$0xff] %v2566
      %2891 = vst [vmem:[%s175 + $0x1f8] sm:$0xff] %v2569
      %2892 = vst [vmem:[%s175 + $0x200] sm:$0xff] %v2574
      %2893 = vst [vmem:[%s175 + $0x208] sm:$0xff] %v2577
      %2894 = vst [vmem:[%s175 + $0x210] sm:$0xff] %v2582
      %2895 = vst [vmem:[%s175 + $0x218] sm:$0xff] %v2585
      %2896 = vst [vmem:[%s175 + $0x220] sm:$0xff] %v2590
      %2897 = vst [vmem:[%s175 + $0x228] sm:$0xff] %v2593
      %2898 = vst [vmem:[%s175 + $0x230] sm:$0xff] %v2598
      %2899 = vst [vmem:[%s175 + $0x238] sm:$0xff] %v2601
      %2900 = vst [vmem:[%s175 + $0x240] sm:$0xff] %v2606
      %2901 = vst [vmem:[%s175 + $0x248] sm:$0xff] %v2609
      %2902 = vst [vmem:[%s175 + $0x250] sm:$0xff] %v2614
      %2903 = vst [vmem:[%s175 + $0x258] sm:$0xff] %v2617
      %2904 = vst [vmem:[%s175 + $0x260] sm:$0xff] %v2622
      %2905 = vst [vmem:[%s175 + $0x268] sm:$0xff] %v2625
      %2906 = vst [vmem:[%s175 + $0x270] sm:$0xff] %v2630
      %2907 = vst [vmem:[%s175 + $0x278] sm:$0xff] %v2633
      %2908 = vst [vmem:[%s175 + $0x280] sm:$0xff] %v2638
      %2909 = vst [vmem:[%s175 + $0x288] sm:$0xff] %v2641
      %2910 = vst [vmem:[%s175 + $0x290] sm:$0xff] %v2646
      %2911 = vst [vmem:[%s175 + $0x298] sm:$0xff] %v2649
      %2912 = vst [vmem:[%s175 + $0x2a0] sm:$0xff] %v2654
      %2913 = vst [vmem:[%s175 + $0x2a8] sm:$0xff] %v2657
      %2914 = vst [vmem:[%s175 + $0x2b0] sm:$0xff] %v2662
      %2915 = vst [vmem:[%s175 + $0x2b8] sm:$0xff] %v2665
      %2916 = vst [vmem:[%s175 + $0x2c0] sm:$0xff] %v2670
      %2917 = vst [vmem:[%s175 + $0x2c8] sm:$0xff] %v2673
      %2918 = vst [vmem:[%s175 + $0x2d0] sm:$0xff] %v2678
      %2919 = vst [vmem:[%s175 + $0x2d8] sm:$0xff] %v2681
      %2920 = vst [vmem:[%s175 + $0x2e0] sm:$0xff] %v2686
      %2921 = vst [vmem:[%s175 + $0x2e8] sm:$0xff] %v2689
      %2922 = vst [vmem:[%s175 + $0x2f0] sm:$0xff] %v2694
      %2923 = vst [vmem:[%s175 + $0x2f8] sm:$0xff] %v2697
      %2924 = vst [vmem:[%s175 + $0x300] sm:$0xff] %v2702
      %2925 = vst [vmem:[%s175 + $0x308] sm:$0xff] %v2705
      %2926 = vst [vmem:[%s175 + $0x310] sm:$0xff] %v2710
      %2927 = vst [vmem:[%s175 + $0x318] sm:$0xff] %v2713
      %2928 = vst [vmem:[%s175 + $0x320] sm:$0xff] %v2718
      %2929 = vst [vmem:[%s175 + $0x328] sm:$0xff] %v2721
      %2930 = vst [vmem:[%s175 + $0x330] sm:$0xff] %v2726
      %2931 = vst [vmem:[%s175 + $0x338] sm:$0xff] %v2729
      %2932 = vst [vmem:[%s175 + $0x340] sm:$0xff] %v2734
      %2933 = vst [vmem:[%s175 + $0x348] sm:$0xff] %v2737
      %2934 = vst [vmem:[%s175 + $0x350] sm:$0xff] %v2742
      %2935 = vst [vmem:[%s175 + $0x358] sm:$0xff] %v2745
      %2936 = vst [vmem:[%s175 + $0x360] sm:$0xff] %v2750
      %2937 = vst [vmem:[%s175 + $0x368] sm:$0xff] %v2753
      %2938 = vst [vmem:[%s175 + $0x370] sm:$0xff] %v2758
      %2939 = vst [vmem:[%s175 + $0x378] sm:$0xff] %v2761
      %2940 = vst [vmem:[%s175 + $0x380] sm:$0xff] %v2766
      %2941 = vst [vmem:[%s175 + $0x388] sm:$0xff] %v2769
      %2942 = vst [vmem:[%s175 + $0x390] sm:$0xff] %v2774
      %2943 = vst [vmem:[%s175 + $0x398] sm:$0xff] %v2777
      %2944 = vst [vmem:[%s175 + $0x3a0] sm:$0xff] %v2782
      %2945 = vst [vmem:[%s175 + $0x3a8] sm:$0xff] %v2785
      %2946 = vst [vmem:[%s175 + $0x3b0] sm:$0xff] %v2790
      %2947 = vst [vmem:[%s175 + $0x3b8] sm:$0xff] %v2793
      %2948 = vst [vmem:[%s175 + $0x3c0] sm:$0xff] %v2798
      %2949 = vst [vmem:[%s175 + $0x3c8] sm:$0xff] %v2801
      %2950 = vst [vmem:[%s175 + $0x3d0] sm:$0xff] %v2806
      %2951 = vst [vmem:[%s175 + $0x3d8] sm:$0xff] %v2809
      %2952 = vst [vmem:[%s175 + $0x3e0] sm:$0xff] %v2814
      %2953 = vst [vmem:[%s175 + $0x3e8] sm:$0xff] %v2817
      %2954 = vst [vmem:[%s175 + $0x3f0] sm:$0xff] %v2822
      %2955 = vst [vmem:[%s175 + $0x3f8] sm:$0xff] %v2825
      %s2956 = smul.u32 128, %s14
      %p2957 = scmp.lt.s32.totalorder %s2956, 255
      %s2958 = scalar_select %p2957, %s2956, 255
      %s2959 = smul.addr %s2958, 8
      %s2960 = scalar_lea.vmem %s3, %s2959
      // Predicated region
      $region33: #{decoder_forward.11} parent=31 // pred_check
        %p2961 = pneg %p100
      $region34: #{decoder_forward.11} parent=31 // pred_check_branch
        %2963 = sbr.rel (%p2961) target = $region36
      $region35: #{decoder_forward.11} parent=31 // pred_region
        %s2964 = smul.u32 128, %s14
      $region36: #{decoder_forward.11} parent=31 // pred_fallthru
        _
    $region32: #{decoder_forward.11} parent=5 // pred_fallthru
      _
    %p2965 = scmp.le.s32.totalorder 2, %s9
    // Predicated region
    $region37: #{decoder_forward.11} parent=5 // pred_check
      %p2966 = pneg %p2965
    $region38: #{decoder_forward.11} parent=5 // pred_check_branch
      %2968 = sbr.rel (%p2966) target = $region40
    $region39: #{decoder_forward.11} parent=5 // pred_region
      %s2969 = ssub.s32 %s9, 2
      // Predicated region
      $region41: #{decoder_forward.11} parent=39 // pred_check
        %p2970 = pneg %p106
      $region42: #{decoder_forward.11} parent=39 // pred_check_branch
        %2972 = sbr.rel (%p2970) target = $region44
      $region43: #{decoder_forward.11} parent=39 // pred_region
        %s2973 = smul.u32 128, %s15
        %p2974 = scmp.lt.s32.totalorder %s2973, 255
        %s2975 = scalar_select %p2974, %s2973, 255
        %s2976 = smul.addr %s2975, 8
        %s2977 = scalar_lea.vmem %s3, %s2976
      $region44: #{decoder_forward.11} parent=39 // pred_fallthru
        _
    $region40: #{decoder_forward.11} parent=5 // pred_fallthru
      _
  $region6: #{decoder_forward.11} parent=0 // loop_footer
    %s13 = sadd.s32 1, %s9
  $region7: #{decoder_forward.11} parent=0 // loop_footer_branch
    %8 = sbr.rel target = $region3
  $region8: #{decoder_forward.11} parent=0 // loop_exit
    _

</llo_original>
